<compile_context>
chip_gen: v7x
topology: tpu7x:2x2x1
jax: 0.10.0
libtpu: 0.0.40
codegen_flags: <defaults>
</compile_context>

<pallas_src>
import functools

import numpy as np
import jax
import jax.numpy as jnp
from jax.experimental import pallas as pl
from jax.experimental.pallas import tpu as pltpu

BN_EPS = 1e-4


# -----------------------------------------------------------------------------
# Host-precomputed constant operators / masks (tiny, exact in bf16)
# -----------------------------------------------------------------------------
@functools.lru_cache(maxsize=None)
def _tap_ops(H, W):
    """(9, HW, HW): M[t, p_src, p_dst]=1 iff tap t of a 3x3 'same' conv at output
    p_dst reads in-bounds source p_src (zero padding = all-zero columns)."""
    HW = H * W
    ops = np.zeros((9, HW, HW), np.float32)
    for t in range(9):
        oy, ox = t // 3 - 1, t % 3 - 1
        for p in range(HW):
            h, w = divmod(p, W)
            hs, ws = h + oy, w + ox
            if 0 <= hs < H and 0 <= ws < W:
                ops[t, hs * W + ws, p] = 1.0
    return ops


@functools.lru_cache(maxsize=None)
def _conv_masks(H, W):
    """(9, 1, HW) border-validity masks for the roll-based 3x3 'same' conv."""
    HW = H * W
    m = np.zeros((9, 1, HW), np.float32)
    for t in range(9):
        dy, dx = t // 3 - 1, t % 3 - 1
        for p in range(HW):
            h, w = divmod(p, W)
            if 0 <= h + dy < H and 0 <= w + dx < W:
                m[t, 0, p] = 1.0
    return m


@functools.lru_cache(maxsize=None)
def _pool_ops(H, W):
    """(4, HW, HW/4): window-offset selection matrices for 2x2 max-pool."""
    Ho, Wo = H // 2, W // 2
    ops = np.zeros((4, H * W, Ho * Wo), np.float32)
    for k, (dy, dx) in enumerate([(0, 0), (0, 1), (1, 0), (1, 1)]):
        for q in range(Ho * Wo):
            qh, qw = divmod(q, Wo)
            ops[k, (2 * qh + dy) * W + (2 * qw + dx), q] = 1.0
    return ops


@functools.lru_cache(maxsize=None)
def _pool_select(H, W):
    """(HW, HW/4): top-left-corner column selection for the roll-based pool."""
    Ho, Wo = H // 2, W // 2
    S = np.zeros((H * W, Ho * Wo), np.float32)
    for q in range(Ho * Wo):
        qh, qw = divmod(q, Wo)
        S[(2 * qh) * W + (2 * qw), q] = 1.0
    return S


@functools.lru_cache(maxsize=None)
def _up_op(H, W):
    """(HW, 4*HW): nearest-neighbor 2x upsample (F.interpolate default)."""
    Ho, Wo = 2 * H, 2 * W
    U = np.zeros((H * W, Ho * Wo), np.float32)
    for q in range(Ho * Wo):
        qh, qw = divmod(q, Wo)
        U[(qh // 2) * W + (qw // 2), q] = 1.0
    return U


# -----------------------------------------------------------------------------
# The single fused Pallas kernel (built for a given H, W)
# -----------------------------------------------------------------------------
def _build_kernel(H, W):
    HW = H * W
    BF16 = jnp.bfloat16
    F32 = jnp.float32

    def kernel(x_ref,
               w_enc1, s_enc1, w_enc2, s_enc2, w_code, s_code,
               w_dec2a, w_dec2b, s_dec2,
               w_dec1a, w_dec1b, s_dec1,
               w_dec0a, w_dec0b, s_dec0,
               w_dvec, s_dvec,
               masks, m8, m4, sel16, p8, u4, u8,
               o_ref):

        def apply_act(y, act):
            if act == "relu":
                return jnp.maximum(y, 0.0)
            if act == "relu_sigmoid":               # hidden relu + classifier
                return jax.nn.sigmoid(jnp.maximum(y, 0.0))
            return y

        def chan_matmul(branches, w_refs):
            """One deep matmul per input branch: weights are (9*Rout, rows_b),
            BN-scale-folded, stacked over the 9 taps (skip-split replaces concat)."""
            c = None
            for xb, wr in zip(branches, w_refs):
                d = jnp.dot(wr[...], xb.astype(BF16), preferred_element_type=F32)
                c = d if c is None else c + d
            return c                                 # (9*Rout, hw) f32

        def roll_conv(branches, w_refs, s_ref, act):
            """3x3 'same' conv at full HxW: channel matmul first, then per-tap
            XLU lane rolls + border masks (no (HW,HW) operator matmuls)."""
            r = w_refs[0].shape[0] // 9
            c = chan_matmul(branches, w_refs)        # (9*r, HW)
            acc = c[4 * r:5 * r]                     # center tap: no roll/mask
            for t in range(9):
                if t == 4:
                    continue
                dy, dx = t // 3 - 1, t % 3 - 1
                sh = (-(dy * W + dx)) % HW           # out[p] <- c[p + dy*W + dx]
                acc = acc + pltpu.roll(c[t * r:(t + 1) * r], shift=sh, axis=1) * masks[t]
            return apply_act(acc + s_ref[...], act)

        def op_conv(branches, w_refs, s_ref, m_ref, act):
            """3x3 'same' conv at reduced resolutions: channel matmul first,
            then small bf16 per-tap spatial-operator matmuls."""
            r = w_refs[0].shape[0] // 9
            cb = chan_matmul(branches, w_refs).astype(BF16)
            acc = jnp.dot(cb[0:r], m_ref[0], preferred_element_type=F32)
            for t in range(1, 9):
                acc = acc + jnp.dot(cb[t * r:(t + 1) * r], m_ref[t],
                                    preferred_element_type=F32)
            return apply_act(acc + s_ref[...], act)

        def pool_roll(x):
            """2x2 max-pool at full HxW: 2 rolls + 2 maxes + one 0/1 selection
            matmul (selected positions never touch wrapped lanes)."""
            a = jnp.maximum(x, pltpu.roll(x, shift=HW - 1, axis=1))   # x[p+1]
            b = jnp.maximum(a, pltpu.roll(a, shift=HW - W, axis=1))   # x[p+W]
            return jnp.dot(b.astype(BF16), sel16[...], preferred_element_type=F32)

        def pool_mm(x):
            xb = x.astype(BF16)
            m = jnp.dot(xb, p8[0], preferred_element_type=F32)
            for k in range(1, 4):
                m = jnp.maximum(m, jnp.dot(xb, p8[k], preferred_element_type=F32))
            return m

        def upsample(x, u_ref):
            return jnp.dot(x.astype(BF16), u_ref[...], preferred_element_type=F32)

        z0 = x_ref[...]                                                   # (Cin*N, 256)

        # encoder
        z1 = pool_roll(roll_conv([z0], [w_enc1], s_enc1, "relu"))         # (sf*N, 64)
        z2 = pool_mm(op_conv([z1], [w_enc2], s_enc2, m8, "relu"))         # (sf*N, 16)

        # bottleneck
        z100 = op_conv([z2], [w_code], s_code, m4, "relu")                # (2sf*N, 16)

        # decoder (skip "concat" == split weight blocks)
        z102 = op_conv([z100, z2], [w_dec2a, w_dec2b], s_dec2, m4, "relu")            # (sf*N, 16)
        z101 = op_conv([upsample(z102, u4), z1], [w_dec1a, w_dec1b], s_dec1, m8,
                       "relu")                                                        # (sf*N, 64)
        z200 = roll_conv([upsample(z101, u8), z0], [w_dec0a, w_dec0b], s_dec0,
                         "relu")                                                      # (8, 256) rows>=6 are 0

        # decode_vector + classifier sigmoid fused in the same kernel
        out = roll_conv([z200], [w_dvec], s_dvec, "relu_sigmoid")                     # (8, 256)
        o_ref[...] = out[:o_ref.shape[0]].astype(o_ref.dtype)

    return kernel


# -----------------------------------------------------------------------------
# Parameters (deterministic, synthetic) + host-side folding into kernel form
# -----------------------------------------------------------------------------
def _conv_init(key, cin, cout):
    return (jax.random.normal(key, (3, 3, cin, cout), jnp.float32)
            * np.sqrt(2.0 / (9.0 * cin))).astype(jnp.float32)


def init_params(key, in_ch, n_classes, sf):
    # channel plan for stages=2, sf_grp=2 (sf_1 = sf_2 = sf, code = 2*sf)
    layer_io = {
        "enc1": (in_ch, sf),                 # EncodeBlock 1
        "enc2": (sf, sf),                    # EncodeBlock 2
        "code": (sf, 2 * sf),                # CreateConvBnLayer (z_code)
        "dec2": (2 * sf + sf, sf),           # DecodeBlock i=2 (scale_factor=1)
        "dec1": (sf + sf, sf),               # DecodeBlock i=1 (scale_factor=2)
        "dec0": (sf + in_ch, n_classes),     # z_dec0
        "dvec": (n_classes, n_classes),      # decode_vector (LearnVectorBlock)
    }
    params = {}
    keys = jax.random.split(key, len(layer_io))
    for k, (name, (cin, cout)) in zip(keys, layer_io.items()):
        kw, kg, kb = jax.random.split(k, 3)
        params[name] = dict(
            w=_conv_init(kw, cin, cout),
            gamma=(1.0 + 0.1 * jax.random.normal(kg, (cout,))).astype(jnp.float32),
            beta=(0.1 * jax.random.normal(kb, (cout,))).astype(jnp.float32),
            mean=jnp.zeros((cout,), jnp.float32),
            var=jnp.ones((cout,), jnp.float32),
        )
    return params


def _pad8(r):
    return ((r + 7) // 8) * 8


def prepare_params(raw, batch, sf):
    """Fold eval-mode BN scale into the conv weights, kron with I_N (batch in the
    rows), stack the 9 taps vertically (8-aligned blocks), split skip branches,
    and cast weights to bf16."""
    eye = np.eye(batch, dtype=np.float32)

    def fold(p):
        w = np.asarray(p["w"], np.float32)                 # (3, 3, Cin, Cout)
        gamma, beta = np.asarray(p["gamma"]), np.asarray(p["beta"])
        mean, var = np.asarray(p["mean"]), np.asarray(p["var"])
        scale = gamma / np.sqrt(var + BN_EPS)
        shift = beta - mean * scale
        cin, cout = w.shape[2], w.shape[3]
        wt = np.transpose(w.reshape(9, cin, cout), (0, 2, 1)) * scale[None, :, None]
        wbig = np.stack([np.kron(wt[t], eye) for t in range(9)], 0)   # (9, N*Cout, N*Cin)
        sbig = np.repeat(shift, batch)[:, None].astype(np.float32)    # (N*Cout, 1)
        return wbig, sbig

    def vstack(wbig, r_pad=None, c_pad=None):
        _, r, c = wbig.shape
        rp = r if r_pad is None else r_pad
        cp = c if c_pad is None else c_pad
        out = np.zeros((9 * rp, cp), np.float32)
        for t in range(9):
            out[t * rp:t * rp + r, :c] = wbig[t]
        return jnp.asarray(out, jnp.bfloat16)

    def svec(s, r_pad=None):
        r = s.shape[0]
        rp = r if r_pad is None else r_pad
        out = np.zeros((rp, 1), np.float32)
        out[:r, :] = s
        return jnp.asarray(out, jnp.float32)

    P = {}
    wb, sb = fold(raw["enc1"]); P["w_enc1"], P["s_enc1"] = vstack(wb), svec(sb)
    wb, sb = fold(raw["enc2"]); P["w_enc2"], P["s_enc2"] = vstack(wb), svec(sb)
    wb, sb = fold(raw["code"]); P["w_code"], P["s_code"] = vstack(wb), svec(sb)

    wb, sb = fold(raw["dec2"])                 # input = [z100 (2sf ch), z2 (sf ch)]
    split = batch * 2 * sf
    P["w_dec2a"], P["w_dec2b"] = vstack(wb[:, :, :split]), vstack(wb[:, :, split:])
    P["s_dec2"] = svec(sb)

    wb, sb = fold(raw["dec1"])                 # input = [up(z102) (sf ch), z1 (sf ch)]
    split = batch * sf
    P["w_dec1a"], P["w_dec1b"] = vstack(wb[:, :, :split]), vstack(wb[:, :, split:])
    P["s_dec1"] = svec(sb)

    wb, sb = fold(raw["dec0"])                 # input = [up(z101) (sf ch), z0 (in_ch)]
    split = batch * sf
    rp0 = _pad8(wb.shape[1])
    P["w_dec0a"] = vstack(wb[:, :, :split], r_pad=rp0)
    P["w_dec0b"] = vstack(wb[:, :, split:], r_pad=rp0)
    P["s_dec0"] = svec(sb, r_pad=rp0)

    wb, sb = fold(raw["dvec"])                 # input = z200 (padded to rp0 rows)
    rpv = _pad8(wb.shape[1])
    P["w_dvec"] = vstack(wb, r_pad=rpv, c_pad=rp0)
    P["s_dvec"] = svec(sb, r_pad=rpv)
    return P


# -----------------------------------------------------------------------------
# HyperModel.forward (real net_type, n_divs=1, stages=2), single pallas_call
# -----------------------------------------------------------------------------
def _full_spec(a):
    nd = a.ndim
    return pl.BlockSpec(a.shape, lambda i, _nd=nd: (0,) * _nd)


def hyper_model_forward(params, x_nchw, *, n_classes):
    N, C, H, W = x_nchw.shape
    HW = H * W

    # boundary layout plumbing: NCHW -> (C*N, HW), rows ordered c*N + n
    x2 = jnp.transpose(x_nchw, (1, 0, 2, 3)).reshape(C * N, HW)

    consts = [
        jnp.asarray(_conv_masks(H, W), jnp.float32),              # masks (9,1,HW)
        jnp.asarray(_tap_ops(H // 2, W // 2), jnp.bfloat16),      # m8
        jnp.asarray(_tap_ops(H // 4, W // 4), jnp.bfloat16),      # m4
        jnp.asarray(_pool_select(H, W), jnp.bfloat16),            # sel16
        jnp.asarray(_pool_ops(H // 2, W // 2), jnp.bfloat16),     # p8
        jnp.asarray(_up_op(H // 4, W // 4), jnp.bfloat16),        # u4
        jnp.asarray(_up_op(H // 2, W // 2), jnp.bfloat16),        # u8
    ]
    weight_args = [
        params["w_enc1"], params["s_enc1"],
        params["w_enc2"], params["s_enc2"],
        params["w_code"], params["s_code"],
        params["w_dec2a"], params["w_dec2b"], params["s_dec2"],
        params["w_dec1a"], params["w_dec1b"], params["s_dec1"],
        params["w_dec0a"], params["w_dec0b"], params["s_dec0"],
        params["w_dvec"], params["s_dvec"],
    ]
    inputs = [x2] + weight_args + consts

    out_rows = N * n_classes
    out2 = pl.pallas_call(
        _build_kernel(H, W),
        out_shape=jax.ShapeDtypeStruct((out_rows, HW), jnp.float32),
        grid=(1,),
        in_specs=[_full_spec(a) for a in inputs],
        out_specs=pl.BlockSpec((out_rows, HW), lambda i: (0, 0)),
        compiler_params=pltpu.CompilerParams(
            dimension_semantics=("arbitrary",)),
    )(*inputs)

    return jnp.transpose(out2.reshape(n_classes, N, H, W), (1, 0, 2, 3))  # NCHW


if __name__ == "__main__":
    key = jax.random.PRNGKey(0)
    kx, kp = jax.random.split(key)

    N, C, H, W = 2, 4, 16, 16
    n_classes, sf = 3, 8

    x = jax.random.normal(kx, (N, C, H, W), dtype=jnp.float32)   # NCHW like PyTorch
    raw_params = init_params(kp, C, n_classes, sf)
    params = prepare_params(raw_params, N, sf)

    fwd = jax.jit(functools.partial(hyper_model_forward, n_classes=n_classes))
    y = fwd(params, x)
    jax.block_until_ready(y)

    assert y.shape == (N, n_classes, H, W), y.shape
    assert bool(jnp.all(jnp.isfinite(y)))
    assert bool(jnp.all((y >= 0.0) & (y <= 1.0)))                # sigmoid classifier output
    print("KERNEL_OK")
</pallas_src>

<mosaic_0001>
module attributes {stable_mosaic.version = 11 : i64} {
  func.func @kernel(%arg0: i32, %arg1: memref<8x256xf32, #tpu.memory_space<vmem>>, %arg2: memref<144x8xbf16, #tpu.memory_space<vmem>>, %arg3: memref<16x1xf32, #tpu.memory_space<vmem>>, %arg4: memref<144x16xbf16, #tpu.memory_space<vmem>>, %arg5: memref<16x1xf32, #tpu.memory_space<vmem>>, %arg6: memref<288x16xbf16, #tpu.memory_space<vmem>>, %arg7: memref<32x1xf32, #tpu.memory_space<vmem>>, %arg8: memref<144x32xbf16, #tpu.memory_space<vmem>>, %arg9: memref<144x16xbf16, #tpu.memory_space<vmem>>, %arg10: memref<16x1xf32, #tpu.memory_space<vmem>>, %arg11: memref<144x16xbf16, #tpu.memory_space<vmem>>, %arg12: memref<144x16xbf16, #tpu.memory_space<vmem>>, %arg13: memref<16x1xf32, #tpu.memory_space<vmem>>, %arg14: memref<72x16xbf16, #tpu.memory_space<vmem>>, %arg15: memref<72x8xbf16, #tpu.memory_space<vmem>>, %arg16: memref<8x1xf32, #tpu.memory_space<vmem>>, %arg17: memref<72x8xbf16, #tpu.memory_space<vmem>>, %arg18: memref<8x1xf32, #tpu.memory_space<vmem>>, %arg19: memref<9x1x256xf32, #tpu.memory_space<vmem>>, %arg20: memref<9x64x64xbf16, #tpu.memory_space<vmem>>, %arg21: memref<9x16x16xbf16, #tpu.memory_space<vmem>>, %arg22: memref<256x64xbf16, #tpu.memory_space<vmem>>, %arg23: memref<4x64x16xbf16, #tpu.memory_space<vmem>>, %arg24: memref<16x64xbf16, #tpu.memory_space<vmem>>, %arg25: memref<64x256xbf16, #tpu.memory_space<vmem>>, %arg26: memref<6x256xf32, #tpu.memory_space<vmem>>) attributes {dimension_semantics = [#tpu.dimension_semantics<arbitrary>], iteration_bounds = array<i64: 1>, scalar_prefetch = 0 : i64, scratch_operands = 0 : i64, tpu.core_type = #tpu.core_type<tc>, window_params = [{pipeline_mode = #tpu.pipeline_mode<synchronous>, transform_indices = @transform_0, window_bounds = array<i64: 8, 256>}, {pipeline_mode = #tpu.pipeline_mode<synchronous>, transform_indices = @transform_1, window_bounds = array<i64: 144, 8>}, {pipeline_mode = #tpu.pipeline_mode<synchronous>, transform_indices = @transform_2, window_bounds = array<i64: 16, 1>}, {pipeline_mode = #tpu.pipeline_mode<synchronous>, transform_indices = @transform_3, window_bounds = array<i64: 144, 16>}, {pipeline_mode = #tpu.pipeline_mode<synchronous>, transform_indices = @transform_4, window_bounds = array<i64: 16, 1>}, {pipeline_mode = #tpu.pipeline_mode<synchronous>, transform_indices = @transform_5, window_bounds = array<i64: 288, 16>}, {pipeline_mode = #tpu.pipeline_mode<synchronous>, transform_indices = @transform_6, window_bounds = array<i64: 32, 1>}, {pipeline_mode = #tpu.pipeline_mode<synchronous>, transform_indices = @transform_7, window_bounds = array<i64: 144, 32>}, {pipeline_mode = #tpu.pipeline_mode<synchronous>, transform_indices = @transform_8, window_bounds = array<i64: 144, 16>}, {pipeline_mode = #tpu.pipeline_mode<synchronous>, transform_indices = @transform_9, window_bounds = array<i64: 16, 1>}, {pipeline_mode = #tpu.pipeline_mode<synchronous>, transform_indices = @transform_10, window_bounds = array<i64: 144, 16>}, {pipeline_mode = #tpu.pipeline_mode<synchronous>, transform_indices = @transform_11, window_bounds = array<i64: 144, 16>}, {pipeline_mode = #tpu.pipeline_mode<synchronous>, transform_indices = @transform_12, window_bounds = array<i64: 16, 1>}, {pipeline_mode = #tpu.pipeline_mode<synchronous>, transform_indices = @transform_13, window_bounds = array<i64: 72, 16>}, {pipeline_mode = #tpu.pipeline_mode<synchronous>, transform_indices = @transform_14, window_bounds = array<i64: 72, 8>}, {pipeline_mode = #tpu.pipeline_mode<synchronous>, transform_indices = @transform_15, window_bounds = array<i64: 8, 1>}, {pipeline_mode = #tpu.pipeline_mode<synchronous>, transform_indices = @transform_16, window_bounds = array<i64: 72, 8>}, {pipeline_mode = #tpu.pipeline_mode<synchronous>, transform_indices = @transform_17, window_bounds = array<i64: 8, 1>}, {pipeline_mode = #tpu.pipeline_mode<synchronous>, transform_indices = @transform_18, window_bounds = array<i64: 9, 1, 256>}, {pipeline_mode = #tpu.pipeline_mode<synchronous>, transform_indices = @transform_19, window_bounds = array<i64: 9, 64, 64>}, {pipeline_mode = #tpu.pipeline_mode<synchronous>, transform_indices = @transform_20, window_bounds = array<i64: 9, 16, 16>}, {pipeline_mode = #tpu.pipeline_mode<synchronous>, transform_indices = @transform_21, window_bounds = array<i64: 256, 64>}, {pipeline_mode = #tpu.pipeline_mode<synchronous>, transform_indices = @transform_22, window_bounds = array<i64: 4, 64, 16>}, {pipeline_mode = #tpu.pipeline_mode<synchronous>, transform_indices = @transform_23, window_bounds = array<i64: 16, 64>}, {pipeline_mode = #tpu.pipeline_mode<synchronous>, transform_indices = @transform_24, window_bounds = array<i64: 64, 256>}, {pipeline_mode = #tpu.pipeline_mode<synchronous>, transform_indices = @transform_25, window_bounds = array<i64: 6, 256>}]} {
    %c0 = arith.constant 0 : index
    %c0_0 = arith.constant 0 : index
    %0 = vector.load %arg1[%c0, %c0_0] : memref<8x256xf32, #tpu.memory_space<vmem>>, vector<8x256xf32>
    %c0_1 = arith.constant 0 : index
    %c0_2 = arith.constant 0 : index
    %1 = vector.load %arg2[%c0_1, %c0_2] : memref<144x8xbf16, #tpu.memory_space<vmem>>, vector<144x8xbf16>
    %2 = arith.truncf %0 : vector<8x256xf32> to vector<8x256xbf16>
    %cst = arith.constant dense<0.000000e+00> : vector<144x256xf32>
    %3 = tpu.matmul %1, %2, %cst {dimension_numbers = #tpu.dot_dimension_numbers<[1], [0], [0], [1], [0, 0, 1, 1], [], []>} : vector<144x8xbf16>, vector<8x256xbf16>, vector<144x256xf32> -> vector<144x256xf32>
    %4 = vector.extract_strided_slice %3 {offsets = [64, 0], sizes = [16, 256], strides = [1, 1]} : vector<144x256xf32> to vector<16x256xf32>
    %5 = vector.extract_strided_slice %3 {offsets = [0, 0], sizes = [16, 256], strides = [1, 1]} : vector<144x256xf32> to vector<16x256xf32>
    %c17_i32 = arith.constant 17 : i32
    %6 = tpu.dynamic_rotate %5 by %c17_i32 dim 1 : vector<16x256xf32>, i32 -> vector<16x256xf32>
    %c0_3 = arith.constant 0 : index
    %c0_4 = arith.constant 0 : index
    %c0_5 = arith.constant 0 : index
    %7 = vector.load %arg19[%c0_3, %c0_4, %c0_5] : memref<9x1x256xf32, #tpu.memory_space<vmem>>, vector<1x1x256xf32>
    %8 = vector.shape_cast %7 : vector<1x1x256xf32> to vector<1x256xf32>
    %9 = vector.broadcast %8 : vector<1x256xf32> to vector<16x256xf32>
    %10 = arith.mulf %6, %9 : vector<16x256xf32>
    %11 = arith.addf %4, %10 : vector<16x256xf32>
    %12 = vector.extract_strided_slice %3 {offsets = [16, 0], sizes = [16, 256], strides = [1, 1]} : vector<144x256xf32> to vector<16x256xf32>
    %c16_i32 = arith.constant 16 : i32
    %13 = tpu.dynamic_rotate %12 by %c16_i32 dim 1 : vector<16x256xf32>, i32 -> vector<16x256xf32>
    %c1 = arith.constant 1 : index
    %c0_6 = arith.constant 0 : index
    %c0_7 = arith.constant 0 : index
    %14 = vector.load %arg19[%c1, %c0_6, %c0_7] : memref<9x1x256xf32, #tpu.memory_space<vmem>>, vector<1x1x256xf32>
    %15 = vector.shape_cast %14 : vector<1x1x256xf32> to vector<1x256xf32>
    %16 = vector.broadcast %15 : vector<1x256xf32> to vector<16x256xf32>
    %17 = arith.mulf %13, %16 : vector<16x256xf32>
    %18 = arith.addf %11, %17 : vector<16x256xf32>
    %19 = vector.extract_strided_slice %3 {offsets = [32, 0], sizes = [16, 256], strides = [1, 1]} : vector<144x256xf32> to vector<16x256xf32>
    %c15_i32 = arith.constant 15 : i32
    %20 = tpu.dynamic_rotate %19 by %c15_i32 dim 1 : vector<16x256xf32>, i32 -> vector<16x256xf32>
    %c2 = arith.constant 2 : index
    %c0_8 = arith.constant 0 : index
    %c0_9 = arith.constant 0 : index
    %21 = vector.load %arg19[%c2, %c0_8, %c0_9] : memref<9x1x256xf32, #tpu.memory_space<vmem>>, vector<1x1x256xf32>
    %22 = vector.shape_cast %21 : vector<1x1x256xf32> to vector<1x256xf32>
    %23 = vector.broadcast %22 : vector<1x256xf32> to vector<16x256xf32>
    %24 = arith.mulf %20, %23 : vector<16x256xf32>
    %25 = arith.addf %18, %24 : vector<16x256xf32>
    %26 = vector.extract_strided_slice %3 {offsets = [48, 0], sizes = [16, 256], strides = [1, 1]} : vector<144x256xf32> to vector<16x256xf32>
    %c1_i32 = arith.constant 1 : i32
    %27 = tpu.dynamic_rotate %26 by %c1_i32 dim 1 : vector<16x256xf32>, i32 -> vector<16x256xf32>
    %c3 = arith.constant 3 : index
    %c0_10 = arith.constant 0 : index
    %c0_11 = arith.constant 0 : index
    %28 = vector.load %arg19[%c3, %c0_10, %c0_11] : memref<9x1x256xf32, #tpu.memory_space<vmem>>, vector<1x1x256xf32>
    %29 = vector.shape_cast %28 : vector<1x1x256xf32> to vector<1x256xf32>
    %30 = vector.broadcast %29 : vector<1x256xf32> to vector<16x256xf32>
    %31 = arith.mulf %27, %30 : vector<16x256xf32>
    %32 = arith.addf %25, %31 : vector<16x256xf32>
    %33 = vector.extract_strided_slice %3 {offsets = [80, 0], sizes = [16, 256], strides = [1, 1]} : vector<144x256xf32> to vector<16x256xf32>
    %c255_i32 = arith.constant 255 : i32
    %34 = tpu.dynamic_rotate %33 by %c255_i32 dim 1 : vector<16x256xf32>, i32 -> vector<16x256xf32>
    %c5 = arith.constant 5 : index
    %c0_12 = arith.constant 0 : index
    %c0_13 = arith.constant 0 : index
    %35 = vector.load %arg19[%c5, %c0_12, %c0_13] : memref<9x1x256xf32, #tpu.memory_space<vmem>>, vector<1x1x256xf32>
    %36 = vector.shape_cast %35 : vector<1x1x256xf32> to vector<1x256xf32>
    %37 = vector.broadcast %36 : vector<1x256xf32> to vector<16x256xf32>
    %38 = arith.mulf %34, %37 : vector<16x256xf32>
    %39 = arith.addf %32, %38 : vector<16x256xf32>
    %40 = vector.extract_strided_slice %3 {offsets = [96, 0], sizes = [16, 256], strides = [1, 1]} : vector<144x256xf32> to vector<16x256xf32>
    %c241_i32 = arith.constant 241 : i32
    %41 = tpu.dynamic_rotate %40 by %c241_i32 dim 1 : vector<16x256xf32>, i32 -> vector<16x256xf32>
    %c6 = arith.constant 6 : index
    %c0_14 = arith.constant 0 : index
    %c0_15 = arith.constant 0 : index
    %42 = vector.load %arg19[%c6, %c0_14, %c0_15] : memref<9x1x256xf32, #tpu.memory_space<vmem>>, vector<1x1x256xf32>
    %43 = vector.shape_cast %42 : vector<1x1x256xf32> to vector<1x256xf32>
    %44 = vector.broadcast %43 : vector<1x256xf32> to vector<16x256xf32>
    %45 = arith.mulf %41, %44 : vector<16x256xf32>
    %46 = arith.addf %39, %45 : vector<16x256xf32>
    %47 = vector.extract_strided_slice %3 {offsets = [112, 0], sizes = [16, 256], strides = [1, 1]} : vector<144x256xf32> to vector<16x256xf32>
    %c240_i32 = arith.constant 240 : i32
    %48 = tpu.dynamic_rotate %47 by %c240_i32 dim 1 : vector<16x256xf32>, i32 -> vector<16x256xf32>
    %c7 = arith.constant 7 : index
    %c0_16 = arith.constant 0 : index
    %c0_17 = arith.constant 0 : index
    %49 = vector.load %arg19[%c7, %c0_16, %c0_17] : memref<9x1x256xf32, #tpu.memory_space<vmem>>, vector<1x1x256xf32>
    %50 = vector.shape_cast %49 : vector<1x1x256xf32> to vector<1x256xf32>
    %51 = vector.broadcast %50 : vector<1x256xf32> to vector<16x256xf32>
    %52 = arith.mulf %48, %51 : vector<16x256xf32>
    %53 = arith.addf %46, %52 : vector<16x256xf32>
    %54 = vector.extract_strided_slice %3 {offsets = [128, 0], sizes = [16, 256], strides = [1, 1]} : vector<144x256xf32> to vector<16x256xf32>
    %c239_i32 = arith.constant 239 : i32
    %55 = tpu.dynamic_rotate %54 by %c239_i32 dim 1 : vector<16x256xf32>, i32 -> vector<16x256xf32>
    %c8 = arith.constant 8 : index
    %c0_18 = arith.constant 0 : index
    %c0_19 = arith.constant 0 : index
    %56 = vector.load %arg19[%c8, %c0_18, %c0_19] : memref<9x1x256xf32, #tpu.memory_space<vmem>>, vector<1x1x256xf32>
    %57 = vector.shape_cast %56 : vector<1x1x256xf32> to vector<1x256xf32>
    %58 = vector.broadcast %57 : vector<1x256xf32> to vector<16x256xf32>
    %59 = arith.mulf %55, %58 : vector<16x256xf32>
    %60 = arith.addf %53, %59 : vector<16x256xf32>
    %c0_20 = arith.constant 0 : index
    %c0_21 = arith.constant 0 : index
    %61 = vector.load %arg3[%c0_20, %c0_21] : memref<16x1xf32, #tpu.memory_space<vmem>>, vector<16x1xf32>
    %62 = vector.broadcast %61 : vector<16x1xf32> to vector<16x256xf32>
    %63 = arith.addf %60, %62 : vector<16x256xf32>
    %cst_22 = arith.constant 0.000000e+00 : f32
    %64 = vector.broadcast %cst_22 : f32 to vector<16x256xf32>
    %65 = arith.maximumf %63, %64 : vector<16x256xf32>
    %c255_i32_23 = arith.constant 255 : i32
    %66 = tpu.dynamic_rotate %65 by %c255_i32_23 dim 1 : vector<16x256xf32>, i32 -> vector<16x256xf32>
    %67 = arith.maximumf %65, %66 : vector<16x256xf32>
    %c240_i32_24 = arith.constant 240 : i32
    %68 = tpu.dynamic_rotate %67 by %c240_i32_24 dim 1 : vector<16x256xf32>, i32 -> vector<16x256xf32>
    %69 = arith.maximumf %67, %68 : vector<16x256xf32>
    %70 = arith.truncf %69 : vector<16x256xf32> to vector<16x256xbf16>
    %c0_25 = arith.constant 0 : index
    %c0_26 = arith.constant 0 : index
    %71 = vector.load %arg22[%c0_25, %c0_26] : memref<256x64xbf16, #tpu.memory_space<vmem>>, vector<256x64xbf16>
    %cst_27 = arith.constant dense<0.000000e+00> : vector<16x64xf32>
    %72 = tpu.matmul %70, %71, %cst_27 {dimension_numbers = #tpu.dot_dimension_numbers<[1], [0], [0], [1], [0, 0, 1, 1], [], []>} : vector<16x256xbf16>, vector<256x64xbf16>, vector<16x64xf32> -> vector<16x64xf32>
    %c0_28 = arith.constant 0 : index
    %c0_29 = arith.constant 0 : index
    %73 = vector.load %arg4[%c0_28, %c0_29] : memref<144x16xbf16, #tpu.memory_space<vmem>>, vector<144x16xbf16>
    %74 = arith.truncf %72 : vector<16x64xf32> to vector<16x64xbf16>
    %cst_30 = arith.constant dense<0.000000e+00> : vector<144x64xf32>
    %75 = tpu.matmul %73, %74, %cst_30 {dimension_numbers = #tpu.dot_dimension_numbers<[1], [0], [0], [1], [0, 0, 1, 1], [], []>} : vector<144x16xbf16>, vector<16x64xbf16>, vector<144x64xf32> -> vector<144x64xf32>
    %76 = arith.truncf %75 : vector<144x64xf32> to vector<144x64xbf16>
    %77 = vector.extract_strided_slice %76 {offsets = [0, 0], sizes = [16, 64], strides = [1, 1]} : vector<144x64xbf16> to vector<16x64xbf16>
    %c0_31 = arith.constant 0 : index
    %c0_32 = arith.constant 0 : index
    %c0_33 = arith.constant 0 : index
    %78 = vector.load %arg20[%c0_31, %c0_32, %c0_33] : memref<9x64x64xbf16, #tpu.memory_space<vmem>>, vector<1x64x64xbf16>
    %79 = vector.shape_cast %78 : vector<1x64x64xbf16> to vector<64x64xbf16>
    %cst_34 = arith.constant dense<0.000000e+00> : vector<16x64xf32>
    %80 = tpu.matmul %77, %79, %cst_34 {dimension_numbers = #tpu.dot_dimension_numbers<[1], [0], [0], [1], [0, 0, 1, 1], [], []>} : vector<16x64xbf16>, vector<64x64xbf16>, vector<16x64xf32> -> vector<16x64xf32>
    %81 = vector.extract_strided_slice %76 {offsets = [16, 0], sizes = [16, 64], strides = [1, 1]} : vector<144x64xbf16> to vector<16x64xbf16>
    %c1_35 = arith.constant 1 : index
    %c0_36 = arith.constant 0 : index
    %c0_37 = arith.constant 0 : index
    %82 = vector.load %arg20[%c1_35, %c0_36, %c0_37] : memref<9x64x64xbf16, #tpu.memory_space<vmem>>, vector<1x64x64xbf16>
    %83 = vector.shape_cast %82 : vector<1x64x64xbf16> to vector<64x64xbf16>
    %cst_38 = arith.constant dense<0.000000e+00> : vector<16x64xf32>
    %84 = tpu.matmul %81, %83, %cst_38 {dimension_numbers = #tpu.dot_dimension_numbers<[1], [0], [0], [1], [0, 0, 1, 1], [], []>} : vector<16x64xbf16>, vector<64x64xbf16>, vector<16x64xf32> -> vector<16x64xf32>
    %85 = arith.addf %80, %84 : vector<16x64xf32>
    %86 = vector.extract_strided_slice %76 {offsets = [32, 0], sizes = [16, 64], strides = [1, 1]} : vector<144x64xbf16> to vector<16x64xbf16>
    %c2_39 = arith.constant 2 : index
    %c0_40 = arith.constant 0 : index
    %c0_41 = arith.constant 0 : index
    %87 = vector.load %arg20[%c2_39, %c0_40, %c0_41] : memref<9x64x64xbf16, #tpu.memory_space<vmem>>, vector<1x64x64xbf16>
    %88 = vector.shape_cast %87 : vector<1x64x64xbf16> to vector<64x64xbf16>
    %cst_42 = arith.constant dense<0.000000e+00> : vector<16x64xf32>
    %89 = tpu.matmul %86, %88, %cst_42 {dimension_numbers = #tpu.dot_dimension_numbers<[1], [0], [0], [1], [0, 0, 1, 1], [], []>} : vector<16x64xbf16>, vector<64x64xbf16>, vector<16x64xf32> -> vector<16x64xf32>
    %90 = arith.addf %85, %89 : vector<16x64xf32>
    %91 = vector.extract_strided_slice %76 {offsets = [48, 0], sizes = [16, 64], strides = [1, 1]} : vector<144x64xbf16> to vector<16x64xbf16>
    %c3_43 = arith.constant 3 : index
    %c0_44 = arith.constant 0 : index
    %c0_45 = arith.constant 0 : index
    %92 = vector.load %arg20[%c3_43, %c0_44, %c0_45] : memref<9x64x64xbf16, #tpu.memory_space<vmem>>, vector<1x64x64xbf16>
    %93 = vector.shape_cast %92 : vector<1x64x64xbf16> to vector<64x64xbf16>
    %cst_46 = arith.constant dense<0.000000e+00> : vector<16x64xf32>
    %94 = tpu.matmul %91, %93, %cst_46 {dimension_numbers = #tpu.dot_dimension_numbers<[1], [0], [0], [1], [0, 0, 1, 1], [], []>} : vector<16x64xbf16>, vector<64x64xbf16>, vector<16x64xf32> -> vector<16x64xf32>
    %95 = arith.addf %90, %94 : vector<16x64xf32>
    %96 = vector.extract_strided_slice %76 {offsets = [64, 0], sizes = [16, 64], strides = [1, 1]} : vector<144x64xbf16> to vector<16x64xbf16>
    %c4 = arith.constant 4 : index
    %c0_47 = arith.constant 0 : index
    %c0_48 = arith.constant 0 : index
    %97 = vector.load %arg20[%c4, %c0_47, %c0_48] : memref<9x64x64xbf16, #tpu.memory_space<vmem>>, vector<1x64x64xbf16>
    %98 = vector.shape_cast %97 : vector<1x64x64xbf16> to vector<64x64xbf16>
    %cst_49 = arith.constant dense<0.000000e+00> : vector<16x64xf32>
    %99 = tpu.matmul %96, %98, %cst_49 {dimension_numbers = #tpu.dot_dimension_numbers<[1], [0], [0], [1], [0, 0, 1, 1], [], []>} : vector<16x64xbf16>, vector<64x64xbf16>, vector<16x64xf32> -> vector<16x64xf32>
    %100 = arith.addf %95, %99 : vector<16x64xf32>
    %101 = vector.extract_strided_slice %76 {offsets = [80, 0], sizes = [16, 64], strides = [1, 1]} : vector<144x64xbf16> to vector<16x64xbf16>
    %c5_50 = arith.constant 5 : index
    %c0_51 = arith.constant 0 : index
    %c0_52 = arith.constant 0 : index
    %102 = vector.load %arg20[%c5_50, %c0_51, %c0_52] : memref<9x64x64xbf16, #tpu.memory_space<vmem>>, vector<1x64x64xbf16>
    %103 = vector.shape_cast %102 : vector<1x64x64xbf16> to vector<64x64xbf16>
    %cst_53 = arith.constant dense<0.000000e+00> : vector<16x64xf32>
    %104 = tpu.matmul %101, %103, %cst_53 {dimension_numbers = #tpu.dot_dimension_numbers<[1], [0], [0], [1], [0, 0, 1, 1], [], []>} : vector<16x64xbf16>, vector<64x64xbf16>, vector<16x64xf32> -> vector<16x64xf32>
    %105 = arith.addf %100, %104 : vector<16x64xf32>
    %106 = vector.extract_strided_slice %76 {offsets = [96, 0], sizes = [16, 64], strides = [1, 1]} : vector<144x64xbf16> to vector<16x64xbf16>
    %c6_54 = arith.constant 6 : index
    %c0_55 = arith.constant 0 : index
    %c0_56 = arith.constant 0 : index
    %107 = vector.load %arg20[%c6_54, %c0_55, %c0_56] : memref<9x64x64xbf16, #tpu.memory_space<vmem>>, vector<1x64x64xbf16>
    %108 = vector.shape_cast %107 : vector<1x64x64xbf16> to vector<64x64xbf16>
    %cst_57 = arith.constant dense<0.000000e+00> : vector<16x64xf32>
    %109 = tpu.matmul %106, %108, %cst_57 {dimension_numbers = #tpu.dot_dimension_numbers<[1], [0], [0], [1], [0, 0, 1, 1], [], []>} : vector<16x64xbf16>, vector<64x64xbf16>, vector<16x64xf32> -> vector<16x64xf32>
    %110 = arith.addf %105, %109 : vector<16x64xf32>
    %111 = vector.extract_strided_slice %76 {offsets = [112, 0], sizes = [16, 64], strides = [1, 1]} : vector<144x64xbf16> to vector<16x64xbf16>
    %c7_58 = arith.constant 7 : index
    %c0_59 = arith.constant 0 : index
    %c0_60 = arith.constant 0 : index
    %112 = vector.load %arg20[%c7_58, %c0_59, %c0_60] : memref<9x64x64xbf16, #tpu.memory_space<vmem>>, vector<1x64x64xbf16>
    %113 = vector.shape_cast %112 : vector<1x64x64xbf16> to vector<64x64xbf16>
    %cst_61 = arith.constant dense<0.000000e+00> : vector<16x64xf32>
    %114 = tpu.matmul %111, %113, %cst_61 {dimension_numbers = #tpu.dot_dimension_numbers<[1], [0], [0], [1], [0, 0, 1, 1], [], []>} : vector<16x64xbf16>, vector<64x64xbf16>, vector<16x64xf32> -> vector<16x64xf32>
    %115 = arith.addf %110, %114 : vector<16x64xf32>
    %116 = vector.extract_strided_slice %76 {offsets = [128, 0], sizes = [16, 64], strides = [1, 1]} : vector<144x64xbf16> to vector<16x64xbf16>
    %c8_62 = arith.constant 8 : index
    %c0_63 = arith.constant 0 : index
    %c0_64 = arith.constant 0 : index
    %117 = vector.load %arg20[%c8_62, %c0_63, %c0_64] : memref<9x64x64xbf16, #tpu.memory_space<vmem>>, vector<1x64x64xbf16>
    %118 = vector.shape_cast %117 : vector<1x64x64xbf16> to vector<64x64xbf16>
    %cst_65 = arith.constant dense<0.000000e+00> : vector<16x64xf32>
    %119 = tpu.matmul %116, %118, %cst_65 {dimension_numbers = #tpu.dot_dimension_numbers<[1], [0], [0], [1], [0, 0, 1, 1], [], []>} : vector<16x64xbf16>, vector<64x64xbf16>, vector<16x64xf32> -> vector<16x64xf32>
    %120 = arith.addf %115, %119 : vector<16x64xf32>
    %c0_66 = arith.constant 0 : index
    %c0_67 = arith.constant 0 : index
    %121 = vector.load %arg5[%c0_66, %c0_67] : memref<16x1xf32, #tpu.memory_space<vmem>>, vector<16x1xf32>
    %122 = vector.broadcast %121 : vector<16x1xf32> to vector<16x64xf32>
    %123 = arith.addf %120, %122 : vector<16x64xf32>
    %cst_68 = arith.constant 0.000000e+00 : f32
    %124 = vector.broadcast %cst_68 : f32 to vector<16x64xf32>
    %125 = arith.maximumf %123, %124 : vector<16x64xf32>
    %126 = arith.truncf %125 : vector<16x64xf32> to vector<16x64xbf16>
    %c0_69 = arith.constant 0 : index
    %c0_70 = arith.constant 0 : index
    %c0_71 = arith.constant 0 : index
    %127 = vector.load %arg23[%c0_69, %c0_70, %c0_71] : memref<4x64x16xbf16, #tpu.memory_space<vmem>>, vector<1x64x16xbf16>
    %128 = vector.shape_cast %127 : vector<1x64x16xbf16> to vector<64x16xbf16>
    %cst_72 = arith.constant dense<0.000000e+00> : vector<16x16xf32>
    %129 = tpu.matmul %126, %128, %cst_72 {dimension_numbers = #tpu.dot_dimension_numbers<[1], [0], [0], [1], [0, 0, 1, 1], [], []>} : vector<16x64xbf16>, vector<64x16xbf16>, vector<16x16xf32> -> vector<16x16xf32>
    %c1_73 = arith.constant 1 : index
    %c0_74 = arith.constant 0 : index
    %c0_75 = arith.constant 0 : index
    %130 = vector.load %arg23[%c1_73, %c0_74, %c0_75] : memref<4x64x16xbf16, #tpu.memory_space<vmem>>, vector<1x64x16xbf16>
    %131 = vector.shape_cast %130 : vector<1x64x16xbf16> to vector<64x16xbf16>
    %cst_76 = arith.constant dense<0.000000e+00> : vector<16x16xf32>
    %132 = tpu.matmul %126, %131, %cst_76 {dimension_numbers = #tpu.dot_dimension_numbers<[1], [0], [0], [1], [0, 0, 1, 1], [], []>} : vector<16x64xbf16>, vector<64x16xbf16>, vector<16x16xf32> -> vector<16x16xf32>
    %133 = arith.maximumf %129, %132 : vector<16x16xf32>
    %c2_77 = arith.constant 2 : index
    %c0_78 = arith.constant 0 : index
    %c0_79 = arith.constant 0 : index
    %134 = vector.load %arg23[%c2_77, %c0_78, %c0_79] : memref<4x64x16xbf16, #tpu.memory_space<vmem>>, vector<1x64x16xbf16>
    %135 = vector.shape_cast %134 : vector<1x64x16xbf16> to vector<64x16xbf16>
    %cst_80 = arith.constant dense<0.000000e+00> : vector<16x16xf32>
    %136 = tpu.matmul %126, %135, %cst_80 {dimension_numbers = #tpu.dot_dimension_numbers<[1], [0], [0], [1], [0, 0, 1, 1], [], []>} : vector<16x64xbf16>, vector<64x16xbf16>, vector<16x16xf32> -> vector<16x16xf32>
    %137 = arith.maximumf %133, %136 : vector<16x16xf32>
    %c3_81 = arith.constant 3 : index
    %c0_82 = arith.constant 0 : index
    %c0_83 = arith.constant 0 : index
    %138 = vector.load %arg23[%c3_81, %c0_82, %c0_83] : memref<4x64x16xbf16, #tpu.memory_space<vmem>>, vector<1x64x16xbf16>
    %139 = vector.shape_cast %138 : vector<1x64x16xbf16> to vector<64x16xbf16>
    %cst_84 = arith.constant dense<0.000000e+00> : vector<16x16xf32>
    %140 = tpu.matmul %126, %139, %cst_84 {dimension_numbers = #tpu.dot_dimension_numbers<[1], [0], [0], [1], [0, 0, 1, 1], [], []>} : vector<16x64xbf16>, vector<64x16xbf16>, vector<16x16xf32> -> vector<16x16xf32>
    %141 = arith.maximumf %137, %140 : vector<16x16xf32>
    %c0_85 = arith.constant 0 : index
    %c0_86 = arith.constant 0 : index
    %142 = vector.load %arg6[%c0_85, %c0_86] : memref<288x16xbf16, #tpu.memory_space<vmem>>, vector<288x16xbf16>
    %143 = arith.truncf %141 : vector<16x16xf32> to vector<16x16xbf16>
    %cst_87 = arith.constant dense<0.000000e+00> : vector<288x16xf32>
    %144 = tpu.matmul %142, %143, %cst_87 {dimension_numbers = #tpu.dot_dimension_numbers<[1], [0], [0], [1], [0, 0, 1, 1], [], []>} : vector<288x16xbf16>, vector<16x16xbf16>, vector<288x16xf32> -> vector<288x16xf32>
    %145 = arith.truncf %144 : vector<288x16xf32> to vector<288x16xbf16>
    %146 = vector.extract_strided_slice %145 {offsets = [0, 0], sizes = [32, 16], strides = [1, 1]} : vector<288x16xbf16> to vector<32x16xbf16>
    %c0_88 = arith.constant 0 : index
    %c0_89 = arith.constant 0 : index
    %c0_90 = arith.constant 0 : index
    %147 = vector.load %arg21[%c0_88, %c0_89, %c0_90] : memref<9x16x16xbf16, #tpu.memory_space<vmem>>, vector<1x16x16xbf16>
    %148 = vector.shape_cast %147 : vector<1x16x16xbf16> to vector<16x16xbf16>
    %cst_91 = arith.constant dense<0.000000e+00> : vector<32x16xf32>
    %149 = tpu.matmul %146, %148, %cst_91 {dimension_numbers = #tpu.dot_dimension_numbers<[1], [0], [0], [1], [0, 0, 1, 1], [], []>} : vector<32x16xbf16>, vector<16x16xbf16>, vector<32x16xf32> -> vector<32x16xf32>
    %150 = vector.extract_strided_slice %145 {offsets = [32, 0], sizes = [32, 16], strides = [1, 1]} : vector<288x16xbf16> to vector<32x16xbf16>
    %c1_92 = arith.constant 1 : index
    %c0_93 = arith.constant 0 : index
    %c0_94 = arith.constant 0 : index
    %151 = vector.load %arg21[%c1_92, %c0_93, %c0_94] : memref<9x16x16xbf16, #tpu.memory_space<vmem>>, vector<1x16x16xbf16>
    %152 = vector.shape_cast %151 : vector<1x16x16xbf16> to vector<16x16xbf16>
    %cst_95 = arith.constant dense<0.000000e+00> : vector<32x16xf32>
    %153 = tpu.matmul %150, %152, %cst_95 {dimension_numbers = #tpu.dot_dimension_numbers<[1], [0], [0], [1], [0, 0, 1, 1], [], []>} : vector<32x16xbf16>, vector<16x16xbf16>, vector<32x16xf32> -> vector<32x16xf32>
    %154 = arith.addf %149, %153 : vector<32x16xf32>
    %155 = vector.extract_strided_slice %145 {offsets = [64, 0], sizes = [32, 16], strides = [1, 1]} : vector<288x16xbf16> to vector<32x16xbf16>
    %c2_96 = arith.constant 2 : index
    %c0_97 = arith.constant 0 : index
    %c0_98 = arith.constant 0 : index
    %156 = vector.load %arg21[%c2_96, %c0_97, %c0_98] : memref<9x16x16xbf16, #tpu.memory_space<vmem>>, vector<1x16x16xbf16>
    %157 = vector.shape_cast %156 : vector<1x16x16xbf16> to vector<16x16xbf16>
    %cst_99 = arith.constant dense<0.000000e+00> : vector<32x16xf32>
    %158 = tpu.matmul %155, %157, %cst_99 {dimension_numbers = #tpu.dot_dimension_numbers<[1], [0], [0], [1], [0, 0, 1, 1], [], []>} : vector<32x16xbf16>, vector<16x16xbf16>, vector<32x16xf32> -> vector<32x16xf32>
    %159 = arith.addf %154, %158 : vector<32x16xf32>
    %160 = vector.extract_strided_slice %145 {offsets = [96, 0], sizes = [32, 16], strides = [1, 1]} : vector<288x16xbf16> to vector<32x16xbf16>
    %c3_100 = arith.constant 3 : index
    %c0_101 = arith.constant 0 : index
    %c0_102 = arith.constant 0 : index
    %161 = vector.load %arg21[%c3_100, %c0_101, %c0_102] : memref<9x16x16xbf16, #tpu.memory_space<vmem>>, vector<1x16x16xbf16>
    %162 = vector.shape_cast %161 : vector<1x16x16xbf16> to vector<16x16xbf16>
    %cst_103 = arith.constant dense<0.000000e+00> : vector<32x16xf32>
    %163 = tpu.matmul %160, %162, %cst_103 {dimension_numbers = #tpu.dot_dimension_numbers<[1], [0], [0], [1], [0, 0, 1, 1], [], []>} : vector<32x16xbf16>, vector<16x16xbf16>, vector<32x16xf32> -> vector<32x16xf32>
    %164 = arith.addf %159, %163 : vector<32x16xf32>
    %165 = vector.extract_strided_slice %145 {offsets = [128, 0], sizes = [32, 16], strides = [1, 1]} : vector<288x16xbf16> to vector<32x16xbf16>
    %c4_104 = arith.constant 4 : index
    %c0_105 = arith.constant 0 : index
    %c0_106 = arith.constant 0 : index
    %166 = vector.load %arg21[%c4_104, %c0_105, %c0_106] : memref<9x16x16xbf16, #tpu.memory_space<vmem>>, vector<1x16x16xbf16>
    %167 = vector.shape_cast %166 : vector<1x16x16xbf16> to vector<16x16xbf16>
    %cst_107 = arith.constant dense<0.000000e+00> : vector<32x16xf32>
    %168 = tpu.matmul %165, %167, %cst_107 {dimension_numbers = #tpu.dot_dimension_numbers<[1], [0], [0], [1], [0, 0, 1, 1], [], []>} : vector<32x16xbf16>, vector<16x16xbf16>, vector<32x16xf32> -> vector<32x16xf32>
    %169 = arith.addf %164, %168 : vector<32x16xf32>
    %170 = vector.extract_strided_slice %145 {offsets = [160, 0], sizes = [32, 16], strides = [1, 1]} : vector<288x16xbf16> to vector<32x16xbf16>
    %c5_108 = arith.constant 5 : index
    %c0_109 = arith.constant 0 : index
    %c0_110 = arith.constant 0 : index
    %171 = vector.load %arg21[%c5_108, %c0_109, %c0_110] : memref<9x16x16xbf16, #tpu.memory_space<vmem>>, vector<1x16x16xbf16>
    %172 = vector.shape_cast %171 : vector<1x16x16xbf16> to vector<16x16xbf16>
    %cst_111 = arith.constant dense<0.000000e+00> : vector<32x16xf32>
    %173 = tpu.matmul %170, %172, %cst_111 {dimension_numbers = #tpu.dot_dimension_numbers<[1], [0], [0], [1], [0, 0, 1, 1], [], []>} : vector<32x16xbf16>, vector<16x16xbf16>, vector<32x16xf32> -> vector<32x16xf32>
    %174 = arith.addf %169, %173 : vector<32x16xf32>
    %175 = vector.extract_strided_slice %145 {offsets = [192, 0], sizes = [32, 16], strides = [1, 1]} : vector<288x16xbf16> to vector<32x16xbf16>
    %c6_112 = arith.constant 6 : index
    %c0_113 = arith.constant 0 : index
    %c0_114 = arith.constant 0 : index
    %176 = vector.load %arg21[%c6_112, %c0_113, %c0_114] : memref<9x16x16xbf16, #tpu.memory_space<vmem>>, vector<1x16x16xbf16>
    %177 = vector.shape_cast %176 : vector<1x16x16xbf16> to vector<16x16xbf16>
    %cst_115 = arith.constant dense<0.000000e+00> : vector<32x16xf32>
    %178 = tpu.matmul %175, %177, %cst_115 {dimension_numbers = #tpu.dot_dimension_numbers<[1], [0], [0], [1], [0, 0, 1, 1], [], []>} : vector<32x16xbf16>, vector<16x16xbf16>, vector<32x16xf32> -> vector<32x16xf32>
    %179 = arith.addf %174, %178 : vector<32x16xf32>
    %180 = vector.extract_strided_slice %145 {offsets = [224, 0], sizes = [32, 16], strides = [1, 1]} : vector<288x16xbf16> to vector<32x16xbf16>
    %c7_116 = arith.constant 7 : index
    %c0_117 = arith.constant 0 : index
    %c0_118 = arith.constant 0 : index
    %181 = vector.load %arg21[%c7_116, %c0_117, %c0_118] : memref<9x16x16xbf16, #tpu.memory_space<vmem>>, vector<1x16x16xbf16>
    %182 = vector.shape_cast %181 : vector<1x16x16xbf16> to vector<16x16xbf16>
    %cst_119 = arith.constant dense<0.000000e+00> : vector<32x16xf32>
    %183 = tpu.matmul %180, %182, %cst_119 {dimension_numbers = #tpu.dot_dimension_numbers<[1], [0], [0], [1], [0, 0, 1, 1], [], []>} : vector<32x16xbf16>, vector<16x16xbf16>, vector<32x16xf32> -> vector<32x16xf32>
    %184 = arith.addf %179, %183 : vector<32x16xf32>
    %185 = vector.extract_strided_slice %145 {offsets = [256, 0], sizes = [32, 16], strides = [1, 1]} : vector<288x16xbf16> to vector<32x16xbf16>
    %c8_120 = arith.constant 8 : index
    %c0_121 = arith.constant 0 : index
    %c0_122 = arith.constant 0 : index
    %186 = vector.load %arg21[%c8_120, %c0_121, %c0_122] : memref<9x16x16xbf16, #tpu.memory_space<vmem>>, vector<1x16x16xbf16>
    %187 = vector.shape_cast %186 : vector<1x16x16xbf16> to vector<16x16xbf16>
    %cst_123 = arith.constant dense<0.000000e+00> : vector<32x16xf32>
    %188 = tpu.matmul %185, %187, %cst_123 {dimension_numbers = #tpu.dot_dimension_numbers<[1], [0], [0], [1], [0, 0, 1, 1], [], []>} : vector<32x16xbf16>, vector<16x16xbf16>, vector<32x16xf32> -> vector<32x16xf32>
    %189 = arith.addf %184, %188 : vector<32x16xf32>
    %c0_124 = arith.constant 0 : index
    %c0_125 = arith.constant 0 : index
    %190 = vector.load %arg7[%c0_124, %c0_125] : memref<32x1xf32, #tpu.memory_space<vmem>>, vector<32x1xf32>
    %191 = vector.broadcast %190 : vector<32x1xf32> to vector<32x16xf32>
    %192 = arith.addf %189, %191 : vector<32x16xf32>
    %cst_126 = arith.constant 0.000000e+00 : f32
    %193 = vector.broadcast %cst_126 : f32 to vector<32x16xf32>
    %194 = arith.maximumf %192, %193 : vector<32x16xf32>
    %c0_127 = arith.constant 0 : index
    %c0_128 = arith.constant 0 : index
    %195 = vector.load %arg8[%c0_127, %c0_128] : memref<144x32xbf16, #tpu.memory_space<vmem>>, vector<144x32xbf16>
    %196 = arith.truncf %194 : vector<32x16xf32> to vector<32x16xbf16>
    %cst_129 = arith.constant dense<0.000000e+00> : vector<144x16xf32>
    %197 = tpu.matmul %195, %196, %cst_129 {dimension_numbers = #tpu.dot_dimension_numbers<[1], [0], [0], [1], [0, 0, 1, 1], [], []>} : vector<144x32xbf16>, vector<32x16xbf16>, vector<144x16xf32> -> vector<144x16xf32>
    %c0_130 = arith.constant 0 : index
    %c0_131 = arith.constant 0 : index
    %198 = vector.load %arg9[%c0_130, %c0_131] : memref<144x16xbf16, #tpu.memory_space<vmem>>, vector<144x16xbf16>
    %199 = arith.truncf %141 : vector<16x16xf32> to vector<16x16xbf16>
    %cst_132 = arith.constant dense<0.000000e+00> : vector<144x16xf32>
    %200 = tpu.matmul %198, %199, %cst_132 {dimension_numbers = #tpu.dot_dimension_numbers<[1], [0], [0], [1], [0, 0, 1, 1], [], []>} : vector<144x16xbf16>, vector<16x16xbf16>, vector<144x16xf32> -> vector<144x16xf32>
    %201 = arith.addf %197, %200 : vector<144x16xf32>
    %202 = arith.truncf %201 : vector<144x16xf32> to vector<144x16xbf16>
    %203 = vector.extract_strided_slice %202 {offsets = [0, 0], sizes = [16, 16], strides = [1, 1]} : vector<144x16xbf16> to vector<16x16xbf16>
    %c0_133 = arith.constant 0 : index
    %c0_134 = arith.constant 0 : index
    %c0_135 = arith.constant 0 : index
    %204 = vector.load %arg21[%c0_133, %c0_134, %c0_135] : memref<9x16x16xbf16, #tpu.memory_space<vmem>>, vector<1x16x16xbf16>
    %205 = vector.shape_cast %204 : vector<1x16x16xbf16> to vector<16x16xbf16>
    %cst_136 = arith.constant dense<0.000000e+00> : vector<16x16xf32>
    %206 = tpu.matmul %203, %205, %cst_136 {dimension_numbers = #tpu.dot_dimension_numbers<[1], [0], [0], [1], [0, 0, 1, 1], [], []>} : vector<16x16xbf16>, vector<16x16xbf16>, vector<16x16xf32> -> vector<16x16xf32>
    %207 = vector.extract_strided_slice %202 {offsets = [16, 0], sizes = [16, 16], strides = [1, 1]} : vector<144x16xbf16> to vector<16x16xbf16>
    %c1_137 = arith.constant 1 : index
    %c0_138 = arith.constant 0 : index
    %c0_139 = arith.constant 0 : index
    %208 = vector.load %arg21[%c1_137, %c0_138, %c0_139] : memref<9x16x16xbf16, #tpu.memory_space<vmem>>, vector<1x16x16xbf16>
    %209 = vector.shape_cast %208 : vector<1x16x16xbf16> to vector<16x16xbf16>
    %cst_140 = arith.constant dense<0.000000e+00> : vector<16x16xf32>
    %210 = tpu.matmul %207, %209, %cst_140 {dimension_numbers = #tpu.dot_dimension_numbers<[1], [0], [0], [1], [0, 0, 1, 1], [], []>} : vector<16x16xbf16>, vector<16x16xbf16>, vector<16x16xf32> -> vector<16x16xf32>
    %211 = arith.addf %206, %210 : vector<16x16xf32>
    %212 = vector.extract_strided_slice %202 {offsets = [32, 0], sizes = [16, 16], strides = [1, 1]} : vector<144x16xbf16> to vector<16x16xbf16>
    %c2_141 = arith.constant 2 : index
    %c0_142 = arith.constant 0 : index
    %c0_143 = arith.constant 0 : index
    %213 = vector.load %arg21[%c2_141, %c0_142, %c0_143] : memref<9x16x16xbf16, #tpu.memory_space<vmem>>, vector<1x16x16xbf16>
    %214 = vector.shape_cast %213 : vector<1x16x16xbf16> to vector<16x16xbf16>
    %cst_144 = arith.constant dense<0.000000e+00> : vector<16x16xf32>
    %215 = tpu.matmul %212, %214, %cst_144 {dimension_numbers = #tpu.dot_dimension_numbers<[1], [0], [0], [1], [0, 0, 1, 1], [], []>} : vector<16x16xbf16>, vector<16x16xbf16>, vector<16x16xf32> -> vector<16x16xf32>
    %216 = arith.addf %211, %215 : vector<16x16xf32>
    %217 = vector.extract_strided_slice %202 {offsets = [48, 0], sizes = [16, 16], strides = [1, 1]} : vector<144x16xbf16> to vector<16x16xbf16>
    %c3_145 = arith.constant 3 : index
    %c0_146 = arith.constant 0 : index
    %c0_147 = arith.constant 0 : index
    %218 = vector.load %arg21[%c3_145, %c0_146, %c0_147] : memref<9x16x16xbf16, #tpu.memory_space<vmem>>, vector<1x16x16xbf16>
    %219 = vector.shape_cast %218 : vector<1x16x16xbf16> to vector<16x16xbf16>
    %cst_148 = arith.constant dense<0.000000e+00> : vector<16x16xf32>
    %220 = tpu.matmul %217, %219, %cst_148 {dimension_numbers = #tpu.dot_dimension_numbers<[1], [0], [0], [1], [0, 0, 1, 1], [], []>} : vector<16x16xbf16>, vector<16x16xbf16>, vector<16x16xf32> -> vector<16x16xf32>
    %221 = arith.addf %216, %220 : vector<16x16xf32>
    %222 = vector.extract_strided_slice %202 {offsets = [64, 0], sizes = [16, 16], strides = [1, 1]} : vector<144x16xbf16> to vector<16x16xbf16>
    %c4_149 = arith.constant 4 : index
    %c0_150 = arith.constant 0 : index
    %c0_151 = arith.constant 0 : index
    %223 = vector.load %arg21[%c4_149, %c0_150, %c0_151] : memref<9x16x16xbf16, #tpu.memory_space<vmem>>, vector<1x16x16xbf16>
    %224 = vector.shape_cast %223 : vector<1x16x16xbf16> to vector<16x16xbf16>
    %cst_152 = arith.constant dense<0.000000e+00> : vector<16x16xf32>
    %225 = tpu.matmul %222, %224, %cst_152 {dimension_numbers = #tpu.dot_dimension_numbers<[1], [0], [0], [1], [0, 0, 1, 1], [], []>} : vector<16x16xbf16>, vector<16x16xbf16>, vector<16x16xf32> -> vector<16x16xf32>
    %226 = arith.addf %221, %225 : vector<16x16xf32>
    %227 = vector.extract_strided_slice %202 {offsets = [80, 0], sizes = [16, 16], strides = [1, 1]} : vector<144x16xbf16> to vector<16x16xbf16>
    %c5_153 = arith.constant 5 : index
    %c0_154 = arith.constant 0 : index
    %c0_155 = arith.constant 0 : index
    %228 = vector.load %arg21[%c5_153, %c0_154, %c0_155] : memref<9x16x16xbf16, #tpu.memory_space<vmem>>, vector<1x16x16xbf16>
    %229 = vector.shape_cast %228 : vector<1x16x16xbf16> to vector<16x16xbf16>
    %cst_156 = arith.constant dense<0.000000e+00> : vector<16x16xf32>
    %230 = tpu.matmul %227, %229, %cst_156 {dimension_numbers = #tpu.dot_dimension_numbers<[1], [0], [0], [1], [0, 0, 1, 1], [], []>} : vector<16x16xbf16>, vector<16x16xbf16>, vector<16x16xf32> -> vector<16x16xf32>
    %231 = arith.addf %226, %230 : vector<16x16xf32>
    %232 = vector.extract_strided_slice %202 {offsets = [96, 0], sizes = [16, 16], strides = [1, 1]} : vector<144x16xbf16> to vector<16x16xbf16>
    %c6_157 = arith.constant 6 : index
    %c0_158 = arith.constant 0 : index
    %c0_159 = arith.constant 0 : index
    %233 = vector.load %arg21[%c6_157, %c0_158, %c0_159] : memref<9x16x16xbf16, #tpu.memory_space<vmem>>, vector<1x16x16xbf16>
    %234 = vector.shape_cast %233 : vector<1x16x16xbf16> to vector<16x16xbf16>
    %cst_160 = arith.constant dense<0.000000e+00> : vector<16x16xf32>
    %235 = tpu.matmul %232, %234, %cst_160 {dimension_numbers = #tpu.dot_dimension_numbers<[1], [0], [0], [1], [0, 0, 1, 1], [], []>} : vector<16x16xbf16>, vector<16x16xbf16>, vector<16x16xf32> -> vector<16x16xf32>
    %236 = arith.addf %231, %235 : vector<16x16xf32>
    %237 = vector.extract_strided_slice %202 {offsets = [112, 0], sizes = [16, 16], strides = [1, 1]} : vector<144x16xbf16> to vector<16x16xbf16>
    %c7_161 = arith.constant 7 : index
    %c0_162 = arith.constant 0 : index
    %c0_163 = arith.constant 0 : index
    %238 = vector.load %arg21[%c7_161, %c0_162, %c0_163] : memref<9x16x16xbf16, #tpu.memory_space<vmem>>, vector<1x16x16xbf16>
    %239 = vector.shape_cast %238 : vector<1x16x16xbf16> to vector<16x16xbf16>
    %cst_164 = arith.constant dense<0.000000e+00> : vector<16x16xf32>
    %240 = tpu.matmul %237, %239, %cst_164 {dimension_numbers = #tpu.dot_dimension_numbers<[1], [0], [0], [1], [0, 0, 1, 1], [], []>} : vector<16x16xbf16>, vector<16x16xbf16>, vector<16x16xf32> -> vector<16x16xf32>
    %241 = arith.addf %236, %240 : vector<16x16xf32>
    %242 = vector.extract_strided_slice %202 {offsets = [128, 0], sizes = [16, 16], strides = [1, 1]} : vector<144x16xbf16> to vector<16x16xbf16>
    %c8_165 = arith.constant 8 : index
    %c0_166 = arith.constant 0 : index
    %c0_167 = arith.constant 0 : index
    %243 = vector.load %arg21[%c8_165, %c0_166, %c0_167] : memref<9x16x16xbf16, #tpu.memory_space<vmem>>, vector<1x16x16xbf16>
    %244 = vector.shape_cast %243 : vector<1x16x16xbf16> to vector<16x16xbf16>
    %cst_168 = arith.constant dense<0.000000e+00> : vector<16x16xf32>
    %245 = tpu.matmul %242, %244, %cst_168 {dimension_numbers = #tpu.dot_dimension_numbers<[1], [0], [0], [1], [0, 0, 1, 1], [], []>} : vector<16x16xbf16>, vector<16x16xbf16>, vector<16x16xf32> -> vector<16x16xf32>
    %246 = arith.addf %241, %245 : vector<16x16xf32>
    %c0_169 = arith.constant 0 : index
    %c0_170 = arith.constant 0 : index
    %247 = vector.load %arg10[%c0_169, %c0_170] : memref<16x1xf32, #tpu.memory_space<vmem>>, vector<16x1xf32>
    %248 = vector.broadcast %247 : vector<16x1xf32> to vector<16x16xf32>
    %249 = arith.addf %246, %248 : vector<16x16xf32>
    %cst_171 = arith.constant 0.000000e+00 : f32
    %250 = vector.broadcast %cst_171 : f32 to vector<16x16xf32>
    %251 = arith.maximumf %249, %250 : vector<16x16xf32>
    %252 = arith.truncf %251 : vector<16x16xf32> to vector<16x16xbf16>
    %c0_172 = arith.constant 0 : index
    %c0_173 = arith.constant 0 : index
    %253 = vector.load %arg24[%c0_172, %c0_173] : memref<16x64xbf16, #tpu.memory_space<vmem>>, vector<16x64xbf16>
    %cst_174 = arith.constant dense<0.000000e+00> : vector<16x64xf32>
    %254 = tpu.matmul %252, %253, %cst_174 {dimension_numbers = #tpu.dot_dimension_numbers<[1], [0], [0], [1], [0, 0, 1, 1], [], []>} : vector<16x16xbf16>, vector<16x64xbf16>, vector<16x64xf32> -> vector<16x64xf32>
    %c0_175 = arith.constant 0 : index
    %c0_176 = arith.constant 0 : index
    %255 = vector.load %arg11[%c0_175, %c0_176] : memref<144x16xbf16, #tpu.memory_space<vmem>>, vector<144x16xbf16>
    %256 = arith.truncf %254 : vector<16x64xf32> to vector<16x64xbf16>
    %cst_177 = arith.constant dense<0.000000e+00> : vector<144x64xf32>
    %257 = tpu.matmul %255, %256, %cst_177 {dimension_numbers = #tpu.dot_dimension_numbers<[1], [0], [0], [1], [0, 0, 1, 1], [], []>} : vector<144x16xbf16>, vector<16x64xbf16>, vector<144x64xf32> -> vector<144x64xf32>
    %c0_178 = arith.constant 0 : index
    %c0_179 = arith.constant 0 : index
    %258 = vector.load %arg12[%c0_178, %c0_179] : memref<144x16xbf16, #tpu.memory_space<vmem>>, vector<144x16xbf16>
    %259 = arith.truncf %72 : vector<16x64xf32> to vector<16x64xbf16>
    %cst_180 = arith.constant dense<0.000000e+00> : vector<144x64xf32>
    %260 = tpu.matmul %258, %259, %cst_180 {dimension_numbers = #tpu.dot_dimension_numbers<[1], [0], [0], [1], [0, 0, 1, 1], [], []>} : vector<144x16xbf16>, vector<16x64xbf16>, vector<144x64xf32> -> vector<144x64xf32>
    %261 = arith.addf %257, %260 : vector<144x64xf32>
    %262 = arith.truncf %261 : vector<144x64xf32> to vector<144x64xbf16>
    %263 = vector.extract_strided_slice %262 {offsets = [0, 0], sizes = [16, 64], strides = [1, 1]} : vector<144x64xbf16> to vector<16x64xbf16>
    %c0_181 = arith.constant 0 : index
    %c0_182 = arith.constant 0 : index
    %c0_183 = arith.constant 0 : index
    %264 = vector.load %arg20[%c0_181, %c0_182, %c0_183] : memref<9x64x64xbf16, #tpu.memory_space<vmem>>, vector<1x64x64xbf16>
    %265 = vector.shape_cast %264 : vector<1x64x64xbf16> to vector<64x64xbf16>
    %cst_184 = arith.constant dense<0.000000e+00> : vector<16x64xf32>
    %266 = tpu.matmul %263, %265, %cst_184 {dimension_numbers = #tpu.dot_dimension_numbers<[1], [0], [0], [1], [0, 0, 1, 1], [], []>} : vector<16x64xbf16>, vector<64x64xbf16>, vector<16x64xf32> -> vector<16x64xf32>
    %267 = vector.extract_strided_slice %262 {offsets = [16, 0], sizes = [16, 64], strides = [1, 1]} : vector<144x64xbf16> to vector<16x64xbf16>
    %c1_185 = arith.constant 1 : index
    %c0_186 = arith.constant 0 : index
    %c0_187 = arith.constant 0 : index
    %268 = vector.load %arg20[%c1_185, %c0_186, %c0_187] : memref<9x64x64xbf16, #tpu.memory_space<vmem>>, vector<1x64x64xbf16>
    %269 = vector.shape_cast %268 : vector<1x64x64xbf16> to vector<64x64xbf16>
    %cst_188 = arith.constant dense<0.000000e+00> : vector<16x64xf32>
    %270 = tpu.matmul %267, %269, %cst_188 {dimension_numbers = #tpu.dot_dimension_numbers<[1], [0], [0], [1], [0, 0, 1, 1], [], []>} : vector<16x64xbf16>, vector<64x64xbf16>, vector<16x64xf32> -> vector<16x64xf32>
    %271 = arith.addf %266, %270 : vector<16x64xf32>
    %272 = vector.extract_strided_slice %262 {offsets = [32, 0], sizes = [16, 64], strides = [1, 1]} : vector<144x64xbf16> to vector<16x64xbf16>
    %c2_189 = arith.constant 2 : index
    %c0_190 = arith.constant 0 : index
    %c0_191 = arith.constant 0 : index
    %273 = vector.load %arg20[%c2_189, %c0_190, %c0_191] : memref<9x64x64xbf16, #tpu.memory_space<vmem>>, vector<1x64x64xbf16>
    %274 = vector.shape_cast %273 : vector<1x64x64xbf16> to vector<64x64xbf16>
    %cst_192 = arith.constant dense<0.000000e+00> : vector<16x64xf32>
    %275 = tpu.matmul %272, %274, %cst_192 {dimension_numbers = #tpu.dot_dimension_numbers<[1], [0], [0], [1], [0, 0, 1, 1], [], []>} : vector<16x64xbf16>, vector<64x64xbf16>, vector<16x64xf32> -> vector<16x64xf32>
    %276 = arith.addf %271, %275 : vector<16x64xf32>
    %277 = vector.extract_strided_slice %262 {offsets = [48, 0], sizes = [16, 64], strides = [1, 1]} : vector<144x64xbf16> to vector<16x64xbf16>
    %c3_193 = arith.constant 3 : index
    %c0_194 = arith.constant 0 : index
    %c0_195 = arith.constant 0 : index
    %278 = vector.load %arg20[%c3_193, %c0_194, %c0_195] : memref<9x64x64xbf16, #tpu.memory_space<vmem>>, vector<1x64x64xbf16>
    %279 = vector.shape_cast %278 : vector<1x64x64xbf16> to vector<64x64xbf16>
    %cst_196 = arith.constant dense<0.000000e+00> : vector<16x64xf32>
    %280 = tpu.matmul %277, %279, %cst_196 {dimension_numbers = #tpu.dot_dimension_numbers<[1], [0], [0], [1], [0, 0, 1, 1], [], []>} : vector<16x64xbf16>, vector<64x64xbf16>, vector<16x64xf32> -> vector<16x64xf32>
    %281 = arith.addf %276, %280 : vector<16x64xf32>
    %282 = vector.extract_strided_slice %262 {offsets = [64, 0], sizes = [16, 64], strides = [1, 1]} : vector<144x64xbf16> to vector<16x64xbf16>
    %c4_197 = arith.constant 4 : index
    %c0_198 = arith.constant 0 : index
    %c0_199 = arith.constant 0 : index
    %283 = vector.load %arg20[%c4_197, %c0_198, %c0_199] : memref<9x64x64xbf16, #tpu.memory_space<vmem>>, vector<1x64x64xbf16>
    %284 = vector.shape_cast %283 : vector<1x64x64xbf16> to vector<64x64xbf16>
    %cst_200 = arith.constant dense<0.000000e+00> : vector<16x64xf32>
    %285 = tpu.matmul %282, %284, %cst_200 {dimension_numbers = #tpu.dot_dimension_numbers<[1], [0], [0], [1], [0, 0, 1, 1], [], []>} : vector<16x64xbf16>, vector<64x64xbf16>, vector<16x64xf32> -> vector<16x64xf32>
    %286 = arith.addf %281, %285 : vector<16x64xf32>
    %287 = vector.extract_strided_slice %262 {offsets = [80, 0], sizes = [16, 64], strides = [1, 1]} : vector<144x64xbf16> to vector<16x64xbf16>
    %c5_201 = arith.constant 5 : index
    %c0_202 = arith.constant 0 : index
    %c0_203 = arith.constant 0 : index
    %288 = vector.load %arg20[%c5_201, %c0_202, %c0_203] : memref<9x64x64xbf16, #tpu.memory_space<vmem>>, vector<1x64x64xbf16>
    %289 = vector.shape_cast %288 : vector<1x64x64xbf16> to vector<64x64xbf16>
    %cst_204 = arith.constant dense<0.000000e+00> : vector<16x64xf32>
    %290 = tpu.matmul %287, %289, %cst_204 {dimension_numbers = #tpu.dot_dimension_numbers<[1], [0], [0], [1], [0, 0, 1, 1], [], []>} : vector<16x64xbf16>, vector<64x64xbf16>, vector<16x64xf32> -> vector<16x64xf32>
    %291 = arith.addf %286, %290 : vector<16x64xf32>
    %292 = vector.extract_strided_slice %262 {offsets = [96, 0], sizes = [16, 64], strides = [1, 1]} : vector<144x64xbf16> to vector<16x64xbf16>
    %c6_205 = arith.constant 6 : index
    %c0_206 = arith.constant 0 : index
    %c0_207 = arith.constant 0 : index
    %293 = vector.load %arg20[%c6_205, %c0_206, %c0_207] : memref<9x64x64xbf16, #tpu.memory_space<vmem>>, vector<1x64x64xbf16>
    %294 = vector.shape_cast %293 : vector<1x64x64xbf16> to vector<64x64xbf16>
    %cst_208 = arith.constant dense<0.000000e+00> : vector<16x64xf32>
    %295 = tpu.matmul %292, %294, %cst_208 {dimension_numbers = #tpu.dot_dimension_numbers<[1], [0], [0], [1], [0, 0, 1, 1], [], []>} : vector<16x64xbf16>, vector<64x64xbf16>, vector<16x64xf32> -> vector<16x64xf32>
    %296 = arith.addf %291, %295 : vector<16x64xf32>
    %297 = vector.extract_strided_slice %262 {offsets = [112, 0], sizes = [16, 64], strides = [1, 1]} : vector<144x64xbf16> to vector<16x64xbf16>
    %c7_209 = arith.constant 7 : index
    %c0_210 = arith.constant 0 : index
    %c0_211 = arith.constant 0 : index
    %298 = vector.load %arg20[%c7_209, %c0_210, %c0_211] : memref<9x64x64xbf16, #tpu.memory_space<vmem>>, vector<1x64x64xbf16>
    %299 = vector.shape_cast %298 : vector<1x64x64xbf16> to vector<64x64xbf16>
    %cst_212 = arith.constant dense<0.000000e+00> : vector<16x64xf32>
    %300 = tpu.matmul %297, %299, %cst_212 {dimension_numbers = #tpu.dot_dimension_numbers<[1], [0], [0], [1], [0, 0, 1, 1], [], []>} : vector<16x64xbf16>, vector<64x64xbf16>, vector<16x64xf32> -> vector<16x64xf32>
    %301 = arith.addf %296, %300 : vector<16x64xf32>
    %302 = vector.extract_strided_slice %262 {offsets = [128, 0], sizes = [16, 64], strides = [1, 1]} : vector<144x64xbf16> to vector<16x64xbf16>
    %c8_213 = arith.constant 8 : index
    %c0_214 = arith.constant 0 : index
    %c0_215 = arith.constant 0 : index
    %303 = vector.load %arg20[%c8_213, %c0_214, %c0_215] : memref<9x64x64xbf16, #tpu.memory_space<vmem>>, vector<1x64x64xbf16>
    %304 = vector.shape_cast %303 : vector<1x64x64xbf16> to vector<64x64xbf16>
    %cst_216 = arith.constant dense<0.000000e+00> : vector<16x64xf32>
    %305 = tpu.matmul %302, %304, %cst_216 {dimension_numbers = #tpu.dot_dimension_numbers<[1], [0], [0], [1], [0, 0, 1, 1], [], []>} : vector<16x64xbf16>, vector<64x64xbf16>, vector<16x64xf32> -> vector<16x64xf32>
    %306 = arith.addf %301, %305 : vector<16x64xf32>
    %c0_217 = arith.constant 0 : index
    %c0_218 = arith.constant 0 : index
    %307 = vector.load %arg13[%c0_217, %c0_218] : memref<16x1xf32, #tpu.memory_space<vmem>>, vector<16x1xf32>
    %308 = vector.broadcast %307 : vector<16x1xf32> to vector<16x64xf32>
    %309 = arith.addf %306, %308 : vector<16x64xf32>
    %cst_219 = arith.constant 0.000000e+00 : f32
    %310 = vector.broadcast %cst_219 : f32 to vector<16x64xf32>
    %311 = arith.maximumf %309, %310 : vector<16x64xf32>
    %312 = arith.truncf %311 : vector<16x64xf32> to vector<16x64xbf16>
    %c0_220 = arith.constant 0 : index
    %c0_221 = arith.constant 0 : index
    %313 = vector.load %arg25[%c0_220, %c0_221] : memref<64x256xbf16, #tpu.memory_space<vmem>>, vector<64x256xbf16>
    %cst_222 = arith.constant dense<0.000000e+00> : vector<16x256xf32>
    %314 = tpu.matmul %312, %313, %cst_222 {dimension_numbers = #tpu.dot_dimension_numbers<[1], [0], [0], [1], [0, 0, 1, 1], [], []>} : vector<16x64xbf16>, vector<64x256xbf16>, vector<16x256xf32> -> vector<16x256xf32>
    %c0_223 = arith.constant 0 : index
    %c0_224 = arith.constant 0 : index
    %315 = vector.load %arg14[%c0_223, %c0_224] : memref<72x16xbf16, #tpu.memory_space<vmem>>, vector<72x16xbf16>
    %316 = arith.truncf %314 : vector<16x256xf32> to vector<16x256xbf16>
    %cst_225 = arith.constant dense<0.000000e+00> : vector<72x256xf32>
    %317 = tpu.matmul %315, %316, %cst_225 {dimension_numbers = #tpu.dot_dimension_numbers<[1], [0], [0], [1], [0, 0, 1, 1], [], []>} : vector<72x16xbf16>, vector<16x256xbf16>, vector<72x256xf32> -> vector<72x256xf32>
    %c0_226 = arith.constant 0 : index
    %c0_227 = arith.constant 0 : index
    %318 = vector.load %arg15[%c0_226, %c0_227] : memref<72x8xbf16, #tpu.memory_space<vmem>>, vector<72x8xbf16>
    %319 = arith.truncf %0 : vector<8x256xf32> to vector<8x256xbf16>
    %cst_228 = arith.constant dense<0.000000e+00> : vector<72x256xf32>
    %320 = tpu.matmul %318, %319, %cst_228 {dimension_numbers = #tpu.dot_dimension_numbers<[1], [0], [0], [1], [0, 0, 1, 1], [], []>} : vector<72x8xbf16>, vector<8x256xbf16>, vector<72x256xf32> -> vector<72x256xf32>
    %321 = arith.addf %317, %320 : vector<72x256xf32>
    %322 = vector.extract_strided_slice %321 {offsets = [32, 0], sizes = [8, 256], strides = [1, 1]} : vector<72x256xf32> to vector<8x256xf32>
    %323 = vector.extract_strided_slice %321 {offsets = [0, 0], sizes = [8, 256], strides = [1, 1]} : vector<72x256xf32> to vector<8x256xf32>
    %c17_i32_229 = arith.constant 17 : i32
    %324 = tpu.dynamic_rotate %323 by %c17_i32_229 dim 1 : vector<8x256xf32>, i32 -> vector<8x256xf32>
    %c0_230 = arith.constant 0 : index
    %c0_231 = arith.constant 0 : index
    %c0_232 = arith.constant 0 : index
    %325 = vector.load %arg19[%c0_230, %c0_231, %c0_232] : memref<9x1x256xf32, #tpu.memory_space<vmem>>, vector<1x1x256xf32>
    %326 = vector.shape_cast %325 : vector<1x1x256xf32> to vector<1x256xf32>
    %327 = vector.broadcast %326 : vector<1x256xf32> to vector<8x256xf32>
    %328 = arith.mulf %324, %327 : vector<8x256xf32>
    %329 = arith.addf %322, %328 : vector<8x256xf32>
    %330 = vector.extract_strided_slice %321 {offsets = [8, 0], sizes = [8, 256], strides = [1, 1]} : vector<72x256xf32> to vector<8x256xf32>
    %c16_i32_233 = arith.constant 16 : i32
    %331 = tpu.dynamic_rotate %330 by %c16_i32_233 dim 1 : vector<8x256xf32>, i32 -> vector<8x256xf32>
    %c1_234 = arith.constant 1 : index
    %c0_235 = arith.constant 0 : index
    %c0_236 = arith.constant 0 : index
    %332 = vector.load %arg19[%c1_234, %c0_235, %c0_236] : memref<9x1x256xf32, #tpu.memory_space<vmem>>, vector<1x1x256xf32>
    %333 = vector.shape_cast %332 : vector<1x1x256xf32> to vector<1x256xf32>
    %334 = vector.broadcast %333 : vector<1x256xf32> to vector<8x256xf32>
    %335 = arith.mulf %331, %334 : vector<8x256xf32>
    %336 = arith.addf %329, %335 : vector<8x256xf32>
    %337 = vector.extract_strided_slice %321 {offsets = [16, 0], sizes = [8, 256], strides = [1, 1]} : vector<72x256xf32> to vector<8x256xf32>
    %c15_i32_237 = arith.constant 15 : i32
    %338 = tpu.dynamic_rotate %337 by %c15_i32_237 dim 1 : vector<8x256xf32>, i32 -> vector<8x256xf32>
    %c2_238 = arith.constant 2 : index
    %c0_239 = arith.constant 0 : index
    %c0_240 = arith.constant 0 : index
    %339 = vector.load %arg19[%c2_238, %c0_239, %c0_240] : memref<9x1x256xf32, #tpu.memory_space<vmem>>, vector<1x1x256xf32>
    %340 = vector.shape_cast %339 : vector<1x1x256xf32> to vector<1x256xf32>
    %341 = vector.broadcast %340 : vector<1x256xf32> to vector<8x256xf32>
    %342 = arith.mulf %338, %341 : vector<8x256xf32>
    %343 = arith.addf %336, %342 : vector<8x256xf32>
    %344 = vector.extract_strided_slice %321 {offsets = [24, 0], sizes = [8, 256], strides = [1, 1]} : vector<72x256xf32> to vector<8x256xf32>
    %c1_i32_241 = arith.constant 1 : i32
    %345 = tpu.dynamic_rotate %344 by %c1_i32_241 dim 1 : vector<8x256xf32>, i32 -> vector<8x256xf32>
    %c3_242 = arith.constant 3 : index
    %c0_243 = arith.constant 0 : index
    %c0_244 = arith.constant 0 : index
    %346 = vector.load %arg19[%c3_242, %c0_243, %c0_244] : memref<9x1x256xf32, #tpu.memory_space<vmem>>, vector<1x1x256xf32>
    %347 = vector.shape_cast %346 : vector<1x1x256xf32> to vector<1x256xf32>
    %348 = vector.broadcast %347 : vector<1x256xf32> to vector<8x256xf32>
    %349 = arith.mulf %345, %348 : vector<8x256xf32>
    %350 = arith.addf %343, %349 : vector<8x256xf32>
    %351 = vector.extract_strided_slice %321 {offsets = [40, 0], sizes = [8, 256], strides = [1, 1]} : vector<72x256xf32> to vector<8x256xf32>
    %c255_i32_245 = arith.constant 255 : i32
    %352 = tpu.dynamic_rotate %351 by %c255_i32_245 dim 1 : vector<8x256xf32>, i32 -> vector<8x256xf32>
    %c5_246 = arith.constant 5 : index
    %c0_247 = arith.constant 0 : index
    %c0_248 = arith.constant 0 : index
    %353 = vector.load %arg19[%c5_246, %c0_247, %c0_248] : memref<9x1x256xf32, #tpu.memory_space<vmem>>, vector<1x1x256xf32>
    %354 = vector.shape_cast %353 : vector<1x1x256xf32> to vector<1x256xf32>
    %355 = vector.broadcast %354 : vector<1x256xf32> to vector<8x256xf32>
    %356 = arith.mulf %352, %355 : vector<8x256xf32>
    %357 = arith.addf %350, %356 : vector<8x256xf32>
    %358 = vector.extract_strided_slice %321 {offsets = [48, 0], sizes = [8, 256], strides = [1, 1]} : vector<72x256xf32> to vector<8x256xf32>
    %c241_i32_249 = arith.constant 241 : i32
    %359 = tpu.dynamic_rotate %358 by %c241_i32_249 dim 1 : vector<8x256xf32>, i32 -> vector<8x256xf32>
    %c6_250 = arith.constant 6 : index
    %c0_251 = arith.constant 0 : index
    %c0_252 = arith.constant 0 : index
    %360 = vector.load %arg19[%c6_250, %c0_251, %c0_252] : memref<9x1x256xf32, #tpu.memory_space<vmem>>, vector<1x1x256xf32>
    %361 = vector.shape_cast %360 : vector<1x1x256xf32> to vector<1x256xf32>
    %362 = vector.broadcast %361 : vector<1x256xf32> to vector<8x256xf32>
    %363 = arith.mulf %359, %362 : vector<8x256xf32>
    %364 = arith.addf %357, %363 : vector<8x256xf32>
    %365 = vector.extract_strided_slice %321 {offsets = [56, 0], sizes = [8, 256], strides = [1, 1]} : vector<72x256xf32> to vector<8x256xf32>
    %c240_i32_253 = arith.constant 240 : i32
    %366 = tpu.dynamic_rotate %365 by %c240_i32_253 dim 1 : vector<8x256xf32>, i32 -> vector<8x256xf32>
    %c7_254 = arith.constant 7 : index
    %c0_255 = arith.constant 0 : index
    %c0_256 = arith.constant 0 : index
    %367 = vector.load %arg19[%c7_254, %c0_255, %c0_256] : memref<9x1x256xf32, #tpu.memory_space<vmem>>, vector<1x1x256xf32>
    %368 = vector.shape_cast %367 : vector<1x1x256xf32> to vector<1x256xf32>
    %369 = vector.broadcast %368 : vector<1x256xf32> to vector<8x256xf32>
    %370 = arith.mulf %366, %369 : vector<8x256xf32>
    %371 = arith.addf %364, %370 : vector<8x256xf32>
    %372 = vector.extract_strided_slice %321 {offsets = [64, 0], sizes = [8, 256], strides = [1, 1]} : vector<72x256xf32> to vector<8x256xf32>
    %c239_i32_257 = arith.constant 239 : i32
    %373 = tpu.dynamic_rotate %372 by %c239_i32_257 dim 1 : vector<8x256xf32>, i32 -> vector<8x256xf32>
    %c8_258 = arith.constant 8 : index
    %c0_259 = arith.constant 0 : index
    %c0_260 = arith.constant 0 : index
    %374 = vector.load %arg19[%c8_258, %c0_259, %c0_260] : memref<9x1x256xf32, #tpu.memory_space<vmem>>, vector<1x1x256xf32>
    %375 = vector.shape_cast %374 : vector<1x1x256xf32> to vector<1x256xf32>
    %376 = vector.broadcast %375 : vector<1x256xf32> to vector<8x256xf32>
    %377 = arith.mulf %373, %376 : vector<8x256xf32>
    %378 = arith.addf %371, %377 : vector<8x256xf32>
    %c0_261 = arith.constant 0 : index
    %c0_262 = arith.constant 0 : index
    %379 = vector.load %arg16[%c0_261, %c0_262] : memref<8x1xf32, #tpu.memory_space<vmem>>, vector<8x1xf32>
    %380 = vector.broadcast %379 : vector<8x1xf32> to vector<8x256xf32>
    %381 = arith.addf %378, %380 : vector<8x256xf32>
    %cst_263 = arith.constant 0.000000e+00 : f32
    %382 = vector.broadcast %cst_263 : f32 to vector<8x256xf32>
    %383 = arith.maximumf %381, %382 : vector<8x256xf32>
    %c0_264 = arith.constant 0 : index
    %c0_265 = arith.constant 0 : index
    %384 = vector.load %arg17[%c0_264, %c0_265] : memref<72x8xbf16, #tpu.memory_space<vmem>>, vector<72x8xbf16>
    %385 = arith.truncf %383 : vector<8x256xf32> to vector<8x256xbf16>
    %cst_266 = arith.constant dense<0.000000e+00> : vector<72x256xf32>
    %386 = tpu.matmul %384, %385, %cst_266 {dimension_numbers = #tpu.dot_dimension_numbers<[1], [0], [0], [1], [0, 0, 1, 1], [], []>} : vector<72x8xbf16>, vector<8x256xbf16>, vector<72x256xf32> -> vector<72x256xf32>
    %387 = vector.extract_strided_slice %386 {offsets = [32, 0], sizes = [8, 256], strides = [1, 1]} : vector<72x256xf32> to vector<8x256xf32>
    %388 = vector.extract_strided_slice %386 {offsets = [0, 0], sizes = [8, 256], strides = [1, 1]} : vector<72x256xf32> to vector<8x256xf32>
    %c17_i32_267 = arith.constant 17 : i32
    %389 = tpu.dynamic_rotate %388 by %c17_i32_267 dim 1 : vector<8x256xf32>, i32 -> vector<8x256xf32>
    %c0_268 = arith.constant 0 : index
    %c0_269 = arith.constant 0 : index
    %c0_270 = arith.constant 0 : index
    %390 = vector.load %arg19[%c0_268, %c0_269, %c0_270] : memref<9x1x256xf32, #tpu.memory_space<vmem>>, vector<1x1x256xf32>
    %391 = vector.shape_cast %390 : vector<1x1x256xf32> to vector<1x256xf32>
    %392 = vector.broadcast %391 : vector<1x256xf32> to vector<8x256xf32>
    %393 = arith.mulf %389, %392 : vector<8x256xf32>
    %394 = arith.addf %387, %393 : vector<8x256xf32>
    %395 = vector.extract_strided_slice %386 {offsets = [8, 0], sizes = [8, 256], strides = [1, 1]} : vector<72x256xf32> to vector<8x256xf32>
    %c16_i32_271 = arith.constant 16 : i32
    %396 = tpu.dynamic_rotate %395 by %c16_i32_271 dim 1 : vector<8x256xf32>, i32 -> vector<8x256xf32>
    %c1_272 = arith.constant 1 : index
    %c0_273 = arith.constant 0 : index
    %c0_274 = arith.constant 0 : index
    %397 = vector.load %arg19[%c1_272, %c0_273, %c0_274] : memref<9x1x256xf32, #tpu.memory_space<vmem>>, vector<1x1x256xf32>
    %398 = vector.shape_cast %397 : vector<1x1x256xf32> to vector<1x256xf32>
    %399 = vector.broadcast %398 : vector<1x256xf32> to vector<8x256xf32>
    %400 = arith.mulf %396, %399 : vector<8x256xf32>
    %401 = arith.addf %394, %400 : vector<8x256xf32>
    %402 = vector.extract_strided_slice %386 {offsets = [16, 0], sizes = [8, 256], strides = [1, 1]} : vector<72x256xf32> to vector<8x256xf32>
    %c15_i32_275 = arith.constant 15 : i32
    %403 = tpu.dynamic_rotate %402 by %c15_i32_275 dim 1 : vector<8x256xf32>, i32 -> vector<8x256xf32>
    %c2_276 = arith.constant 2 : index
    %c0_277 = arith.constant 0 : index
    %c0_278 = arith.constant 0 : index
    %404 = vector.load %arg19[%c2_276, %c0_277, %c0_278] : memref<9x1x256xf32, #tpu.memory_space<vmem>>, vector<1x1x256xf32>
    %405 = vector.shape_cast %404 : vector<1x1x256xf32> to vector<1x256xf32>
    %406 = vector.broadcast %405 : vector<1x256xf32> to vector<8x256xf32>
    %407 = arith.mulf %403, %406 : vector<8x256xf32>
    %408 = arith.addf %401, %407 : vector<8x256xf32>
    %409 = vector.extract_strided_slice %386 {offsets = [24, 0], sizes = [8, 256], strides = [1, 1]} : vector<72x256xf32> to vector<8x256xf32>
    %c1_i32_279 = arith.constant 1 : i32
    %410 = tpu.dynamic_rotate %409 by %c1_i32_279 dim 1 : vector<8x256xf32>, i32 -> vector<8x256xf32>
    %c3_280 = arith.constant 3 : index
    %c0_281 = arith.constant 0 : index
    %c0_282 = arith.constant 0 : index
    %411 = vector.load %arg19[%c3_280, %c0_281, %c0_282] : memref<9x1x256xf32, #tpu.memory_space<vmem>>, vector<1x1x256xf32>
    %412 = vector.shape_cast %411 : vector<1x1x256xf32> to vector<1x256xf32>
    %413 = vector.broadcast %412 : vector<1x256xf32> to vector<8x256xf32>
    %414 = arith.mulf %410, %413 : vector<8x256xf32>
    %415 = arith.addf %408, %414 : vector<8x256xf32>
    %416 = vector.extract_strided_slice %386 {offsets = [40, 0], sizes = [8, 256], strides = [1, 1]} : vector<72x256xf32> to vector<8x256xf32>
    %c255_i32_283 = arith.constant 255 : i32
    %417 = tpu.dynamic_rotate %416 by %c255_i32_283 dim 1 : vector<8x256xf32>, i32 -> vector<8x256xf32>
    %c5_284 = arith.constant 5 : index
    %c0_285 = arith.constant 0 : index
    %c0_286 = arith.constant 0 : index
    %418 = vector.load %arg19[%c5_284, %c0_285, %c0_286] : memref<9x1x256xf32, #tpu.memory_space<vmem>>, vector<1x1x256xf32>
    %419 = vector.shape_cast %418 : vector<1x1x256xf32> to vector<1x256xf32>
    %420 = vector.broadcast %419 : vector<1x256xf32> to vector<8x256xf32>
    %421 = arith.mulf %417, %420 : vector<8x256xf32>
    %422 = arith.addf %415, %421 : vector<8x256xf32>
    %423 = vector.extract_strided_slice %386 {offsets = [48, 0], sizes = [8, 256], strides = [1, 1]} : vector<72x256xf32> to vector<8x256xf32>
    %c241_i32_287 = arith.constant 241 : i32
    %424 = tpu.dynamic_rotate %423 by %c241_i32_287 dim 1 : vector<8x256xf32>, i32 -> vector<8x256xf32>
    %c6_288 = arith.constant 6 : index
    %c0_289 = arith.constant 0 : index
    %c0_290 = arith.constant 0 : index
    %425 = vector.load %arg19[%c6_288, %c0_289, %c0_290] : memref<9x1x256xf32, #tpu.memory_space<vmem>>, vector<1x1x256xf32>
    %426 = vector.shape_cast %425 : vector<1x1x256xf32> to vector<1x256xf32>
    %427 = vector.broadcast %426 : vector<1x256xf32> to vector<8x256xf32>
    %428 = arith.mulf %424, %427 : vector<8x256xf32>
    %429 = arith.addf %422, %428 : vector<8x256xf32>
    %430 = vector.extract_strided_slice %386 {offsets = [56, 0], sizes = [8, 256], strides = [1, 1]} : vector<72x256xf32> to vector<8x256xf32>
    %c240_i32_291 = arith.constant 240 : i32
    %431 = tpu.dynamic_rotate %430 by %c240_i32_291 dim 1 : vector<8x256xf32>, i32 -> vector<8x256xf32>
    %c7_292 = arith.constant 7 : index
    %c0_293 = arith.constant 0 : index
    %c0_294 = arith.constant 0 : index
    %432 = vector.load %arg19[%c7_292, %c0_293, %c0_294] : memref<9x1x256xf32, #tpu.memory_space<vmem>>, vector<1x1x256xf32>
    %433 = vector.shape_cast %432 : vector<1x1x256xf32> to vector<1x256xf32>
    %434 = vector.broadcast %433 : vector<1x256xf32> to vector<8x256xf32>
    %435 = arith.mulf %431, %434 : vector<8x256xf32>
    %436 = arith.addf %429, %435 : vector<8x256xf32>
    %437 = vector.extract_strided_slice %386 {offsets = [64, 0], sizes = [8, 256], strides = [1, 1]} : vector<72x256xf32> to vector<8x256xf32>
    %c239_i32_295 = arith.constant 239 : i32
    %438 = tpu.dynamic_rotate %437 by %c239_i32_295 dim 1 : vector<8x256xf32>, i32 -> vector<8x256xf32>
    %c8_296 = arith.constant 8 : index
    %c0_297 = arith.constant 0 : index
    %c0_298 = arith.constant 0 : index
    %439 = vector.load %arg19[%c8_296, %c0_297, %c0_298] : memref<9x1x256xf32, #tpu.memory_space<vmem>>, vector<1x1x256xf32>
    %440 = vector.shape_cast %439 : vector<1x1x256xf32> to vector<1x256xf32>
    %441 = vector.broadcast %440 : vector<1x256xf32> to vector<8x256xf32>
    %442 = arith.mulf %438, %441 : vector<8x256xf32>
    %443 = arith.addf %436, %442 : vector<8x256xf32>
    %c0_299 = arith.constant 0 : index
    %c0_300 = arith.constant 0 : index
    %444 = vector.load %arg18[%c0_299, %c0_300] : memref<8x1xf32, #tpu.memory_space<vmem>>, vector<8x1xf32>
    %445 = vector.broadcast %444 : vector<8x1xf32> to vector<8x256xf32>
    %446 = arith.addf %443, %445 : vector<8x256xf32>
    %cst_301 = arith.constant 0.000000e+00 : f32
    %447 = vector.broadcast %cst_301 : f32 to vector<8x256xf32>
    %448 = arith.maximumf %446, %447 : vector<8x256xf32>
    %449 = arith.negf %448 : vector<8x256xf32>
    %450 = math.exp %449 : vector<8x256xf32>
    %cst_302 = arith.constant 1.000000e+00 : f32
    %451 = vector.broadcast %cst_302 : f32 to vector<8x256xf32>
    %452 = arith.addf %451, %450 : vector<8x256xf32>
    %453 = arith.divf %451, %452 : vector<8x256xf32>
    %454 = vector.extract_strided_slice %453 {offsets = [0, 0], sizes = [6, 256], strides = [1, 1]} : vector<8x256xf32> to vector<6x256xf32>
    %c0_303 = arith.constant 0 : index
    %c0_304 = arith.constant 0 : index
    %455 = vector.load %arg26[%c0_303, %c0_304] : memref<6x256xf32, #tpu.memory_space<vmem>>, vector<6x256xf32>
    tpu.vector_store %arg26[%c0_303, %c0_304], %454 {strides = array<i32>} : memref<6x256xf32, #tpu.memory_space<vmem>>, vector<6x256xf32>,
    return
  }
  func.func @transform_0(%arg0: i32) -> (i32, i32) {
    %c0_i32 = arith.constant 0 : i32
    %c0_i32_0 = arith.constant 0 : i32
    %c0_i32_1 = arith.constant 0 : i32
    return %c0_i32, %c0_i32_0 : i32, i32
  }
  func.func @transform_1(%arg0: i32) -> (i32, i32) {
    %c0_i32 = arith.constant 0 : i32
    %c0_i32_0 = arith.constant 0 : i32
    %c0_i32_1 = arith.constant 0 : i32
    return %c0_i32, %c0_i32_0 : i32, i32
  }
  func.func @transform_2(%arg0: i32) -> (i32, i32) {
    %c0_i32 = arith.constant 0 : i32
    %c0_i32_0 = arith.constant 0 : i32
    %c0_i32_1 = arith.constant 0 : i32
    return %c0_i32, %c0_i32_0 : i32, i32
  }
  func.func @transform_3(%arg0: i32) -> (i32, i32) {
    %c0_i32 = arith.constant 0 : i32
    %c0_i32_0 = arith.constant 0 : i32
    %c0_i32_1 = arith.constant 0 : i32
    return %c0_i32, %c0_i32_0 : i32, i32
  }
  func.func @transform_4(%arg0: i32) -> (i32, i32) {
    %c0_i32 = arith.constant 0 : i32
    %c0_i32_0 = arith.constant 0 : i32
    %c0_i32_1 = arith.constant 0 : i32
    return %c0_i32, %c0_i32_0 : i32, i32
  }
  func.func @transform_5(%arg0: i32) -> (i32, i32) {
    %c0_i32 = arith.constant 0 : i32
    %c0_i32_0 = arith.constant 0 : i32
    %c0_i32_1 = arith.constant 0 : i32
    return %c0_i32, %c0_i32_0 : i32, i32
  }
  func.func @transform_6(%arg0: i32) -> (i32, i32) {
    %c0_i32 = arith.constant 0 : i32
    %c0_i32_0 = arith.constant 0 : i32
    %c0_i32_1 = arith.constant 0 : i32
    return %c0_i32, %c0_i32_0 : i32, i32
  }
  func.func @transform_7(%arg0: i32) -> (i32, i32) {
    %c0_i32 = arith.constant 0 : i32
    %c0_i32_0 = arith.constant 0 : i32
    %c0_i32_1 = arith.constant 0 : i32
    return %c0_i32, %c0_i32_0 : i32, i32
  }
  func.func @transform_8(%arg0: i32) -> (i32, i32) {
    %c0_i32 = arith.constant 0 : i32
    %c0_i32_0 = arith.constant 0 : i32
    %c0_i32_1 = arith.constant 0 : i32
    return %c0_i32, %c0_i32_0 : i32, i32
  }
  func.func @transform_9(%arg0: i32) -> (i32, i32) {
    %c0_i32 = arith.constant 0 : i32
    %c0_i32_0 = arith.constant 0 : i32
    %c0_i32_1 = arith.constant 0 : i32
    return %c0_i32, %c0_i32_0 : i32, i32
  }
  func.func @transform_10(%arg0: i32) -> (i32, i32) {
    %c0_i32 = arith.constant 0 : i32
    %c0_i32_0 = arith.constant 0 : i32
    %c0_i32_1 = arith.constant 0 : i32
    return %c0_i32, %c0_i32_0 : i32, i32
  }
  func.func @transform_11(%arg0: i32) -> (i32, i32) {
    %c0_i32 = arith.constant 0 : i32
    %c0_i32_0 = arith.constant 0 : i32
    %c0_i32_1 = arith.constant 0 : i32
    return %c0_i32, %c0_i32_0 : i32, i32
  }
  func.func @transform_12(%arg0: i32) -> (i32, i32) {
    %c0_i32 = arith.constant 0 : i32
    %c0_i32_0 = arith.constant 0 : i32
    %c0_i32_1 = arith.constant 0 : i32
    return %c0_i32, %c0_i32_0 : i32, i32
  }
  func.func @transform_13(%arg0: i32) -> (i32, i32) {
    %c0_i32 = arith.constant 0 : i32
    %c0_i32_0 = arith.constant 0 : i32
    %c0_i32_1 = arith.constant 0 : i32
    return %c0_i32, %c0_i32_0 : i32, i32
  }
  func.func @transform_14(%arg0: i32) -> (i32, i32) {
    %c0_i32 = arith.constant 0 : i32
    %c0_i32_0 = arith.constant 0 : i32
    %c0_i32_1 = arith.constant 0 : i32
    return %c0_i32, %c0_i32_0 : i32, i32
  }
  func.func @transform_15(%arg0: i32) -> (i32, i32) {
    %c0_i32 = arith.constant 0 : i32
    %c0_i32_0 = arith.constant 0 : i32
    %c0_i32_1 = arith.constant 0 : i32
    return %c0_i32, %c0_i32_0 : i32, i32
  }
  func.func @transform_16(%arg0: i32) -> (i32, i32) {
    %c0_i32 = arith.constant 0 : i32
    %c0_i32_0 = arith.constant 0 : i32
    %c0_i32_1 = arith.constant 0 : i32
    return %c0_i32, %c0_i32_0 : i32, i32
  }
  func.func @transform_17(%arg0: i32) -> (i32, i32) {
    %c0_i32 = arith.constant 0 : i32
    %c0_i32_0 = arith.constant 0 : i32
    %c0_i32_1 = arith.constant 0 : i32
    return %c0_i32, %c0_i32_0 : i32, i32
  }
  func.func @transform_18(%arg0: i32) -> (i32, i32, i32) {
    %c0_i32 = arith.constant 0 : i32
    %c0_i32_0 = arith.constant 0 : i32
    %c0_i32_1 = arith.constant 0 : i32
    %c0_i32_2 = arith.constant 0 : i32
    return %c0_i32, %c0_i32_0, %c0_i32_1 : i32, i32, i32
  }
  func.func @transform_19(%arg0: i32) -> (i32, i32, i32) {
    %c0_i32 = arith.constant 0 : i32
    %c0_i32_0 = arith.constant 0 : i32
    %c0_i32_1 = arith.constant 0 : i32
    %c0_i32_2 = arith.constant 0 : i32
    return %c0_i32, %c0_i32_0, %c0_i32_1 : i32, i32, i32
  }
  func.func @transform_20(%arg0: i32) -> (i32, i32, i32) {
    %c0_i32 = arith.constant 0 : i32
    %c0_i32_0 = arith.constant 0 : i32
    %c0_i32_1 = arith.constant 0 : i32
    %c0_i32_2 = arith.constant 0 : i32
    return %c0_i32, %c0_i32_0, %c0_i32_1 : i32, i32, i32
  }
  func.func @transform_21(%arg0: i32) -> (i32, i32) {
    %c0_i32 = arith.constant 0 : i32
    %c0_i32_0 = arith.constant 0 : i32
    %c0_i32_1 = arith.constant 0 : i32
    return %c0_i32, %c0_i32_0 : i32, i32
  }
  func.func @transform_22(%arg0: i32) -> (i32, i32, i32) {
    %c0_i32 = arith.constant 0 : i32
    %c0_i32_0 = arith.constant 0 : i32
    %c0_i32_1 = arith.constant 0 : i32
    %c0_i32_2 = arith.constant 0 : i32
    return %c0_i32, %c0_i32_0, %c0_i32_1 : i32, i32, i32
  }
  func.func @transform_23(%arg0: i32) -> (i32, i32) {
    %c0_i32 = arith.constant 0 : i32
    %c0_i32_0 = arith.constant 0 : i32
    %c0_i32_1 = arith.constant 0 : i32
    return %c0_i32, %c0_i32_0 : i32, i32
  }
  func.func @transform_24(%arg0: i32) -> (i32, i32) {
    %c0_i32 = arith.constant 0 : i32
    %c0_i32_0 = arith.constant 0 : i32
    %c0_i32_1 = arith.constant 0 : i32
    return %c0_i32, %c0_i32_0 : i32, i32
  }
  func.func @transform_25(%arg0: i32) -> (i32, i32) {
    %c0_i32 = arith.constant 0 : i32
    %c0_i32_0 = arith.constant 0 : i32
    %c0_i32_1 = arith.constant 0 : i32
    return %c0_i32, %c0_i32_0 : i32, i32
  }
}

</mosaic_0001>

<llo_original>
// kernel: hyper_model_forward.1
$region0: #{hyper_model_forward.1}
  #allocation0 [shape = 'u32[]', space=smem, size = 0x4, offset = 0x4, fixed_abs, tag = 'smem constant byte address 0x4 - core index']
  #allocation1 [shape = 'u32[144,128]{1,0:T(1,128)}', space=vmem, size = 0x12000, scoped, tag = 'internal scratch']
  %s0 = inlined_call_operand.vmem [shape: f32[8,256], index: 0, kind: input, shape index: {}]
  %s1 = inlined_call_operand.vmem [shape: bf16[144,8], index: 1, kind: input, shape index: {}]
  %s2 = inlined_call_operand.vmem [shape: f32[16,1], index: 2, kind: input, shape index: {}]
  %s3 = inlined_call_operand.vmem [shape: bf16[144,16], index: 3, kind: input, shape index: {}]
  %s4 = inlined_call_operand.vmem [shape: f32[16,1], index: 4, kind: input, shape index: {}]
  %s5 = inlined_call_operand.vmem [shape: bf16[288,16], index: 5, kind: input, shape index: {}]
  %s6 = inlined_call_operand.vmem [shape: f32[32,1], index: 6, kind: input, shape index: {}]
  %s7 = inlined_call_operand.vmem [shape: bf16[144,32], index: 7, kind: input, shape index: {}]
  %s8 = inlined_call_operand.vmem [shape: bf16[144,16], index: 8, kind: input, shape index: {}]
  %s9 = inlined_call_operand.vmem [shape: f32[16,1], index: 9, kind: input, shape index: {}]
  %s10 = inlined_call_operand.vmem [shape: bf16[144,16], index: 10, kind: input, shape index: {}]
  %s11 = inlined_call_operand.vmem [shape: bf16[144,16], index: 11, kind: input, shape index: {}]
  %s12 = inlined_call_operand.vmem [shape: f32[16,1], index: 12, kind: input, shape index: {}]
  %s13 = inlined_call_operand.vmem [shape: bf16[72,16], index: 13, kind: input, shape index: {}]
  %s14 = inlined_call_operand.vmem [shape: bf16[72,8], index: 14, kind: input, shape index: {}]
  %s15 = inlined_call_operand.vmem [shape: f32[8,1], index: 15, kind: input, shape index: {}]
  %s16 = inlined_call_operand.vmem [shape: bf16[72,8], index: 16, kind: input, shape index: {}]
  %s17 = inlined_call_operand.vmem [shape: f32[8,1], index: 17, kind: input, shape index: {}]
  %s18 = inlined_call_operand.vmem [shape: f32[9,1,256], index: 18, kind: input, shape index: {}]
  %s19 = inlined_call_operand.vmem [shape: bf16[9,64,64], index: 19, kind: input, shape index: {}]
  %s20 = inlined_call_operand.vmem [shape: bf16[9,16,16], index: 20, kind: input, shape index: {}]
  %s21 = inlined_call_operand.vmem [shape: bf16[256,64], index: 21, kind: input, shape index: {}]
  %s22 = inlined_call_operand.vmem [shape: bf16[4,64,16], index: 22, kind: input, shape index: {}]
  %s23 = inlined_call_operand.vmem [shape: bf16[16,64], index: 23, kind: input, shape index: {}]
  %s24 = inlined_call_operand.vmem [shape: bf16[64,256], index: 24, kind: input, shape index: {}]
  %s25 = inlined_call_operand.vmem [shape: f32[6,256], index: 25, kind: output, shape index: {}]
  %s26 = sld [smem:[#allocation0]]
  $region110: #{hyper_model_forward.1} parent=0
    _
  %s28 = ssub.s32 1, %s26
  %s29 = scalar_select 0, %s28, %s26
  // Predicated region
  $region2: #{hyper_model_forward.1} parent=0 // pred_check
    _
  $region3: #{hyper_model_forward.1} parent=0 // pred_check_branch
    %31 = sbr.rel (0) target = $region5
  $region4: #{hyper_model_forward.1} parent=0 // pred_region
    _
  $region5: #{hyper_model_forward.1} parent=0 // pred_fallthru
    _
  // Predicated region
  $region6: #{hyper_model_forward.1} parent=0 // pred_check
    _
  $region7: #{hyper_model_forward.1} parent=0 // pred_check_branch
    %33 = sbr.rel (0) target = $region9
  $region8: #{hyper_model_forward.1} parent=0 // pred_region
    _
  $region9: #{hyper_model_forward.1} parent=0 // pred_fallthru
    _
  // Predicated region
  $region10: #{hyper_model_forward.1} parent=0 // pred_check
    _
  $region11: #{hyper_model_forward.1} parent=0 // pred_check_branch
    %35 = sbr.rel (0) target = $region13
  $region12: #{hyper_model_forward.1} parent=0 // pred_region
    _
  $region13: #{hyper_model_forward.1} parent=0 // pred_fallthru
    _
  // Predicated region
  $region14: #{hyper_model_forward.1} parent=0 // pred_check
    _
  $region15: #{hyper_model_forward.1} parent=0 // pred_check_branch
    %37 = sbr.rel (0) target = $region17
  $region16: #{hyper_model_forward.1} parent=0 // pred_region
    _
  $region17: #{hyper_model_forward.1} parent=0 // pred_fallthru
    _
  // Predicated region
  $region18: #{hyper_model_forward.1} parent=0 // pred_check
    _
  $region19: #{hyper_model_forward.1} parent=0 // pred_check_branch
    %39 = sbr.rel (0) target = $region21
  $region20: #{hyper_model_forward.1} parent=0 // pred_region
    _
  $region21: #{hyper_model_forward.1} parent=0 // pred_fallthru
    _
  // Predicated region
  $region22: #{hyper_model_forward.1} parent=0 // pred_check
    _
  $region23: #{hyper_model_forward.1} parent=0 // pred_check_branch
    %41 = sbr.rel (0) target = $region25
  $region24: #{hyper_model_forward.1} parent=0 // pred_region
    _
  $region25: #{hyper_model_forward.1} parent=0 // pred_fallthru
    _
  // Predicated region
  $region26: #{hyper_model_forward.1} parent=0 // pred_check
    _
  $region27: #{hyper_model_forward.1} parent=0 // pred_check_branch
    %43 = sbr.rel (0) target = $region29
  $region28: #{hyper_model_forward.1} parent=0 // pred_region
    _
  $region29: #{hyper_model_forward.1} parent=0 // pred_fallthru
    _
  // Predicated region
  $region30: #{hyper_model_forward.1} parent=0 // pred_check
    _
  $region31: #{hyper_model_forward.1} parent=0 // pred_check_branch
    %45 = sbr.rel (0) target = $region33
  $region32: #{hyper_model_forward.1} parent=0 // pred_region
    _
  $region33: #{hyper_model_forward.1} parent=0 // pred_fallthru
    _
  // Predicated region
  $region34: #{hyper_model_forward.1} parent=0 // pred_check
    _
  $region35: #{hyper_model_forward.1} parent=0 // pred_check_branch
    %47 = sbr.rel (0) target = $region37
  $region36: #{hyper_model_forward.1} parent=0 // pred_region
    _
  $region37: #{hyper_model_forward.1} parent=0 // pred_fallthru
    _
  // Predicated region
  $region38: #{hyper_model_forward.1} parent=0 // pred_check
    _
  $region39: #{hyper_model_forward.1} parent=0 // pred_check_branch
    %49 = sbr.rel (0) target = $region41
  $region40: #{hyper_model_forward.1} parent=0 // pred_region
    _
  $region41: #{hyper_model_forward.1} parent=0 // pred_fallthru
    _
  // Predicated region
  $region42: #{hyper_model_forward.1} parent=0 // pred_check
    _
  $region43: #{hyper_model_forward.1} parent=0 // pred_check_branch
    %51 = sbr.rel (0) target = $region45
  $region44: #{hyper_model_forward.1} parent=0 // pred_region
    _
  $region45: #{hyper_model_forward.1} parent=0 // pred_fallthru
    _
  // Predicated region
  $region46: #{hyper_model_forward.1} parent=0 // pred_check
    _
  $region47: #{hyper_model_forward.1} parent=0 // pred_check_branch
    %53 = sbr.rel (0) target = $region49
  $region48: #{hyper_model_forward.1} parent=0 // pred_region
    _
  $region49: #{hyper_model_forward.1} parent=0 // pred_fallthru
    _
  // Predicated region
  $region50: #{hyper_model_forward.1} parent=0 // pred_check
    _
  $region51: #{hyper_model_forward.1} parent=0 // pred_check_branch
    %55 = sbr.rel (0) target = $region53
  $region52: #{hyper_model_forward.1} parent=0 // pred_region
    _
  $region53: #{hyper_model_forward.1} parent=0 // pred_fallthru
    _
  // Predicated region
  $region54: #{hyper_model_forward.1} parent=0 // pred_check
    _
  $region55: #{hyper_model_forward.1} parent=0 // pred_check_branch
    %57 = sbr.rel (0) target = $region57
  $region56: #{hyper_model_forward.1} parent=0 // pred_region
    _
  $region57: #{hyper_model_forward.1} parent=0 // pred_fallthru
    _
  // Predicated region
  $region58: #{hyper_model_forward.1} parent=0 // pred_check
    _
  $region59: #{hyper_model_forward.1} parent=0 // pred_check_branch
    %59 = sbr.rel (0) target = $region61
  $region60: #{hyper_model_forward.1} parent=0 // pred_region
    _
  $region61: #{hyper_model_forward.1} parent=0 // pred_fallthru
    _
  // Predicated region
  $region62: #{hyper_model_forward.1} parent=0 // pred_check
    _
  $region63: #{hyper_model_forward.1} parent=0 // pred_check_branch
    %61 = sbr.rel (0) target = $region65
  $region64: #{hyper_model_forward.1} parent=0 // pred_region
    _
  $region65: #{hyper_model_forward.1} parent=0 // pred_fallthru
    _
  // Predicated region
  $region66: #{hyper_model_forward.1} parent=0 // pred_check
    _
  $region67: #{hyper_model_forward.1} parent=0 // pred_check_branch
    %63 = sbr.rel (0) target = $region69
  $region68: #{hyper_model_forward.1} parent=0 // pred_region
    _
  $region69: #{hyper_model_forward.1} parent=0 // pred_fallthru
    _
  // Predicated region
  $region70: #{hyper_model_forward.1} parent=0 // pred_check
    _
  $region71: #{hyper_model_forward.1} parent=0 // pred_check_branch
    %65 = sbr.rel (0) target = $region73
  $region72: #{hyper_model_forward.1} parent=0 // pred_region
    _
  $region73: #{hyper_model_forward.1} parent=0 // pred_fallthru
    _
  // Predicated region
  $region74: #{hyper_model_forward.1} parent=0 // pred_check
    _
  $region75: #{hyper_model_forward.1} parent=0 // pred_check_branch
    %67 = sbr.rel (0) target = $region77
  $region76: #{hyper_model_forward.1} parent=0 // pred_region
    _
  $region77: #{hyper_model_forward.1} parent=0 // pred_fallthru
    _
  // Predicated region
  $region78: #{hyper_model_forward.1} parent=0 // pred_check
    _
  $region79: #{hyper_model_forward.1} parent=0 // pred_check_branch
    %69 = sbr.rel (0) target = $region81
  $region80: #{hyper_model_forward.1} parent=0 // pred_region
    _
  $region81: #{hyper_model_forward.1} parent=0 // pred_fallthru
    _
  // Predicated region
  $region82: #{hyper_model_forward.1} parent=0 // pred_check
    _
  $region83: #{hyper_model_forward.1} parent=0 // pred_check_branch
    %71 = sbr.rel (0) target = $region85
  $region84: #{hyper_model_forward.1} parent=0 // pred_region
    _
  $region85: #{hyper_model_forward.1} parent=0 // pred_fallthru
    _
  // Predicated region
  $region86: #{hyper_model_forward.1} parent=0 // pred_check
    _
  $region87: #{hyper_model_forward.1} parent=0 // pred_check_branch
    %73 = sbr.rel (0) target = $region89
  $region88: #{hyper_model_forward.1} parent=0 // pred_region
    _
  $region89: #{hyper_model_forward.1} parent=0 // pred_fallthru
    _
  // Predicated region
  $region90: #{hyper_model_forward.1} parent=0 // pred_check
    _
  $region91: #{hyper_model_forward.1} parent=0 // pred_check_branch
    %75 = sbr.rel (0) target = $region93
  $region92: #{hyper_model_forward.1} parent=0 // pred_region
    _
  $region93: #{hyper_model_forward.1} parent=0 // pred_fallthru
    _
  // Predicated region
  $region94: #{hyper_model_forward.1} parent=0 // pred_check
    _
  $region95: #{hyper_model_forward.1} parent=0 // pred_check_branch
    %77 = sbr.rel (0) target = $region97
  $region96: #{hyper_model_forward.1} parent=0 // pred_region
    _
  $region97: #{hyper_model_forward.1} parent=0 // pred_fallthru
    _
  // Predicated region
  $region98: #{hyper_model_forward.1} parent=0 // pred_check
    _
  $region99: #{hyper_model_forward.1} parent=0 // pred_check_branch
    %79 = sbr.rel (0) target = $region101
  $region100: #{hyper_model_forward.1} parent=0 // pred_region
    _
  $region101: #{hyper_model_forward.1} parent=0 // pred_fallthru
    _
  %v81 = vld [vmem:[%s0] sm:$0xff]
  %v82 = vld [vmem:[%s0 + $0x8] sm:$0xff]
  %v83 = vld [vmem:[%s1] sm:$0xf]
  %v84 = vld [vmem:[%s1 + $0x4] sm:$0xf]
  %v85 = vld [vmem:[%s1 + $0x8] sm:$0xf]
  %v86 = vld [vmem:[%s1 + $0xc] sm:$0xf]
  %v87 = vld [vmem:[%s1 + $0x10] sm:$0xf]
  %v88 = vld [vmem:[%s1 + $0x14] sm:$0xf]
  %v89 = vld [vmem:[%s1 + $0x18] sm:$0xf]
  %v90 = vld [vmem:[%s1 + $0x1c] sm:$0xf]
  %v91 = vld [vmem:[%s1 + $0x20] sm:$0xf]
  %v92 = vld [vmem:[%s1 + $0x24] sm:$0xf]
  %v93 = vld [vmem:[%s1 + $0x28] sm:$0xf]
  %v94 = vld [vmem:[%s1 + $0x2c] sm:$0xf]
  %v95 = vld [vmem:[%s1 + $0x30] sm:$0xf]
  %v96 = vld [vmem:[%s1 + $0x34] sm:$0xf]
  %v97 = vld [vmem:[%s1 + $0x38] sm:$0xf]
  %v98 = vld [vmem:[%s1 + $0x3c] sm:$0xf]
  %v99 = vld [vmem:[%s1 + $0x40] sm:$0xf]
  %v100 = vld [vmem:[%s1 + $0x44] sm:$0xf]
  %v101 = vpack.c.bf16 %v81, %v81
  %v102 = vpack.c.bf16 %v82, %v82
  %v121 = vunpack.c.l.b16 %v83
  %v122 = vunpack.c.l.b16 %v84
  %v123 = vunpack.c.l.b16 %v85
  %v124 = vunpack.c.l.b16 %v86
  %v125 = vunpack.c.l.b16 %v87
  %v126 = vunpack.c.l.b16 %v88
  %v127 = vunpack.c.l.b16 %v89
  %v128 = vunpack.c.l.b16 %v90
  %v129 = vunpack.c.l.b16 %v91
  %v130 = vunpack.c.l.b16 %v92
  %v131 = vunpack.c.l.b16 %v93
  %v132 = vunpack.c.l.b16 %v94
  %v133 = vunpack.c.l.b16 %v95
  %v134 = vunpack.c.l.b16 %v96
  %v135 = vunpack.c.l.b16 %v97
  %v136 = vunpack.c.l.b16 %v98
  %v137 = vunpack.c.l.b16 %v99
  %v138 = vunpack.c.l.b16 %v100
  %v139 = vpack.c.b16 %v122, %v121
  %v140 = vpack.c.b16 %v124, %v123
  %v141 = vpack.c.b16 %v126, %v125
  %v142 = vpack.c.b16 %v128, %v127
  %v143 = vpack.c.b16 %v130, %v129
  %v144 = vpack.c.b16 %v132, %v131
  %v145 = vpack.c.b16 %v134, %v133
  %v146 = vpack.c.b16 %v136, %v135
  %v147 = vpack.c.b16 %v138, %v137
  %vm148 = vcmask 64512
  %v150 = vsel %vm148, %v139, 0
  %v153 = vsel %vm148, %v140, 0
  %v156 = vsel %vm148, %v141, 0
  %v159 = vsel %vm148, %v142, 0
  %v162 = vsel %vm148, %v143, 0
  %v165 = vsel %vm148, %v144, 0
  %v168 = vsel %vm148, %v145, 0
  %v171 = vsel %vm148, %v146, 0
  %v174 = vsel %vm148, %v147, 0
  %vm176 = vcmask 1043456
  %v178 = vsel %vm176, %v101, 0
  %v181 = vsel %vm176, %v102, 0
  %183 = vmatprep.subr.bf16.mxu0 %v181
  %184 = vmatpush1.bf16.msra.mxu0 %v178
  %185 = vmatprep.subr.bf16.mxu0 0
  %186 = vmatpush1.bf16.msra.mxu0 0
  %187 = vmatprep.subr.bf16.mxu0 0
  %188 = vmatpush1.bf16.msra.mxu0 0
  %189 = vmatprep.subr.bf16.mxu0 0
  %190 = vmatpush1.bf16.msra.mxu0 0
  %191 = vmatprep.subr.bf16.mxu0 0
  %192 = vmatpush1.bf16.msra.mxu0 0
  %193 = vmatprep.subr.bf16.mxu0 0
  %194 = vmatpush1.bf16.msra.mxu0 0
  %195 = vmatprep.subr.bf16.mxu0 0
  %196 = vmatpush1.bf16.msra.mxu0 0
  %197 = vmatprep.subr.bf16.mxu0 0
  %198 = vmatpush1.bf16.msra.mxu0 0
  %199 = vmatprep.subr.bf16.mxu0 0
  %200 = vmatpush1.bf16.msra.mxu0 0
  %201 = vmatprep.subr.bf16.mxu0 0
  %202 = vmatpush1.bf16.msra.mxu0 0
  %203 = vmatprep.subr.bf16.mxu0 0
  %204 = vmatpush1.bf16.msra.mxu0 0
  %205 = vmatprep.subr.bf16.mxu0 0
  %206 = vmatpush1.bf16.msra.mxu0 0
  %207 = vmatprep.subr.bf16.mxu0 0
  %208 = vmatpush1.bf16.msra.mxu0 0
  %209 = vmatprep.subr.bf16.mxu0 0
  %210 = vmatpush1.bf16.msra.mxu0 0
  %211 = vmatprep.subr.bf16.mxu0 0
  %212 = vmatpush1.bf16.msra.mxu0 0
  %213 = vmatprep.subr.bf16.mxu0 0
  %214 = vmatpush1.bf16.msra.mxu0 0
  %215 = vmatprep.mubr.bf16.mxu0 0
  %216 = vmatmul.mubr.bf16.gmra.mrb[0].mxu0 %v150
  %v217 = vpop.f32.mrb[0].mxu0
  %v218 = vadd.f32 0.0, %v217
  %v219 = vpop.f32.mrb[0].mxu0
  %v220 = vadd.f32 0.0, %v219
  %v221 = vpop.f32.mrb[0].mxu0
  %v222 = vadd.f32 0.0, %v221
  %v223 = vpop.f32.mrb[0].mxu0
  %v224 = vadd.f32 0.0, %v223
  %225 = vmatprep.mubr.bf16.mxu0 0
  %226 = vmatmul.mubr.bf16.gmra.mrb[0].mxu0 %v153
  %v227 = vpop.f32.mrb[0].mxu0
  %v228 = vadd.f32 0.0, %v227
  %v229 = vpop.f32.mrb[0].mxu0
  %v230 = vadd.f32 0.0, %v229
  %v231 = vpop.f32.mrb[0].mxu0
  %v232 = vadd.f32 0.0, %v231
  %v233 = vpop.f32.mrb[0].mxu0
  %v234 = vadd.f32 0.0, %v233
  %235 = vmatprep.mubr.bf16.mxu0 0
  %236 = vmatmul.mubr.bf16.gmra.mrb[0].mxu0 %v156
  %v237 = vpop.f32.mrb[0].mxu0
  %v238 = vadd.f32 0.0, %v237
  %v239 = vpop.f32.mrb[0].mxu0
  %v240 = vadd.f32 0.0, %v239
  %v241 = vpop.f32.mrb[0].mxu0
  %v242 = vadd.f32 0.0, %v241
  %v243 = vpop.f32.mrb[0].mxu0
  %v244 = vadd.f32 0.0, %v243
  %245 = vmatprep.mubr.bf16.mxu0 0
  %246 = vmatmul.mubr.bf16.gmra.mrb[0].mxu0 %v159
  %v247 = vpop.f32.mrb[0].mxu0
  %v248 = vadd.f32 0.0, %v247
  %v249 = vpop.f32.mrb[0].mxu0
  %v250 = vadd.f32 0.0, %v249
  %v251 = vpop.f32.mrb[0].mxu0
  %v252 = vadd.f32 0.0, %v251
  %v253 = vpop.f32.mrb[0].mxu0
  %v254 = vadd.f32 0.0, %v253
  %255 = vmatprep.mubr.bf16.mxu0 0
  %256 = vmatmul.mubr.bf16.gmra.mrb[0].mxu0 %v162
  %v257 = vpop.f32.mrb[0].mxu0
  %v258 = vadd.f32 0.0, %v257
  %v259 = vpop.f32.mrb[0].mxu0
  %v260 = vadd.f32 0.0, %v259
  %v261 = vpop.f32.mrb[0].mxu0
  %v262 = vadd.f32 0.0, %v261
  %v263 = vpop.f32.mrb[0].mxu0
  %v264 = vadd.f32 0.0, %v263
  %265 = vmatprep.mubr.bf16.mxu0 0
  %266 = vmatmul.mubr.bf16.gmra.mrb[0].mxu0 %v165
  %v267 = vpop.f32.mrb[0].mxu0
  %v268 = vadd.f32 0.0, %v267
  %v269 = vpop.f32.mrb[0].mxu0
  %v270 = vadd.f32 0.0, %v269
  %v271 = vpop.f32.mrb[0].mxu0
  %v272 = vadd.f32 0.0, %v271
  %v273 = vpop.f32.mrb[0].mxu0
  %v274 = vadd.f32 0.0, %v273
  %275 = vmatprep.mubr.bf16.mxu0 0
  %276 = vmatmul.mubr.bf16.gmra.mrb[0].mxu0 %v168
  %v277 = vpop.f32.mrb[0].mxu0
  %v278 = vadd.f32 0.0, %v277
  %v279 = vpop.f32.mrb[0].mxu0
  %v280 = vadd.f32 0.0, %v279
  %v281 = vpop.f32.mrb[0].mxu0
  %v282 = vadd.f32 0.0, %v281
  %v283 = vpop.f32.mrb[0].mxu0
  %v284 = vadd.f32 0.0, %v283
  %285 = vmatprep.mubr.bf16.mxu0 0
  %286 = vmatmul.mubr.bf16.gmra.mrb[0].mxu0 %v171
  %v287 = vpop.f32.mrb[0].mxu0
  %v288 = vadd.f32 0.0, %v287
  %v289 = vpop.f32.mrb[0].mxu0
  %v290 = vadd.f32 0.0, %v289
  %v291 = vpop.f32.mrb[0].mxu0
  %v292 = vadd.f32 0.0, %v291
  %v293 = vpop.f32.mrb[0].mxu0
  %v294 = vadd.f32 0.0, %v293
  %295 = vmatprep.mubr.bf16.mxu0 0
  %296 = vmatmul.mubr.bf16.gmra.mrb[0].mxu0 %v174
  %v297 = vpop.f32.mrb[0].mxu0
  %v298 = vadd.f32 0.0, %v297
  %v299 = vpop.f32.mrb[0].mxu0
  %v300 = vadd.f32 0.0, %v299
  %v301 = vpop.f32.mrb[0].mxu0
  %v302 = vadd.f32 0.0, %v301
  %v303 = vpop.f32.mrb[0].mxu0
  %v304 = vadd.f32 0.0, %v303
  %305 = vdwg.mxu0
  %306 = vrot.lane.b32.xlu0 %v218, 17
  %v307 = vpop.permute.xlu0 %306
  %308 = vrot.lane.b32.xlu0 %v222, 17
  %v309 = vpop.permute.xlu0 %308
  %310 = vrot.lane.b32.xlu0 %v220, 17
  %v311 = vpop.permute.xlu0 %310
  %312 = vrot.lane.b32.xlu0 %v224, 17
  %v313 = vpop.permute.xlu0 %312
  %v314 = vlaneseq
  %v315 = vand.u32 %v314, 127
  %vm316 = vcmp.lt.s32.totalorder %v315, 17
  %v317 = vsel %vm316, %v307, %v311
  %v318 = vsel %vm316, %v309, %v313
  %v319 = vsel %vm316, %v311, %v307
  %v320 = vsel %vm316, %v313, %v309
  %v321 = vld [vmem:[%s18] sm:$0x3]
  %v323 = vlaneseq
  %v324 = vshrl.u32 %v323, 7
  %v325 = vsub.s32 0, %v324
  %v326 = vrot.slane %v321, %v325
  %v327 = vlaneseq
  %v328 = vshrl.u32 %v327, 7
  %v329 = vsub.s32 1, %v328
  %v330 = vrot.slane %v321, %v329
  %v333 = vmul.f32 %v319, %v326
  %v334 = vmul.f32 %v317, %v330
  %v335 = vmul.f32 %v320, %v326
  %v336 = vmul.f32 %v318, %v330
  %v337 = vadd.f32 %v258, %v333
  %v338 = vadd.f32 %v260, %v334
  %v339 = vadd.f32 %v262, %v335
  %v340 = vadd.f32 %v264, %v336
  %341 = vrot.lane.b32.xlu0 %v228, 16
  %v342 = vpop.permute.xlu0 %341
  %343 = vrot.lane.b32.xlu0 %v232, 16
  %v344 = vpop.permute.xlu0 %343
  %345 = vrot.lane.b32.xlu0 %v230, 16
  %v346 = vpop.permute.xlu0 %345
  %347 = vrot.lane.b32.xlu0 %v234, 16
  %v348 = vpop.permute.xlu0 %347
  %vm349 = vcmp.lt.s32.totalorder %v315, 16
  %v350 = vsel %vm349, %v342, %v346
  %v351 = vsel %vm349, %v344, %v348
  %v352 = vsel %vm349, %v346, %v342
  %v353 = vsel %vm349, %v348, %v344
  %s354 = scalar_lea.vmem %s18, 2
  %v355 = vld [vmem:[%s354] sm:$0x3]
  %v357 = vlaneseq
  %v358 = vshrl.u32 %v357, 7
  %v359 = vsub.s32 0, %v358
  %v360 = vrot.slane %v355, %v359
  %v361 = vlaneseq
  %v362 = vshrl.u32 %v361, 7
  %v363 = vsub.s32 1, %v362
  %v364 = vrot.slane %v355, %v363
  %v367 = vmul.f32 %v352, %v360
  %v368 = vmul.f32 %v350, %v364
  %v369 = vmul.f32 %v353, %v360
  %v370 = vmul.f32 %v351, %v364
  %v371 = vadd.f32 %v337, %v367
  %v372 = vadd.f32 %v338, %v368
  %v373 = vadd.f32 %v339, %v369
  %v374 = vadd.f32 %v340, %v370
  %375 = vrot.lane.b32.xlu0 %v238, 15
  %v376 = vpop.permute.xlu0 %375
  %377 = vrot.lane.b32.xlu0 %v242, 15
  %v378 = vpop.permute.xlu0 %377
  %379 = vrot.lane.b32.xlu0 %v240, 15
  %v380 = vpop.permute.xlu0 %379
  %381 = vrot.lane.b32.xlu0 %v244, 15
  %v382 = vpop.permute.xlu0 %381
  %vm383 = vcmp.lt.s32.totalorder %v315, 15
  %v384 = vsel %vm383, %v376, %v380
  %v385 = vsel %vm383, %v378, %v382
  %v386 = vsel %vm383, %v380, %v376
  %v387 = vsel %vm383, %v382, %v378
  %s388 = scalar_lea.vmem %s18, 4
  %v389 = vld [vmem:[%s388] sm:$0x3]
  %v391 = vlaneseq
  %v392 = vshrl.u32 %v391, 7
  %v393 = vsub.s32 0, %v392
  %v394 = vrot.slane %v389, %v393
  %v395 = vlaneseq
  %v396 = vshrl.u32 %v395, 7
  %v397 = vsub.s32 1, %v396
  %v398 = vrot.slane %v389, %v397
  %v401 = vmul.f32 %v386, %v394
  %v402 = vmul.f32 %v384, %v398
  %v403 = vmul.f32 %v387, %v394
  %v404 = vmul.f32 %v385, %v398
  %v405 = vadd.f32 %v371, %v401
  %v406 = vadd.f32 %v372, %v402
  %v407 = vadd.f32 %v373, %v403
  %v408 = vadd.f32 %v374, %v404
  %409 = vrot.lane.b32.xlu0 %v248, 1
  %v410 = vpop.permute.xlu0 %409
  %411 = vrot.lane.b32.xlu0 %v252, 1
  %v412 = vpop.permute.xlu0 %411
  %413 = vrot.lane.b32.xlu0 %v250, 1
  %v414 = vpop.permute.xlu0 %413
  %415 = vrot.lane.b32.xlu0 %v254, 1
  %v416 = vpop.permute.xlu0 %415
  %vm417 = vcmp.lt.s32.totalorder %v315, 1
  %v418 = vsel %vm417, %v410, %v414
  %v419 = vsel %vm417, %v412, %v416
  %v420 = vsel %vm417, %v414, %v410
  %v421 = vsel %vm417, %v416, %v412
  %s422 = scalar_lea.vmem %s18, 6
  %v423 = vld [vmem:[%s422] sm:$0x3]
  %v425 = vlaneseq
  %v426 = vshrl.u32 %v425, 7
  %v427 = vsub.s32 0, %v426
  %v428 = vrot.slane %v423, %v427
  %v429 = vlaneseq
  %v430 = vshrl.u32 %v429, 7
  %v431 = vsub.s32 1, %v430
  %v432 = vrot.slane %v423, %v431
  %v435 = vmul.f32 %v420, %v428
  %v436 = vmul.f32 %v418, %v432
  %v437 = vmul.f32 %v421, %v428
  %v438 = vmul.f32 %v419, %v432
  %v439 = vadd.f32 %v405, %v435
  %v440 = vadd.f32 %v406, %v436
  %v441 = vadd.f32 %v407, %v437
  %v442 = vadd.f32 %v408, %v438
  %443 = vrot.lane.b32.xlu0 %v268, 127
  %v444 = vpop.permute.xlu0 %443
  %445 = vrot.lane.b32.xlu0 %v272, 127
  %v446 = vpop.permute.xlu0 %445
  %447 = vrot.lane.b32.xlu0 %v270, 127
  %v448 = vpop.permute.xlu0 %447
  %449 = vrot.lane.b32.xlu0 %v274, 127
  %v450 = vpop.permute.xlu0 %449
  %vm451 = vcmp.lt.s32.totalorder %v315, 127
  %v452 = vsel %vm451, %v444, %v448
  %v453 = vsel %vm451, %v446, %v450
  %v454 = vsel %vm451, %v448, %v444
  %v455 = vsel %vm451, %v450, %v446
  %s456 = scalar_lea.vmem %s18, 10
  %v457 = vld [vmem:[%s456] sm:$0x3]
  %v459 = vlaneseq
  %v460 = vshrl.u32 %v459, 7
  %v461 = vsub.s32 0, %v460
  %v462 = vrot.slane %v457, %v461
  %v463 = vlaneseq
  %v464 = vshrl.u32 %v463, 7
  %v465 = vsub.s32 1, %v464
  %v466 = vrot.slane %v457, %v465
  %v469 = vmul.f32 %v452, %v462
  %v470 = vmul.f32 %v454, %v466
  %v471 = vmul.f32 %v453, %v462
  %v472 = vmul.f32 %v455, %v466
  %v473 = vadd.f32 %v439, %v469
  %v474 = vadd.f32 %v440, %v470
  %v475 = vadd.f32 %v441, %v471
  %v476 = vadd.f32 %v442, %v472
  %477 = vrot.lane.b32.xlu0 %v278, 113
  %v478 = vpop.permute.xlu0 %477
  %479 = vrot.lane.b32.xlu0 %v282, 113
  %v480 = vpop.permute.xlu0 %479
  %481 = vrot.lane.b32.xlu0 %v280, 113
  %v482 = vpop.permute.xlu0 %481
  %483 = vrot.lane.b32.xlu0 %v284, 113
  %v484 = vpop.permute.xlu0 %483
  %vm485 = vcmp.lt.s32.totalorder %v315, 113
  %v486 = vsel %vm485, %v478, %v482
  %v487 = vsel %vm485, %v480, %v484
  %v488 = vsel %vm485, %v482, %v478
  %v489 = vsel %vm485, %v484, %v480
  %s490 = scalar_lea.vmem %s18, 12
  %v491 = vld [vmem:[%s490] sm:$0x3]
  %v493 = vlaneseq
  %v494 = vshrl.u32 %v493, 7
  %v495 = vsub.s32 0, %v494
  %v496 = vrot.slane %v491, %v495
  %v497 = vlaneseq
  %v498 = vshrl.u32 %v497, 7
  %v499 = vsub.s32 1, %v498
  %v500 = vrot.slane %v491, %v499
  %v503 = vmul.f32 %v486, %v496
  %v504 = vmul.f32 %v488, %v500
  %v505 = vmul.f32 %v487, %v496
  %v506 = vmul.f32 %v489, %v500
  %v507 = vadd.f32 %v473, %v503
  %v508 = vadd.f32 %v474, %v504
  %v509 = vadd.f32 %v475, %v505
  %v510 = vadd.f32 %v476, %v506
  %511 = vrot.lane.b32.xlu0 %v288, 112
  %v512 = vpop.permute.xlu0 %511
  %513 = vrot.lane.b32.xlu0 %v292, 112
  %v514 = vpop.permute.xlu0 %513
  %515 = vrot.lane.b32.xlu0 %v290, 112
  %v516 = vpop.permute.xlu0 %515
  %517 = vrot.lane.b32.xlu0 %v294, 112
  %v518 = vpop.permute.xlu0 %517
  %vm519 = vcmp.lt.s32.totalorder %v315, 112
  %v520 = vsel %vm519, %v512, %v516
  %v521 = vsel %vm519, %v514, %v518
  %v522 = vsel %vm519, %v516, %v512
  %v523 = vsel %vm519, %v518, %v514
  %s524 = scalar_lea.vmem %s18, 14
  %v525 = vld [vmem:[%s524] sm:$0x3]
  %v527 = vlaneseq
  %v528 = vshrl.u32 %v527, 7
  %v529 = vsub.s32 0, %v528
  %v530 = vrot.slane %v525, %v529
  %v531 = vlaneseq
  %v532 = vshrl.u32 %v531, 7
  %v533 = vsub.s32 1, %v532
  %v534 = vrot.slane %v525, %v533
  %v537 = vmul.f32 %v520, %v530
  %v538 = vmul.f32 %v522, %v534
  %v539 = vmul.f32 %v521, %v530
  %v540 = vmul.f32 %v523, %v534
  %v541 = vadd.f32 %v507, %v537
  %v542 = vadd.f32 %v508, %v538
  %v543 = vadd.f32 %v509, %v539
  %v544 = vadd.f32 %v510, %v540
  %545 = vrot.lane.b32.xlu0 %v298, 111
  %v546 = vpop.permute.xlu0 %545
  %547 = vrot.lane.b32.xlu0 %v302, 111
  %v548 = vpop.permute.xlu0 %547
  %549 = vrot.lane.b32.xlu0 %v300, 111
  %v550 = vpop.permute.xlu0 %549
  %551 = vrot.lane.b32.xlu0 %v304, 111
  %v552 = vpop.permute.xlu0 %551
  %vm553 = vcmp.lt.s32.totalorder %v315, 111
  %v554 = vsel %vm553, %v546, %v550
  %v555 = vsel %vm553, %v548, %v552
  %v556 = vsel %vm553, %v550, %v546
  %v557 = vsel %vm553, %v552, %v548
  %s558 = scalar_lea.vmem %s18, 16
  %v559 = vld [vmem:[%s558] sm:$0x3]
  %v561 = vlaneseq
  %v562 = vshrl.u32 %v561, 7
  %v563 = vsub.s32 0, %v562
  %v564 = vrot.slane %v559, %v563
  %v565 = vlaneseq
  %v566 = vshrl.u32 %v565, 7
  %v567 = vsub.s32 1, %v566
  %v568 = vrot.slane %v559, %v567
  %v571 = vmul.f32 %v554, %v564
  %v572 = vmul.f32 %v556, %v568
  %v573 = vmul.f32 %v555, %v564
  %v574 = vmul.f32 %v557, %v568
  %v575 = vadd.f32 %v541, %v571
  %v576 = vadd.f32 %v542, %v572
  %v577 = vadd.f32 %v543, %v573
  %v578 = vadd.f32 %v544, %v574
  %v579 = vld [vmem:[%s2] sm:$0xff]
  %v580 = vld [vmem:[%s2 + $0x8] sm:$0xff]
  %582 = vset.pattern.permute.xlu0 0
  %583 = vperm.xlu0 %582, %v579
  %v584 = vpop.permute.xlu0 %583
  %587 = vset.pattern.permute.xlu0 0
  %588 = vperm.xlu0 %587, %v580
  %v589 = vpop.permute.xlu0 %588
  %v591 = vadd.f32 %v575, %v584
  %v592 = vadd.f32 %v576, %v584
  %v593 = vadd.f32 %v577, %v589
  %v594 = vadd.f32 %v578, %v589
  %v595 = vmax.f32 %v591, 0.0
  %v596 = vmax.f32 %v592, 0.0
  %v597 = vmax.f32 %v593, 0.0
  %v598 = vmax.f32 %v594, 0.0
  %599 = vrot.lane.b32.xlu0 %v595, 127
  %v600 = vpop.permute.xlu0 %599
  %601 = vrot.lane.b32.xlu0 %v597, 127
  %v602 = vpop.permute.xlu0 %601
  %603 = vrot.lane.b32.xlu0 %v596, 127
  %v604 = vpop.permute.xlu0 %603
  %605 = vrot.lane.b32.xlu0 %v598, 127
  %v606 = vpop.permute.xlu0 %605
  %v607 = vsel %vm451, %v600, %v604
  %v608 = vsel %vm451, %v602, %v606
  %v609 = vsel %vm451, %v604, %v600
  %v610 = vsel %vm451, %v606, %v602
  %v611 = vmax.f32 %v595, %v607
  %v612 = vmax.f32 %v596, %v609
  %v613 = vmax.f32 %v597, %v608
  %v614 = vmax.f32 %v598, %v610
  %615 = vrot.lane.b32.xlu0 %v611, 112
  %v616 = vpop.permute.xlu0 %615
  %617 = vrot.lane.b32.xlu0 %v613, 112
  %v618 = vpop.permute.xlu0 %617
  %619 = vrot.lane.b32.xlu0 %v612, 112
  %v620 = vpop.permute.xlu0 %619
  %621 = vrot.lane.b32.xlu0 %v614, 112
  %v622 = vpop.permute.xlu0 %621
  %v623 = vsel %vm519, %v616, %v620
  %v624 = vsel %vm519, %v618, %v622
  %v625 = vsel %vm519, %v620, %v616
  %v626 = vsel %vm519, %v622, %v618
  %v627 = vmax.f32 %v611, %v623
  %v628 = vmax.f32 %v612, %v625
  %v629 = vmax.f32 %v613, %v624
  %v630 = vmax.f32 %v614, %v626
  %v631 = vpack.c.bf16 %v629, %v627
  %v632 = vpack.c.bf16 %v630, %v628
  %v633 = vld [vmem:[%s21] sm:$0xf]
  %v634 = vld [vmem:[%s21 + $0x4] sm:$0xf]
  %v635 = vld [vmem:[%s21 + $0x8] sm:$0xf]
  %v636 = vld [vmem:[%s21 + $0xc] sm:$0xf]
  %v637 = vld [vmem:[%s21 + $0x10] sm:$0xf]
  %v638 = vld [vmem:[%s21 + $0x14] sm:$0xf]
  %v639 = vld [vmem:[%s21 + $0x18] sm:$0xf]
  %v640 = vld [vmem:[%s21 + $0x1c] sm:$0xf]
  %v641 = vld [vmem:[%s21 + $0x20] sm:$0xf]
  %v642 = vld [vmem:[%s21 + $0x24] sm:$0xf]
  %v643 = vld [vmem:[%s21 + $0x28] sm:$0xf]
  %v644 = vld [vmem:[%s21 + $0x2c] sm:$0xf]
  %v645 = vld [vmem:[%s21 + $0x30] sm:$0xf]
  %v646 = vld [vmem:[%s21 + $0x34] sm:$0xf]
  %v647 = vld [vmem:[%s21 + $0x38] sm:$0xf]
  %v648 = vld [vmem:[%s21 + $0x3c] sm:$0xf]
  %v649 = vld [vmem:[%s21 + $0x40] sm:$0xf]
  %v650 = vld [vmem:[%s21 + $0x44] sm:$0xf]
  %v651 = vld [vmem:[%s21 + $0x48] sm:$0xf]
  %v652 = vld [vmem:[%s21 + $0x4c] sm:$0xf]
  %v653 = vld [vmem:[%s21 + $0x50] sm:$0xf]
  %v654 = vld [vmem:[%s21 + $0x54] sm:$0xf]
  %v655 = vld [vmem:[%s21 + $0x58] sm:$0xf]
  %v656 = vld [vmem:[%s21 + $0x5c] sm:$0xf]
  %v657 = vld [vmem:[%s21 + $0x60] sm:$0xf]
  %v658 = vld [vmem:[%s21 + $0x64] sm:$0xf]
  %v659 = vld [vmem:[%s21 + $0x68] sm:$0xf]
  %v660 = vld [vmem:[%s21 + $0x6c] sm:$0xf]
  %v661 = vld [vmem:[%s21 + $0x70] sm:$0xf]
  %v662 = vld [vmem:[%s21 + $0x74] sm:$0xf]
  %v663 = vld [vmem:[%s21 + $0x78] sm:$0xf]
  %v664 = vld [vmem:[%s21 + $0x7c] sm:$0xf]
  %v697 = vunpack.c.l.b16 %v633
  %v698 = vunpack.c.l.b16 %v634
  %v699 = vunpack.c.l.b16 %v635
  %v700 = vunpack.c.l.b16 %v636
  %v701 = vunpack.c.l.b16 %v637
  %v702 = vunpack.c.l.b16 %v638
  %v703 = vunpack.c.l.b16 %v639
  %v704 = vunpack.c.l.b16 %v640
  %v705 = vunpack.c.l.b16 %v641
  %v706 = vunpack.c.l.b16 %v642
  %v707 = vunpack.c.l.b16 %v643
  %v708 = vunpack.c.l.b16 %v644
  %v709 = vunpack.c.l.b16 %v645
  %v710 = vunpack.c.l.b16 %v646
  %v711 = vunpack.c.l.b16 %v647
  %v712 = vunpack.c.l.b16 %v648
  %v713 = vunpack.c.l.b16 %v649
  %v714 = vunpack.c.l.b16 %v650
  %v715 = vunpack.c.l.b16 %v651
  %v716 = vunpack.c.l.b16 %v652
  %v717 = vunpack.c.l.b16 %v653
  %v718 = vunpack.c.l.b16 %v654
  %v719 = vunpack.c.l.b16 %v655
  %v720 = vunpack.c.l.b16 %v656
  %v721 = vunpack.c.l.b16 %v657
  %v722 = vunpack.c.l.b16 %v658
  %v723 = vunpack.c.l.b16 %v659
  %v724 = vunpack.c.l.b16 %v660
  %v725 = vunpack.c.l.b16 %v661
  %v726 = vunpack.c.l.b16 %v662
  %v727 = vunpack.c.l.b16 %v663
  %v728 = vunpack.c.l.b16 %v664
  %v729 = vpack.c.b16 %v698, %v697
  %v730 = vpack.c.b16 %v700, %v699
  %v731 = vpack.c.b16 %v702, %v701
  %v732 = vpack.c.b16 %v704, %v703
  %v733 = vpack.c.b16 %v706, %v705
  %v734 = vpack.c.b16 %v708, %v707
  %v735 = vpack.c.b16 %v710, %v709
  %v736 = vpack.c.b16 %v712, %v711
  %v737 = vpack.c.b16 %v714, %v713
  %v738 = vpack.c.b16 %v716, %v715
  %v739 = vpack.c.b16 %v718, %v717
  %v740 = vpack.c.b16 %v720, %v719
  %v741 = vpack.c.b16 %v722, %v721
  %v742 = vpack.c.b16 %v724, %v723
  %v743 = vpack.c.b16 %v726, %v725
  %v744 = vpack.c.b16 %v728, %v727
  %761 = vmatprep.subr.bf16.mxu0 0
  %762 = vmatpush1.bf16.msra.mxu0 %v729
  %763 = vmatprep.subr.bf16.mxu0 0
  %764 = vmatpush1.bf16.msra.mxu0 %v730
  %765 = vmatprep.subr.bf16.mxu0 0
  %766 = vmatpush1.bf16.msra.mxu0 %v731
  %767 = vmatprep.subr.bf16.mxu0 0
  %768 = vmatpush1.bf16.msra.mxu0 %v732
  %769 = vmatprep.subr.bf16.mxu0 0
  %770 = vmatpush1.bf16.msra.mxu0 %v733
  %771 = vmatprep.subr.bf16.mxu0 0
  %772 = vmatpush1.bf16.msra.mxu0 %v734
  %773 = vmatprep.subr.bf16.mxu0 0
  %774 = vmatpush1.bf16.msra.mxu0 %v735
  %775 = vmatprep.subr.bf16.mxu0 0
  %776 = vmatpush1.bf16.msra.mxu0 %v736
  %777 = vmatprep.subr.bf16.mxu0 0
  %778 = vmatpush1.bf16.msra.mxu0 %v737
  %779 = vmatprep.subr.bf16.mxu0 0
  %780 = vmatpush1.bf16.msra.mxu0 %v738
  %781 = vmatprep.subr.bf16.mxu0 0
  %782 = vmatpush1.bf16.msra.mxu0 %v739
  %783 = vmatprep.subr.bf16.mxu0 0
  %784 = vmatpush1.bf16.msra.mxu0 %v740
  %785 = vmatprep.subr.bf16.mxu0 0
  %786 = vmatpush1.bf16.msra.mxu0 %v741
  %787 = vmatprep.subr.bf16.mxu0 0
  %788 = vmatpush1.bf16.msra.mxu0 %v742
  %789 = vmatprep.subr.bf16.mxu0 0
  %790 = vmatpush1.bf16.msra.mxu0 %v743
  %791 = vmatprep.subr.bf16.mxu0 0
  %792 = vmatpush1.bf16.msra.mxu0 %v744
  %793 = vmatprep.mubr.bf16.mxu0 %v632
  %794 = vmatmul.mubr.bf16.gmra.mrb[0].mxu0 %v631
  %v795 = vpop.f32.mrb[0].mxu0
  %v796 = vadd.f32 0.0, %v795
  %v797 = vpop.f32.mrb[0].mxu0
  %v798 = vpop.f32.mrb[0].mxu0
  %v799 = vadd.f32 0.0, %v798
  %v800 = vpop.f32.mrb[0].mxu0
  %801 = vdwg.mxu0
  %v802 = vld [vmem:[%s3] sm:$0xf]
  %v803 = vld [vmem:[%s3 + $0x4] sm:$0xf]
  %v804 = vld [vmem:[%s3 + $0x8] sm:$0xf]
  %v805 = vld [vmem:[%s3 + $0xc] sm:$0xf]
  %v806 = vld [vmem:[%s3 + $0x10] sm:$0xf]
  %v807 = vld [vmem:[%s3 + $0x14] sm:$0xf]
  %v808 = vld [vmem:[%s3 + $0x18] sm:$0xf]
  %v809 = vld [vmem:[%s3 + $0x1c] sm:$0xf]
  %v810 = vld [vmem:[%s3 + $0x20] sm:$0xf]
  %v811 = vld [vmem:[%s3 + $0x24] sm:$0xf]
  %v812 = vld [vmem:[%s3 + $0x28] sm:$0xf]
  %v813 = vld [vmem:[%s3 + $0x2c] sm:$0xf]
  %v814 = vld [vmem:[%s3 + $0x30] sm:$0xf]
  %v815 = vld [vmem:[%s3 + $0x34] sm:$0xf]
  %v816 = vld [vmem:[%s3 + $0x38] sm:$0xf]
  %v817 = vld [vmem:[%s3 + $0x3c] sm:$0xf]
  %v818 = vld [vmem:[%s3 + $0x40] sm:$0xf]
  %v819 = vld [vmem:[%s3 + $0x44] sm:$0xf]
  %v820 = vpack.c.bf16 %v799, %v796
  %v839 = vunpack.c.l.b16 %v802
  %v840 = vunpack.c.l.b16 %v803
  %v841 = vunpack.c.l.b16 %v804
  %v842 = vunpack.c.l.b16 %v805
  %v843 = vunpack.c.l.b16 %v806
  %v844 = vunpack.c.l.b16 %v807
  %v845 = vunpack.c.l.b16 %v808
  %v846 = vunpack.c.l.b16 %v809
  %v847 = vunpack.c.l.b16 %v810
  %v848 = vunpack.c.l.b16 %v811
  %v849 = vunpack.c.l.b16 %v812
  %v850 = vunpack.c.l.b16 %v813
  %v851 = vunpack.c.l.b16 %v814
  %v852 = vunpack.c.l.b16 %v815
  %v853 = vunpack.c.l.b16 %v816
  %v854 = vunpack.c.l.b16 %v817
  %v855 = vunpack.c.l.b16 %v818
  %v856 = vunpack.c.l.b16 %v819
  %v857 = vpack.c.b16 %v840, %v839
  %v858 = vpack.c.b16 %v842, %v841
  %v859 = vpack.c.b16 %v844, %v843
  %v860 = vpack.c.b16 %v846, %v845
  %v861 = vpack.c.b16 %v848, %v847
  %v862 = vpack.c.b16 %v850, %v849
  %v863 = vpack.c.b16 %v852, %v851
  %v864 = vpack.c.b16 %v854, %v853
  %v865 = vpack.c.b16 %v856, %v855
  %vm866 = vcmask 130048
  %v868 = vsel %vm866, %v857, 0
  %v871 = vsel %vm866, %v858, 0
  %v874 = vsel %vm866, %v859, 0
  %v877 = vsel %vm866, %v860, 0
  %v880 = vsel %vm866, %v861, 0
  %v883 = vsel %vm866, %v862, 0
  %v886 = vsel %vm866, %v863, 0
  %v889 = vsel %vm866, %v864, 0
  %v892 = vsel %vm866, %v865, 0
  %894 = vmatprep.subr.bf16.mxu0 0
  %895 = vmatpush1.bf16.msra.mxu0 %v820
  %896 = vmatprep.subr.bf16.mxu0 0
  %897 = vmatpush1.bf16.msra.mxu0 0
  %898 = vmatprep.subr.bf16.mxu0 0
  %899 = vmatpush1.bf16.msra.mxu0 0
  %900 = vmatprep.subr.bf16.mxu0 0
  %901 = vmatpush1.bf16.msra.mxu0 0
  %902 = vmatprep.subr.bf16.mxu0 0
  %903 = vmatpush1.bf16.msra.mxu0 0
  %904 = vmatprep.subr.bf16.mxu0 0
  %905 = vmatpush1.bf16.msra.mxu0 0
  %906 = vmatprep.subr.bf16.mxu0 0
  %907 = vmatpush1.bf16.msra.mxu0 0
  %908 = vmatprep.subr.bf16.mxu0 0
  %909 = vmatpush1.bf16.msra.mxu0 0
  %910 = vmatprep.subr.bf16.mxu0 0
  %911 = vmatpush1.bf16.msra.mxu0 0
  %912 = vmatprep.subr.bf16.mxu0 0
  %913 = vmatpush1.bf16.msra.mxu0 0
  %914 = vmatprep.subr.bf16.mxu0 0
  %915 = vmatpush1.bf16.msra.mxu0 0
  %916 = vmatprep.subr.bf16.mxu0 0
  %917 = vmatpush1.bf16.msra.mxu0 0
  %918 = vmatprep.subr.bf16.mxu0 0
  %919 = vmatpush1.bf16.msra.mxu0 0
  %920 = vmatprep.subr.bf16.mxu0 0
  %921 = vmatpush1.bf16.msra.mxu0 0
  %922 = vmatprep.subr.bf16.mxu0 0
  %923 = vmatpush1.bf16.msra.mxu0 0
  %924 = vmatprep.subr.bf16.mxu0 0
  %925 = vmatpush1.bf16.msra.mxu0 0
  %926 = vmatprep.mubr.bf16.mxu0 0
  %927 = vmatmul.mubr.bf16.gmra.mrb[0].mxu0 %v868
  %v928 = vpop.f32.mrb[0].mxu0
  %v929 = vadd.f32 0.0, %v928
  %v930 = vpop.f32.mrb[0].mxu0
  %v931 = vpop.f32.mrb[0].mxu0
  %v932 = vadd.f32 0.0, %v931
  %v933 = vpop.f32.mrb[0].mxu0
  %934 = vmatprep.mubr.bf16.mxu0 0
  %935 = vmatmul.mubr.bf16.gmra.mrb[0].mxu0 %v871
  %v936 = vpop.f32.mrb[0].mxu0
  %v937 = vadd.f32 0.0, %v936
  %v938 = vpop.f32.mrb[0].mxu0
  %v939 = vpop.f32.mrb[0].mxu0
  %v940 = vadd.f32 0.0, %v939
  %v941 = vpop.f32.mrb[0].mxu0
  %942 = vmatprep.mubr.bf16.mxu0 0
  %943 = vmatmul.mubr.bf16.gmra.mrb[0].mxu0 %v874
  %v944 = vpop.f32.mrb[0].mxu0
  %v945 = vadd.f32 0.0, %v944
  %v946 = vpop.f32.mrb[0].mxu0
  %v947 = vpop.f32.mrb[0].mxu0
  %v948 = vadd.f32 0.0, %v947
  %v949 = vpop.f32.mrb[0].mxu0
  %950 = vmatprep.mubr.bf16.mxu0 0
  %951 = vmatmul.mubr.bf16.gmra.mrb[0].mxu0 %v877
  %v952 = vpop.f32.mrb[0].mxu0
  %v953 = vadd.f32 0.0, %v952
  %v954 = vpop.f32.mrb[0].mxu0
  %v955 = vpop.f32.mrb[0].mxu0
  %v956 = vadd.f32 0.0, %v955
  %v957 = vpop.f32.mrb[0].mxu0
  %958 = vmatprep.mubr.bf16.mxu0 0
  %959 = vmatmul.mubr.bf16.gmra.mrb[0].mxu0 %v880
  %v960 = vpop.f32.mrb[0].mxu0
  %v961 = vadd.f32 0.0, %v960
  %v962 = vpop.f32.mrb[0].mxu0
  %v963 = vpop.f32.mrb[0].mxu0
  %v964 = vadd.f32 0.0, %v963
  %v965 = vpop.f32.mrb[0].mxu0
  %966 = vmatprep.mubr.bf16.mxu0 0
  %967 = vmatmul.mubr.bf16.gmra.mrb[0].mxu0 %v883
  %v968 = vpop.f32.mrb[0].mxu0
  %v969 = vadd.f32 0.0, %v968
  %v970 = vpop.f32.mrb[0].mxu0
  %v971 = vpop.f32.mrb[0].mxu0
  %v972 = vadd.f32 0.0, %v971
  %v973 = vpop.f32.mrb[0].mxu0
  %974 = vmatprep.mubr.bf16.mxu0 0
  %975 = vmatmul.mubr.bf16.gmra.mrb[0].mxu0 %v886
  %v976 = vpop.f32.mrb[0].mxu0
  %v977 = vadd.f32 0.0, %v976
  %v978 = vpop.f32.mrb[0].mxu0
  %v979 = vpop.f32.mrb[0].mxu0
  %v980 = vadd.f32 0.0, %v979
  %v981 = vpop.f32.mrb[0].mxu0
  %982 = vmatprep.mubr.bf16.mxu0 0
  %983 = vmatmul.mubr.bf16.gmra.mrb[0].mxu0 %v889
  %v984 = vpop.f32.mrb[0].mxu0
  %v985 = vadd.f32 0.0, %v984
  %v986 = vpop.f32.mrb[0].mxu0
  %v987 = vpop.f32.mrb[0].mxu0
  %v988 = vadd.f32 0.0, %v987
  %v989 = vpop.f32.mrb[0].mxu0
  %990 = vmatprep.mubr.bf16.mxu0 0
  %991 = vmatmul.mubr.bf16.gmra.mrb[0].mxu0 %v892
  %v992 = vpop.f32.mrb[0].mxu0
  %v993 = vadd.f32 0.0, %v992
  %v994 = vpop.f32.mrb[0].mxu0
  %v995 = vpop.f32.mrb[0].mxu0
  %v996 = vadd.f32 0.0, %v995
  %v997 = vpop.f32.mrb[0].mxu0
  %998 = vdwg.mxu0
  %v999 = vpack.c.bf16 %v932, %v929
  %v1000 = vpack.c.bf16 %v940, %v937
  %v1001 = vpack.c.bf16 %v948, %v945
  %v1002 = vpack.c.bf16 %v956, %v953
  %v1003 = vpack.c.bf16 %v964, %v961
  %v1004 = vpack.c.bf16 %v972, %v969
  %v1005 = vpack.c.bf16 %v980, %v977
  %v1006 = vpack.c.bf16 %v988, %v985
  %v1007 = vpack.c.bf16 %v996, %v993
  %v1008 = vld [vmem:[%s19] sm:$0xf]
  %v1009 = vld [vmem:[%s19 + $0x4] sm:$0xf]
  %v1010 = vld [vmem:[%s19 + $0x8] sm:$0xf]
  %v1011 = vld [vmem:[%s19 + $0xc] sm:$0xf]
  %v1012 = vld [vmem:[%s19 + $0x10] sm:$0xf]
  %v1013 = vld [vmem:[%s19 + $0x14] sm:$0xf]
  %v1014 = vld [vmem:[%s19 + $0x18] sm:$0xf]
  %v1015 = vld [vmem:[%s19 + $0x1c] sm:$0xf]
  %s1016 = scalar_lea.vmem %s19, 32
  %v1017 = vld [vmem:[%s1016] sm:$0xf]
  %v1018 = vld [vmem:[%s1016 + $0x4] sm:$0xf]
  %v1019 = vld [vmem:[%s1016 + $0x8] sm:$0xf]
  %v1020 = vld [vmem:[%s1016 + $0xc] sm:$0xf]
  %v1021 = vld [vmem:[%s1016 + $0x10] sm:$0xf]
  %v1022 = vld [vmem:[%s1016 + $0x14] sm:$0xf]
  %v1023 = vld [vmem:[%s1016 + $0x18] sm:$0xf]
  %v1024 = vld [vmem:[%s1016 + $0x1c] sm:$0xf]
  %v1033 = vunpack.c.l.b16 %v1017
  %v1034 = vunpack.c.l.b16 %v1018
  %v1035 = vunpack.c.l.b16 %v1019
  %v1036 = vunpack.c.l.b16 %v1020
  %v1037 = vunpack.c.l.b16 %v1021
  %v1038 = vunpack.c.l.b16 %v1022
  %v1039 = vunpack.c.l.b16 %v1023
  %v1040 = vunpack.c.l.b16 %v1024
  %v1041 = vpack.c.b16 %v1034, %v1033
  %v1042 = vpack.c.b16 %v1036, %v1035
  %v1043 = vpack.c.b16 %v1038, %v1037
  %v1044 = vpack.c.b16 %v1040, %v1039
  %vm1049 = vcmask 523264
  %v1051 = vsel %vm1049, %v1000, 0
  %1053 = vmatprep.subr.bf16.mxu0 0
  %1054 = vmatpush1.bf16.msra.mxu0 %v1041
  %1055 = vmatprep.subr.bf16.mxu0 0
  %1056 = vmatpush1.bf16.msra.mxu0 %v1042
  %1057 = vmatprep.subr.bf16.mxu0 0
  %1058 = vmatpush1.bf16.msra.mxu0 %v1043
  %1059 = vmatprep.subr.bf16.mxu0 0
  %1060 = vmatpush1.bf16.msra.mxu0 %v1044
  %1061 = vmatprep.subr.bf16.mxu0 0
  %1062 = vmatpush1.bf16.msra.mxu0 0
  %1063 = vmatprep.subr.bf16.mxu0 0
  %1064 = vmatpush1.bf16.msra.mxu0 0
  %1065 = vmatprep.subr.bf16.mxu0 0
  %1066 = vmatpush1.bf16.msra.mxu0 0
  %1067 = vmatprep.subr.bf16.mxu0 0
  %1068 = vmatpush1.bf16.msra.mxu0 0
  %1069 = vmatprep.subr.bf16.mxu0 0
  %1070 = vmatpush1.bf16.msra.mxu0 0
  %1071 = vmatprep.subr.bf16.mxu0 0
  %1072 = vmatpush1.bf16.msra.mxu0 0
  %1073 = vmatprep.subr.bf16.mxu0 0
  %1074 = vmatpush1.bf16.msra.mxu0 0
  %1075 = vmatprep.subr.bf16.mxu0 0
  %1076 = vmatpush1.bf16.msra.mxu0 0
  %1077 = vmatprep.subr.bf16.mxu0 0
  %1078 = vmatpush1.bf16.msra.mxu0 0
  %1079 = vmatprep.subr.bf16.mxu0 0
  %1080 = vmatpush1.bf16.msra.mxu0 0
  %1081 = vmatprep.subr.bf16.mxu0 0
  %1082 = vmatpush1.bf16.msra.mxu0 0
  %1083 = vmatprep.subr.bf16.mxu0 0
  %1084 = vmatpush1.bf16.msra.mxu0 0
  %1085 = vmatprep.mubr.bf16.mxu0 0
  %1086 = vmatmul.mubr.bf16.gmra.mrb[0].mxu0 %v1051
  %v1087 = vpop.f32.mrb[0].mxu0
  %v1088 = vadd.f32 0.0, %v1087
  %v1089 = vpop.f32.mrb[0].mxu0
  %v1090 = vpop.f32.mrb[0].mxu0
  %v1091 = vadd.f32 0.0, %v1090
  %v1092 = vpop.f32.mrb[0].mxu0
  %1093 = vdwg.mxu0
  %v1102 = vunpack.c.l.b16 %v1008
  %v1103 = vunpack.c.l.b16 %v1009
  %v1104 = vunpack.c.l.b16 %v1010
  %v1105 = vunpack.c.l.b16 %v1011
  %v1106 = vunpack.c.l.b16 %v1012
  %v1107 = vunpack.c.l.b16 %v1013
  %v1108 = vunpack.c.l.b16 %v1014
  %v1109 = vunpack.c.l.b16 %v1015
  %v1110 = vpack.c.b16 %v1103, %v1102
  %v1111 = vpack.c.b16 %v1105, %v1104
  %v1112 = vpack.c.b16 %v1107, %v1106
  %v1113 = vpack.c.b16 %v1109, %v1108
  %v1119 = vsel %vm1049, %v999, 0
  %1121 = vmatprep.subr.bf16.mxu0 0
  %1122 = vmatpush1.bf16.msra.mxu0 %v1110
  %1123 = vmatprep.subr.bf16.mxu0 0
  %1124 = vmatpush1.bf16.msra.mxu0 %v1111
  %1125 = vmatprep.subr.bf16.mxu0 0
  %1126 = vmatpush1.bf16.msra.mxu0 %v1112
  %1127 = vmatprep.subr.bf16.mxu0 0
  %1128 = vmatpush1.bf16.msra.mxu0 %v1113
  %1129 = vmatprep.subr.bf16.mxu0 0
  %1130 = vmatpush1.bf16.msra.mxu0 0
  %1131 = vmatprep.subr.bf16.mxu0 0
  %1132 = vmatpush1.bf16.msra.mxu0 0
  %1133 = vmatprep.subr.bf16.mxu0 0
  %1134 = vmatpush1.bf16.msra.mxu0 0
  %1135 = vmatprep.subr.bf16.mxu0 0
  %1136 = vmatpush1.bf16.msra.mxu0 0
  %1137 = vmatprep.subr.bf16.mxu0 0
  %1138 = vmatpush1.bf16.msra.mxu0 0
  %1139 = vmatprep.subr.bf16.mxu0 0
  %1140 = vmatpush1.bf16.msra.mxu0 0
  %1141 = vmatprep.subr.bf16.mxu0 0
  %1142 = vmatpush1.bf16.msra.mxu0 0
  %1143 = vmatprep.subr.bf16.mxu0 0
  %1144 = vmatpush1.bf16.msra.mxu0 0
  %1145 = vmatprep.subr.bf16.mxu0 0
  %1146 = vmatpush1.bf16.msra.mxu0 0
  %1147 = vmatprep.subr.bf16.mxu0 0
  %1148 = vmatpush1.bf16.msra.mxu0 0
  %1149 = vmatprep.subr.bf16.mxu0 0
  %1150 = vmatpush1.bf16.msra.mxu0 0
  %1151 = vmatprep.subr.bf16.mxu0 0
  %1152 = vmatpush1.bf16.msra.mxu0 0
  %1153 = vmatprep.mubr.bf16.mxu0 0
  %1154 = vmatmul.mubr.bf16.gmra.mrb[0].mxu0 %v1119
  %v1155 = vpop.f32.mrb[0].mxu0
  %v1156 = vadd.f32 %v1088, %v1155
  %v1157 = vpop.f32.mrb[0].mxu0
  %v1158 = vpop.f32.mrb[0].mxu0
  %v1159 = vadd.f32 %v1091, %v1158
  %v1160 = vpop.f32.mrb[0].mxu0
  %1161 = vdwg.mxu0
  %s1162 = scalar_lea.vmem %s19, 64
  %v1163 = vld [vmem:[%s1162] sm:$0xf]
  %v1164 = vld [vmem:[%s1162 + $0x4] sm:$0xf]
  %v1165 = vld [vmem:[%s1162 + $0x8] sm:$0xf]
  %v1166 = vld [vmem:[%s1162 + $0xc] sm:$0xf]
  %v1167 = vld [vmem:[%s1162 + $0x10] sm:$0xf]
  %v1168 = vld [vmem:[%s1162 + $0x14] sm:$0xf]
  %v1169 = vld [vmem:[%s1162 + $0x18] sm:$0xf]
  %v1170 = vld [vmem:[%s1162 + $0x1c] sm:$0xf]
  %v1179 = vunpack.c.l.b16 %v1163
  %v1180 = vunpack.c.l.b16 %v1164
  %v1181 = vunpack.c.l.b16 %v1165
  %v1182 = vunpack.c.l.b16 %v1166
  %v1183 = vunpack.c.l.b16 %v1167
  %v1184 = vunpack.c.l.b16 %v1168
  %v1185 = vunpack.c.l.b16 %v1169
  %v1186 = vunpack.c.l.b16 %v1170
  %v1187 = vpack.c.b16 %v1180, %v1179
  %v1188 = vpack.c.b16 %v1182, %v1181
  %v1189 = vpack.c.b16 %v1184, %v1183
  %v1190 = vpack.c.b16 %v1186, %v1185
  %v1196 = vsel %vm1049, %v1001, 0
  %1198 = vmatprep.subr.bf16.mxu0 0
  %1199 = vmatpush1.bf16.msra.mxu0 %v1187
  %1200 = vmatprep.subr.bf16.mxu0 0
  %1201 = vmatpush1.bf16.msra.mxu0 %v1188
  %1202 = vmatprep.subr.bf16.mxu0 0
  %1203 = vmatpush1.bf16.msra.mxu0 %v1189
  %1204 = vmatprep.subr.bf16.mxu0 0
  %1205 = vmatpush1.bf16.msra.mxu0 %v1190
  %1206 = vmatprep.subr.bf16.mxu0 0
  %1207 = vmatpush1.bf16.msra.mxu0 0
  %1208 = vmatprep.subr.bf16.mxu0 0
  %1209 = vmatpush1.bf16.msra.mxu0 0
  %1210 = vmatprep.subr.bf16.mxu0 0
  %1211 = vmatpush1.bf16.msra.mxu0 0
  %1212 = vmatprep.subr.bf16.mxu0 0
  %1213 = vmatpush1.bf16.msra.mxu0 0
  %1214 = vmatprep.subr.bf16.mxu0 0
  %1215 = vmatpush1.bf16.msra.mxu0 0
  %1216 = vmatprep.subr.bf16.mxu0 0
  %1217 = vmatpush1.bf16.msra.mxu0 0
  %1218 = vmatprep.subr.bf16.mxu0 0
  %1219 = vmatpush1.bf16.msra.mxu0 0
  %1220 = vmatprep.subr.bf16.mxu0 0
  %1221 = vmatpush1.bf16.msra.mxu0 0
  %1222 = vmatprep.subr.bf16.mxu0 0
  %1223 = vmatpush1.bf16.msra.mxu0 0
  %1224 = vmatprep.subr.bf16.mxu0 0
  %1225 = vmatpush1.bf16.msra.mxu0 0
  %1226 = vmatprep.subr.bf16.mxu0 0
  %1227 = vmatpush1.bf16.msra.mxu0 0
  %1228 = vmatprep.subr.bf16.mxu0 0
  %1229 = vmatpush1.bf16.msra.mxu0 0
  %1230 = vmatprep.mubr.bf16.mxu0 0
  %1231 = vmatmul.mubr.bf16.gmra.mrb[0].mxu0 %v1196
  %v1232 = vpop.f32.mrb[0].mxu0
  %v1233 = vadd.f32 0.0, %v1232
  %v1234 = vpop.f32.mrb[0].mxu0
  %v1235 = vpop.f32.mrb[0].mxu0
  %v1236 = vadd.f32 0.0, %v1235
  %v1237 = vpop.f32.mrb[0].mxu0
  %1238 = vdwg.mxu0
  %v1239 = vadd.f32 %v1156, %v1233
  %v1240 = vadd.f32 %v1159, %v1236
  %s1241 = scalar_lea.vmem %s19, 96
  %v1242 = vld [vmem:[%s1241] sm:$0xf]
  %v1243 = vld [vmem:[%s1241 + $0x4] sm:$0xf]
  %v1244 = vld [vmem:[%s1241 + $0x8] sm:$0xf]
  %v1245 = vld [vmem:[%s1241 + $0xc] sm:$0xf]
  %v1246 = vld [vmem:[%s1241 + $0x10] sm:$0xf]
  %v1247 = vld [vmem:[%s1241 + $0x14] sm:$0xf]
  %v1248 = vld [vmem:[%s1241 + $0x18] sm:$0xf]
  %v1249 = vld [vmem:[%s1241 + $0x1c] sm:$0xf]
  %v1258 = vunpack.c.l.b16 %v1242
  %v1259 = vunpack.c.l.b16 %v1243
  %v1260 = vunpack.c.l.b16 %v1244
  %v1261 = vunpack.c.l.b16 %v1245
  %v1262 = vunpack.c.l.b16 %v1246
  %v1263 = vunpack.c.l.b16 %v1247
  %v1264 = vunpack.c.l.b16 %v1248
  %v1265 = vunpack.c.l.b16 %v1249
  %v1266 = vpack.c.b16 %v1259, %v1258
  %v1267 = vpack.c.b16 %v1261, %v1260
  %v1268 = vpack.c.b16 %v1263, %v1262
  %v1269 = vpack.c.b16 %v1265, %v1264
  %v1275 = vsel %vm1049, %v1002, 0
  %1277 = vmatprep.subr.bf16.mxu0 0
  %1278 = vmatpush1.bf16.msra.mxu0 %v1266
  %1279 = vmatprep.subr.bf16.mxu0 0
  %1280 = vmatpush1.bf16.msra.mxu0 %v1267
  %1281 = vmatprep.subr.bf16.mxu0 0
  %1282 = vmatpush1.bf16.msra.mxu0 %v1268
  %1283 = vmatprep.subr.bf16.mxu0 0
  %1284 = vmatpush1.bf16.msra.mxu0 %v1269
  %1285 = vmatprep.subr.bf16.mxu0 0
  %1286 = vmatpush1.bf16.msra.mxu0 0
  %1287 = vmatprep.subr.bf16.mxu0 0
  %1288 = vmatpush1.bf16.msra.mxu0 0
  %1289 = vmatprep.subr.bf16.mxu0 0
  %1290 = vmatpush1.bf16.msra.mxu0 0
  %1291 = vmatprep.subr.bf16.mxu0 0
  %1292 = vmatpush1.bf16.msra.mxu0 0
  %1293 = vmatprep.subr.bf16.mxu0 0
  %1294 = vmatpush1.bf16.msra.mxu0 0
  %1295 = vmatprep.subr.bf16.mxu0 0
  %1296 = vmatpush1.bf16.msra.mxu0 0
  %1297 = vmatprep.subr.bf16.mxu0 0
  %1298 = vmatpush1.bf16.msra.mxu0 0
  %1299 = vmatprep.subr.bf16.mxu0 0
  %1300 = vmatpush1.bf16.msra.mxu0 0
  %1301 = vmatprep.subr.bf16.mxu0 0
  %1302 = vmatpush1.bf16.msra.mxu0 0
  %1303 = vmatprep.subr.bf16.mxu0 0
  %1304 = vmatpush1.bf16.msra.mxu0 0
  %1305 = vmatprep.subr.bf16.mxu0 0
  %1306 = vmatpush1.bf16.msra.mxu0 0
  %1307 = vmatprep.subr.bf16.mxu0 0
  %1308 = vmatpush1.bf16.msra.mxu0 0
  %1309 = vmatprep.mubr.bf16.mxu0 0
  %1310 = vmatmul.mubr.bf16.gmra.mrb[0].mxu0 %v1275
  %v1311 = vpop.f32.mrb[0].mxu0
  %v1312 = vadd.f32 0.0, %v1311
  %v1313 = vpop.f32.mrb[0].mxu0
  %v1314 = vpop.f32.mrb[0].mxu0
  %v1315 = vadd.f32 0.0, %v1314
  %v1316 = vpop.f32.mrb[0].mxu0
  %1317 = vdwg.mxu0
  %v1318 = vadd.f32 %v1239, %v1312
  %v1319 = vadd.f32 %v1240, %v1315
  %s1320 = scalar_lea.vmem %s19, 128
  %v1321 = vld [vmem:[%s1320] sm:$0xf]
  %v1322 = vld [vmem:[%s1320 + $0x4] sm:$0xf]
  %v1323 = vld [vmem:[%s1320 + $0x8] sm:$0xf]
  %v1324 = vld [vmem:[%s1320 + $0xc] sm:$0xf]
  %v1325 = vld [vmem:[%s1320 + $0x10] sm:$0xf]
  %v1326 = vld [vmem:[%s1320 + $0x14] sm:$0xf]
  %v1327 = vld [vmem:[%s1320 + $0x18] sm:$0xf]
  %v1328 = vld [vmem:[%s1320 + $0x1c] sm:$0xf]
  %v1337 = vunpack.c.l.b16 %v1321
  %v1338 = vunpack.c.l.b16 %v1322
  %v1339 = vunpack.c.l.b16 %v1323
  %v1340 = vunpack.c.l.b16 %v1324
  %v1341 = vunpack.c.l.b16 %v1325
  %v1342 = vunpack.c.l.b16 %v1326
  %v1343 = vunpack.c.l.b16 %v1327
  %v1344 = vunpack.c.l.b16 %v1328
  %v1345 = vpack.c.b16 %v1338, %v1337
  %v1346 = vpack.c.b16 %v1340, %v1339
  %v1347 = vpack.c.b16 %v1342, %v1341
  %v1348 = vpack.c.b16 %v1344, %v1343
  %v1354 = vsel %vm1049, %v1003, 0
  %1356 = vmatprep.subr.bf16.mxu0 0
  %1357 = vmatpush1.bf16.msra.mxu0 %v1345
  %1358 = vmatprep.subr.bf16.mxu0 0
  %1359 = vmatpush1.bf16.msra.mxu0 %v1346
  %1360 = vmatprep.subr.bf16.mxu0 0
  %1361 = vmatpush1.bf16.msra.mxu0 %v1347
  %1362 = vmatprep.subr.bf16.mxu0 0
  %1363 = vmatpush1.bf16.msra.mxu0 %v1348
  %1364 = vmatprep.subr.bf16.mxu0 0
  %1365 = vmatpush1.bf16.msra.mxu0 0
  %1366 = vmatprep.subr.bf16.mxu0 0
  %1367 = vmatpush1.bf16.msra.mxu0 0
  %1368 = vmatprep.subr.bf16.mxu0 0
  %1369 = vmatpush1.bf16.msra.mxu0 0
  %1370 = vmatprep.subr.bf16.mxu0 0
  %1371 = vmatpush1.bf16.msra.mxu0 0
  %1372 = vmatprep.subr.bf16.mxu0 0
  %1373 = vmatpush1.bf16.msra.mxu0 0
  %1374 = vmatprep.subr.bf16.mxu0 0
  %1375 = vmatpush1.bf16.msra.mxu0 0
  %1376 = vmatprep.subr.bf16.mxu0 0
  %1377 = vmatpush1.bf16.msra.mxu0 0
  %1378 = vmatprep.subr.bf16.mxu0 0
  %1379 = vmatpush1.bf16.msra.mxu0 0
  %1380 = vmatprep.subr.bf16.mxu0 0
  %1381 = vmatpush1.bf16.msra.mxu0 0
  %1382 = vmatprep.subr.bf16.mxu0 0
  %1383 = vmatpush1.bf16.msra.mxu0 0
  %1384 = vmatprep.subr.bf16.mxu0 0
  %1385 = vmatpush1.bf16.msra.mxu0 0
  %1386 = vmatprep.subr.bf16.mxu0 0
  %1387 = vmatpush1.bf16.msra.mxu0 0
  %1388 = vmatprep.mubr.bf16.mxu0 0
  %1389 = vmatmul.mubr.bf16.gmra.mrb[0].mxu0 %v1354
  %v1390 = vpop.f32.mrb[0].mxu0
  %v1391 = vadd.f32 0.0, %v1390
  %v1392 = vpop.f32.mrb[0].mxu0
  %v1393 = vpop.f32.mrb[0].mxu0
  %v1394 = vadd.f32 0.0, %v1393
  %v1395 = vpop.f32.mrb[0].mxu0
  %1396 = vdwg.mxu0
  %v1397 = vadd.f32 %v1318, %v1391
  %v1398 = vadd.f32 %v1319, %v1394
  %s1399 = scalar_lea.vmem %s19, 160
  %v1400 = vld [vmem:[%s1399] sm:$0xf]
  %v1401 = vld [vmem:[%s1399 + $0x4] sm:$0xf]
  %v1402 = vld [vmem:[%s1399 + $0x8] sm:$0xf]
  %v1403 = vld [vmem:[%s1399 + $0xc] sm:$0xf]
  %v1404 = vld [vmem:[%s1399 + $0x10] sm:$0xf]
  %v1405 = vld [vmem:[%s1399 + $0x14] sm:$0xf]
  %v1406 = vld [vmem:[%s1399 + $0x18] sm:$0xf]
  %v1407 = vld [vmem:[%s1399 + $0x1c] sm:$0xf]
  %v1416 = vunpack.c.l.b16 %v1400
  %v1417 = vunpack.c.l.b16 %v1401
  %v1418 = vunpack.c.l.b16 %v1402
  %v1419 = vunpack.c.l.b16 %v1403
  %v1420 = vunpack.c.l.b16 %v1404
  %v1421 = vunpack.c.l.b16 %v1405
  %v1422 = vunpack.c.l.b16 %v1406
  %v1423 = vunpack.c.l.b16 %v1407
  %v1424 = vpack.c.b16 %v1417, %v1416
  %v1425 = vpack.c.b16 %v1419, %v1418
  %v1426 = vpack.c.b16 %v1421, %v1420
  %v1427 = vpack.c.b16 %v1423, %v1422
  %v1433 = vsel %vm1049, %v1004, 0
  %1435 = vmatprep.subr.bf16.mxu0 0
  %1436 = vmatpush1.bf16.msra.mxu0 %v1424
  %1437 = vmatprep.subr.bf16.mxu0 0
  %1438 = vmatpush1.bf16.msra.mxu0 %v1425
  %1439 = vmatprep.subr.bf16.mxu0 0
  %1440 = vmatpush1.bf16.msra.mxu0 %v1426
  %1441 = vmatprep.subr.bf16.mxu0 0
  %1442 = vmatpush1.bf16.msra.mxu0 %v1427
  %1443 = vmatprep.subr.bf16.mxu0 0
  %1444 = vmatpush1.bf16.msra.mxu0 0
  %1445 = vmatprep.subr.bf16.mxu0 0
  %1446 = vmatpush1.bf16.msra.mxu0 0
  %1447 = vmatprep.subr.bf16.mxu0 0
  %1448 = vmatpush1.bf16.msra.mxu0 0
  %1449 = vmatprep.subr.bf16.mxu0 0
  %1450 = vmatpush1.bf16.msra.mxu0 0
  %1451 = vmatprep.subr.bf16.mxu0 0
  %1452 = vmatpush1.bf16.msra.mxu0 0
  %1453 = vmatprep.subr.bf16.mxu0 0
  %1454 = vmatpush1.bf16.msra.mxu0 0
  %1455 = vmatprep.subr.bf16.mxu0 0
  %1456 = vmatpush1.bf16.msra.mxu0 0
  %1457 = vmatprep.subr.bf16.mxu0 0
  %1458 = vmatpush1.bf16.msra.mxu0 0
  %1459 = vmatprep.subr.bf16.mxu0 0
  %1460 = vmatpush1.bf16.msra.mxu0 0
  %1461 = vmatprep.subr.bf16.mxu0 0
  %1462 = vmatpush1.bf16.msra.mxu0 0
  %1463 = vmatprep.subr.bf16.mxu0 0
  %1464 = vmatpush1.bf16.msra.mxu0 0
  %1465 = vmatprep.subr.bf16.mxu0 0
  %1466 = vmatpush1.bf16.msra.mxu0 0
  %1467 = vmatprep.mubr.bf16.mxu0 0
  %1468 = vmatmul.mubr.bf16.gmra.mrb[0].mxu0 %v1433
  %v1469 = vpop.f32.mrb[0].mxu0
  %v1470 = vadd.f32 0.0, %v1469
  %v1471 = vpop.f32.mrb[0].mxu0
  %v1472 = vpop.f32.mrb[0].mxu0
  %v1473 = vadd.f32 0.0, %v1472
  %v1474 = vpop.f32.mrb[0].mxu0
  %1475 = vdwg.mxu0
  %v1476 = vadd.f32 %v1397, %v1470
  %v1477 = vadd.f32 %v1398, %v1473
  %s1478 = scalar_lea.vmem %s19, 192
  %v1479 = vld [vmem:[%s1478] sm:$0xf]
  %v1480 = vld [vmem:[%s1478 + $0x4] sm:$0xf]
  %v1481 = vld [vmem:[%s1478 + $0x8] sm:$0xf]
  %v1482 = vld [vmem:[%s1478 + $0xc] sm:$0xf]
  %v1483 = vld [vmem:[%s1478 + $0x10] sm:$0xf]
  %v1484 = vld [vmem:[%s1478 + $0x14] sm:$0xf]
  %v1485 = vld [vmem:[%s1478 + $0x18] sm:$0xf]
  %v1486 = vld [vmem:[%s1478 + $0x1c] sm:$0xf]
  %v1495 = vunpack.c.l.b16 %v1479
  %v1496 = vunpack.c.l.b16 %v1480
  %v1497 = vunpack.c.l.b16 %v1481
  %v1498 = vunpack.c.l.b16 %v1482
  %v1499 = vunpack.c.l.b16 %v1483
  %v1500 = vunpack.c.l.b16 %v1484
  %v1501 = vunpack.c.l.b16 %v1485
  %v1502 = vunpack.c.l.b16 %v1486
  %v1503 = vpack.c.b16 %v1496, %v1495
  %v1504 = vpack.c.b16 %v1498, %v1497
  %v1505 = vpack.c.b16 %v1500, %v1499
  %v1506 = vpack.c.b16 %v1502, %v1501
  %v1512 = vsel %vm1049, %v1005, 0
  %1514 = vmatprep.subr.bf16.mxu0 0
  %1515 = vmatpush1.bf16.msra.mxu0 %v1503
  %1516 = vmatprep.subr.bf16.mxu0 0
  %1517 = vmatpush1.bf16.msra.mxu0 %v1504
  %1518 = vmatprep.subr.bf16.mxu0 0
  %1519 = vmatpush1.bf16.msra.mxu0 %v1505
  %1520 = vmatprep.subr.bf16.mxu0 0
  %1521 = vmatpush1.bf16.msra.mxu0 %v1506
  %1522 = vmatprep.subr.bf16.mxu0 0
  %1523 = vmatpush1.bf16.msra.mxu0 0
  %1524 = vmatprep.subr.bf16.mxu0 0
  %1525 = vmatpush1.bf16.msra.mxu0 0
  %1526 = vmatprep.subr.bf16.mxu0 0
  %1527 = vmatpush1.bf16.msra.mxu0 0
  %1528 = vmatprep.subr.bf16.mxu0 0
  %1529 = vmatpush1.bf16.msra.mxu0 0
  %1530 = vmatprep.subr.bf16.mxu0 0
  %1531 = vmatpush1.bf16.msra.mxu0 0
  %1532 = vmatprep.subr.bf16.mxu0 0
  %1533 = vmatpush1.bf16.msra.mxu0 0
  %1534 = vmatprep.subr.bf16.mxu0 0
  %1535 = vmatpush1.bf16.msra.mxu0 0
  %1536 = vmatprep.subr.bf16.mxu0 0
  %1537 = vmatpush1.bf16.msra.mxu0 0
  %1538 = vmatprep.subr.bf16.mxu0 0
  %1539 = vmatpush1.bf16.msra.mxu0 0
  %1540 = vmatprep.subr.bf16.mxu0 0
  %1541 = vmatpush1.bf16.msra.mxu0 0
  %1542 = vmatprep.subr.bf16.mxu0 0
  %1543 = vmatpush1.bf16.msra.mxu0 0
  %1544 = vmatprep.subr.bf16.mxu0 0
  %1545 = vmatpush1.bf16.msra.mxu0 0
  %1546 = vmatprep.mubr.bf16.mxu0 0
  %1547 = vmatmul.mubr.bf16.gmra.mrb[0].mxu0 %v1512
  %v1548 = vpop.f32.mrb[0].mxu0
  %v1549 = vadd.f32 0.0, %v1548
  %v1550 = vpop.f32.mrb[0].mxu0
  %v1551 = vpop.f32.mrb[0].mxu0
  %v1552 = vadd.f32 0.0, %v1551
  %v1553 = vpop.f32.mrb[0].mxu0
  %1554 = vdwg.mxu0
  %v1555 = vadd.f32 %v1476, %v1549
  %v1556 = vadd.f32 %v1477, %v1552
  %s1557 = scalar_lea.vmem %s19, 224
  %v1558 = vld [vmem:[%s1557] sm:$0xf]
  %v1559 = vld [vmem:[%s1557 + $0x4] sm:$0xf]
  %v1560 = vld [vmem:[%s1557 + $0x8] sm:$0xf]
  %v1561 = vld [vmem:[%s1557 + $0xc] sm:$0xf]
  %v1562 = vld [vmem:[%s1557 + $0x10] sm:$0xf]
  %v1563 = vld [vmem:[%s1557 + $0x14] sm:$0xf]
  %v1564 = vld [vmem:[%s1557 + $0x18] sm:$0xf]
  %v1565 = vld [vmem:[%s1557 + $0x1c] sm:$0xf]
  %v1574 = vunpack.c.l.b16 %v1558
  %v1575 = vunpack.c.l.b16 %v1559
  %v1576 = vunpack.c.l.b16 %v1560
  %v1577 = vunpack.c.l.b16 %v1561
  %v1578 = vunpack.c.l.b16 %v1562
  %v1579 = vunpack.c.l.b16 %v1563
  %v1580 = vunpack.c.l.b16 %v1564
  %v1581 = vunpack.c.l.b16 %v1565
  %v1582 = vpack.c.b16 %v1575, %v1574
  %v1583 = vpack.c.b16 %v1577, %v1576
  %v1584 = vpack.c.b16 %v1579, %v1578
  %v1585 = vpack.c.b16 %v1581, %v1580
  %v1591 = vsel %vm1049, %v1006, 0
  %1593 = vmatprep.subr.bf16.mxu0 0
  %1594 = vmatpush1.bf16.msra.mxu0 %v1582
  %1595 = vmatprep.subr.bf16.mxu0 0
  %1596 = vmatpush1.bf16.msra.mxu0 %v1583
  %1597 = vmatprep.subr.bf16.mxu0 0
  %1598 = vmatpush1.bf16.msra.mxu0 %v1584
  %1599 = vmatprep.subr.bf16.mxu0 0
  %1600 = vmatpush1.bf16.msra.mxu0 %v1585
  %1601 = vmatprep.subr.bf16.mxu0 0
  %1602 = vmatpush1.bf16.msra.mxu0 0
  %1603 = vmatprep.subr.bf16.mxu0 0
  %1604 = vmatpush1.bf16.msra.mxu0 0
  %1605 = vmatprep.subr.bf16.mxu0 0
  %1606 = vmatpush1.bf16.msra.mxu0 0
  %1607 = vmatprep.subr.bf16.mxu0 0
  %1608 = vmatpush1.bf16.msra.mxu0 0
  %1609 = vmatprep.subr.bf16.mxu0 0
  %1610 = vmatpush1.bf16.msra.mxu0 0
  %1611 = vmatprep.subr.bf16.mxu0 0
  %1612 = vmatpush1.bf16.msra.mxu0 0
  %1613 = vmatprep.subr.bf16.mxu0 0
  %1614 = vmatpush1.bf16.msra.mxu0 0
  %1615 = vmatprep.subr.bf16.mxu0 0
  %1616 = vmatpush1.bf16.msra.mxu0 0
  %1617 = vmatprep.subr.bf16.mxu0 0
  %1618 = vmatpush1.bf16.msra.mxu0 0
  %1619 = vmatprep.subr.bf16.mxu0 0
  %1620 = vmatpush1.bf16.msra.mxu0 0
  %1621 = vmatprep.subr.bf16.mxu0 0
  %1622 = vmatpush1.bf16.msra.mxu0 0
  %1623 = vmatprep.subr.bf16.mxu0 0
  %1624 = vmatpush1.bf16.msra.mxu0 0
  %1625 = vmatprep.mubr.bf16.mxu0 0
  %1626 = vmatmul.mubr.bf16.gmra.mrb[0].mxu0 %v1591
  %v1627 = vpop.f32.mrb[0].mxu0
  %v1628 = vadd.f32 0.0, %v1627
  %v1629 = vpop.f32.mrb[0].mxu0
  %v1630 = vpop.f32.mrb[0].mxu0
  %v1631 = vadd.f32 0.0, %v1630
  %v1632 = vpop.f32.mrb[0].mxu0
  %1633 = vdwg.mxu0
  %v1634 = vadd.f32 %v1555, %v1628
  %v1635 = vadd.f32 %v1556, %v1631
  %s1636 = scalar_lea.vmem %s19, 256
  %v1637 = vld [vmem:[%s1636] sm:$0xf]
  %v1638 = vld [vmem:[%s1636 + $0x4] sm:$0xf]
  %v1639 = vld [vmem:[%s1636 + $0x8] sm:$0xf]
  %v1640 = vld [vmem:[%s1636 + $0xc] sm:$0xf]
  %v1641 = vld [vmem:[%s1636 + $0x10] sm:$0xf]
  %v1642 = vld [vmem:[%s1636 + $0x14] sm:$0xf]
  %v1643 = vld [vmem:[%s1636 + $0x18] sm:$0xf]
  %v1644 = vld [vmem:[%s1636 + $0x1c] sm:$0xf]
  %v1653 = vunpack.c.l.b16 %v1637
  %v1654 = vunpack.c.l.b16 %v1638
  %v1655 = vunpack.c.l.b16 %v1639
  %v1656 = vunpack.c.l.b16 %v1640
  %v1657 = vunpack.c.l.b16 %v1641
  %v1658 = vunpack.c.l.b16 %v1642
  %v1659 = vunpack.c.l.b16 %v1643
  %v1660 = vunpack.c.l.b16 %v1644
  %v1661 = vpack.c.b16 %v1654, %v1653
  %v1662 = vpack.c.b16 %v1656, %v1655
  %v1663 = vpack.c.b16 %v1658, %v1657
  %v1664 = vpack.c.b16 %v1660, %v1659
  %v1670 = vsel %vm1049, %v1007, 0
  %1672 = vmatprep.subr.bf16.mxu0 0
  %1673 = vmatpush1.bf16.msra.mxu0 %v1661
  %1674 = vmatprep.subr.bf16.mxu0 0
  %1675 = vmatpush1.bf16.msra.mxu0 %v1662
  %1676 = vmatprep.subr.bf16.mxu0 0
  %1677 = vmatpush1.bf16.msra.mxu0 %v1663
  %1678 = vmatprep.subr.bf16.mxu0 0
  %1679 = vmatpush1.bf16.msra.mxu0 %v1664
  %1680 = vmatprep.subr.bf16.mxu0 0
  %1681 = vmatpush1.bf16.msra.mxu0 0
  %1682 = vmatprep.subr.bf16.mxu0 0
  %1683 = vmatpush1.bf16.msra.mxu0 0
  %1684 = vmatprep.subr.bf16.mxu0 0
  %1685 = vmatpush1.bf16.msra.mxu0 0
  %1686 = vmatprep.subr.bf16.mxu0 0
  %1687 = vmatpush1.bf16.msra.mxu0 0
  %1688 = vmatprep.subr.bf16.mxu0 0
  %1689 = vmatpush1.bf16.msra.mxu0 0
  %1690 = vmatprep.subr.bf16.mxu0 0
  %1691 = vmatpush1.bf16.msra.mxu0 0
  %1692 = vmatprep.subr.bf16.mxu0 0
  %1693 = vmatpush1.bf16.msra.mxu0 0
  %1694 = vmatprep.subr.bf16.mxu0 0
  %1695 = vmatpush1.bf16.msra.mxu0 0
  %1696 = vmatprep.subr.bf16.mxu0 0
  %1697 = vmatpush1.bf16.msra.mxu0 0
  %1698 = vmatprep.subr.bf16.mxu0 0
  %1699 = vmatpush1.bf16.msra.mxu0 0
  %1700 = vmatprep.subr.bf16.mxu0 0
  %1701 = vmatpush1.bf16.msra.mxu0 0
  %1702 = vmatprep.subr.bf16.mxu0 0
  %1703 = vmatpush1.bf16.msra.mxu0 0
  %1704 = vmatprep.mubr.bf16.mxu0 0
  %1705 = vmatmul.mubr.bf16.gmra.mrb[0].mxu0 %v1670
  %v1706 = vpop.f32.mrb[0].mxu0
  %v1707 = vadd.f32 0.0, %v1706
  %v1708 = vpop.f32.mrb[0].mxu0
  %v1709 = vpop.f32.mrb[0].mxu0
  %v1710 = vadd.f32 0.0, %v1709
  %v1711 = vpop.f32.mrb[0].mxu0
  %1712 = vdwg.mxu0
  %v1713 = vadd.f32 %v1634, %v1707
  %v1714 = vadd.f32 %v1635, %v1710
  %v1715 = vld [vmem:[%s4] sm:$0xff]
  %v1716 = vld [vmem:[%s4 + $0x8] sm:$0xff]
  %1718 = vset.pattern.permute.xlu0 0
  %1719 = vperm.xlu0 %1718, %v1715
  %v1720 = vpop.permute.xlu0 %1719
  %1723 = vset.pattern.permute.xlu0 0
  %1724 = vperm.xlu0 %1723, %v1716
  %v1725 = vpop.permute.xlu0 %1724
  %v1727 = vadd.f32 %v1713, %v1720
  %v1728 = vadd.f32 %v1714, %v1725
  %v1729 = vmax.f32 %v1727, 0.0
  %v1730 = vmax.f32 %v1728, 0.0
  %v1731 = vpack.c.bf16 %v1730, %v1729
  %v1732 = vld [vmem:[%s22] sm:$0xf]
  %v1733 = vld [vmem:[%s22 + $0x4] sm:$0xf]
  %v1734 = vld [vmem:[%s22 + $0x8] sm:$0xf]
  %v1735 = vld [vmem:[%s22 + $0xc] sm:$0xf]
  %v1736 = vld [vmem:[%s22 + $0x10] sm:$0xf]
  %v1737 = vld [vmem:[%s22 + $0x14] sm:$0xf]
  %v1738 = vld [vmem:[%s22 + $0x18] sm:$0xf]
  %v1739 = vld [vmem:[%s22 + $0x1c] sm:$0xf]
  %v1748 = vunpack.c.l.b16 %v1732
  %v1749 = vunpack.c.l.b16 %v1733
  %v1750 = vunpack.c.l.b16 %v1734
  %v1751 = vunpack.c.l.b16 %v1735
  %v1752 = vunpack.c.l.b16 %v1736
  %v1753 = vunpack.c.l.b16 %v1737
  %v1754 = vunpack.c.l.b16 %v1738
  %v1755 = vunpack.c.l.b16 %v1739
  %v1756 = vpack.c.b16 %v1749, %v1748
  %v1757 = vpack.c.b16 %v1751, %v1750
  %v1758 = vpack.c.b16 %v1753, %v1752
  %v1759 = vpack.c.b16 %v1755, %v1754
  %v1765 = vsel %vm1049, %v1731, 0
  %1767 = vmatprep.subr.bf16.mxu0 0
  %1768 = vmatpush1.bf16.msra.mxu0 %v1756
  %1769 = vmatprep.subr.bf16.mxu0 0
  %1770 = vmatpush1.bf16.msra.mxu0 %v1757
  %1771 = vmatprep.subr.bf16.mxu0 0
  %1772 = vmatpush1.bf16.msra.mxu0 %v1758
  %1773 = vmatprep.subr.bf16.mxu0 0
  %1774 = vmatpush1.bf16.msra.mxu0 %v1759
  %1775 = vmatprep.subr.bf16.mxu0 0
  %1776 = vmatpush1.bf16.msra.mxu0 0
  %1777 = vmatprep.subr.bf16.mxu0 0
  %1778 = vmatpush1.bf16.msra.mxu0 0
  %1779 = vmatprep.subr.bf16.mxu0 0
  %1780 = vmatpush1.bf16.msra.mxu0 0
  %1781 = vmatprep.subr.bf16.mxu0 0
  %1782 = vmatpush1.bf16.msra.mxu0 0
  %1783 = vmatprep.subr.bf16.mxu0 0
  %1784 = vmatpush1.bf16.msra.mxu0 0
  %1785 = vmatprep.subr.bf16.mxu0 0
  %1786 = vmatpush1.bf16.msra.mxu0 0
  %1787 = vmatprep.subr.bf16.mxu0 0
  %1788 = vmatpush1.bf16.msra.mxu0 0
  %1789 = vmatprep.subr.bf16.mxu0 0
  %1790 = vmatpush1.bf16.msra.mxu0 0
  %1791 = vmatprep.subr.bf16.mxu0 0
  %1792 = vmatpush1.bf16.msra.mxu0 0
  %1793 = vmatprep.subr.bf16.mxu0 0
  %1794 = vmatpush1.bf16.msra.mxu0 0
  %1795 = vmatprep.subr.bf16.mxu0 0
  %1796 = vmatpush1.bf16.msra.mxu0 0
  %1797 = vmatprep.subr.bf16.mxu0 0
  %1798 = vmatpush1.bf16.msra.mxu0 0
  %1799 = vmatprep.mubr.bf16.mxu0 0
  %1800 = vmatmul.mubr.bf16.gmra.mrb[0].mxu0 %v1765
  %v1801 = vpop.f32.mrb[0].mxu0
  %v1802 = vadd.f32 0.0, %v1801
  %v1803 = vpop.f32.mrb[0].mxu0
  %v1804 = vpop.f32.mrb[0].mxu0
  %v1805 = vadd.f32 0.0, %v1804
  %v1806 = vpop.f32.mrb[0].mxu0
  %1807 = vdwg.mxu0
  %s1808 = scalar_lea.vmem %s22, 32
  %v1809 = vld [vmem:[%s1808] sm:$0xf]
  %v1810 = vld [vmem:[%s1808 + $0x4] sm:$0xf]
  %v1811 = vld [vmem:[%s1808 + $0x8] sm:$0xf]
  %v1812 = vld [vmem:[%s1808 + $0xc] sm:$0xf]
  %v1813 = vld [vmem:[%s1808 + $0x10] sm:$0xf]
  %v1814 = vld [vmem:[%s1808 + $0x14] sm:$0xf]
  %v1815 = vld [vmem:[%s1808 + $0x18] sm:$0xf]
  %v1816 = vld [vmem:[%s1808 + $0x1c] sm:$0xf]
  %v1825 = vunpack.c.l.b16 %v1809
  %v1826 = vunpack.c.l.b16 %v1810
  %v1827 = vunpack.c.l.b16 %v1811
  %v1828 = vunpack.c.l.b16 %v1812
  %v1829 = vunpack.c.l.b16 %v1813
  %v1830 = vunpack.c.l.b16 %v1814
  %v1831 = vunpack.c.l.b16 %v1815
  %v1832 = vunpack.c.l.b16 %v1816
  %v1833 = vpack.c.b16 %v1826, %v1825
  %v1834 = vpack.c.b16 %v1828, %v1827
  %v1835 = vpack.c.b16 %v1830, %v1829
  %v1836 = vpack.c.b16 %v1832, %v1831
  %1841 = vmatprep.subr.bf16.mxu0 0
  %1842 = vmatpush1.bf16.msra.mxu0 %v1833
  %1843 = vmatprep.subr.bf16.mxu0 0
  %1844 = vmatpush1.bf16.msra.mxu0 %v1834
  %1845 = vmatprep.subr.bf16.mxu0 0
  %1846 = vmatpush1.bf16.msra.mxu0 %v1835
  %1847 = vmatprep.subr.bf16.mxu0 0
  %1848 = vmatpush1.bf16.msra.mxu0 %v1836
  %1849 = vmatprep.subr.bf16.mxu0 0
  %1850 = vmatpush1.bf16.msra.mxu0 0
  %1851 = vmatprep.subr.bf16.mxu0 0
  %1852 = vmatpush1.bf16.msra.mxu0 0
  %1853 = vmatprep.subr.bf16.mxu0 0
  %1854 = vmatpush1.bf16.msra.mxu0 0
  %1855 = vmatprep.subr.bf16.mxu0 0
  %1856 = vmatpush1.bf16.msra.mxu0 0
  %1857 = vmatprep.subr.bf16.mxu0 0
  %1858 = vmatpush1.bf16.msra.mxu0 0
  %1859 = vmatprep.subr.bf16.mxu0 0
  %1860 = vmatpush1.bf16.msra.mxu0 0
  %1861 = vmatprep.subr.bf16.mxu0 0
  %1862 = vmatpush1.bf16.msra.mxu0 0
  %1863 = vmatprep.subr.bf16.mxu0 0
  %1864 = vmatpush1.bf16.msra.mxu0 0
  %1865 = vmatprep.subr.bf16.mxu0 0
  %1866 = vmatpush1.bf16.msra.mxu0 0
  %1867 = vmatprep.subr.bf16.mxu0 0
  %1868 = vmatpush1.bf16.msra.mxu0 0
  %1869 = vmatprep.subr.bf16.mxu0 0
  %1870 = vmatpush1.bf16.msra.mxu0 0
  %1871 = vmatprep.subr.bf16.mxu0 0
  %1872 = vmatpush1.bf16.msra.mxu0 0
  %1873 = vmatprep.mubr.bf16.mxu0 0
  %1874 = vmatmul.mubr.bf16.gmra.mrb[0].mxu0 %v1765
  %v1875 = vpop.f32.mrb[0].mxu0
  %v1876 = vadd.f32 0.0, %v1875
  %v1877 = vpop.f32.mrb[0].mxu0
  %v1878 = vpop.f32.mrb[0].mxu0
  %v1879 = vadd.f32 0.0, %v1878
  %v1880 = vpop.f32.mrb[0].mxu0
  %1881 = vdwg.mxu0
  %v1882 = vmax.f32 %v1802, %v1876
  %v1883 = vmax.f32 %v1805, %v1879
  %s1884 = scalar_lea.vmem %s22, 64
  %v1885 = vld [vmem:[%s1884] sm:$0xf]
  %v1886 = vld [vmem:[%s1884 + $0x4] sm:$0xf]
  %v1887 = vld [vmem:[%s1884 + $0x8] sm:$0xf]
  %v1888 = vld [vmem:[%s1884 + $0xc] sm:$0xf]
  %v1889 = vld [vmem:[%s1884 + $0x10] sm:$0xf]
  %v1890 = vld [vmem:[%s1884 + $0x14] sm:$0xf]
  %v1891 = vld [vmem:[%s1884 + $0x18] sm:$0xf]
  %v1892 = vld [vmem:[%s1884 + $0x1c] sm:$0xf]
  %v1901 = vunpack.c.l.b16 %v1885
  %v1902 = vunpack.c.l.b16 %v1886
  %v1903 = vunpack.c.l.b16 %v1887
  %v1904 = vunpack.c.l.b16 %v1888
  %v1905 = vunpack.c.l.b16 %v1889
  %v1906 = vunpack.c.l.b16 %v1890
  %v1907 = vunpack.c.l.b16 %v1891
  %v1908 = vunpack.c.l.b16 %v1892
  %v1909 = vpack.c.b16 %v1902, %v1901
  %v1910 = vpack.c.b16 %v1904, %v1903
  %v1911 = vpack.c.b16 %v1906, %v1905
  %v1912 = vpack.c.b16 %v1908, %v1907
  %1917 = vmatprep.subr.bf16.mxu0 0
  %1918 = vmatpush1.bf16.msra.mxu0 %v1909
  %1919 = vmatprep.subr.bf16.mxu0 0
  %1920 = vmatpush1.bf16.msra.mxu0 %v1910
  %1921 = vmatprep.subr.bf16.mxu0 0
  %1922 = vmatpush1.bf16.msra.mxu0 %v1911
  %1923 = vmatprep.subr.bf16.mxu0 0
  %1924 = vmatpush1.bf16.msra.mxu0 %v1912
  %1925 = vmatprep.subr.bf16.mxu0 0
  %1926 = vmatpush1.bf16.msra.mxu0 0
  %1927 = vmatprep.subr.bf16.mxu0 0
  %1928 = vmatpush1.bf16.msra.mxu0 0
  %1929 = vmatprep.subr.bf16.mxu0 0
  %1930 = vmatpush1.bf16.msra.mxu0 0
  %1931 = vmatprep.subr.bf16.mxu0 0
  %1932 = vmatpush1.bf16.msra.mxu0 0
  %1933 = vmatprep.subr.bf16.mxu0 0
  %1934 = vmatpush1.bf16.msra.mxu0 0
  %1935 = vmatprep.subr.bf16.mxu0 0
  %1936 = vmatpush1.bf16.msra.mxu0 0
  %1937 = vmatprep.subr.bf16.mxu0 0
  %1938 = vmatpush1.bf16.msra.mxu0 0
  %1939 = vmatprep.subr.bf16.mxu0 0
  %1940 = vmatpush1.bf16.msra.mxu0 0
  %1941 = vmatprep.subr.bf16.mxu0 0
  %1942 = vmatpush1.bf16.msra.mxu0 0
  %1943 = vmatprep.subr.bf16.mxu0 0
  %1944 = vmatpush1.bf16.msra.mxu0 0
  %1945 = vmatprep.subr.bf16.mxu0 0
  %1946 = vmatpush1.bf16.msra.mxu0 0
  %1947 = vmatprep.subr.bf16.mxu0 0
  %1948 = vmatpush1.bf16.msra.mxu0 0
  %1949 = vmatprep.mubr.bf16.mxu0 0
  %1950 = vmatmul.mubr.bf16.gmra.mrb[0].mxu0 %v1765
  %v1951 = vpop.f32.mrb[0].mxu0
  %v1952 = vadd.f32 0.0, %v1951
  %v1953 = vpop.f32.mrb[0].mxu0
  %v1954 = vpop.f32.mrb[0].mxu0
  %v1955 = vadd.f32 0.0, %v1954
  %v1956 = vpop.f32.mrb[0].mxu0
  %1957 = vdwg.mxu0
  %v1958 = vmax.f32 %v1882, %v1952
  %v1959 = vmax.f32 %v1883, %v1955
  %s1960 = scalar_lea.vmem %s22, 96
  %v1961 = vld [vmem:[%s1960] sm:$0xf]
  %v1962 = vld [vmem:[%s1960 + $0x4] sm:$0xf]
  %v1963 = vld [vmem:[%s1960 + $0x8] sm:$0xf]
  %v1964 = vld [vmem:[%s1960 + $0xc] sm:$0xf]
  %v1965 = vld [vmem:[%s1960 + $0x10] sm:$0xf]
  %v1966 = vld [vmem:[%s1960 + $0x14] sm:$0xf]
  %v1967 = vld [vmem:[%s1960 + $0x18] sm:$0xf]
  %v1968 = vld [vmem:[%s1960 + $0x1c] sm:$0xf]
  %v1977 = vunpack.c.l.b16 %v1961
  %v1978 = vunpack.c.l.b16 %v1962
  %v1979 = vunpack.c.l.b16 %v1963
  %v1980 = vunpack.c.l.b16 %v1964
  %v1981 = vunpack.c.l.b16 %v1965
  %v1982 = vunpack.c.l.b16 %v1966
  %v1983 = vunpack.c.l.b16 %v1967
  %v1984 = vunpack.c.l.b16 %v1968
  %v1985 = vpack.c.b16 %v1978, %v1977
  %v1986 = vpack.c.b16 %v1980, %v1979
  %v1987 = vpack.c.b16 %v1982, %v1981
  %v1988 = vpack.c.b16 %v1984, %v1983
  %1993 = vmatprep.subr.bf16.mxu0 0
  %1994 = vmatpush1.bf16.msra.mxu0 %v1985
  %1995 = vmatprep.subr.bf16.mxu0 0
  %1996 = vmatpush1.bf16.msra.mxu0 %v1986
  %1997 = vmatprep.subr.bf16.mxu0 0
  %1998 = vmatpush1.bf16.msra.mxu0 %v1987
  %1999 = vmatprep.subr.bf16.mxu0 0
  %2000 = vmatpush1.bf16.msra.mxu0 %v1988
  %2001 = vmatprep.subr.bf16.mxu0 0
  %2002 = vmatpush1.bf16.msra.mxu0 0
  %2003 = vmatprep.subr.bf16.mxu0 0
  %2004 = vmatpush1.bf16.msra.mxu0 0
  %2005 = vmatprep.subr.bf16.mxu0 0
  %2006 = vmatpush1.bf16.msra.mxu0 0
  %2007 = vmatprep.subr.bf16.mxu0 0
  %2008 = vmatpush1.bf16.msra.mxu0 0
  %2009 = vmatprep.subr.bf16.mxu0 0
  %2010 = vmatpush1.bf16.msra.mxu0 0
  %2011 = vmatprep.subr.bf16.mxu0 0
  %2012 = vmatpush1.bf16.msra.mxu0 0
  %2013 = vmatprep.subr.bf16.mxu0 0
  %2014 = vmatpush1.bf16.msra.mxu0 0
  %2015 = vmatprep.subr.bf16.mxu0 0
  %2016 = vmatpush1.bf16.msra.mxu0 0
  %2017 = vmatprep.subr.bf16.mxu0 0
  %2018 = vmatpush1.bf16.msra.mxu0 0
  %2019 = vmatprep.subr.bf16.mxu0 0
  %2020 = vmatpush1.bf16.msra.mxu0 0
  %2021 = vmatprep.subr.bf16.mxu0 0
  %2022 = vmatpush1.bf16.msra.mxu0 0
  %2023 = vmatprep.subr.bf16.mxu0 0
  %2024 = vmatpush1.bf16.msra.mxu0 0
  %2025 = vmatprep.mubr.bf16.mxu0 0
  %2026 = vmatmul.mubr.bf16.gmra.mrb[0].mxu0 %v1765
  %v2027 = vpop.f32.mrb[0].mxu0
  %v2028 = vadd.f32 0.0, %v2027
  %v2029 = vpop.f32.mrb[0].mxu0
  %v2030 = vpop.f32.mrb[0].mxu0
  %v2031 = vadd.f32 0.0, %v2030
  %v2032 = vpop.f32.mrb[0].mxu0
  %2033 = vdwg.mxu0
  %v2034 = vmax.f32 %v1958, %v2028
  %v2035 = vmax.f32 %v1959, %v2031
  %v2036 = vld [vmem:[%s5] sm:$0xf]
  %v2037 = vld [vmem:[%s5 + $0x4] sm:$0xf]
  %v2038 = vld [vmem:[%s5 + $0x8] sm:$0xf]
  %v2039 = vld [vmem:[%s5 + $0xc] sm:$0xf]
  %v2040 = vld [vmem:[%s5 + $0x10] sm:$0xf]
  %v2041 = vld [vmem:[%s5 + $0x14] sm:$0xf]
  %v2042 = vld [vmem:[%s5 + $0x18] sm:$0xf]
  %v2043 = vld [vmem:[%s5 + $0x1c] sm:$0xf]
  %v2044 = vld [vmem:[%s5 + $0x20] sm:$0xf]
  %v2045 = vld [vmem:[%s5 + $0x24] sm:$0xf]
  %v2046 = vld [vmem:[%s5 + $0x28] sm:$0xf]
  %v2047 = vld [vmem:[%s5 + $0x2c] sm:$0xf]
  %v2048 = vld [vmem:[%s5 + $0x30] sm:$0xf]
  %v2049 = vld [vmem:[%s5 + $0x34] sm:$0xf]
  %v2050 = vld [vmem:[%s5 + $0x38] sm:$0xf]
  %v2051 = vld [vmem:[%s5 + $0x3c] sm:$0xf]
  %v2052 = vld [vmem:[%s5 + $0x40] sm:$0xf]
  %v2053 = vld [vmem:[%s5 + $0x44] sm:$0xf]
  %v2054 = vld [vmem:[%s5 + $0x48] sm:$0xf]
  %v2055 = vld [vmem:[%s5 + $0x4c] sm:$0xf]
  %v2056 = vld [vmem:[%s5 + $0x50] sm:$0xf]
  %v2057 = vld [vmem:[%s5 + $0x54] sm:$0xf]
  %v2058 = vld [vmem:[%s5 + $0x58] sm:$0xf]
  %v2059 = vld [vmem:[%s5 + $0x5c] sm:$0xf]
  %v2060 = vld [vmem:[%s5 + $0x60] sm:$0xf]
  %v2061 = vld [vmem:[%s5 + $0x64] sm:$0xf]
  %v2062 = vld [vmem:[%s5 + $0x68] sm:$0xf]
  %v2063 = vld [vmem:[%s5 + $0x6c] sm:$0xf]
  %v2064 = vld [vmem:[%s5 + $0x70] sm:$0xf]
  %v2065 = vld [vmem:[%s5 + $0x74] sm:$0xf]
  %v2066 = vld [vmem:[%s5 + $0x78] sm:$0xf]
  %v2067 = vld [vmem:[%s5 + $0x7c] sm:$0xf]
  %v2068 = vld [vmem:[%s5 + $0x80] sm:$0xf]
  %v2069 = vld [vmem:[%s5 + $0x84] sm:$0xf]
  %v2070 = vld [vmem:[%s5 + $0x88] sm:$0xf]
  %v2071 = vld [vmem:[%s5 + $0x8c] sm:$0xf]
  %v2072 = vpack.c.bf16 %v2035, %v2034
  %v2109 = vunpack.c.l.b16 %v2036
  %v2110 = vunpack.c.l.b16 %v2037
  %v2111 = vunpack.c.l.b16 %v2038
  %v2112 = vunpack.c.l.b16 %v2039
  %v2113 = vunpack.c.l.b16 %v2040
  %v2114 = vunpack.c.l.b16 %v2041
  %v2115 = vunpack.c.l.b16 %v2042
  %v2116 = vunpack.c.l.b16 %v2043
  %v2117 = vunpack.c.l.b16 %v2044
  %v2118 = vunpack.c.l.b16 %v2045
  %v2119 = vunpack.c.l.b16 %v2046
  %v2120 = vunpack.c.l.b16 %v2047
  %v2121 = vunpack.c.l.b16 %v2048
  %v2122 = vunpack.c.l.b16 %v2049
  %v2123 = vunpack.c.l.b16 %v2050
  %v2124 = vunpack.c.l.b16 %v2051
  %v2125 = vunpack.c.l.b16 %v2052
  %v2126 = vunpack.c.l.b16 %v2053
  %v2127 = vunpack.c.l.b16 %v2054
  %v2128 = vunpack.c.l.b16 %v2055
  %v2129 = vunpack.c.l.b16 %v2056
  %v2130 = vunpack.c.l.b16 %v2057
  %v2131 = vunpack.c.l.b16 %v2058
  %v2132 = vunpack.c.l.b16 %v2059
  %v2133 = vunpack.c.l.b16 %v2060
  %v2134 = vunpack.c.l.b16 %v2061
  %v2135 = vunpack.c.l.b16 %v2062
  %v2136 = vunpack.c.l.b16 %v2063
  %v2137 = vunpack.c.l.b16 %v2064
  %v2138 = vunpack.c.l.b16 %v2065
  %v2139 = vunpack.c.l.b16 %v2066
  %v2140 = vunpack.c.l.b16 %v2067
  %v2141 = vunpack.c.l.b16 %v2068
  %v2142 = vunpack.c.l.b16 %v2069
  %v2143 = vunpack.c.l.b16 %v2070
  %v2144 = vunpack.c.l.b16 %v2071
  %v2145 = vpack.c.b16 %v2110, %v2109
  %v2146 = vpack.c.b16 %v2112, %v2111
  %v2147 = vpack.c.b16 %v2114, %v2113
  %v2148 = vpack.c.b16 %v2116, %v2115
  %v2149 = vpack.c.b16 %v2118, %v2117
  %v2150 = vpack.c.b16 %v2120, %v2119
  %v2151 = vpack.c.b16 %v2122, %v2121
  %v2152 = vpack.c.b16 %v2124, %v2123
  %v2153 = vpack.c.b16 %v2126, %v2125
  %v2154 = vpack.c.b16 %v2128, %v2127
  %v2155 = vpack.c.b16 %v2130, %v2129
  %v2156 = vpack.c.b16 %v2132, %v2131
  %v2157 = vpack.c.b16 %v2134, %v2133
  %v2158 = vpack.c.b16 %v2136, %v2135
  %v2159 = vpack.c.b16 %v2138, %v2137
  %v2160 = vpack.c.b16 %v2140, %v2139
  %v2161 = vpack.c.b16 %v2142, %v2141
  %v2162 = vpack.c.b16 %v2144, %v2143
  %v2164 = vsel %vm866, %v2145, 0
  %v2167 = vsel %vm866, %v2146, 0
  %v2170 = vsel %vm866, %v2147, 0
  %v2173 = vsel %vm866, %v2148, 0
  %v2176 = vsel %vm866, %v2149, 0
  %v2179 = vsel %vm866, %v2150, 0
  %v2182 = vsel %vm866, %v2151, 0
  %v2185 = vsel %vm866, %v2152, 0
  %v2188 = vsel %vm866, %v2153, 0
  %v2191 = vsel %vm866, %v2154, 0
  %v2194 = vsel %vm866, %v2155, 0
  %v2197 = vsel %vm866, %v2156, 0
  %v2200 = vsel %vm866, %v2157, 0
  %v2203 = vsel %vm866, %v2158, 0
  %v2206 = vsel %vm866, %v2159, 0
  %v2209 = vsel %vm866, %v2160, 0
  %v2212 = vsel %vm866, %v2161, 0
  %v2215 = vsel %vm866, %v2162, 0
  %2217 = vmatprep.subr.bf16.mxu0 0
  %2218 = vmatpush1.bf16.msra.mxu0 %v2072
  %2219 = vmatprep.subr.bf16.mxu0 0
  %2220 = vmatpush1.bf16.msra.mxu0 0
  %2221 = vmatprep.subr.bf16.mxu0 0
  %2222 = vmatpush1.bf16.msra.mxu0 0
  %2223 = vmatprep.subr.bf16.mxu0 0
  %2224 = vmatpush1.bf16.msra.mxu0 0
  %2225 = vmatprep.subr.bf16.mxu0 0
  %2226 = vmatpush1.bf16.msra.mxu0 0
  %2227 = vmatprep.subr.bf16.mxu0 0
  %2228 = vmatpush1.bf16.msra.mxu0 0
  %2229 = vmatprep.subr.bf16.mxu0 0
  %2230 = vmatpush1.bf16.msra.mxu0 0
  %2231 = vmatprep.subr.bf16.mxu0 0
  %2232 = vmatpush1.bf16.msra.mxu0 0
  %2233 = vmatprep.subr.bf16.mxu0 0
  %2234 = vmatpush1.bf16.msra.mxu0 0
  %2235 = vmatprep.subr.bf16.mxu0 0
  %2236 = vmatpush1.bf16.msra.mxu0 0
  %2237 = vmatprep.subr.bf16.mxu0 0
  %2238 = vmatpush1.bf16.msra.mxu0 0
  %2239 = vmatprep.subr.bf16.mxu0 0
  %2240 = vmatpush1.bf16.msra.mxu0 0
  %2241 = vmatprep.subr.bf16.mxu0 0
  %2242 = vmatpush1.bf16.msra.mxu0 0
  %2243 = vmatprep.subr.bf16.mxu0 0
  %2244 = vmatpush1.bf16.msra.mxu0 0
  %2245 = vmatprep.subr.bf16.mxu0 0
  %2246 = vmatpush1.bf16.msra.mxu0 0
  %2247 = vmatprep.subr.bf16.mxu0 0
  %2248 = vmatpush1.bf16.msra.mxu0 0
  %2249 = vmatprep.mubr.bf16.mxu0 0
  %2250 = vmatmul.mubr.bf16.gmra.mrb[0].mxu0 %v2164
  %v2251 = vpop.f32.mrb[0].mxu0
  %v2252 = vadd.f32 0.0, %v2251
  %v2253 = vpop.f32.mrb[0].mxu0
  %v2254 = vpop.f32.mrb[0].mxu0
  %v2255 = vadd.f32 0.0, %v2254
  %v2256 = vpop.f32.mrb[0].mxu0
  %2257 = vmatprep.mubr.bf16.mxu0 0
  %2258 = vmatmul.mubr.bf16.gmra.mrb[0].mxu0 %v2167
  %v2259 = vpop.f32.mrb[0].mxu0
  %v2260 = vadd.f32 0.0, %v2259
  %v2261 = vpop.f32.mrb[0].mxu0
  %v2262 = vpop.f32.mrb[0].mxu0
  %v2263 = vadd.f32 0.0, %v2262
  %v2264 = vpop.f32.mrb[0].mxu0
  %2265 = vmatprep.mubr.bf16.mxu0 0
  %2266 = vmatmul.mubr.bf16.gmra.mrb[0].mxu0 %v2170
  %v2267 = vpop.f32.mrb[0].mxu0
  %v2268 = vadd.f32 0.0, %v2267
  %v2269 = vpop.f32.mrb[0].mxu0
  %v2270 = vpop.f32.mrb[0].mxu0
  %v2271 = vadd.f32 0.0, %v2270
  %v2272 = vpop.f32.mrb[0].mxu0
  %2273 = vmatprep.mubr.bf16.mxu0 0
  %2274 = vmatmul.mubr.bf16.gmra.mrb[0].mxu0 %v2173
  %v2275 = vpop.f32.mrb[0].mxu0
  %v2276 = vadd.f32 0.0, %v2275
  %v2277 = vpop.f32.mrb[0].mxu0
  %v2278 = vpop.f32.mrb[0].mxu0
  %v2279 = vadd.f32 0.0, %v2278
  %v2280 = vpop.f32.mrb[0].mxu0
  %2281 = vmatprep.mubr.bf16.mxu0 0
  %2282 = vmatmul.mubr.bf16.gmra.mrb[0].mxu0 %v2176
  %v2283 = vpop.f32.mrb[0].mxu0
  %v2284 = vadd.f32 0.0, %v2283
  %v2285 = vpop.f32.mrb[0].mxu0
  %v2286 = vpop.f32.mrb[0].mxu0
  %v2287 = vadd.f32 0.0, %v2286
  %v2288 = vpop.f32.mrb[0].mxu0
  %2289 = vmatprep.mubr.bf16.mxu0 0
  %2290 = vmatmul.mubr.bf16.gmra.mrb[0].mxu0 %v2179
  %v2291 = vpop.f32.mrb[0].mxu0
  %v2292 = vadd.f32 0.0, %v2291
  %v2293 = vpop.f32.mrb[0].mxu0
  %v2294 = vpop.f32.mrb[0].mxu0
  %v2295 = vadd.f32 0.0, %v2294
  %v2296 = vpop.f32.mrb[0].mxu0
  %2297 = vmatprep.mubr.bf16.mxu0 0
  %2298 = vmatmul.mubr.bf16.gmra.mrb[0].mxu0 %v2182
  %v2299 = vpop.f32.mrb[0].mxu0
  %v2300 = vadd.f32 0.0, %v2299
  %v2301 = vpop.f32.mrb[0].mxu0
  %v2302 = vpop.f32.mrb[0].mxu0
  %v2303 = vadd.f32 0.0, %v2302
  %v2304 = vpop.f32.mrb[0].mxu0
  %2305 = vmatprep.mubr.bf16.mxu0 0
  %2306 = vmatmul.mubr.bf16.gmra.mrb[0].mxu0 %v2185
  %v2307 = vpop.f32.mrb[0].mxu0
  %v2308 = vadd.f32 0.0, %v2307
  %v2309 = vpop.f32.mrb[0].mxu0
  %v2310 = vpop.f32.mrb[0].mxu0
  %v2311 = vadd.f32 0.0, %v2310
  %v2312 = vpop.f32.mrb[0].mxu0
  %2313 = vmatprep.mubr.bf16.mxu0 0
  %2314 = vmatmul.mubr.bf16.gmra.mrb[0].mxu0 %v2188
  %v2315 = vpop.f32.mrb[0].mxu0
  %v2316 = vadd.f32 0.0, %v2315
  %v2317 = vpop.f32.mrb[0].mxu0
  %v2318 = vpop.f32.mrb[0].mxu0
  %v2319 = vadd.f32 0.0, %v2318
  %v2320 = vpop.f32.mrb[0].mxu0
  %2321 = vmatprep.mubr.bf16.mxu0 0
  %2322 = vmatmul.mubr.bf16.gmra.mrb[0].mxu0 %v2191
  %v2323 = vpop.f32.mrb[0].mxu0
  %v2324 = vadd.f32 0.0, %v2323
  %v2325 = vpop.f32.mrb[0].mxu0
  %v2326 = vpop.f32.mrb[0].mxu0
  %v2327 = vadd.f32 0.0, %v2326
  %v2328 = vpop.f32.mrb[0].mxu0
  %2329 = vmatprep.mubr.bf16.mxu0 0
  %2330 = vmatmul.mubr.bf16.gmra.mrb[0].mxu0 %v2194
  %v2331 = vpop.f32.mrb[0].mxu0
  %v2332 = vadd.f32 0.0, %v2331
  %v2333 = vpop.f32.mrb[0].mxu0
  %v2334 = vpop.f32.mrb[0].mxu0
  %v2335 = vadd.f32 0.0, %v2334
  %v2336 = vpop.f32.mrb[0].mxu0
  %2337 = vmatprep.mubr.bf16.mxu0 0
  %2338 = vmatmul.mubr.bf16.gmra.mrb[0].mxu0 %v2197
  %v2339 = vpop.f32.mrb[0].mxu0
  %v2340 = vadd.f32 0.0, %v2339
  %v2341 = vpop.f32.mrb[0].mxu0
  %v2342 = vpop.f32.mrb[0].mxu0
  %v2343 = vadd.f32 0.0, %v2342
  %v2344 = vpop.f32.mrb[0].mxu0
  %2345 = vmatprep.mubr.bf16.mxu0 0
  %2346 = vmatmul.mubr.bf16.gmra.mrb[0].mxu0 %v2200
  %v2347 = vpop.f32.mrb[0].mxu0
  %v2348 = vadd.f32 0.0, %v2347
  %v2349 = vpop.f32.mrb[0].mxu0
  %v2350 = vpop.f32.mrb[0].mxu0
  %v2351 = vadd.f32 0.0, %v2350
  %v2352 = vpop.f32.mrb[0].mxu0
  %2353 = vmatprep.mubr.bf16.mxu0 0
  %2354 = vmatmul.mubr.bf16.gmra.mrb[0].mxu0 %v2203
  %v2355 = vpop.f32.mrb[0].mxu0
  %v2356 = vadd.f32 0.0, %v2355
  %v2357 = vpop.f32.mrb[0].mxu0
  %v2358 = vpop.f32.mrb[0].mxu0
  %v2359 = vadd.f32 0.0, %v2358
  %v2360 = vpop.f32.mrb[0].mxu0
  %2361 = vmatprep.mubr.bf16.mxu0 0
  %2362 = vmatmul.mubr.bf16.gmra.mrb[0].mxu0 %v2206
  %v2363 = vpop.f32.mrb[0].mxu0
  %v2364 = vadd.f32 0.0, %v2363
  %v2365 = vpop.f32.mrb[0].mxu0
  %v2366 = vpop.f32.mrb[0].mxu0
  %v2367 = vadd.f32 0.0, %v2366
  %v2368 = vpop.f32.mrb[0].mxu0
  %2369 = vmatprep.mubr.bf16.mxu0 0
  %2370 = vmatmul.mubr.bf16.gmra.mrb[0].mxu0 %v2209
  %v2371 = vpop.f32.mrb[0].mxu0
  %v2372 = vadd.f32 0.0, %v2371
  %v2373 = vpop.f32.mrb[0].mxu0
  %v2374 = vpop.f32.mrb[0].mxu0
  %v2375 = vadd.f32 0.0, %v2374
  %v2376 = vpop.f32.mrb[0].mxu0
  %2377 = vmatprep.mubr.bf16.mxu0 0
  %2378 = vmatmul.mubr.bf16.gmra.mrb[0].mxu0 %v2212
  %v2379 = vpop.f32.mrb[0].mxu0
  %v2380 = vadd.f32 0.0, %v2379
  %v2381 = vpop.f32.mrb[0].mxu0
  %v2382 = vpop.f32.mrb[0].mxu0
  %v2383 = vadd.f32 0.0, %v2382
  %v2384 = vpop.f32.mrb[0].mxu0
  %2385 = vmatprep.mubr.bf16.mxu0 0
  %2386 = vmatmul.mubr.bf16.gmra.mrb[0].mxu0 %v2215
  %v2387 = vpop.f32.mrb[0].mxu0
  %v2388 = vadd.f32 0.0, %v2387
  %v2389 = vpop.f32.mrb[0].mxu0
  %v2390 = vpop.f32.mrb[0].mxu0
  %v2391 = vadd.f32 0.0, %v2390
  %v2392 = vpop.f32.mrb[0].mxu0
  %2393 = vdwg.mxu0
  %v2394 = vpack.c.bf16 %v2255, %v2252
  %v2395 = vpack.c.bf16 %v2263, %v2260
  %v2396 = vpack.c.bf16 %v2271, %v2268
  %v2397 = vpack.c.bf16 %v2279, %v2276
  %v2398 = vpack.c.bf16 %v2287, %v2284
  %v2399 = vpack.c.bf16 %v2295, %v2292
  %v2400 = vpack.c.bf16 %v2303, %v2300
  %v2401 = vpack.c.bf16 %v2311, %v2308
  %v2402 = vpack.c.bf16 %v2319, %v2316
  %v2403 = vpack.c.bf16 %v2327, %v2324
  %v2404 = vpack.c.bf16 %v2335, %v2332
  %v2405 = vpack.c.bf16 %v2343, %v2340
  %v2406 = vpack.c.bf16 %v2351, %v2348
  %v2407 = vpack.c.bf16 %v2359, %v2356
  %v2408 = vpack.c.bf16 %v2367, %v2364
  %v2409 = vpack.c.bf16 %v2375, %v2372
  %v2410 = vpack.c.bf16 %v2383, %v2380
  %v2411 = vpack.c.bf16 %v2391, %v2388
  %v2412 = vld [vmem:[%s20] sm:$0xf]
  %v2413 = vld [vmem:[%s20 + $0x4] sm:$0xf]
  %s2414 = scalar_lea.vmem %s20, 8
  %v2415 = vld [vmem:[%s2414] sm:$0xf]
  %v2416 = vld [vmem:[%s2414 + $0x4] sm:$0xf]
  %v2419 = vunpack.c.l.b16 %v2415
  %v2420 = vunpack.c.l.b16 %v2416
  %v2421 = vpack.c.b16 %v2420, %v2419
  %v2424 = vsel %vm866, %v2396, 0
  %v2427 = vsel %vm866, %v2397, 0
  %2429 = vmatprep.subr.bf16.mxu0 0
  %2430 = vmatpush1.bf16.msra.mxu0 %v2421
  %2431 = vmatprep.subr.bf16.mxu0 0
  %2432 = vmatpush1.bf16.msra.mxu0 0
  %2433 = vmatprep.subr.bf16.mxu0 0
  %2434 = vmatpush1.bf16.msra.mxu0 0
  %2435 = vmatprep.subr.bf16.mxu0 0
  %2436 = vmatpush1.bf16.msra.mxu0 0
  %2437 = vmatprep.subr.bf16.mxu0 0
  %2438 = vmatpush1.bf16.msra.mxu0 0
  %2439 = vmatprep.subr.bf16.mxu0 0
  %2440 = vmatpush1.bf16.msra.mxu0 0
  %2441 = vmatprep.subr.bf16.mxu0 0
  %2442 = vmatpush1.bf16.msra.mxu0 0
  %2443 = vmatprep.subr.bf16.mxu0 0
  %2444 = vmatpush1.bf16.msra.mxu0 0
  %2445 = vmatprep.subr.bf16.mxu0 0
  %2446 = vmatpush1.bf16.msra.mxu0 0
  %2447 = vmatprep.subr.bf16.mxu0 0
  %2448 = vmatpush1.bf16.msra.mxu0 0
  %2449 = vmatprep.subr.bf16.mxu0 0
  %2450 = vmatpush1.bf16.msra.mxu0 0
  %2451 = vmatprep.subr.bf16.mxu0 0
  %2452 = vmatpush1.bf16.msra.mxu0 0
  %2453 = vmatprep.subr.bf16.mxu0 0
  %2454 = vmatpush1.bf16.msra.mxu0 0
  %2455 = vmatprep.subr.bf16.mxu0 0
  %2456 = vmatpush1.bf16.msra.mxu0 0
  %2457 = vmatprep.subr.bf16.mxu0 0
  %2458 = vmatpush1.bf16.msra.mxu0 0
  %2459 = vmatprep.subr.bf16.mxu0 0
  %2460 = vmatpush1.bf16.msra.mxu0 0
  %2461 = vmatprep.mubr.bf16.mxu0 0
  %2462 = vmatmul.mubr.bf16.gmra.mrb[0].mxu0 %v2424
  %v2463 = vpop.f32.mrb[0].mxu0
  %v2464 = vadd.f32 0.0, %v2463
  %v2465 = vpop.f32.mrb[0].mxu0
  %v2466 = vpop.f32.mrb[0].mxu0
  %v2467 = vadd.f32 0.0, %v2466
  %v2468 = vpop.f32.mrb[0].mxu0
  %2469 = vmatprep.mubr.bf16.mxu0 0
  %2470 = vmatmul.mubr.bf16.gmra.mrb[0].mxu0 %v2427
  %v2471 = vpop.f32.mrb[0].mxu0
  %v2472 = vadd.f32 0.0, %v2471
  %v2473 = vpop.f32.mrb[0].mxu0
  %v2474 = vpop.f32.mrb[0].mxu0
  %v2475 = vadd.f32 0.0, %v2474
  %v2476 = vpop.f32.mrb[0].mxu0
  %2477 = vdwg.mxu0
  %v2480 = vunpack.c.l.b16 %v2412
  %v2481 = vunpack.c.l.b16 %v2413
  %v2482 = vpack.c.b16 %v2481, %v2480
  %v2485 = vsel %vm866, %v2394, 0
  %v2488 = vsel %vm866, %v2395, 0
  %2490 = vmatprep.subr.bf16.mxu0 0
  %2491 = vmatpush1.bf16.msra.mxu0 %v2482
  %2492 = vmatprep.subr.bf16.mxu0 0
  %2493 = vmatpush1.bf16.msra.mxu0 0
  %2494 = vmatprep.subr.bf16.mxu0 0
  %2495 = vmatpush1.bf16.msra.mxu0 0
  %2496 = vmatprep.subr.bf16.mxu0 0
  %2497 = vmatpush1.bf16.msra.mxu0 0
  %2498 = vmatprep.subr.bf16.mxu0 0
  %2499 = vmatpush1.bf16.msra.mxu0 0
  %2500 = vmatprep.subr.bf16.mxu0 0
  %2501 = vmatpush1.bf16.msra.mxu0 0
  %2502 = vmatprep.subr.bf16.mxu0 0
  %2503 = vmatpush1.bf16.msra.mxu0 0
  %2504 = vmatprep.subr.bf16.mxu0 0
  %2505 = vmatpush1.bf16.msra.mxu0 0
  %2506 = vmatprep.subr.bf16.mxu0 0
  %2507 = vmatpush1.bf16.msra.mxu0 0
  %2508 = vmatprep.subr.bf16.mxu0 0
  %2509 = vmatpush1.bf16.msra.mxu0 0
  %2510 = vmatprep.subr.bf16.mxu0 0
  %2511 = vmatpush1.bf16.msra.mxu0 0
  %2512 = vmatprep.subr.bf16.mxu0 0
  %2513 = vmatpush1.bf16.msra.mxu0 0
  %2514 = vmatprep.subr.bf16.mxu0 0
  %2515 = vmatpush1.bf16.msra.mxu0 0
  %2516 = vmatprep.subr.bf16.mxu0 0
  %2517 = vmatpush1.bf16.msra.mxu0 0
  %2518 = vmatprep.subr.bf16.mxu0 0
  %2519 = vmatpush1.bf16.msra.mxu0 0
  %2520 = vmatprep.subr.bf16.mxu0 0
  %2521 = vmatpush1.bf16.msra.mxu0 0
  %2522 = vmatprep.mubr.bf16.mxu0 0
  %2523 = vmatmul.mubr.bf16.gmra.mrb[0].mxu0 %v2485
  %v2524 = vpop.f32.mrb[0].mxu0
  %v2525 = vadd.f32 %v2464, %v2524
  %v2526 = vpop.f32.mrb[0].mxu0
  %v2527 = vpop.f32.mrb[0].mxu0
  %v2528 = vadd.f32 %v2467, %v2527
  %v2529 = vpop.f32.mrb[0].mxu0
  %2530 = vmatprep.mubr.bf16.mxu0 0
  %2531 = vmatmul.mubr.bf16.gmra.mrb[0].mxu0 %v2488
  %v2532 = vpop.f32.mrb[0].mxu0
  %v2533 = vadd.f32 %v2472, %v2532
  %v2534 = vpop.f32.mrb[0].mxu0
  %v2535 = vpop.f32.mrb[0].mxu0
  %v2536 = vadd.f32 %v2475, %v2535
  %v2537 = vpop.f32.mrb[0].mxu0
  %2538 = vdwg.mxu0
  %s2539 = scalar_lea.vmem %s20, 16
  %v2540 = vld [vmem:[%s2539] sm:$0xf]
  %v2541 = vld [vmem:[%s2539 + $0x4] sm:$0xf]
  %v2544 = vunpack.c.l.b16 %v2540
  %v2545 = vunpack.c.l.b16 %v2541
  %v2546 = vpack.c.b16 %v2545, %v2544
  %v2549 = vsel %vm866, %v2398, 0
  %v2552 = vsel %vm866, %v2399, 0
  %2554 = vmatprep.subr.bf16.mxu0 0
  %2555 = vmatpush1.bf16.msra.mxu0 %v2546
  %2556 = vmatprep.subr.bf16.mxu0 0
  %2557 = vmatpush1.bf16.msra.mxu0 0
  %2558 = vmatprep.subr.bf16.mxu0 0
  %2559 = vmatpush1.bf16.msra.mxu0 0
  %2560 = vmatprep.subr.bf16.mxu0 0
  %2561 = vmatpush1.bf16.msra.mxu0 0
  %2562 = vmatprep.subr.bf16.mxu0 0
  %2563 = vmatpush1.bf16.msra.mxu0 0
  %2564 = vmatprep.subr.bf16.mxu0 0
  %2565 = vmatpush1.bf16.msra.mxu0 0
  %2566 = vmatprep.subr.bf16.mxu0 0
  %2567 = vmatpush1.bf16.msra.mxu0 0
  %2568 = vmatprep.subr.bf16.mxu0 0
  %2569 = vmatpush1.bf16.msra.mxu0 0
  %2570 = vmatprep.subr.bf16.mxu0 0
  %2571 = vmatpush1.bf16.msra.mxu0 0
  %2572 = vmatprep.subr.bf16.mxu0 0
  %2573 = vmatpush1.bf16.msra.mxu0 0
  %2574 = vmatprep.subr.bf16.mxu0 0
  %2575 = vmatpush1.bf16.msra.mxu0 0
  %2576 = vmatprep.subr.bf16.mxu0 0
  %2577 = vmatpush1.bf16.msra.mxu0 0
  %2578 = vmatprep.subr.bf16.mxu0 0
  %2579 = vmatpush1.bf16.msra.mxu0 0
  %2580 = vmatprep.subr.bf16.mxu0 0
  %2581 = vmatpush1.bf16.msra.mxu0 0
  %2582 = vmatprep.subr.bf16.mxu0 0
  %2583 = vmatpush1.bf16.msra.mxu0 0
  %2584 = vmatprep.subr.bf16.mxu0 0
  %2585 = vmatpush1.bf16.msra.mxu0 0
  %2586 = vmatprep.mubr.bf16.mxu0 0
  %2587 = vmatmul.mubr.bf16.gmra.mrb[0].mxu0 %v2549
  %v2588 = vpop.f32.mrb[0].mxu0
  %v2589 = vadd.f32 0.0, %v2588
  %v2590 = vpop.f32.mrb[0].mxu0
  %v2591 = vpop.f32.mrb[0].mxu0
  %v2592 = vadd.f32 0.0, %v2591
  %v2593 = vpop.f32.mrb[0].mxu0
  %2594 = vmatprep.mubr.bf16.mxu0 0
  %2595 = vmatmul.mubr.bf16.gmra.mrb[0].mxu0 %v2552
  %v2596 = vpop.f32.mrb[0].mxu0
  %v2597 = vadd.f32 0.0, %v2596
  %v2598 = vpop.f32.mrb[0].mxu0
  %v2599 = vpop.f32.mrb[0].mxu0
  %v2600 = vadd.f32 0.0, %v2599
  %v2601 = vpop.f32.mrb[0].mxu0
  %2602 = vdwg.mxu0
  %v2603 = vadd.f32 %v2525, %v2589
  %v2604 = vadd.f32 %v2528, %v2592
  %v2605 = vadd.f32 %v2533, %v2597
  %v2606 = vadd.f32 %v2536, %v2600
  %s2607 = scalar_lea.vmem %s20, 24
  %v2608 = vld [vmem:[%s2607] sm:$0xf]
  %v2609 = vld [vmem:[%s2607 + $0x4] sm:$0xf]
  %v2612 = vunpack.c.l.b16 %v2608
  %v2613 = vunpack.c.l.b16 %v2609
  %v2614 = vpack.c.b16 %v2613, %v2612
  %v2617 = vsel %vm866, %v2400, 0
  %v2620 = vsel %vm866, %v2401, 0
  %2622 = vmatprep.subr.bf16.mxu0 0
  %2623 = vmatpush1.bf16.msra.mxu0 %v2614
  %2624 = vmatprep.subr.bf16.mxu0 0
  %2625 = vmatpush1.bf16.msra.mxu0 0
  %2626 = vmatprep.subr.bf16.mxu0 0
  %2627 = vmatpush1.bf16.msra.mxu0 0
  %2628 = vmatprep.subr.bf16.mxu0 0
  %2629 = vmatpush1.bf16.msra.mxu0 0
  %2630 = vmatprep.subr.bf16.mxu0 0
  %2631 = vmatpush1.bf16.msra.mxu0 0
  %2632 = vmatprep.subr.bf16.mxu0 0
  %2633 = vmatpush1.bf16.msra.mxu0 0
  %2634 = vmatprep.subr.bf16.mxu0 0
  %2635 = vmatpush1.bf16.msra.mxu0 0
  %2636 = vmatprep.subr.bf16.mxu0 0
  %2637 = vmatpush1.bf16.msra.mxu0 0
  %2638 = vmatprep.subr.bf16.mxu0 0
  %2639 = vmatpush1.bf16.msra.mxu0 0
  %2640 = vmatprep.subr.bf16.mxu0 0
  %2641 = vmatpush1.bf16.msra.mxu0 0
  %2642 = vmatprep.subr.bf16.mxu0 0
  %2643 = vmatpush1.bf16.msra.mxu0 0
  %2644 = vmatprep.subr.bf16.mxu0 0
  %2645 = vmatpush1.bf16.msra.mxu0 0
  %2646 = vmatprep.subr.bf16.mxu0 0
  %2647 = vmatpush1.bf16.msra.mxu0 0
  %2648 = vmatprep.subr.bf16.mxu0 0
  %2649 = vmatpush1.bf16.msra.mxu0 0
  %2650 = vmatprep.subr.bf16.mxu0 0
  %2651 = vmatpush1.bf16.msra.mxu0 0
  %2652 = vmatprep.subr.bf16.mxu0 0
  %2653 = vmatpush1.bf16.msra.mxu0 0
  %2654 = vmatprep.mubr.bf16.mxu0 0
  %2655 = vmatmul.mubr.bf16.gmra.mrb[0].mxu0 %v2617
  %v2656 = vpop.f32.mrb[0].mxu0
  %v2657 = vadd.f32 0.0, %v2656
  %v2658 = vpop.f32.mrb[0].mxu0
  %v2659 = vpop.f32.mrb[0].mxu0
  %v2660 = vadd.f32 0.0, %v2659
  %v2661 = vpop.f32.mrb[0].mxu0
  %2662 = vmatprep.mubr.bf16.mxu0 0
  %2663 = vmatmul.mubr.bf16.gmra.mrb[0].mxu0 %v2620
  %v2664 = vpop.f32.mrb[0].mxu0
  %v2665 = vadd.f32 0.0, %v2664
  %v2666 = vpop.f32.mrb[0].mxu0
  %v2667 = vpop.f32.mrb[0].mxu0
  %v2668 = vadd.f32 0.0, %v2667
  %v2669 = vpop.f32.mrb[0].mxu0
  %2670 = vdwg.mxu0
  %v2671 = vadd.f32 %v2603, %v2657
  %v2672 = vadd.f32 %v2604, %v2660
  %v2673 = vadd.f32 %v2605, %v2665
  %v2674 = vadd.f32 %v2606, %v2668
  %s2675 = scalar_lea.vmem %s20, 32
  %v2676 = vld [vmem:[%s2675] sm:$0xf]
  %v2677 = vld [vmem:[%s2675 + $0x4] sm:$0xf]
  %v2680 = vunpack.c.l.b16 %v2676
  %v2681 = vunpack.c.l.b16 %v2677
  %v2682 = vpack.c.b16 %v2681, %v2680
  %v2685 = vsel %vm866, %v2402, 0
  %v2688 = vsel %vm866, %v2403, 0
  %2690 = vmatprep.subr.bf16.mxu0 0
  %2691 = vmatpush1.bf16.msra.mxu0 %v2682
  %2692 = vmatprep.subr.bf16.mxu0 0
  %2693 = vmatpush1.bf16.msra.mxu0 0
  %2694 = vmatprep.subr.bf16.mxu0 0
  %2695 = vmatpush1.bf16.msra.mxu0 0
  %2696 = vmatprep.subr.bf16.mxu0 0
  %2697 = vmatpush1.bf16.msra.mxu0 0
  %2698 = vmatprep.subr.bf16.mxu0 0
  %2699 = vmatpush1.bf16.msra.mxu0 0
  %2700 = vmatprep.subr.bf16.mxu0 0
  %2701 = vmatpush1.bf16.msra.mxu0 0
  %2702 = vmatprep.subr.bf16.mxu0 0
  %2703 = vmatpush1.bf16.msra.mxu0 0
  %2704 = vmatprep.subr.bf16.mxu0 0
  %2705 = vmatpush1.bf16.msra.mxu0 0
  %2706 = vmatprep.subr.bf16.mxu0 0
  %2707 = vmatpush1.bf16.msra.mxu0 0
  %2708 = vmatprep.subr.bf16.mxu0 0
  %2709 = vmatpush1.bf16.msra.mxu0 0
  %2710 = vmatprep.subr.bf16.mxu0 0
  %2711 = vmatpush1.bf16.msra.mxu0 0
  %2712 = vmatprep.subr.bf16.mxu0 0
  %2713 = vmatpush1.bf16.msra.mxu0 0
  %2714 = vmatprep.subr.bf16.mxu0 0
  %2715 = vmatpush1.bf16.msra.mxu0 0
  %2716 = vmatprep.subr.bf16.mxu0 0
  %2717 = vmatpush1.bf16.msra.mxu0 0
  %2718 = vmatprep.subr.bf16.mxu0 0
  %2719 = vmatpush1.bf16.msra.mxu0 0
  %2720 = vmatprep.subr.bf16.mxu0 0
  %2721 = vmatpush1.bf16.msra.mxu0 0
  %2722 = vmatprep.mubr.bf16.mxu0 0
  %2723 = vmatmul.mubr.bf16.gmra.mrb[0].mxu0 %v2685
  %v2724 = vpop.f32.mrb[0].mxu0
  %v2725 = vadd.f32 0.0, %v2724
  %v2726 = vpop.f32.mrb[0].mxu0
  %v2727 = vpop.f32.mrb[0].mxu0
  %v2728 = vadd.f32 0.0, %v2727
  %v2729 = vpop.f32.mrb[0].mxu0
  %2730 = vmatprep.mubr.bf16.mxu0 0
  %2731 = vmatmul.mubr.bf16.gmra.mrb[0].mxu0 %v2688
  %v2732 = vpop.f32.mrb[0].mxu0
  %v2733 = vadd.f32 0.0, %v2732
  %v2734 = vpop.f32.mrb[0].mxu0
  %v2735 = vpop.f32.mrb[0].mxu0
  %v2736 = vadd.f32 0.0, %v2735
  %v2737 = vpop.f32.mrb[0].mxu0
  %2738 = vdwg.mxu0
  %v2739 = vadd.f32 %v2671, %v2725
  %v2740 = vadd.f32 %v2672, %v2728
  %v2741 = vadd.f32 %v2673, %v2733
  %v2742 = vadd.f32 %v2674, %v2736
  %s2743 = scalar_lea.vmem %s20, 40
  %v2744 = vld [vmem:[%s2743] sm:$0xf]
  %v2745 = vld [vmem:[%s2743 + $0x4] sm:$0xf]
  %v2748 = vunpack.c.l.b16 %v2744
  %v2749 = vunpack.c.l.b16 %v2745
  %v2750 = vpack.c.b16 %v2749, %v2748
  %v2753 = vsel %vm866, %v2404, 0
  %v2756 = vsel %vm866, %v2405, 0
  %2758 = vmatprep.subr.bf16.mxu0 0
  %2759 = vmatpush1.bf16.msra.mxu0 %v2750
  %2760 = vmatprep.subr.bf16.mxu0 0
  %2761 = vmatpush1.bf16.msra.mxu0 0
  %2762 = vmatprep.subr.bf16.mxu0 0
  %2763 = vmatpush1.bf16.msra.mxu0 0
  %2764 = vmatprep.subr.bf16.mxu0 0
  %2765 = vmatpush1.bf16.msra.mxu0 0
  %2766 = vmatprep.subr.bf16.mxu0 0
  %2767 = vmatpush1.bf16.msra.mxu0 0
  %2768 = vmatprep.subr.bf16.mxu0 0
  %2769 = vmatpush1.bf16.msra.mxu0 0
  %2770 = vmatprep.subr.bf16.mxu0 0
  %2771 = vmatpush1.bf16.msra.mxu0 0
  %2772 = vmatprep.subr.bf16.mxu0 0
  %2773 = vmatpush1.bf16.msra.mxu0 0
  %2774 = vmatprep.subr.bf16.mxu0 0
  %2775 = vmatpush1.bf16.msra.mxu0 0
  %2776 = vmatprep.subr.bf16.mxu0 0
  %2777 = vmatpush1.bf16.msra.mxu0 0
  %2778 = vmatprep.subr.bf16.mxu0 0
  %2779 = vmatpush1.bf16.msra.mxu0 0
  %2780 = vmatprep.subr.bf16.mxu0 0
  %2781 = vmatpush1.bf16.msra.mxu0 0
  %2782 = vmatprep.subr.bf16.mxu0 0
  %2783 = vmatpush1.bf16.msra.mxu0 0
  %2784 = vmatprep.subr.bf16.mxu0 0
  %2785 = vmatpush1.bf16.msra.mxu0 0
  %2786 = vmatprep.subr.bf16.mxu0 0
  %2787 = vmatpush1.bf16.msra.mxu0 0
  %2788 = vmatprep.subr.bf16.mxu0 0
  %2789 = vmatpush1.bf16.msra.mxu0 0
  %2790 = vmatprep.mubr.bf16.mxu0 0
  %2791 = vmatmul.mubr.bf16.gmra.mrb[0].mxu0 %v2753
  %v2792 = vpop.f32.mrb[0].mxu0
  %v2793 = vadd.f32 0.0, %v2792
  %v2794 = vpop.f32.mrb[0].mxu0
  %v2795 = vpop.f32.mrb[0].mxu0
  %v2796 = vadd.f32 0.0, %v2795
  %v2797 = vpop.f32.mrb[0].mxu0
  %2798 = vmatprep.mubr.bf16.mxu0 0
  %2799 = vmatmul.mubr.bf16.gmra.mrb[0].mxu0 %v2756
  %v2800 = vpop.f32.mrb[0].mxu0
  %v2801 = vadd.f32 0.0, %v2800
  %v2802 = vpop.f32.mrb[0].mxu0
  %v2803 = vpop.f32.mrb[0].mxu0
  %v2804 = vadd.f32 0.0, %v2803
  %v2805 = vpop.f32.mrb[0].mxu0
  %2806 = vdwg.mxu0
  %v2807 = vadd.f32 %v2739, %v2793
  %v2808 = vadd.f32 %v2740, %v2796
  %v2809 = vadd.f32 %v2741, %v2801
  %v2810 = vadd.f32 %v2742, %v2804
  %s2811 = scalar_lea.vmem %s20, 48
  %v2812 = vld [vmem:[%s2811] sm:$0xf]
  %v2813 = vld [vmem:[%s2811 + $0x4] sm:$0xf]
  %v2816 = vunpack.c.l.b16 %v2812
  %v2817 = vunpack.c.l.b16 %v2813
  %v2818 = vpack.c.b16 %v2817, %v2816
  %v2821 = vsel %vm866, %v2406, 0
  %v2824 = vsel %vm866, %v2407, 0
  %2826 = vmatprep.subr.bf16.mxu0 0
  %2827 = vmatpush1.bf16.msra.mxu0 %v2818
  %2828 = vmatprep.subr.bf16.mxu0 0
  %2829 = vmatpush1.bf16.msra.mxu0 0
  %2830 = vmatprep.subr.bf16.mxu0 0
  %2831 = vmatpush1.bf16.msra.mxu0 0
  %2832 = vmatprep.subr.bf16.mxu0 0
  %2833 = vmatpush1.bf16.msra.mxu0 0
  %2834 = vmatprep.subr.bf16.mxu0 0
  %2835 = vmatpush1.bf16.msra.mxu0 0
  %2836 = vmatprep.subr.bf16.mxu0 0
  %2837 = vmatpush1.bf16.msra.mxu0 0
  %2838 = vmatprep.subr.bf16.mxu0 0
  %2839 = vmatpush1.bf16.msra.mxu0 0
  %2840 = vmatprep.subr.bf16.mxu0 0
  %2841 = vmatpush1.bf16.msra.mxu0 0
  %2842 = vmatprep.subr.bf16.mxu0 0
  %2843 = vmatpush1.bf16.msra.mxu0 0
  %2844 = vmatprep.subr.bf16.mxu0 0
  %2845 = vmatpush1.bf16.msra.mxu0 0
  %2846 = vmatprep.subr.bf16.mxu0 0
  %2847 = vmatpush1.bf16.msra.mxu0 0
  %2848 = vmatprep.subr.bf16.mxu0 0
  %2849 = vmatpush1.bf16.msra.mxu0 0
  %2850 = vmatprep.subr.bf16.mxu0 0
  %2851 = vmatpush1.bf16.msra.mxu0 0
  %2852 = vmatprep.subr.bf16.mxu0 0
  %2853 = vmatpush1.bf16.msra.mxu0 0
  %2854 = vmatprep.subr.bf16.mxu0 0
  %2855 = vmatpush1.bf16.msra.mxu0 0
  %2856 = vmatprep.subr.bf16.mxu0 0
  %2857 = vmatpush1.bf16.msra.mxu0 0
  %2858 = vmatprep.mubr.bf16.mxu0 0
  %2859 = vmatmul.mubr.bf16.gmra.mrb[0].mxu0 %v2821
  %v2860 = vpop.f32.mrb[0].mxu0
  %v2861 = vadd.f32 0.0, %v2860
  %v2862 = vpop.f32.mrb[0].mxu0
  %v2863 = vpop.f32.mrb[0].mxu0
  %v2864 = vadd.f32 0.0, %v2863
  %v2865 = vpop.f32.mrb[0].mxu0
  %2866 = vmatprep.mubr.bf16.mxu0 0
  %2867 = vmatmul.mubr.bf16.gmra.mrb[0].mxu0 %v2824
  %v2868 = vpop.f32.mrb[0].mxu0
  %v2869 = vadd.f32 0.0, %v2868
  %v2870 = vpop.f32.mrb[0].mxu0
  %v2871 = vpop.f32.mrb[0].mxu0
  %v2872 = vadd.f32 0.0, %v2871
  %v2873 = vpop.f32.mrb[0].mxu0
  %2874 = vdwg.mxu0
  %v2875 = vadd.f32 %v2807, %v2861
  %v2876 = vadd.f32 %v2808, %v2864
  %v2877 = vadd.f32 %v2809, %v2869
  %v2878 = vadd.f32 %v2810, %v2872
  %s2879 = scalar_lea.vmem %s20, 56
  %v2880 = vld [vmem:[%s2879] sm:$0xf]
  %v2881 = vld [vmem:[%s2879 + $0x4] sm:$0xf]
  %v2884 = vunpack.c.l.b16 %v2880
  %v2885 = vunpack.c.l.b16 %v2881
  %v2886 = vpack.c.b16 %v2885, %v2884
  %v2889 = vsel %vm866, %v2408, 0
  %v2892 = vsel %vm866, %v2409, 0
  %2894 = vmatprep.subr.bf16.mxu0 0
  %2895 = vmatpush1.bf16.msra.mxu0 %v2886
  %2896 = vmatprep.subr.bf16.mxu0 0
  %2897 = vmatpush1.bf16.msra.mxu0 0
  %2898 = vmatprep.subr.bf16.mxu0 0
  %2899 = vmatpush1.bf16.msra.mxu0 0
  %2900 = vmatprep.subr.bf16.mxu0 0
  %2901 = vmatpush1.bf16.msra.mxu0 0
  %2902 = vmatprep.subr.bf16.mxu0 0
  %2903 = vmatpush1.bf16.msra.mxu0 0
  %2904 = vmatprep.subr.bf16.mxu0 0
  %2905 = vmatpush1.bf16.msra.mxu0 0
  %2906 = vmatprep.subr.bf16.mxu0 0
  %2907 = vmatpush1.bf16.msra.mxu0 0
  %2908 = vmatprep.subr.bf16.mxu0 0
  %2909 = vmatpush1.bf16.msra.mxu0 0
  %2910 = vmatprep.subr.bf16.mxu0 0
  %2911 = vmatpush1.bf16.msra.mxu0 0
  %2912 = vmatprep.subr.bf16.mxu0 0
  %2913 = vmatpush1.bf16.msra.mxu0 0
  %2914 = vmatprep.subr.bf16.mxu0 0
  %2915 = vmatpush1.bf16.msra.mxu0 0
  %2916 = vmatprep.subr.bf16.mxu0 0
  %2917 = vmatpush1.bf16.msra.mxu0 0
  %2918 = vmatprep.subr.bf16.mxu0 0
  %2919 = vmatpush1.bf16.msra.mxu0 0
  %2920 = vmatprep.subr.bf16.mxu0 0
  %2921 = vmatpush1.bf16.msra.mxu0 0
  %2922 = vmatprep.subr.bf16.mxu0 0
  %2923 = vmatpush1.bf16.msra.mxu0 0
  %2924 = vmatprep.subr.bf16.mxu0 0
  %2925 = vmatpush1.bf16.msra.mxu0 0
  %2926 = vmatprep.mubr.bf16.mxu0 0
  %2927 = vmatmul.mubr.bf16.gmra.mrb[0].mxu0 %v2889
  %v2928 = vpop.f32.mrb[0].mxu0
  %v2929 = vadd.f32 0.0, %v2928
  %v2930 = vpop.f32.mrb[0].mxu0
  %v2931 = vpop.f32.mrb[0].mxu0
  %v2932 = vadd.f32 0.0, %v2931
  %v2933 = vpop.f32.mrb[0].mxu0
  %2934 = vmatprep.mubr.bf16.mxu0 0
  %2935 = vmatmul.mubr.bf16.gmra.mrb[0].mxu0 %v2892
  %v2936 = vpop.f32.mrb[0].mxu0
  %v2937 = vadd.f32 0.0, %v2936
  %v2938 = vpop.f32.mrb[0].mxu0
  %v2939 = vpop.f32.mrb[0].mxu0
  %v2940 = vadd.f32 0.0, %v2939
  %v2941 = vpop.f32.mrb[0].mxu0
  %2942 = vdwg.mxu0
  %v2943 = vadd.f32 %v2875, %v2929
  %v2944 = vadd.f32 %v2876, %v2932
  %v2945 = vadd.f32 %v2877, %v2937
  %v2946 = vadd.f32 %v2878, %v2940
  %s2947 = scalar_lea.vmem %s20, 64
  %v2948 = vld [vmem:[%s2947] sm:$0xf]
  %v2949 = vld [vmem:[%s2947 + $0x4] sm:$0xf]
  %v2952 = vunpack.c.l.b16 %v2948
  %v2953 = vunpack.c.l.b16 %v2949
  %v2954 = vpack.c.b16 %v2953, %v2952
  %v2957 = vsel %vm866, %v2410, 0
  %v2960 = vsel %vm866, %v2411, 0
  %2962 = vmatprep.subr.bf16.mxu0 0
  %2963 = vmatpush1.bf16.msra.mxu0 %v2954
  %2964 = vmatprep.subr.bf16.mxu0 0
  %2965 = vmatpush1.bf16.msra.mxu0 0
  %2966 = vmatprep.subr.bf16.mxu0 0
  %2967 = vmatpush1.bf16.msra.mxu0 0
  %2968 = vmatprep.subr.bf16.mxu0 0
  %2969 = vmatpush1.bf16.msra.mxu0 0
  %2970 = vmatprep.subr.bf16.mxu0 0
  %2971 = vmatpush1.bf16.msra.mxu0 0
  %2972 = vmatprep.subr.bf16.mxu0 0
  %2973 = vmatpush1.bf16.msra.mxu0 0
  %2974 = vmatprep.subr.bf16.mxu0 0
  %2975 = vmatpush1.bf16.msra.mxu0 0
  %2976 = vmatprep.subr.bf16.mxu0 0
  %2977 = vmatpush1.bf16.msra.mxu0 0
  %2978 = vmatprep.subr.bf16.mxu0 0
  %2979 = vmatpush1.bf16.msra.mxu0 0
  %2980 = vmatprep.subr.bf16.mxu0 0
  %2981 = vmatpush1.bf16.msra.mxu0 0
  %2982 = vmatprep.subr.bf16.mxu0 0
  %2983 = vmatpush1.bf16.msra.mxu0 0
  %2984 = vmatprep.subr.bf16.mxu0 0
  %2985 = vmatpush1.bf16.msra.mxu0 0
  %2986 = vmatprep.subr.bf16.mxu0 0
  %2987 = vmatpush1.bf16.msra.mxu0 0
  %2988 = vmatprep.subr.bf16.mxu0 0
  %2989 = vmatpush1.bf16.msra.mxu0 0
  %2990 = vmatprep.subr.bf16.mxu0 0
  %2991 = vmatpush1.bf16.msra.mxu0 0
  %2992 = vmatprep.subr.bf16.mxu0 0
  %2993 = vmatpush1.bf16.msra.mxu0 0
  %2994 = vmatprep.mubr.bf16.mxu0 0
  %2995 = vmatmul.mubr.bf16.gmra.mrb[0].mxu0 %v2957
  %v2996 = vpop.f32.mrb[0].mxu0
  %v2997 = vadd.f32 0.0, %v2996
  %v2998 = vpop.f32.mrb[0].mxu0
  %v2999 = vpop.f32.mrb[0].mxu0
  %v3000 = vadd.f32 0.0, %v2999
  %v3001 = vpop.f32.mrb[0].mxu0
  %3002 = vmatprep.mubr.bf16.mxu0 0
  %3003 = vmatmul.mubr.bf16.gmra.mrb[0].mxu0 %v2960
  %v3004 = vpop.f32.mrb[0].mxu0
  %v3005 = vadd.f32 0.0, %v3004
  %v3006 = vpop.f32.mrb[0].mxu0
  %v3007 = vpop.f32.mrb[0].mxu0
  %v3008 = vadd.f32 0.0, %v3007
  %v3009 = vpop.f32.mrb[0].mxu0
  %3010 = vdwg.mxu0
  %v3011 = vadd.f32 %v2943, %v2997
  %v3012 = vadd.f32 %v2944, %v3000
  %v3013 = vadd.f32 %v2945, %v3005
  %v3014 = vadd.f32 %v2946, %v3008
  %v3015 = vld [vmem:[%s6] sm:$0xff]
  %v3016 = vld [vmem:[%s6 + $0x8] sm:$0xff]
  %v3017 = vld [vmem:[%s6 + $0x10] sm:$0xff]
  %v3018 = vld [vmem:[%s6 + $0x18] sm:$0xff]
  %3020 = vset.pattern.permute.xlu0 0
  %3021 = vperm.xlu0 %3020, %v3015
  %v3022 = vpop.permute.xlu0 %3021
  %3025 = vset.pattern.permute.xlu0 0
  %3026 = vperm.xlu0 %3025, %v3016
  %v3027 = vpop.permute.xlu0 %3026
  %3030 = vset.pattern.permute.xlu0 0
  %3031 = vperm.xlu0 %3030, %v3017
  %v3032 = vpop.permute.xlu0 %3031
  %3035 = vset.pattern.permute.xlu0 0
  %3036 = vperm.xlu0 %3035, %v3018
  %v3037 = vpop.permute.xlu0 %3036
  %v3039 = vadd.f32 %v3011, %v3022
  %v3040 = vadd.f32 %v3012, %v3027
  %v3041 = vadd.f32 %v3013, %v3032
  %v3042 = vadd.f32 %v3014, %v3037
  %v3043 = vmax.f32 %v3039, 0.0
  %v3044 = vmax.f32 %v3040, 0.0
  %v3045 = vmax.f32 %v3041, 0.0
  %v3046 = vmax.f32 %v3042, 0.0
  %v3047 = vld [vmem:[%s7] sm:$0xf]
  %v3048 = vld [vmem:[%s7 + $0x4] sm:$0xf]
  %v3049 = vld [vmem:[%s7 + $0x8] sm:$0xf]
  %v3050 = vld [vmem:[%s7 + $0xc] sm:$0xf]
  %v3051 = vld [vmem:[%s7 + $0x10] sm:$0xf]
  %v3052 = vld [vmem:[%s7 + $0x14] sm:$0xf]
  %v3053 = vld [vmem:[%s7 + $0x18] sm:$0xf]
  %v3054 = vld [vmem:[%s7 + $0x1c] sm:$0xf]
  %v3055 = vld [vmem:[%s7 + $0x20] sm:$0xf]
  %v3056 = vld [vmem:[%s7 + $0x24] sm:$0xf]
  %v3057 = vld [vmem:[%s7 + $0x28] sm:$0xf]
  %v3058 = vld [vmem:[%s7 + $0x2c] sm:$0xf]
  %v3059 = vld [vmem:[%s7 + $0x30] sm:$0xf]
  %v3060 = vld [vmem:[%s7 + $0x34] sm:$0xf]
  %v3061 = vld [vmem:[%s7 + $0x38] sm:$0xf]
  %v3062 = vld [vmem:[%s7 + $0x3c] sm:$0xf]
  %v3063 = vld [vmem:[%s7 + $0x40] sm:$0xf]
  %v3064 = vld [vmem:[%s7 + $0x44] sm:$0xf]
  %v3065 = vpack.c.bf16 %v3044, %v3043
  %v3066 = vpack.c.bf16 %v3046, %v3045
  %v3067 = vld [vmem:[%s8] sm:$0xf]
  %v3068 = vld [vmem:[%s8 + $0x4] sm:$0xf]
  %v3069 = vld [vmem:[%s8 + $0x8] sm:$0xf]
  %v3070 = vld [vmem:[%s8 + $0xc] sm:$0xf]
  %v3071 = vld [vmem:[%s8 + $0x10] sm:$0xf]
  %v3072 = vld [vmem:[%s8 + $0x14] sm:$0xf]
  %v3073 = vld [vmem:[%s8 + $0x18] sm:$0xf]
  %v3074 = vld [vmem:[%s8 + $0x1c] sm:$0xf]
  %v3075 = vld [vmem:[%s8 + $0x20] sm:$0xf]
  %v3076 = vld [vmem:[%s8 + $0x24] sm:$0xf]
  %v3077 = vld [vmem:[%s8 + $0x28] sm:$0xf]
  %v3078 = vld [vmem:[%s8 + $0x2c] sm:$0xf]
  %v3079 = vld [vmem:[%s8 + $0x30] sm:$0xf]
  %v3080 = vld [vmem:[%s8 + $0x34] sm:$0xf]
  %v3081 = vld [vmem:[%s8 + $0x38] sm:$0xf]
  %v3082 = vld [vmem:[%s8 + $0x3c] sm:$0xf]
  %v3083 = vld [vmem:[%s8 + $0x40] sm:$0xf]
  %v3084 = vld [vmem:[%s8 + $0x44] sm:$0xf]
  %v3103 = vunpack.c.l.b16 %v3067
  %v3104 = vunpack.c.l.b16 %v3068
  %v3105 = vunpack.c.l.b16 %v3069
  %v3106 = vunpack.c.l.b16 %v3070
  %v3107 = vunpack.c.l.b16 %v3071
  %v3108 = vunpack.c.l.b16 %v3072
  %v3109 = vunpack.c.l.b16 %v3073
  %v3110 = vunpack.c.l.b16 %v3074
  %v3111 = vunpack.c.l.b16 %v3075
  %v3112 = vunpack.c.l.b16 %v3076
  %v3113 = vunpack.c.l.b16 %v3077
  %v3114 = vunpack.c.l.b16 %v3078
  %v3115 = vunpack.c.l.b16 %v3079
  %v3116 = vunpack.c.l.b16 %v3080
  %v3117 = vunpack.c.l.b16 %v3081
  %v3118 = vunpack.c.l.b16 %v3082
  %v3119 = vunpack.c.l.b16 %v3083
  %v3120 = vunpack.c.l.b16 %v3084
  %v3121 = vpack.c.b16 %v3104, %v3103
  %v3122 = vpack.c.b16 %v3106, %v3105
  %v3123 = vpack.c.b16 %v3108, %v3107
  %v3124 = vpack.c.b16 %v3110, %v3109
  %v3125 = vpack.c.b16 %v3112, %v3111
  %v3126 = vpack.c.b16 %v3114, %v3113
  %v3127 = vpack.c.b16 %v3116, %v3115
  %v3128 = vpack.c.b16 %v3118, %v3117
  %v3129 = vpack.c.b16 %v3120, %v3119
  %v3131 = vsel %vm866, %v3121, 0
  %v3134 = vsel %vm866, %v3122, 0
  %v3137 = vsel %vm866, %v3123, 0
  %v3140 = vsel %vm866, %v3124, 0
  %v3143 = vsel %vm866, %v3125, 0
  %v3146 = vsel %vm866, %v3126, 0
  %v3149 = vsel %vm866, %v3127, 0
  %v3152 = vsel %vm866, %v3128, 0
  %v3155 = vsel %vm866, %v3129, 0
  %3157 = vmatprep.subr.bf16.mxu0 0
  %3158 = vmatpush1.bf16.msra.mxu0 %v2072
  %3159 = vmatprep.subr.bf16.mxu0 0
  %3160 = vmatpush1.bf16.msra.mxu0 0
  %3161 = vmatprep.subr.bf16.mxu0 0
  %3162 = vmatpush1.bf16.msra.mxu0 0
  %3163 = vmatprep.subr.bf16.mxu0 0
  %3164 = vmatpush1.bf16.msra.mxu0 0
  %3165 = vmatprep.subr.bf16.mxu0 0
  %3166 = vmatpush1.bf16.msra.mxu0 0
  %3167 = vmatprep.subr.bf16.mxu0 0
  %3168 = vmatpush1.bf16.msra.mxu0 0
  %3169 = vmatprep.subr.bf16.mxu0 0
  %3170 = vmatpush1.bf16.msra.mxu0 0
  %3171 = vmatprep.subr.bf16.mxu0 0
  %3172 = vmatpush1.bf16.msra.mxu0 0
  %3173 = vmatprep.subr.bf16.mxu0 0
  %3174 = vmatpush1.bf16.msra.mxu0 0
  %3175 = vmatprep.subr.bf16.mxu0 0
  %3176 = vmatpush1.bf16.msra.mxu0 0
  %3177 = vmatprep.subr.bf16.mxu0 0
  %3178 = vmatpush1.bf16.msra.mxu0 0
  %3179 = vmatprep.subr.bf16.mxu0 0
  %3180 = vmatpush1.bf16.msra.mxu0 0
  %3181 = vmatprep.subr.bf16.mxu0 0
  %3182 = vmatpush1.bf16.msra.mxu0 0
  %3183 = vmatprep.subr.bf16.mxu0 0
  %3184 = vmatpush1.bf16.msra.mxu0 0
  %3185 = vmatprep.subr.bf16.mxu0 0
  %3186 = vmatpush1.bf16.msra.mxu0 0
  %3187 = vmatprep.subr.bf16.mxu0 0
  %3188 = vmatpush1.bf16.msra.mxu0 0
  %3189 = vmatprep.mubr.bf16.mxu0 0
  %3190 = vmatmul.mubr.bf16.gmra.mrb[0].mxu0 %v3131
  %v3191 = vpop.f32.mrb[0].mxu0
  %v3192 = vadd.f32 0.0, %v3191
  %v3193 = vpop.f32.mrb[0].mxu0
  %v3194 = vpop.f32.mrb[0].mxu0
  %v3195 = vadd.f32 0.0, %v3194
  %v3196 = vpop.f32.mrb[0].mxu0
  %3197 = vmatprep.mubr.bf16.mxu0 0
  %3198 = vmatmul.mubr.bf16.gmra.mrb[0].mxu0 %v3134
  %v3199 = vpop.f32.mrb[0].mxu0
  %v3200 = vadd.f32 0.0, %v3199
  %v3201 = vpop.f32.mrb[0].mxu0
  %v3202 = vpop.f32.mrb[0].mxu0
  %v3203 = vadd.f32 0.0, %v3202
  %v3204 = vpop.f32.mrb[0].mxu0
  %3205 = vmatprep.mubr.bf16.mxu0 0
  %3206 = vmatmul.mubr.bf16.gmra.mrb[0].mxu0 %v3137
  %v3207 = vpop.f32.mrb[0].mxu0
  %v3208 = vadd.f32 0.0, %v3207
  %v3209 = vpop.f32.mrb[0].mxu0
  %v3210 = vpop.f32.mrb[0].mxu0
  %v3211 = vadd.f32 0.0, %v3210
  %v3212 = vpop.f32.mrb[0].mxu0
  %3213 = vmatprep.mubr.bf16.mxu0 0
  %3214 = vmatmul.mubr.bf16.gmra.mrb[0].mxu0 %v3140
  %v3215 = vpop.f32.mrb[0].mxu0
  %v3216 = vadd.f32 0.0, %v3215
  %v3217 = vpop.f32.mrb[0].mxu0
  %v3218 = vpop.f32.mrb[0].mxu0
  %v3219 = vadd.f32 0.0, %v3218
  %v3220 = vpop.f32.mrb[0].mxu0
  %3221 = vmatprep.mubr.bf16.mxu0 0
  %3222 = vmatmul.mubr.bf16.gmra.mrb[0].mxu0 %v3143
  %v3223 = vpop.f32.mrb[0].mxu0
  %v3224 = vadd.f32 0.0, %v3223
  %v3225 = vpop.f32.mrb[0].mxu0
  %v3226 = vpop.f32.mrb[0].mxu0
  %v3227 = vadd.f32 0.0, %v3226
  %v3228 = vpop.f32.mrb[0].mxu0
  %3229 = vmatprep.mubr.bf16.mxu0 0
  %3230 = vmatmul.mubr.bf16.gmra.mrb[0].mxu0 %v3146
  %v3231 = vpop.f32.mrb[0].mxu0
  %v3232 = vadd.f32 0.0, %v3231
  %v3233 = vpop.f32.mrb[0].mxu0
  %v3234 = vpop.f32.mrb[0].mxu0
  %v3235 = vadd.f32 0.0, %v3234
  %v3236 = vpop.f32.mrb[0].mxu0
  %3237 = vmatprep.mubr.bf16.mxu0 0
  %3238 = vmatmul.mubr.bf16.gmra.mrb[0].mxu0 %v3149
  %v3239 = vpop.f32.mrb[0].mxu0
  %v3240 = vadd.f32 0.0, %v3239
  %v3241 = vpop.f32.mrb[0].mxu0
  %v3242 = vpop.f32.mrb[0].mxu0
  %v3243 = vadd.f32 0.0, %v3242
  %v3244 = vpop.f32.mrb[0].mxu0
  %3245 = vmatprep.mubr.bf16.mxu0 0
  %3246 = vmatmul.mubr.bf16.gmra.mrb[0].mxu0 %v3152
  %v3247 = vpop.f32.mrb[0].mxu0
  %v3248 = vadd.f32 0.0, %v3247
  %v3249 = vpop.f32.mrb[0].mxu0
  %v3250 = vpop.f32.mrb[0].mxu0
  %v3251 = vadd.f32 0.0, %v3250
  %v3252 = vpop.f32.mrb[0].mxu0
  %3253 = vmatprep.mubr.bf16.mxu0 0
  %3254 = vmatmul.mubr.bf16.gmra.mrb[0].mxu0 %v3155
  %v3255 = vpop.f32.mrb[0].mxu0
  %v3256 = vadd.f32 0.0, %v3255
  %v3257 = vpop.f32.mrb[0].mxu0
  %v3258 = vpop.f32.mrb[0].mxu0
  %v3259 = vadd.f32 0.0, %v3258
  %v3260 = vpop.f32.mrb[0].mxu0
  %3261 = vdwg.mxu0
  %v3280 = vunpack.c.l.b16 %v3047
  %v3281 = vunpack.c.l.b16 %v3048
  %v3282 = vunpack.c.l.b16 %v3049
  %v3283 = vunpack.c.l.b16 %v3050
  %v3284 = vunpack.c.l.b16 %v3051
  %v3285 = vunpack.c.l.b16 %v3052
  %v3286 = vunpack.c.l.b16 %v3053
  %v3287 = vunpack.c.l.b16 %v3054
  %v3288 = vunpack.c.l.b16 %v3055
  %v3289 = vunpack.c.l.b16 %v3056
  %v3290 = vunpack.c.l.b16 %v3057
  %v3291 = vunpack.c.l.b16 %v3058
  %v3292 = vunpack.c.l.b16 %v3059
  %v3293 = vunpack.c.l.b16 %v3060
  %v3294 = vunpack.c.l.b16 %v3061
  %v3295 = vunpack.c.l.b16 %v3062
  %v3296 = vunpack.c.l.b16 %v3063
  %v3297 = vunpack.c.l.b16 %v3064
  %v3298 = vpack.c.b16 %v3281, %v3280
  %v3299 = vpack.c.b16 %v3283, %v3282
  %v3300 = vpack.c.b16 %v3285, %v3284
  %v3301 = vpack.c.b16 %v3287, %v3286
  %v3302 = vpack.c.b16 %v3289, %v3288
  %v3303 = vpack.c.b16 %v3291, %v3290
  %v3304 = vpack.c.b16 %v3293, %v3292
  %v3305 = vpack.c.b16 %v3295, %v3294
  %v3306 = vpack.c.b16 %v3297, %v3296
  %vm3307 = vcmask 261120
  %v3309 = vsel %vm3307, %v3298, 0
  %v3312 = vsel %vm3307, %v3299, 0
  %v3315 = vsel %vm3307, %v3300, 0
  %v3318 = vsel %vm3307, %v3301, 0
  %v3321 = vsel %vm3307, %v3302, 0
  %v3324 = vsel %vm3307, %v3303, 0
  %v3327 = vsel %vm3307, %v3304, 0
  %v3330 = vsel %vm3307, %v3305, 0
  %v3333 = vsel %vm3307, %v3306, 0
  %3335 = vmatprep.subr.bf16.mxu0 0
  %3336 = vmatpush1.bf16.msra.mxu0 %v3065
  %3337 = vmatprep.subr.bf16.mxu0 0
  %3338 = vmatpush1.bf16.msra.mxu0 %v3066
  %3339 = vmatprep.subr.bf16.mxu0 0
  %3340 = vmatpush1.bf16.msra.mxu0 0
  %3341 = vmatprep.subr.bf16.mxu0 0
  %3342 = vmatpush1.bf16.msra.mxu0 0
  %3343 = vmatprep.subr.bf16.mxu0 0
  %3344 = vmatpush1.bf16.msra.mxu0 0
  %3345 = vmatprep.subr.bf16.mxu0 0
  %3346 = vmatpush1.bf16.msra.mxu0 0
  %3347 = vmatprep.subr.bf16.mxu0 0
  %3348 = vmatpush1.bf16.msra.mxu0 0
  %3349 = vmatprep.subr.bf16.mxu0 0
  %3350 = vmatpush1.bf16.msra.mxu0 0
  %3351 = vmatprep.subr.bf16.mxu0 0
  %3352 = vmatpush1.bf16.msra.mxu0 0
  %3353 = vmatprep.subr.bf16.mxu0 0
  %3354 = vmatpush1.bf16.msra.mxu0 0
  %3355 = vmatprep.subr.bf16.mxu0 0
  %3356 = vmatpush1.bf16.msra.mxu0 0
  %3357 = vmatprep.subr.bf16.mxu0 0
  %3358 = vmatpush1.bf16.msra.mxu0 0
  %3359 = vmatprep.subr.bf16.mxu0 0
  %3360 = vmatpush1.bf16.msra.mxu0 0
  %3361 = vmatprep.subr.bf16.mxu0 0
  %3362 = vmatpush1.bf16.msra.mxu0 0
  %3363 = vmatprep.subr.bf16.mxu0 0
  %3364 = vmatpush1.bf16.msra.mxu0 0
  %3365 = vmatprep.subr.bf16.mxu0 0
  %3366 = vmatpush1.bf16.msra.mxu0 0
  %3367 = vmatprep.mubr.bf16.mxu0 0
  %3368 = vmatmul.mubr.bf16.gmra.mrb[0].mxu0 %v3309
  %v3369 = vpop.f32.mrb[0].mxu0
  %v3370 = vadd.f32 %v3192, %v3369
  %v3371 = vpop.f32.mrb[0].mxu0
  %v3372 = vpop.f32.mrb[0].mxu0
  %v3373 = vadd.f32 %v3195, %v3372
  %v3374 = vpop.f32.mrb[0].mxu0
  %3375 = vmatprep.mubr.bf16.mxu0 0
  %3376 = vmatmul.mubr.bf16.gmra.mrb[0].mxu0 %v3312
  %v3377 = vpop.f32.mrb[0].mxu0
  %v3378 = vadd.f32 %v3200, %v3377
  %v3379 = vpop.f32.mrb[0].mxu0
  %v3380 = vpop.f32.mrb[0].mxu0
  %v3381 = vadd.f32 %v3203, %v3380
  %v3382 = vpop.f32.mrb[0].mxu0
  %3383 = vmatprep.mubr.bf16.mxu0 0
  %3384 = vmatmul.mubr.bf16.gmra.mrb[0].mxu0 %v3315
  %v3385 = vpop.f32.mrb[0].mxu0
  %v3386 = vadd.f32 %v3208, %v3385
  %v3387 = vpop.f32.mrb[0].mxu0
  %v3388 = vpop.f32.mrb[0].mxu0
  %v3389 = vadd.f32 %v3211, %v3388
  %v3390 = vpop.f32.mrb[0].mxu0
  %3391 = vmatprep.mubr.bf16.mxu0 0
  %3392 = vmatmul.mubr.bf16.gmra.mrb[0].mxu0 %v3318
  %v3393 = vpop.f32.mrb[0].mxu0
  %v3394 = vadd.f32 %v3216, %v3393
  %v3395 = vpop.f32.mrb[0].mxu0
  %v3396 = vpop.f32.mrb[0].mxu0
  %v3397 = vadd.f32 %v3219, %v3396
  %v3398 = vpop.f32.mrb[0].mxu0
  %3399 = vmatprep.mubr.bf16.mxu0 0
  %3400 = vmatmul.mubr.bf16.gmra.mrb[0].mxu0 %v3321
  %v3401 = vpop.f32.mrb[0].mxu0
  %v3402 = vadd.f32 %v3224, %v3401
  %v3403 = vpop.f32.mrb[0].mxu0
  %v3404 = vpop.f32.mrb[0].mxu0
  %v3405 = vadd.f32 %v3227, %v3404
  %v3406 = vpop.f32.mrb[0].mxu0
  %3407 = vmatprep.mubr.bf16.mxu0 0
  %3408 = vmatmul.mubr.bf16.gmra.mrb[0].mxu0 %v3324
  %v3409 = vpop.f32.mrb[0].mxu0
  %v3410 = vadd.f32 %v3232, %v3409
  %v3411 = vpop.f32.mrb[0].mxu0
  %v3412 = vpop.f32.mrb[0].mxu0
  %v3413 = vadd.f32 %v3235, %v3412
  %v3414 = vpop.f32.mrb[0].mxu0
  %3415 = vmatprep.mubr.bf16.mxu0 0
  %3416 = vmatmul.mubr.bf16.gmra.mrb[0].mxu0 %v3327
  %v3417 = vpop.f32.mrb[0].mxu0
  %v3418 = vadd.f32 %v3240, %v3417
  %v3419 = vpop.f32.mrb[0].mxu0
  %v3420 = vpop.f32.mrb[0].mxu0
  %v3421 = vadd.f32 %v3243, %v3420
  %v3422 = vpop.f32.mrb[0].mxu0
  %3423 = vmatprep.mubr.bf16.mxu0 0
  %3424 = vmatmul.mubr.bf16.gmra.mrb[0].mxu0 %v3330
  %v3425 = vpop.f32.mrb[0].mxu0
  %v3426 = vadd.f32 %v3248, %v3425
  %v3427 = vpop.f32.mrb[0].mxu0
  %v3428 = vpop.f32.mrb[0].mxu0
  %v3429 = vadd.f32 %v3251, %v3428
  %v3430 = vpop.f32.mrb[0].mxu0
  %3431 = vmatprep.mubr.bf16.mxu0 0
  %3432 = vmatmul.mubr.bf16.gmra.mrb[0].mxu0 %v3333
  %v3433 = vpop.f32.mrb[0].mxu0
  %v3434 = vadd.f32 %v3256, %v3433
  %v3435 = vpop.f32.mrb[0].mxu0
  %v3436 = vpop.f32.mrb[0].mxu0
  %v3437 = vadd.f32 %v3259, %v3436
  %v3438 = vpop.f32.mrb[0].mxu0
  %3439 = vdwg.mxu0
  %v3440 = vpack.c.bf16 %v3373, %v3370
  %v3441 = vpack.c.bf16 %v3381, %v3378
  %v3442 = vpack.c.bf16 %v3389, %v3386
  %v3443 = vpack.c.bf16 %v3397, %v3394
  %v3444 = vpack.c.bf16 %v3405, %v3402
  %v3445 = vpack.c.bf16 %v3413, %v3410
  %v3446 = vpack.c.bf16 %v3421, %v3418
  %v3447 = vpack.c.bf16 %v3429, %v3426
  %v3448 = vpack.c.bf16 %v3437, %v3434
  %v3450 = vsel %vm866, %v3441, 0
  %3452 = vmatprep.subr.bf16.mxu0 0
  %3453 = vmatpush1.bf16.msra.mxu0 %v2421
  %3454 = vmatprep.subr.bf16.mxu0 0
  %3455 = vmatpush1.bf16.msra.mxu0 0
  %3456 = vmatprep.subr.bf16.mxu0 0
  %3457 = vmatpush1.bf16.msra.mxu0 0
  %3458 = vmatprep.subr.bf16.mxu0 0
  %3459 = vmatpush1.bf16.msra.mxu0 0
  %3460 = vmatprep.subr.bf16.mxu0 0
  %3461 = vmatpush1.bf16.msra.mxu0 0
  %3462 = vmatprep.subr.bf16.mxu0 0
  %3463 = vmatpush1.bf16.msra.mxu0 0
  %3464 = vmatprep.subr.bf16.mxu0 0
  %3465 = vmatpush1.bf16.msra.mxu0 0
  %3466 = vmatprep.subr.bf16.mxu0 0
  %3467 = vmatpush1.bf16.msra.mxu0 0
  %3468 = vmatprep.subr.bf16.mxu0 0
  %3469 = vmatpush1.bf16.msra.mxu0 0
  %3470 = vmatprep.subr.bf16.mxu0 0
  %3471 = vmatpush1.bf16.msra.mxu0 0
  %3472 = vmatprep.subr.bf16.mxu0 0
  %3473 = vmatpush1.bf16.msra.mxu0 0
  %3474 = vmatprep.subr.bf16.mxu0 0
  %3475 = vmatpush1.bf16.msra.mxu0 0
  %3476 = vmatprep.subr.bf16.mxu0 0
  %3477 = vmatpush1.bf16.msra.mxu0 0
  %3478 = vmatprep.subr.bf16.mxu0 0
  %3479 = vmatpush1.bf16.msra.mxu0 0
  %3480 = vmatprep.subr.bf16.mxu0 0
  %3481 = vmatpush1.bf16.msra.mxu0 0
  %3482 = vmatprep.subr.bf16.mxu0 0
  %3483 = vmatpush1.bf16.msra.mxu0 0
  %3484 = vmatprep.mubr.bf16.mxu0 0
  %3485 = vmatmul.mubr.bf16.gmra.mrb[0].mxu0 %v3450
  %v3486 = vpop.f32.mrb[0].mxu0
  %v3487 = vadd.f32 0.0, %v3486
  %v3488 = vpop.f32.mrb[0].mxu0
  %v3489 = vpop.f32.mrb[0].mxu0
  %v3490 = vadd.f32 0.0, %v3489
  %v3491 = vpop.f32.mrb[0].mxu0
  %3492 = vdwg.mxu0
  %v3494 = vsel %vm866, %v3440, 0
  %3496 = vmatprep.subr.bf16.mxu0 0
  %3497 = vmatpush1.bf16.msra.mxu0 %v2482
  %3498 = vmatprep.subr.bf16.mxu0 0
  %3499 = vmatpush1.bf16.msra.mxu0 0
  %3500 = vmatprep.subr.bf16.mxu0 0
  %3501 = vmatpush1.bf16.msra.mxu0 0
  %3502 = vmatprep.subr.bf16.mxu0 0
  %3503 = vmatpush1.bf16.msra.mxu0 0
  %3504 = vmatprep.subr.bf16.mxu0 0
  %3505 = vmatpush1.bf16.msra.mxu0 0
  %3506 = vmatprep.subr.bf16.mxu0 0
  %3507 = vmatpush1.bf16.msra.mxu0 0
  %3508 = vmatprep.subr.bf16.mxu0 0
  %3509 = vmatpush1.bf16.msra.mxu0 0
  %3510 = vmatprep.subr.bf16.mxu0 0
  %3511 = vmatpush1.bf16.msra.mxu0 0
  %3512 = vmatprep.subr.bf16.mxu0 0
  %3513 = vmatpush1.bf16.msra.mxu0 0
  %3514 = vmatprep.subr.bf16.mxu0 0
  %3515 = vmatpush1.bf16.msra.mxu0 0
  %3516 = vmatprep.subr.bf16.mxu0 0
  %3517 = vmatpush1.bf16.msra.mxu0 0
  %3518 = vmatprep.subr.bf16.mxu0 0
  %3519 = vmatpush1.bf16.msra.mxu0 0
  %3520 = vmatprep.subr.bf16.mxu0 0
  %3521 = vmatpush1.bf16.msra.mxu0 0
  %3522 = vmatprep.subr.bf16.mxu0 0
  %3523 = vmatpush1.bf16.msra.mxu0 0
  %3524 = vmatprep.subr.bf16.mxu0 0
  %3525 = vmatpush1.bf16.msra.mxu0 0
  %3526 = vmatprep.subr.bf16.mxu0 0
  %3527 = vmatpush1.bf16.msra.mxu0 0
  %3528 = vmatprep.mubr.bf16.mxu0 0
  %3529 = vmatmul.mubr.bf16.gmra.mrb[0].mxu0 %v3494
  %v3530 = vpop.f32.mrb[0].mxu0
  %v3531 = vadd.f32 %v3487, %v3530
  %v3532 = vpop.f32.mrb[0].mxu0
  %v3533 = vpop.f32.mrb[0].mxu0
  %v3534 = vadd.f32 %v3490, %v3533
  %v3535 = vpop.f32.mrb[0].mxu0
  %3536 = vdwg.mxu0
  %v3538 = vsel %vm866, %v3442, 0
  %3540 = vmatprep.subr.bf16.mxu0 0
  %3541 = vmatpush1.bf16.msra.mxu0 %v2546
  %3542 = vmatprep.subr.bf16.mxu0 0
  %3543 = vmatpush1.bf16.msra.mxu0 0
  %3544 = vmatprep.subr.bf16.mxu0 0
  %3545 = vmatpush1.bf16.msra.mxu0 0
  %3546 = vmatprep.subr.bf16.mxu0 0
  %3547 = vmatpush1.bf16.msra.mxu0 0
  %3548 = vmatprep.subr.bf16.mxu0 0
  %3549 = vmatpush1.bf16.msra.mxu0 0
  %3550 = vmatprep.subr.bf16.mxu0 0
  %3551 = vmatpush1.bf16.msra.mxu0 0
  %3552 = vmatprep.subr.bf16.mxu0 0
  %3553 = vmatpush1.bf16.msra.mxu0 0
  %3554 = vmatprep.subr.bf16.mxu0 0
  %3555 = vmatpush1.bf16.msra.mxu0 0
  %3556 = vmatprep.subr.bf16.mxu0 0
  %3557 = vmatpush1.bf16.msra.mxu0 0
  %3558 = vmatprep.subr.bf16.mxu0 0
  %3559 = vmatpush1.bf16.msra.mxu0 0
  %3560 = vmatprep.subr.bf16.mxu0 0
  %3561 = vmatpush1.bf16.msra.mxu0 0
  %3562 = vmatprep.subr.bf16.mxu0 0
  %3563 = vmatpush1.bf16.msra.mxu0 0
  %3564 = vmatprep.subr.bf16.mxu0 0
  %3565 = vmatpush1.bf16.msra.mxu0 0
  %3566 = vmatprep.subr.bf16.mxu0 0
  %3567 = vmatpush1.bf16.msra.mxu0 0
  %3568 = vmatprep.subr.bf16.mxu0 0
  %3569 = vmatpush1.bf16.msra.mxu0 0
  %3570 = vmatprep.subr.bf16.mxu0 0
  %3571 = vmatpush1.bf16.msra.mxu0 0
  %3572 = vmatprep.mubr.bf16.mxu0 0
  %3573 = vmatmul.mubr.bf16.gmra.mrb[0].mxu0 %v3538
  %v3574 = vpop.f32.mrb[0].mxu0
  %v3575 = vadd.f32 0.0, %v3574
  %v3576 = vpop.f32.mrb[0].mxu0
  %v3577 = vpop.f32.mrb[0].mxu0
  %v3578 = vadd.f32 0.0, %v3577
  %v3579 = vpop.f32.mrb[0].mxu0
  %3580 = vdwg.mxu0
  %v3581 = vadd.f32 %v3531, %v3575
  %v3582 = vadd.f32 %v3534, %v3578
  %v3584 = vsel %vm866, %v3443, 0
  %3586 = vmatprep.subr.bf16.mxu0 0
  %3587 = vmatpush1.bf16.msra.mxu0 %v2614
  %3588 = vmatprep.subr.bf16.mxu0 0
  %3589 = vmatpush1.bf16.msra.mxu0 0
  %3590 = vmatprep.subr.bf16.mxu0 0
  %3591 = vmatpush1.bf16.msra.mxu0 0
  %3592 = vmatprep.subr.bf16.mxu0 0
  %3593 = vmatpush1.bf16.msra.mxu0 0
  %3594 = vmatprep.subr.bf16.mxu0 0
  %3595 = vmatpush1.bf16.msra.mxu0 0
  %3596 = vmatprep.subr.bf16.mxu0 0
  %3597 = vmatpush1.bf16.msra.mxu0 0
  %3598 = vmatprep.subr.bf16.mxu0 0
  %3599 = vmatpush1.bf16.msra.mxu0 0
  %3600 = vmatprep.subr.bf16.mxu0 0
  %3601 = vmatpush1.bf16.msra.mxu0 0
  %3602 = vmatprep.subr.bf16.mxu0 0
  %3603 = vmatpush1.bf16.msra.mxu0 0
  %3604 = vmatprep.subr.bf16.mxu0 0
  %3605 = vmatpush1.bf16.msra.mxu0 0
  %3606 = vmatprep.subr.bf16.mxu0 0
  %3607 = vmatpush1.bf16.msra.mxu0 0
  %3608 = vmatprep.subr.bf16.mxu0 0
  %3609 = vmatpush1.bf16.msra.mxu0 0
  %3610 = vmatprep.subr.bf16.mxu0 0
  %3611 = vmatpush1.bf16.msra.mxu0 0
  %3612 = vmatprep.subr.bf16.mxu0 0
  %3613 = vmatpush1.bf16.msra.mxu0 0
  %3614 = vmatprep.subr.bf16.mxu0 0
  %3615 = vmatpush1.bf16.msra.mxu0 0
  %3616 = vmatprep.subr.bf16.mxu0 0
  %3617 = vmatpush1.bf16.msra.mxu0 0
  %3618 = vmatprep.mubr.bf16.mxu0 0
  %3619 = vmatmul.mubr.bf16.gmra.mrb[0].mxu0 %v3584
  %v3620 = vpop.f32.mrb[0].mxu0
  %v3621 = vadd.f32 0.0, %v3620
  %v3622 = vpop.f32.mrb[0].mxu0
  %v3623 = vpop.f32.mrb[0].mxu0
  %v3624 = vadd.f32 0.0, %v3623
  %v3625 = vpop.f32.mrb[0].mxu0
  %3626 = vdwg.mxu0
  %v3627 = vadd.f32 %v3581, %v3621
  %v3628 = vadd.f32 %v3582, %v3624
  %v3630 = vsel %vm866, %v3444, 0
  %3632 = vmatprep.subr.bf16.mxu0 0
  %3633 = vmatpush1.bf16.msra.mxu0 %v2682
  %3634 = vmatprep.subr.bf16.mxu0 0
  %3635 = vmatpush1.bf16.msra.mxu0 0
  %3636 = vmatprep.subr.bf16.mxu0 0
  %3637 = vmatpush1.bf16.msra.mxu0 0
  %3638 = vmatprep.subr.bf16.mxu0 0
  %3639 = vmatpush1.bf16.msra.mxu0 0
  %3640 = vmatprep.subr.bf16.mxu0 0
  %3641 = vmatpush1.bf16.msra.mxu0 0
  %3642 = vmatprep.subr.bf16.mxu0 0
  %3643 = vmatpush1.bf16.msra.mxu0 0
  %3644 = vmatprep.subr.bf16.mxu0 0
  %3645 = vmatpush1.bf16.msra.mxu0 0
  %3646 = vmatprep.subr.bf16.mxu0 0
  %3647 = vmatpush1.bf16.msra.mxu0 0
  %3648 = vmatprep.subr.bf16.mxu0 0
  %3649 = vmatpush1.bf16.msra.mxu0 0
  %3650 = vmatprep.subr.bf16.mxu0 0
  %3651 = vmatpush1.bf16.msra.mxu0 0
  %3652 = vmatprep.subr.bf16.mxu0 0
  %3653 = vmatpush1.bf16.msra.mxu0 0
  %3654 = vmatprep.subr.bf16.mxu0 0
  %3655 = vmatpush1.bf16.msra.mxu0 0
  %3656 = vmatprep.subr.bf16.mxu0 0
  %3657 = vmatpush1.bf16.msra.mxu0 0
  %3658 = vmatprep.subr.bf16.mxu0 0
  %3659 = vmatpush1.bf16.msra.mxu0 0
  %3660 = vmatprep.subr.bf16.mxu0 0
  %3661 = vmatpush1.bf16.msra.mxu0 0
  %3662 = vmatprep.subr.bf16.mxu0 0
  %3663 = vmatpush1.bf16.msra.mxu0 0
  %3664 = vmatprep.mubr.bf16.mxu0 0
  %3665 = vmatmul.mubr.bf16.gmra.mrb[0].mxu0 %v3630
  %v3666 = vpop.f32.mrb[0].mxu0
  %v3667 = vadd.f32 0.0, %v3666
  %v3668 = vpop.f32.mrb[0].mxu0
  %v3669 = vpop.f32.mrb[0].mxu0
  %v3670 = vadd.f32 0.0, %v3669
  %v3671 = vpop.f32.mrb[0].mxu0
  %3672 = vdwg.mxu0
  %v3673 = vadd.f32 %v3627, %v3667
  %v3674 = vadd.f32 %v3628, %v3670
  %v3676 = vsel %vm866, %v3445, 0
  %3678 = vmatprep.subr.bf16.mxu0 0
  %3679 = vmatpush1.bf16.msra.mxu0 %v2750
  %3680 = vmatprep.subr.bf16.mxu0 0
  %3681 = vmatpush1.bf16.msra.mxu0 0
  %3682 = vmatprep.subr.bf16.mxu0 0
  %3683 = vmatpush1.bf16.msra.mxu0 0
  %3684 = vmatprep.subr.bf16.mxu0 0
  %3685 = vmatpush1.bf16.msra.mxu0 0
  %3686 = vmatprep.subr.bf16.mxu0 0
  %3687 = vmatpush1.bf16.msra.mxu0 0
  %3688 = vmatprep.subr.bf16.mxu0 0
  %3689 = vmatpush1.bf16.msra.mxu0 0
  %3690 = vmatprep.subr.bf16.mxu0 0
  %3691 = vmatpush1.bf16.msra.mxu0 0
  %3692 = vmatprep.subr.bf16.mxu0 0
  %3693 = vmatpush1.bf16.msra.mxu0 0
  %3694 = vmatprep.subr.bf16.mxu0 0
  %3695 = vmatpush1.bf16.msra.mxu0 0
  %3696 = vmatprep.subr.bf16.mxu0 0
  %3697 = vmatpush1.bf16.msra.mxu0 0
  %3698 = vmatprep.subr.bf16.mxu0 0
  %3699 = vmatpush1.bf16.msra.mxu0 0
  %3700 = vmatprep.subr.bf16.mxu0 0
  %3701 = vmatpush1.bf16.msra.mxu0 0
  %3702 = vmatprep.subr.bf16.mxu0 0
  %3703 = vmatpush1.bf16.msra.mxu0 0
  %3704 = vmatprep.subr.bf16.mxu0 0
  %3705 = vmatpush1.bf16.msra.mxu0 0
  %3706 = vmatprep.subr.bf16.mxu0 0
  %3707 = vmatpush1.bf16.msra.mxu0 0
  %3708 = vmatprep.subr.bf16.mxu0 0
  %3709 = vmatpush1.bf16.msra.mxu0 0
  %3710 = vmatprep.mubr.bf16.mxu0 0
  %3711 = vmatmul.mubr.bf16.gmra.mrb[0].mxu0 %v3676
  %v3712 = vpop.f32.mrb[0].mxu0
  %v3713 = vadd.f32 0.0, %v3712
  %v3714 = vpop.f32.mrb[0].mxu0
  %v3715 = vpop.f32.mrb[0].mxu0
  %v3716 = vadd.f32 0.0, %v3715
  %v3717 = vpop.f32.mrb[0].mxu0
  %3718 = vdwg.mxu0
  %v3719 = vadd.f32 %v3673, %v3713
  %v3720 = vadd.f32 %v3674, %v3716
  %v3722 = vsel %vm866, %v3446, 0
  %3724 = vmatprep.subr.bf16.mxu0 0
  %3725 = vmatpush1.bf16.msra.mxu0 %v2818
  %3726 = vmatprep.subr.bf16.mxu0 0
  %3727 = vmatpush1.bf16.msra.mxu0 0
  %3728 = vmatprep.subr.bf16.mxu0 0
  %3729 = vmatpush1.bf16.msra.mxu0 0
  %3730 = vmatprep.subr.bf16.mxu0 0
  %3731 = vmatpush1.bf16.msra.mxu0 0
  %3732 = vmatprep.subr.bf16.mxu0 0
  %3733 = vmatpush1.bf16.msra.mxu0 0
  %3734 = vmatprep.subr.bf16.mxu0 0
  %3735 = vmatpush1.bf16.msra.mxu0 0
  %3736 = vmatprep.subr.bf16.mxu0 0
  %3737 = vmatpush1.bf16.msra.mxu0 0
  %3738 = vmatprep.subr.bf16.mxu0 0
  %3739 = vmatpush1.bf16.msra.mxu0 0
  %3740 = vmatprep.subr.bf16.mxu0 0
  %3741 = vmatpush1.bf16.msra.mxu0 0
  %3742 = vmatprep.subr.bf16.mxu0 0
  %3743 = vmatpush1.bf16.msra.mxu0 0
  %3744 = vmatprep.subr.bf16.mxu0 0
  %3745 = vmatpush1.bf16.msra.mxu0 0
  %3746 = vmatprep.subr.bf16.mxu0 0
  %3747 = vmatpush1.bf16.msra.mxu0 0
  %3748 = vmatprep.subr.bf16.mxu0 0
  %3749 = vmatpush1.bf16.msra.mxu0 0
  %3750 = vmatprep.subr.bf16.mxu0 0
  %3751 = vmatpush1.bf16.msra.mxu0 0
  %3752 = vmatprep.subr.bf16.mxu0 0
  %3753 = vmatpush1.bf16.msra.mxu0 0
  %3754 = vmatprep.subr.bf16.mxu0 0
  %3755 = vmatpush1.bf16.msra.mxu0 0
  %3756 = vmatprep.mubr.bf16.mxu0 0
  %3757 = vmatmul.mubr.bf16.gmra.mrb[0].mxu0 %v3722
  %v3758 = vpop.f32.mrb[0].mxu0
  %v3759 = vadd.f32 0.0, %v3758
  %v3760 = vpop.f32.mrb[0].mxu0
  %v3761 = vpop.f32.mrb[0].mxu0
  %v3762 = vadd.f32 0.0, %v3761
  %v3763 = vpop.f32.mrb[0].mxu0
  %3764 = vdwg.mxu0
  %v3765 = vadd.f32 %v3719, %v3759
  %v3766 = vadd.f32 %v3720, %v3762
  %v3768 = vsel %vm866, %v3447, 0
  %3770 = vmatprep.subr.bf16.mxu0 0
  %3771 = vmatpush1.bf16.msra.mxu0 %v2886
  %3772 = vmatprep.subr.bf16.mxu0 0
  %3773 = vmatpush1.bf16.msra.mxu0 0
  %3774 = vmatprep.subr.bf16.mxu0 0
  %3775 = vmatpush1.bf16.msra.mxu0 0
  %3776 = vmatprep.subr.bf16.mxu0 0
  %3777 = vmatpush1.bf16.msra.mxu0 0
  %3778 = vmatprep.subr.bf16.mxu0 0
  %3779 = vmatpush1.bf16.msra.mxu0 0
  %3780 = vmatprep.subr.bf16.mxu0 0
  %3781 = vmatpush1.bf16.msra.mxu0 0
  %3782 = vmatprep.subr.bf16.mxu0 0
  %3783 = vmatpush1.bf16.msra.mxu0 0
  %3784 = vmatprep.subr.bf16.mxu0 0
  %3785 = vmatpush1.bf16.msra.mxu0 0
  %3786 = vmatprep.subr.bf16.mxu0 0
  %3787 = vmatpush1.bf16.msra.mxu0 0
  %3788 = vmatprep.subr.bf16.mxu0 0
  %3789 = vmatpush1.bf16.msra.mxu0 0
  %3790 = vmatprep.subr.bf16.mxu0 0
  %3791 = vmatpush1.bf16.msra.mxu0 0
  %3792 = vmatprep.subr.bf16.mxu0 0
  %3793 = vmatpush1.bf16.msra.mxu0 0
  %3794 = vmatprep.subr.bf16.mxu0 0
  %3795 = vmatpush1.bf16.msra.mxu0 0
  %3796 = vmatprep.subr.bf16.mxu0 0
  %3797 = vmatpush1.bf16.msra.mxu0 0
  %3798 = vmatprep.subr.bf16.mxu0 0
  %3799 = vmatpush1.bf16.msra.mxu0 0
  %3800 = vmatprep.subr.bf16.mxu0 0
  %3801 = vmatpush1.bf16.msra.mxu0 0
  %3802 = vmatprep.mubr.bf16.mxu0 0
  %3803 = vmatmul.mubr.bf16.gmra.mrb[0].mxu0 %v3768
  %v3804 = vpop.f32.mrb[0].mxu0
  %v3805 = vadd.f32 0.0, %v3804
  %v3806 = vpop.f32.mrb[0].mxu0
  %v3807 = vpop.f32.mrb[0].mxu0
  %v3808 = vadd.f32 0.0, %v3807
  %v3809 = vpop.f32.mrb[0].mxu0
  %3810 = vdwg.mxu0
  %v3811 = vadd.f32 %v3765, %v3805
  %v3812 = vadd.f32 %v3766, %v3808
  %v3814 = vsel %vm866, %v3448, 0
  %3816 = vmatprep.subr.bf16.mxu0 0
  %3817 = vmatpush1.bf16.msra.mxu0 %v2954
  %3818 = vmatprep.subr.bf16.mxu0 0
  %3819 = vmatpush1.bf16.msra.mxu0 0
  %3820 = vmatprep.subr.bf16.mxu0 0
  %3821 = vmatpush1.bf16.msra.mxu0 0
  %3822 = vmatprep.subr.bf16.mxu0 0
  %3823 = vmatpush1.bf16.msra.mxu0 0
  %3824 = vmatprep.subr.bf16.mxu0 0
  %3825 = vmatpush1.bf16.msra.mxu0 0
  %3826 = vmatprep.subr.bf16.mxu0 0
  %3827 = vmatpush1.bf16.msra.mxu0 0
  %3828 = vmatprep.subr.bf16.mxu0 0
  %3829 = vmatpush1.bf16.msra.mxu0 0
  %3830 = vmatprep.subr.bf16.mxu0 0
  %3831 = vmatpush1.bf16.msra.mxu0 0
  %3832 = vmatprep.subr.bf16.mxu0 0
  %3833 = vmatpush1.bf16.msra.mxu0 0
  %3834 = vmatprep.subr.bf16.mxu0 0
  %3835 = vmatpush1.bf16.msra.mxu0 0
  %3836 = vmatprep.subr.bf16.mxu0 0
  %3837 = vmatpush1.bf16.msra.mxu0 0
  %3838 = vmatprep.subr.bf16.mxu0 0
  %3839 = vmatpush1.bf16.msra.mxu0 0
  %3840 = vmatprep.subr.bf16.mxu0 0
  %3841 = vmatpush1.bf16.msra.mxu0 0
  %3842 = vmatprep.subr.bf16.mxu0 0
  %3843 = vmatpush1.bf16.msra.mxu0 0
  %3844 = vmatprep.subr.bf16.mxu0 0
  %3845 = vmatpush1.bf16.msra.mxu0 0
  %3846 = vmatprep.subr.bf16.mxu0 0
  %3847 = vmatpush1.bf16.msra.mxu0 0
  %3848 = vmatprep.mubr.bf16.mxu0 0
  %3849 = vmatmul.mubr.bf16.gmra.mrb[0].mxu0 %v3814
  %v3850 = vpop.f32.mrb[0].mxu0
  %v3851 = vadd.f32 0.0, %v3850
  %v3852 = vpop.f32.mrb[0].mxu0
  %v3853 = vpop.f32.mrb[0].mxu0
  %v3854 = vadd.f32 0.0, %v3853
  %v3855 = vpop.f32.mrb[0].mxu0
  %3856 = vdwg.mxu0
  %v3857 = vadd.f32 %v3811, %v3851
  %v3858 = vadd.f32 %v3812, %v3854
  %v3859 = vld [vmem:[%s9] sm:$0xff]
  %v3860 = vld [vmem:[%s9 + $0x8] sm:$0xff]
  %3862 = vset.pattern.permute.xlu0 0
  %3863 = vperm.xlu0 %3862, %v3859
  %v3864 = vpop.permute.xlu0 %3863
  %3867 = vset.pattern.permute.xlu0 0
  %3868 = vperm.xlu0 %3867, %v3860
  %v3869 = vpop.permute.xlu0 %3868
  %v3871 = vadd.f32 %v3857, %v3864
  %v3872 = vadd.f32 %v3858, %v3869
  %v3873 = vmax.f32 %v3871, 0.0
  %v3874 = vmax.f32 %v3872, 0.0
  %v3875 = vpack.c.bf16 %v3874, %v3873
  %v3876 = vld [vmem:[%s23] sm:$0xf]
  %v3877 = vld [vmem:[%s23 + $0x4] sm:$0xf]
  %v3880 = vunpack.c.l.b16 %v3876
  %v3881 = vunpack.c.l.b16 %v3877
  %v3882 = vpack.c.b16 %v3881, %v3880
  %v3885 = vsel %vm866, %v3875, 0
  %3887 = vmatprep.subr.bf16.mxu0 0
  %3888 = vmatpush1.bf16.msra.mxu0 %v3882
  %3889 = vmatprep.subr.bf16.mxu0 0
  %3890 = vmatpush1.bf16.msra.mxu0 0
  %3891 = vmatprep.subr.bf16.mxu0 0
  %3892 = vmatpush1.bf16.msra.mxu0 0
  %3893 = vmatprep.subr.bf16.mxu0 0
  %3894 = vmatpush1.bf16.msra.mxu0 0
  %3895 = vmatprep.subr.bf16.mxu0 0
  %3896 = vmatpush1.bf16.msra.mxu0 0
  %3897 = vmatprep.subr.bf16.mxu0 0
  %3898 = vmatpush1.bf16.msra.mxu0 0
  %3899 = vmatprep.subr.bf16.mxu0 0
  %3900 = vmatpush1.bf16.msra.mxu0 0
  %3901 = vmatprep.subr.bf16.mxu0 0
  %3902 = vmatpush1.bf16.msra.mxu0 0
  %3903 = vmatprep.subr.bf16.mxu0 0
  %3904 = vmatpush1.bf16.msra.mxu0 0
  %3905 = vmatprep.subr.bf16.mxu0 0
  %3906 = vmatpush1.bf16.msra.mxu0 0
  %3907 = vmatprep.subr.bf16.mxu0 0
  %3908 = vmatpush1.bf16.msra.mxu0 0
  %3909 = vmatprep.subr.bf16.mxu0 0
  %3910 = vmatpush1.bf16.msra.mxu0 0
  %3911 = vmatprep.subr.bf16.mxu0 0
  %3912 = vmatpush1.bf16.msra.mxu0 0
  %3913 = vmatprep.subr.bf16.mxu0 0
  %3914 = vmatpush1.bf16.msra.mxu0 0
  %3915 = vmatprep.subr.bf16.mxu0 0
  %3916 = vmatpush1.bf16.msra.mxu0 0
  %3917 = vmatprep.subr.bf16.mxu0 0
  %3918 = vmatpush1.bf16.msra.mxu0 0
  %3919 = vmatprep.mubr.bf16.mxu0 0
  %3920 = vmatmul.mubr.bf16.gmra.mrb[0].mxu0 %v3885
  %v3921 = vpop.f32.mrb[0].mxu0
  %v3922 = vadd.f32 0.0, %v3921
  %v3923 = vpop.f32.mrb[0].mxu0
  %v3924 = vpop.f32.mrb[0].mxu0
  %v3925 = vadd.f32 0.0, %v3924
  %v3926 = vpop.f32.mrb[0].mxu0
  %3927 = vdwg.mxu0
  %v3928 = vld [vmem:[%s10] sm:$0xf]
  %v3929 = vld [vmem:[%s10 + $0x4] sm:$0xf]
  %v3930 = vld [vmem:[%s10 + $0x8] sm:$0xf]
  %v3931 = vld [vmem:[%s10 + $0xc] sm:$0xf]
  %v3932 = vld [vmem:[%s10 + $0x10] sm:$0xf]
  %v3933 = vld [vmem:[%s10 + $0x14] sm:$0xf]
  %v3934 = vld [vmem:[%s10 + $0x18] sm:$0xf]
  %v3935 = vld [vmem:[%s10 + $0x1c] sm:$0xf]
  %v3936 = vld [vmem:[%s10 + $0x20] sm:$0xf]
  %v3937 = vld [vmem:[%s10 + $0x24] sm:$0xf]
  %v3938 = vld [vmem:[%s10 + $0x28] sm:$0xf]
  %v3939 = vld [vmem:[%s10 + $0x2c] sm:$0xf]
  %v3940 = vld [vmem:[%s10 + $0x30] sm:$0xf]
  %v3941 = vld [vmem:[%s10 + $0x34] sm:$0xf]
  %v3942 = vld [vmem:[%s10 + $0x38] sm:$0xf]
  %v3943 = vld [vmem:[%s10 + $0x3c] sm:$0xf]
  %v3944 = vld [vmem:[%s10 + $0x40] sm:$0xf]
  %v3945 = vld [vmem:[%s10 + $0x44] sm:$0xf]
  %v3946 = vpack.c.bf16 %v3925, %v3922
  %v3947 = vld [vmem:[%s11] sm:$0xf]
  %v3948 = vld [vmem:[%s11 + $0x4] sm:$0xf]
  %v3949 = vld [vmem:[%s11 + $0x8] sm:$0xf]
  %v3950 = vld [vmem:[%s11 + $0xc] sm:$0xf]
  %v3951 = vld [vmem:[%s11 + $0x10] sm:$0xf]
  %v3952 = vld [vmem:[%s11 + $0x14] sm:$0xf]
  %v3953 = vld [vmem:[%s11 + $0x18] sm:$0xf]
  %v3954 = vld [vmem:[%s11 + $0x1c] sm:$0xf]
  %v3955 = vld [vmem:[%s11 + $0x20] sm:$0xf]
  %v3956 = vld [vmem:[%s11 + $0x24] sm:$0xf]
  %v3957 = vld [vmem:[%s11 + $0x28] sm:$0xf]
  %v3958 = vld [vmem:[%s11 + $0x2c] sm:$0xf]
  %v3959 = vld [vmem:[%s11 + $0x30] sm:$0xf]
  %v3960 = vld [vmem:[%s11 + $0x34] sm:$0xf]
  %v3961 = vld [vmem:[%s11 + $0x38] sm:$0xf]
  %v3962 = vld [vmem:[%s11 + $0x3c] sm:$0xf]
  %v3963 = vld [vmem:[%s11 + $0x40] sm:$0xf]
  %v3964 = vld [vmem:[%s11 + $0x44] sm:$0xf]
  %v3983 = vunpack.c.l.b16 %v3947
  %v3984 = vunpack.c.l.b16 %v3948
  %v3985 = vunpack.c.l.b16 %v3949
  %v3986 = vunpack.c.l.b16 %v3950
  %v3987 = vunpack.c.l.b16 %v3951
  %v3988 = vunpack.c.l.b16 %v3952
  %v3989 = vunpack.c.l.b16 %v3953
  %v3990 = vunpack.c.l.b16 %v3954
  %v3991 = vunpack.c.l.b16 %v3955
  %v3992 = vunpack.c.l.b16 %v3956
  %v3993 = vunpack.c.l.b16 %v3957
  %v3994 = vunpack.c.l.b16 %v3958
  %v3995 = vunpack.c.l.b16 %v3959
  %v3996 = vunpack.c.l.b16 %v3960
  %v3997 = vunpack.c.l.b16 %v3961
  %v3998 = vunpack.c.l.b16 %v3962
  %v3999 = vunpack.c.l.b16 %v3963
  %v4000 = vunpack.c.l.b16 %v3964
  %v4001 = vpack.c.b16 %v3984, %v3983
  %v4002 = vpack.c.b16 %v3986, %v3985
  %v4003 = vpack.c.b16 %v3988, %v3987
  %v4004 = vpack.c.b16 %v3990, %v3989
  %v4005 = vpack.c.b16 %v3992, %v3991
  %v4006 = vpack.c.b16 %v3994, %v3993
  %v4007 = vpack.c.b16 %v3996, %v3995
  %v4008 = vpack.c.b16 %v3998, %v3997
  %v4009 = vpack.c.b16 %v4000, %v3999
  %v4011 = vsel %vm866, %v4001, 0
  %v4014 = vsel %vm866, %v4002, 0
  %v4017 = vsel %vm866, %v4003, 0
  %v4020 = vsel %vm866, %v4004, 0
  %v4023 = vsel %vm866, %v4005, 0
  %v4026 = vsel %vm866, %v4006, 0
  %v4029 = vsel %vm866, %v4007, 0
  %v4032 = vsel %vm866, %v4008, 0
  %v4035 = vsel %vm866, %v4009, 0
  %4037 = vmatprep.subr.bf16.mxu0 0
  %4038 = vmatpush1.bf16.msra.mxu0 %v820
  %4039 = vmatprep.subr.bf16.mxu0 0
  %4040 = vmatpush1.bf16.msra.mxu0 0
  %4041 = vmatprep.subr.bf16.mxu0 0
  %4042 = vmatpush1.bf16.msra.mxu0 0
  %4043 = vmatprep.subr.bf16.mxu0 0
  %4044 = vmatpush1.bf16.msra.mxu0 0
  %4045 = vmatprep.subr.bf16.mxu0 0
  %4046 = vmatpush1.bf16.msra.mxu0 0
  %4047 = vmatprep.subr.bf16.mxu0 0
  %4048 = vmatpush1.bf16.msra.mxu0 0
  %4049 = vmatprep.subr.bf16.mxu0 0
  %4050 = vmatpush1.bf16.msra.mxu0 0
  %4051 = vmatprep.subr.bf16.mxu0 0
  %4052 = vmatpush1.bf16.msra.mxu0 0
  %4053 = vmatprep.subr.bf16.mxu0 0
  %4054 = vmatpush1.bf16.msra.mxu0 0
  %4055 = vmatprep.subr.bf16.mxu0 0
  %4056 = vmatpush1.bf16.msra.mxu0 0
  %4057 = vmatprep.subr.bf16.mxu0 0
  %4058 = vmatpush1.bf16.msra.mxu0 0
  %4059 = vmatprep.subr.bf16.mxu0 0
  %4060 = vmatpush1.bf16.msra.mxu0 0
  %4061 = vmatprep.subr.bf16.mxu0 0
  %4062 = vmatpush1.bf16.msra.mxu0 0
  %4063 = vmatprep.subr.bf16.mxu0 0
  %4064 = vmatpush1.bf16.msra.mxu0 0
  %4065 = vmatprep.subr.bf16.mxu0 0
  %4066 = vmatpush1.bf16.msra.mxu0 0
  %4067 = vmatprep.subr.bf16.mxu0 0
  %4068 = vmatpush1.bf16.msra.mxu0 0
  %4069 = vmatprep.mubr.bf16.mxu0 0
  %4070 = vmatmul.mubr.bf16.gmra.mrb[0].mxu0 %v4011
  %v4071 = vpop.f32.mrb[0].mxu0
  %v4072 = vadd.f32 0.0, %v4071
  %v4073 = vpop.f32.mrb[0].mxu0
  %v4074 = vpop.f32.mrb[0].mxu0
  %v4075 = vadd.f32 0.0, %v4074
  %v4076 = vpop.f32.mrb[0].mxu0
  %4077 = vmatprep.mubr.bf16.mxu0 0
  %4078 = vmatmul.mubr.bf16.gmra.mrb[0].mxu0 %v4014
  %v4079 = vpop.f32.mrb[0].mxu0
  %v4080 = vadd.f32 0.0, %v4079
  %v4081 = vpop.f32.mrb[0].mxu0
  %v4082 = vpop.f32.mrb[0].mxu0
  %v4083 = vadd.f32 0.0, %v4082
  %v4084 = vpop.f32.mrb[0].mxu0
  %4085 = vmatprep.mubr.bf16.mxu0 0
  %4086 = vmatmul.mubr.bf16.gmra.mrb[0].mxu0 %v4017
  %v4087 = vpop.f32.mrb[0].mxu0
  %v4088 = vadd.f32 0.0, %v4087
  %v4089 = vpop.f32.mrb[0].mxu0
  %v4090 = vpop.f32.mrb[0].mxu0
  %v4091 = vadd.f32 0.0, %v4090
  %v4092 = vpop.f32.mrb[0].mxu0
  %4093 = vmatprep.mubr.bf16.mxu0 0
  %4094 = vmatmul.mubr.bf16.gmra.mrb[0].mxu0 %v4020
  %v4095 = vpop.f32.mrb[0].mxu0
  %v4096 = vadd.f32 0.0, %v4095
  %v4097 = vpop.f32.mrb[0].mxu0
  %v4098 = vpop.f32.mrb[0].mxu0
  %v4099 = vadd.f32 0.0, %v4098
  %v4100 = vpop.f32.mrb[0].mxu0
  %4101 = vmatprep.mubr.bf16.mxu0 0
  %4102 = vmatmul.mubr.bf16.gmra.mrb[0].mxu0 %v4023
  %v4103 = vpop.f32.mrb[0].mxu0
  %v4104 = vadd.f32 0.0, %v4103
  %v4105 = vpop.f32.mrb[0].mxu0
  %v4106 = vpop.f32.mrb[0].mxu0
  %v4107 = vadd.f32 0.0, %v4106
  %v4108 = vpop.f32.mrb[0].mxu0
  %4109 = vmatprep.mubr.bf16.mxu0 0
  %4110 = vmatmul.mubr.bf16.gmra.mrb[0].mxu0 %v4026
  %v4111 = vpop.f32.mrb[0].mxu0
  %v4112 = vadd.f32 0.0, %v4111
  %v4113 = vpop.f32.mrb[0].mxu0
  %v4114 = vpop.f32.mrb[0].mxu0
  %v4115 = vadd.f32 0.0, %v4114
  %v4116 = vpop.f32.mrb[0].mxu0
  %4117 = vmatprep.mubr.bf16.mxu0 0
  %4118 = vmatmul.mubr.bf16.gmra.mrb[0].mxu0 %v4029
  %v4119 = vpop.f32.mrb[0].mxu0
  %v4120 = vadd.f32 0.0, %v4119
  %v4121 = vpop.f32.mrb[0].mxu0
  %v4122 = vpop.f32.mrb[0].mxu0
  %v4123 = vadd.f32 0.0, %v4122
  %v4124 = vpop.f32.mrb[0].mxu0
  %4125 = vmatprep.mubr.bf16.mxu0 0
  %4126 = vmatmul.mubr.bf16.gmra.mrb[0].mxu0 %v4032
  %v4127 = vpop.f32.mrb[0].mxu0
  %v4128 = vadd.f32 0.0, %v4127
  %v4129 = vpop.f32.mrb[0].mxu0
  %v4130 = vpop.f32.mrb[0].mxu0
  %v4131 = vadd.f32 0.0, %v4130
  %v4132 = vpop.f32.mrb[0].mxu0
  %4133 = vmatprep.mubr.bf16.mxu0 0
  %4134 = vmatmul.mubr.bf16.gmra.mrb[0].mxu0 %v4035
  %v4135 = vpop.f32.mrb[0].mxu0
  %v4136 = vadd.f32 0.0, %v4135
  %v4137 = vpop.f32.mrb[0].mxu0
  %v4138 = vpop.f32.mrb[0].mxu0
  %v4139 = vadd.f32 0.0, %v4138
  %v4140 = vpop.f32.mrb[0].mxu0
  %4141 = vdwg.mxu0
  %v4160 = vunpack.c.l.b16 %v3928
  %v4161 = vunpack.c.l.b16 %v3929
  %v4162 = vunpack.c.l.b16 %v3930
  %v4163 = vunpack.c.l.b16 %v3931
  %v4164 = vunpack.c.l.b16 %v3932
  %v4165 = vunpack.c.l.b16 %v3933
  %v4166 = vunpack.c.l.b16 %v3934
  %v4167 = vunpack.c.l.b16 %v3935
  %v4168 = vunpack.c.l.b16 %v3936
  %v4169 = vunpack.c.l.b16 %v3937
  %v4170 = vunpack.c.l.b16 %v3938
  %v4171 = vunpack.c.l.b16 %v3939
  %v4172 = vunpack.c.l.b16 %v3940
  %v4173 = vunpack.c.l.b16 %v3941
  %v4174 = vunpack.c.l.b16 %v3942
  %v4175 = vunpack.c.l.b16 %v3943
  %v4176 = vunpack.c.l.b16 %v3944
  %v4177 = vunpack.c.l.b16 %v3945
  %v4178 = vpack.c.b16 %v4161, %v4160
  %v4179 = vpack.c.b16 %v4163, %v4162
  %v4180 = vpack.c.b16 %v4165, %v4164
  %v4181 = vpack.c.b16 %v4167, %v4166
  %v4182 = vpack.c.b16 %v4169, %v4168
  %v4183 = vpack.c.b16 %v4171, %v4170
  %v4184 = vpack.c.b16 %v4173, %v4172
  %v4185 = vpack.c.b16 %v4175, %v4174
  %v4186 = vpack.c.b16 %v4177, %v4176
  %v4188 = vsel %vm866, %v4178, 0
  %v4191 = vsel %vm866, %v4179, 0
  %v4194 = vsel %vm866, %v4180, 0
  %v4197 = vsel %vm866, %v4181, 0
  %v4200 = vsel %vm866, %v4182, 0
  %v4203 = vsel %vm866, %v4183, 0
  %v4206 = vsel %vm866, %v4184, 0
  %v4209 = vsel %vm866, %v4185, 0
  %v4212 = vsel %vm866, %v4186, 0
  %4214 = vmatprep.subr.bf16.mxu0 0
  %4215 = vmatpush1.bf16.msra.mxu0 %v3946
  %4216 = vmatprep.subr.bf16.mxu0 0
  %4217 = vmatpush1.bf16.msra.mxu0 0
  %4218 = vmatprep.subr.bf16.mxu0 0
  %4219 = vmatpush1.bf16.msra.mxu0 0
  %4220 = vmatprep.subr.bf16.mxu0 0
  %4221 = vmatpush1.bf16.msra.mxu0 0
  %4222 = vmatprep.subr.bf16.mxu0 0
  %4223 = vmatpush1.bf16.msra.mxu0 0
  %4224 = vmatprep.subr.bf16.mxu0 0
  %4225 = vmatpush1.bf16.msra.mxu0 0
  %4226 = vmatprep.subr.bf16.mxu0 0
  %4227 = vmatpush1.bf16.msra.mxu0 0
  %4228 = vmatprep.subr.bf16.mxu0 0
  %4229 = vmatpush1.bf16.msra.mxu0 0
  %4230 = vmatprep.subr.bf16.mxu0 0
  %4231 = vmatpush1.bf16.msra.mxu0 0
  %4232 = vmatprep.subr.bf16.mxu0 0
  %4233 = vmatpush1.bf16.msra.mxu0 0
  %4234 = vmatprep.subr.bf16.mxu0 0
  %4235 = vmatpush1.bf16.msra.mxu0 0
  %4236 = vmatprep.subr.bf16.mxu0 0
  %4237 = vmatpush1.bf16.msra.mxu0 0
  %4238 = vmatprep.subr.bf16.mxu0 0
  %4239 = vmatpush1.bf16.msra.mxu0 0
  %4240 = vmatprep.subr.bf16.mxu0 0
  %4241 = vmatpush1.bf16.msra.mxu0 0
  %4242 = vmatprep.subr.bf16.mxu0 0
  %4243 = vmatpush1.bf16.msra.mxu0 0
  %4244 = vmatprep.subr.bf16.mxu0 0
  %4245 = vmatpush1.bf16.msra.mxu0 0
  %4246 = vmatprep.mubr.bf16.mxu0 0
  %4247 = vmatmul.mubr.bf16.gmra.mrb[0].mxu0 %v4188
  %v4248 = vpop.f32.mrb[0].mxu0
  %v4249 = vadd.f32 %v4072, %v4248
  %v4250 = vpop.f32.mrb[0].mxu0
  %v4251 = vpop.f32.mrb[0].mxu0
  %v4252 = vadd.f32 %v4075, %v4251
  %v4253 = vpop.f32.mrb[0].mxu0
  %4254 = vmatprep.mubr.bf16.mxu0 0
  %4255 = vmatmul.mubr.bf16.gmra.mrb[0].mxu0 %v4191
  %v4256 = vpop.f32.mrb[0].mxu0
  %v4257 = vadd.f32 %v4080, %v4256
  %v4258 = vpop.f32.mrb[0].mxu0
  %v4259 = vpop.f32.mrb[0].mxu0
  %v4260 = vadd.f32 %v4083, %v4259
  %v4261 = vpop.f32.mrb[0].mxu0
  %4262 = vmatprep.mubr.bf16.mxu0 0
  %4263 = vmatmul.mubr.bf16.gmra.mrb[0].mxu0 %v4194
  %v4264 = vpop.f32.mrb[0].mxu0
  %v4265 = vadd.f32 %v4088, %v4264
  %v4266 = vpop.f32.mrb[0].mxu0
  %v4267 = vpop.f32.mrb[0].mxu0
  %v4268 = vadd.f32 %v4091, %v4267
  %v4269 = vpop.f32.mrb[0].mxu0
  %4270 = vmatprep.mubr.bf16.mxu0 0
  %4271 = vmatmul.mubr.bf16.gmra.mrb[0].mxu0 %v4197
  %v4272 = vpop.f32.mrb[0].mxu0
  %v4273 = vadd.f32 %v4096, %v4272
  %v4274 = vpop.f32.mrb[0].mxu0
  %v4275 = vpop.f32.mrb[0].mxu0
  %v4276 = vadd.f32 %v4099, %v4275
  %v4277 = vpop.f32.mrb[0].mxu0
  %4278 = vmatprep.mubr.bf16.mxu0 0
  %4279 = vmatmul.mubr.bf16.gmra.mrb[0].mxu0 %v4200
  %v4280 = vpop.f32.mrb[0].mxu0
  %v4281 = vadd.f32 %v4104, %v4280
  %v4282 = vpop.f32.mrb[0].mxu0
  %v4283 = vpop.f32.mrb[0].mxu0
  %v4284 = vadd.f32 %v4107, %v4283
  %v4285 = vpop.f32.mrb[0].mxu0
  %4286 = vmatprep.mubr.bf16.mxu0 0
  %4287 = vmatmul.mubr.bf16.gmra.mrb[0].mxu0 %v4203
  %v4288 = vpop.f32.mrb[0].mxu0
  %v4289 = vadd.f32 %v4112, %v4288
  %v4290 = vpop.f32.mrb[0].mxu0
  %v4291 = vpop.f32.mrb[0].mxu0
  %v4292 = vadd.f32 %v4115, %v4291
  %v4293 = vpop.f32.mrb[0].mxu0
  %4294 = vmatprep.mubr.bf16.mxu0 0
  %4295 = vmatmul.mubr.bf16.gmra.mrb[0].mxu0 %v4206
  %v4296 = vpop.f32.mrb[0].mxu0
  %v4297 = vadd.f32 %v4120, %v4296
  %v4298 = vpop.f32.mrb[0].mxu0
  %v4299 = vpop.f32.mrb[0].mxu0
  %v4300 = vadd.f32 %v4123, %v4299
  %v4301 = vpop.f32.mrb[0].mxu0
  %4302 = vmatprep.mubr.bf16.mxu0 0
  %4303 = vmatmul.mubr.bf16.gmra.mrb[0].mxu0 %v4209
  %v4304 = vpop.f32.mrb[0].mxu0
  %v4305 = vadd.f32 %v4128, %v4304
  %v4306 = vpop.f32.mrb[0].mxu0
  %v4307 = vpop.f32.mrb[0].mxu0
  %v4308 = vadd.f32 %v4131, %v4307
  %v4309 = vpop.f32.mrb[0].mxu0
  %4310 = vmatprep.mubr.bf16.mxu0 0
  %4311 = vmatmul.mubr.bf16.gmra.mrb[0].mxu0 %v4212
  %v4312 = vpop.f32.mrb[0].mxu0
  %v4313 = vadd.f32 %v4136, %v4312
  %v4314 = vpop.f32.mrb[0].mxu0
  %v4315 = vpop.f32.mrb[0].mxu0
  %v4316 = vadd.f32 %v4139, %v4315
  %v4317 = vpop.f32.mrb[0].mxu0
  %4318 = vdwg.mxu0
  %v4319 = vpack.c.bf16 %v4252, %v4249
  %v4320 = vpack.c.bf16 %v4260, %v4257
  %v4321 = vpack.c.bf16 %v4268, %v4265
  %v4322 = vpack.c.bf16 %v4276, %v4273
  %v4323 = vpack.c.bf16 %v4284, %v4281
  %v4324 = vpack.c.bf16 %v4292, %v4289
  %v4325 = vpack.c.bf16 %v4300, %v4297
  %v4326 = vpack.c.bf16 %v4308, %v4305
  %v4327 = vpack.c.bf16 %v4316, %v4313
  %v4329 = vsel %vm1049, %v4320, 0
  %4331 = vmatprep.subr.bf16.mxu0 0
  %4332 = vmatpush1.bf16.msra.mxu0 %v1041
  %4333 = vmatprep.subr.bf16.mxu0 0
  %4334 = vmatpush1.bf16.msra.mxu0 %v1042
  %4335 = vmatprep.subr.bf16.mxu0 0
  %4336 = vmatpush1.bf16.msra.mxu0 %v1043
  %4337 = vmatprep.subr.bf16.mxu0 0
  %4338 = vmatpush1.bf16.msra.mxu0 %v1044
  %4339 = vmatprep.subr.bf16.mxu0 0
  %4340 = vmatpush1.bf16.msra.mxu0 0
  %4341 = vmatprep.subr.bf16.mxu0 0
  %4342 = vmatpush1.bf16.msra.mxu0 0
  %4343 = vmatprep.subr.bf16.mxu0 0
  %4344 = vmatpush1.bf16.msra.mxu0 0
  %4345 = vmatprep.subr.bf16.mxu0 0
  %4346 = vmatpush1.bf16.msra.mxu0 0
  %4347 = vmatprep.subr.bf16.mxu0 0
  %4348 = vmatpush1.bf16.msra.mxu0 0
  %4349 = vmatprep.subr.bf16.mxu0 0
  %4350 = vmatpush1.bf16.msra.mxu0 0
  %4351 = vmatprep.subr.bf16.mxu0 0
  %4352 = vmatpush1.bf16.msra.mxu0 0
  %4353 = vmatprep.subr.bf16.mxu0 0
  %4354 = vmatpush1.bf16.msra.mxu0 0
  %4355 = vmatprep.subr.bf16.mxu0 0
  %4356 = vmatpush1.bf16.msra.mxu0 0
  %4357 = vmatprep.subr.bf16.mxu0 0
  %4358 = vmatpush1.bf16.msra.mxu0 0
  %4359 = vmatprep.subr.bf16.mxu0 0
  %4360 = vmatpush1.bf16.msra.mxu0 0
  %4361 = vmatprep.subr.bf16.mxu0 0
  %4362 = vmatpush1.bf16.msra.mxu0 0
  %4363 = vmatprep.mubr.bf16.mxu0 0
  %4364 = vmatmul.mubr.bf16.gmra.mrb[0].mxu0 %v4329
  %v4365 = vpop.f32.mrb[0].mxu0
  %v4366 = vadd.f32 0.0, %v4365
  %v4367 = vpop.f32.mrb[0].mxu0
  %v4368 = vpop.f32.mrb[0].mxu0
  %v4369 = vadd.f32 0.0, %v4368
  %v4370 = vpop.f32.mrb[0].mxu0
  %4371 = vdwg.mxu0
  %v4373 = vsel %vm1049, %v4319, 0
  %4375 = vmatprep.subr.bf16.mxu0 0
  %4376 = vmatpush1.bf16.msra.mxu0 %v1110
  %4377 = vmatprep.subr.bf16.mxu0 0
  %4378 = vmatpush1.bf16.msra.mxu0 %v1111
  %4379 = vmatprep.subr.bf16.mxu0 0
  %4380 = vmatpush1.bf16.msra.mxu0 %v1112
  %4381 = vmatprep.subr.bf16.mxu0 0
  %4382 = vmatpush1.bf16.msra.mxu0 %v1113
  %4383 = vmatprep.subr.bf16.mxu0 0
  %4384 = vmatpush1.bf16.msra.mxu0 0
  %4385 = vmatprep.subr.bf16.mxu0 0
  %4386 = vmatpush1.bf16.msra.mxu0 0
  %4387 = vmatprep.subr.bf16.mxu0 0
  %4388 = vmatpush1.bf16.msra.mxu0 0
  %4389 = vmatprep.subr.bf16.mxu0 0
  %4390 = vmatpush1.bf16.msra.mxu0 0
  %4391 = vmatprep.subr.bf16.mxu0 0
  %4392 = vmatpush1.bf16.msra.mxu0 0
  %4393 = vmatprep.subr.bf16.mxu0 0
  %4394 = vmatpush1.bf16.msra.mxu0 0
  %4395 = vmatprep.subr.bf16.mxu0 0
  %4396 = vmatpush1.bf16.msra.mxu0 0
  %4397 = vmatprep.subr.bf16.mxu0 0
  %4398 = vmatpush1.bf16.msra.mxu0 0
  %4399 = vmatprep.subr.bf16.mxu0 0
  %4400 = vmatpush1.bf16.msra.mxu0 0
  %4401 = vmatprep.subr.bf16.mxu0 0
  %4402 = vmatpush1.bf16.msra.mxu0 0
  %4403 = vmatprep.subr.bf16.mxu0 0
  %4404 = vmatpush1.bf16.msra.mxu0 0
  %4405 = vmatprep.subr.bf16.mxu0 0
  %4406 = vmatpush1.bf16.msra.mxu0 0
  %4407 = vmatprep.mubr.bf16.mxu0 0
  %4408 = vmatmul.mubr.bf16.gmra.mrb[0].mxu0 %v4373
  %v4409 = vpop.f32.mrb[0].mxu0
  %v4410 = vadd.f32 %v4366, %v4409
  %v4411 = vpop.f32.mrb[0].mxu0
  %v4412 = vpop.f32.mrb[0].mxu0
  %v4413 = vadd.f32 %v4369, %v4412
  %v4414 = vpop.f32.mrb[0].mxu0
  %4415 = vdwg.mxu0
  %v4417 = vsel %vm1049, %v4321, 0
  %4419 = vmatprep.subr.bf16.mxu0 0
  %4420 = vmatpush1.bf16.msra.mxu0 %v1187
  %4421 = vmatprep.subr.bf16.mxu0 0
  %4422 = vmatpush1.bf16.msra.mxu0 %v1188
  %4423 = vmatprep.subr.bf16.mxu0 0
  %4424 = vmatpush1.bf16.msra.mxu0 %v1189
  %4425 = vmatprep.subr.bf16.mxu0 0
  %4426 = vmatpush1.bf16.msra.mxu0 %v1190
  %4427 = vmatprep.subr.bf16.mxu0 0
  %4428 = vmatpush1.bf16.msra.mxu0 0
  %4429 = vmatprep.subr.bf16.mxu0 0
  %4430 = vmatpush1.bf16.msra.mxu0 0
  %4431 = vmatprep.subr.bf16.mxu0 0
  %4432 = vmatpush1.bf16.msra.mxu0 0
  %4433 = vmatprep.subr.bf16.mxu0 0
  %4434 = vmatpush1.bf16.msra.mxu0 0
  %4435 = vmatprep.subr.bf16.mxu0 0
  %4436 = vmatpush1.bf16.msra.mxu0 0
  %4437 = vmatprep.subr.bf16.mxu0 0
  %4438 = vmatpush1.bf16.msra.mxu0 0
  %4439 = vmatprep.subr.bf16.mxu0 0
  %4440 = vmatpush1.bf16.msra.mxu0 0
  %4441 = vmatprep.subr.bf16.mxu0 0
  %4442 = vmatpush1.bf16.msra.mxu0 0
  %4443 = vmatprep.subr.bf16.mxu0 0
  %4444 = vmatpush1.bf16.msra.mxu0 0
  %4445 = vmatprep.subr.bf16.mxu0 0
  %4446 = vmatpush1.bf16.msra.mxu0 0
  %4447 = vmatprep.subr.bf16.mxu0 0
  %4448 = vmatpush1.bf16.msra.mxu0 0
  %4449 = vmatprep.subr.bf16.mxu0 0
  %4450 = vmatpush1.bf16.msra.mxu0 0
  %4451 = vmatprep.mubr.bf16.mxu0 0
  %4452 = vmatmul.mubr.bf16.gmra.mrb[0].mxu0 %v4417
  %v4453 = vpop.f32.mrb[0].mxu0
  %v4454 = vadd.f32 0.0, %v4453
  %v4455 = vpop.f32.mrb[0].mxu0
  %v4456 = vpop.f32.mrb[0].mxu0
  %v4457 = vadd.f32 0.0, %v4456
  %v4458 = vpop.f32.mrb[0].mxu0
  %4459 = vdwg.mxu0
  %v4460 = vadd.f32 %v4410, %v4454
  %v4461 = vadd.f32 %v4413, %v4457
  %v4463 = vsel %vm1049, %v4322, 0
  %4465 = vmatprep.subr.bf16.mxu0 0
  %4466 = vmatpush1.bf16.msra.mxu0 %v1266
  %4467 = vmatprep.subr.bf16.mxu0 0
  %4468 = vmatpush1.bf16.msra.mxu0 %v1267
  %4469 = vmatprep.subr.bf16.mxu0 0
  %4470 = vmatpush1.bf16.msra.mxu0 %v1268
  %4471 = vmatprep.subr.bf16.mxu0 0
  %4472 = vmatpush1.bf16.msra.mxu0 %v1269
  %4473 = vmatprep.subr.bf16.mxu0 0
  %4474 = vmatpush1.bf16.msra.mxu0 0
  %4475 = vmatprep.subr.bf16.mxu0 0
  %4476 = vmatpush1.bf16.msra.mxu0 0
  %4477 = vmatprep.subr.bf16.mxu0 0
  %4478 = vmatpush1.bf16.msra.mxu0 0
  %4479 = vmatprep.subr.bf16.mxu0 0
  %4480 = vmatpush1.bf16.msra.mxu0 0
  %4481 = vmatprep.subr.bf16.mxu0 0
  %4482 = vmatpush1.bf16.msra.mxu0 0
  %4483 = vmatprep.subr.bf16.mxu0 0
  %4484 = vmatpush1.bf16.msra.mxu0 0
  %4485 = vmatprep.subr.bf16.mxu0 0
  %4486 = vmatpush1.bf16.msra.mxu0 0
  %4487 = vmatprep.subr.bf16.mxu0 0
  %4488 = vmatpush1.bf16.msra.mxu0 0
  %4489 = vmatprep.subr.bf16.mxu0 0
  %4490 = vmatpush1.bf16.msra.mxu0 0
  %4491 = vmatprep.subr.bf16.mxu0 0
  %4492 = vmatpush1.bf16.msra.mxu0 0
  %4493 = vmatprep.subr.bf16.mxu0 0
  %4494 = vmatpush1.bf16.msra.mxu0 0
  %4495 = vmatprep.subr.bf16.mxu0 0
  %4496 = vmatpush1.bf16.msra.mxu0 0
  %4497 = vmatprep.mubr.bf16.mxu0 0
  %4498 = vmatmul.mubr.bf16.gmra.mrb[0].mxu0 %v4463
  %v4499 = vpop.f32.mrb[0].mxu0
  %v4500 = vadd.f32 0.0, %v4499
  %v4501 = vpop.f32.mrb[0].mxu0
  %v4502 = vpop.f32.mrb[0].mxu0
  %v4503 = vadd.f32 0.0, %v4502
  %v4504 = vpop.f32.mrb[0].mxu0
  %4505 = vdwg.mxu0
  %v4506 = vadd.f32 %v4460, %v4500
  %v4507 = vadd.f32 %v4461, %v4503
  %v4509 = vsel %vm1049, %v4323, 0
  %4511 = vmatprep.subr.bf16.mxu0 0
  %4512 = vmatpush1.bf16.msra.mxu0 %v1345
  %4513 = vmatprep.subr.bf16.mxu0 0
  %4514 = vmatpush1.bf16.msra.mxu0 %v1346
  %4515 = vmatprep.subr.bf16.mxu0 0
  %4516 = vmatpush1.bf16.msra.mxu0 %v1347
  %4517 = vmatprep.subr.bf16.mxu0 0
  %4518 = vmatpush1.bf16.msra.mxu0 %v1348
  %4519 = vmatprep.subr.bf16.mxu0 0
  %4520 = vmatpush1.bf16.msra.mxu0 0
  %4521 = vmatprep.subr.bf16.mxu0 0
  %4522 = vmatpush1.bf16.msra.mxu0 0
  %4523 = vmatprep.subr.bf16.mxu0 0
  %4524 = vmatpush1.bf16.msra.mxu0 0
  %4525 = vmatprep.subr.bf16.mxu0 0
  %4526 = vmatpush1.bf16.msra.mxu0 0
  %4527 = vmatprep.subr.bf16.mxu0 0
  %4528 = vmatpush1.bf16.msra.mxu0 0
  %4529 = vmatprep.subr.bf16.mxu0 0
  %4530 = vmatpush1.bf16.msra.mxu0 0
  %4531 = vmatprep.subr.bf16.mxu0 0
  %4532 = vmatpush1.bf16.msra.mxu0 0
  %4533 = vmatprep.subr.bf16.mxu0 0
  %4534 = vmatpush1.bf16.msra.mxu0 0
  %4535 = vmatprep.subr.bf16.mxu0 0
  %4536 = vmatpush1.bf16.msra.mxu0 0
  %4537 = vmatprep.subr.bf16.mxu0 0
  %4538 = vmatpush1.bf16.msra.mxu0 0
  %4539 = vmatprep.subr.bf16.mxu0 0
  %4540 = vmatpush1.bf16.msra.mxu0 0
  %4541 = vmatprep.subr.bf16.mxu0 0
  %4542 = vmatpush1.bf16.msra.mxu0 0
  %4543 = vmatprep.mubr.bf16.mxu0 0
  %4544 = vmatmul.mubr.bf16.gmra.mrb[0].mxu0 %v4509
  %v4545 = vpop.f32.mrb[0].mxu0
  %v4546 = vadd.f32 0.0, %v4545
  %v4547 = vpop.f32.mrb[0].mxu0
  %v4548 = vpop.f32.mrb[0].mxu0
  %v4549 = vadd.f32 0.0, %v4548
  %v4550 = vpop.f32.mrb[0].mxu0
  %4551 = vdwg.mxu0
  %v4552 = vadd.f32 %v4506, %v4546
  %v4553 = vadd.f32 %v4507, %v4549
  %v4555 = vsel %vm1049, %v4324, 0
  %4557 = vmatprep.subr.bf16.mxu0 0
  %4558 = vmatpush1.bf16.msra.mxu0 %v1424
  %4559 = vmatprep.subr.bf16.mxu0 0
  %4560 = vmatpush1.bf16.msra.mxu0 %v1425
  %4561 = vmatprep.subr.bf16.mxu0 0
  %4562 = vmatpush1.bf16.msra.mxu0 %v1426
  %4563 = vmatprep.subr.bf16.mxu0 0
  %4564 = vmatpush1.bf16.msra.mxu0 %v1427
  %4565 = vmatprep.subr.bf16.mxu0 0
  %4566 = vmatpush1.bf16.msra.mxu0 0
  %4567 = vmatprep.subr.bf16.mxu0 0
  %4568 = vmatpush1.bf16.msra.mxu0 0
  %4569 = vmatprep.subr.bf16.mxu0 0
  %4570 = vmatpush1.bf16.msra.mxu0 0
  %4571 = vmatprep.subr.bf16.mxu0 0
  %4572 = vmatpush1.bf16.msra.mxu0 0
  %4573 = vmatprep.subr.bf16.mxu0 0
  %4574 = vmatpush1.bf16.msra.mxu0 0
  %4575 = vmatprep.subr.bf16.mxu0 0
  %4576 = vmatpush1.bf16.msra.mxu0 0
  %4577 = vmatprep.subr.bf16.mxu0 0
  %4578 = vmatpush1.bf16.msra.mxu0 0
  %4579 = vmatprep.subr.bf16.mxu0 0
  %4580 = vmatpush1.bf16.msra.mxu0 0
  %4581 = vmatprep.subr.bf16.mxu0 0
  %4582 = vmatpush1.bf16.msra.mxu0 0
  %4583 = vmatprep.subr.bf16.mxu0 0
  %4584 = vmatpush1.bf16.msra.mxu0 0
  %4585 = vmatprep.subr.bf16.mxu0 0
  %4586 = vmatpush1.bf16.msra.mxu0 0
  %4587 = vmatprep.subr.bf16.mxu0 0
  %4588 = vmatpush1.bf16.msra.mxu0 0
  %4589 = vmatprep.mubr.bf16.mxu0 0
  %4590 = vmatmul.mubr.bf16.gmra.mrb[0].mxu0 %v4555
  %v4591 = vpop.f32.mrb[0].mxu0
  %v4592 = vadd.f32 0.0, %v4591
  %v4593 = vpop.f32.mrb[0].mxu0
  %v4594 = vpop.f32.mrb[0].mxu0
  %v4595 = vadd.f32 0.0, %v4594
  %v4596 = vpop.f32.mrb[0].mxu0
  %4597 = vdwg.mxu0
  %v4598 = vadd.f32 %v4552, %v4592
  %v4599 = vadd.f32 %v4553, %v4595
  %v4601 = vsel %vm1049, %v4325, 0
  %4603 = vmatprep.subr.bf16.mxu0 0
  %4604 = vmatpush1.bf16.msra.mxu0 %v1503
  %4605 = vmatprep.subr.bf16.mxu0 0
  %4606 = vmatpush1.bf16.msra.mxu0 %v1504
  %4607 = vmatprep.subr.bf16.mxu0 0
  %4608 = vmatpush1.bf16.msra.mxu0 %v1505
  %4609 = vmatprep.subr.bf16.mxu0 0
  %4610 = vmatpush1.bf16.msra.mxu0 %v1506
  %4611 = vmatprep.subr.bf16.mxu0 0
  %4612 = vmatpush1.bf16.msra.mxu0 0
  %4613 = vmatprep.subr.bf16.mxu0 0
  %4614 = vmatpush1.bf16.msra.mxu0 0
  %4615 = vmatprep.subr.bf16.mxu0 0
  %4616 = vmatpush1.bf16.msra.mxu0 0
  %4617 = vmatprep.subr.bf16.mxu0 0
  %4618 = vmatpush1.bf16.msra.mxu0 0
  %4619 = vmatprep.subr.bf16.mxu0 0
  %4620 = vmatpush1.bf16.msra.mxu0 0
  %4621 = vmatprep.subr.bf16.mxu0 0
  %4622 = vmatpush1.bf16.msra.mxu0 0
  %4623 = vmatprep.subr.bf16.mxu0 0
  %4624 = vmatpush1.bf16.msra.mxu0 0
  %4625 = vmatprep.subr.bf16.mxu0 0
  %4626 = vmatpush1.bf16.msra.mxu0 0
  %4627 = vmatprep.subr.bf16.mxu0 0
  %4628 = vmatpush1.bf16.msra.mxu0 0
  %4629 = vmatprep.subr.bf16.mxu0 0
  %4630 = vmatpush1.bf16.msra.mxu0 0
  %4631 = vmatprep.subr.bf16.mxu0 0
  %4632 = vmatpush1.bf16.msra.mxu0 0
  %4633 = vmatprep.subr.bf16.mxu0 0
  %4634 = vmatpush1.bf16.msra.mxu0 0
  %4635 = vmatprep.mubr.bf16.mxu0 0
  %4636 = vmatmul.mubr.bf16.gmra.mrb[0].mxu0 %v4601
  %v4637 = vpop.f32.mrb[0].mxu0
  %v4638 = vadd.f32 0.0, %v4637
  %v4639 = vpop.f32.mrb[0].mxu0
  %v4640 = vpop.f32.mrb[0].mxu0
  %v4641 = vadd.f32 0.0, %v4640
  %v4642 = vpop.f32.mrb[0].mxu0
  %4643 = vdwg.mxu0
  %v4644 = vadd.f32 %v4598, %v4638
  %v4645 = vadd.f32 %v4599, %v4641
  %v4647 = vsel %vm1049, %v4326, 0
  %4649 = vmatprep.subr.bf16.mxu0 0
  %4650 = vmatpush1.bf16.msra.mxu0 %v1582
  %4651 = vmatprep.subr.bf16.mxu0 0
  %4652 = vmatpush1.bf16.msra.mxu0 %v1583
  %4653 = vmatprep.subr.bf16.mxu0 0
  %4654 = vmatpush1.bf16.msra.mxu0 %v1584
  %4655 = vmatprep.subr.bf16.mxu0 0
  %4656 = vmatpush1.bf16.msra.mxu0 %v1585
  %4657 = vmatprep.subr.bf16.mxu0 0
  %4658 = vmatpush1.bf16.msra.mxu0 0
  %4659 = vmatprep.subr.bf16.mxu0 0
  %4660 = vmatpush1.bf16.msra.mxu0 0
  %4661 = vmatprep.subr.bf16.mxu0 0
  %4662 = vmatpush1.bf16.msra.mxu0 0
  %4663 = vmatprep.subr.bf16.mxu0 0
  %4664 = vmatpush1.bf16.msra.mxu0 0
  %4665 = vmatprep.subr.bf16.mxu0 0
  %4666 = vmatpush1.bf16.msra.mxu0 0
  %4667 = vmatprep.subr.bf16.mxu0 0
  %4668 = vmatpush1.bf16.msra.mxu0 0
  %4669 = vmatprep.subr.bf16.mxu0 0
  %4670 = vmatpush1.bf16.msra.mxu0 0
  %4671 = vmatprep.subr.bf16.mxu0 0
  %4672 = vmatpush1.bf16.msra.mxu0 0
  %4673 = vmatprep.subr.bf16.mxu0 0
  %4674 = vmatpush1.bf16.msra.mxu0 0
  %4675 = vmatprep.subr.bf16.mxu0 0
  %4676 = vmatpush1.bf16.msra.mxu0 0
  %4677 = vmatprep.subr.bf16.mxu0 0
  %4678 = vmatpush1.bf16.msra.mxu0 0
  %4679 = vmatprep.subr.bf16.mxu0 0
  %4680 = vmatpush1.bf16.msra.mxu0 0
  %4681 = vmatprep.mubr.bf16.mxu0 0
  %4682 = vmatmul.mubr.bf16.gmra.mrb[0].mxu0 %v4647
  %v4683 = vpop.f32.mrb[0].mxu0
  %v4684 = vadd.f32 0.0, %v4683
  %v4685 = vpop.f32.mrb[0].mxu0
  %v4686 = vpop.f32.mrb[0].mxu0
  %v4687 = vadd.f32 0.0, %v4686
  %v4688 = vpop.f32.mrb[0].mxu0
  %4689 = vdwg.mxu0
  %v4690 = vadd.f32 %v4644, %v4684
  %v4691 = vadd.f32 %v4645, %v4687
  %v4693 = vsel %vm1049, %v4327, 0
  %4695 = vmatprep.subr.bf16.mxu0 0
  %4696 = vmatpush1.bf16.msra.mxu0 %v1661
  %4697 = vmatprep.subr.bf16.mxu0 0
  %4698 = vmatpush1.bf16.msra.mxu0 %v1662
  %4699 = vmatprep.subr.bf16.mxu0 0
  %4700 = vmatpush1.bf16.msra.mxu0 %v1663
  %4701 = vmatprep.subr.bf16.mxu0 0
  %4702 = vmatpush1.bf16.msra.mxu0 %v1664
  %4703 = vmatprep.subr.bf16.mxu0 0
  %4704 = vmatpush1.bf16.msra.mxu0 0
  %4705 = vmatprep.subr.bf16.mxu0 0
  %4706 = vmatpush1.bf16.msra.mxu0 0
  %4707 = vmatprep.subr.bf16.mxu0 0
  %4708 = vmatpush1.bf16.msra.mxu0 0
  %4709 = vmatprep.subr.bf16.mxu0 0
  %4710 = vmatpush1.bf16.msra.mxu0 0
  %4711 = vmatprep.subr.bf16.mxu0 0
  %4712 = vmatpush1.bf16.msra.mxu0 0
  %4713 = vmatprep.subr.bf16.mxu0 0
  %4714 = vmatpush1.bf16.msra.mxu0 0
  %4715 = vmatprep.subr.bf16.mxu0 0
  %4716 = vmatpush1.bf16.msra.mxu0 0
  %4717 = vmatprep.subr.bf16.mxu0 0
  %4718 = vmatpush1.bf16.msra.mxu0 0
  %4719 = vmatprep.subr.bf16.mxu0 0
  %4720 = vmatpush1.bf16.msra.mxu0 0
  %4721 = vmatprep.subr.bf16.mxu0 0
  %4722 = vmatpush1.bf16.msra.mxu0 0
  %4723 = vmatprep.subr.bf16.mxu0 0
  %4724 = vmatpush1.bf16.msra.mxu0 0
  %4725 = vmatprep.subr.bf16.mxu0 0
  %4726 = vmatpush1.bf16.msra.mxu0 0
  %4727 = vmatprep.mubr.bf16.mxu0 0
  %4728 = vmatmul.mubr.bf16.gmra.mrb[0].mxu0 %v4693
  %v4729 = vpop.f32.mrb[0].mxu0
  %v4730 = vadd.f32 0.0, %v4729
  %v4731 = vpop.f32.mrb[0].mxu0
  %v4732 = vpop.f32.mrb[0].mxu0
  %v4733 = vadd.f32 0.0, %v4732
  %v4734 = vpop.f32.mrb[0].mxu0
  %4735 = vdwg.mxu0
  %v4736 = vadd.f32 %v4690, %v4730
  %v4737 = vadd.f32 %v4691, %v4733
  %v4738 = vld [vmem:[%s12] sm:$0xff]
  %v4739 = vld [vmem:[%s12 + $0x8] sm:$0xff]
  %4741 = vset.pattern.permute.xlu0 0
  %4742 = vperm.xlu0 %4741, %v4738
  %v4743 = vpop.permute.xlu0 %4742
  %4746 = vset.pattern.permute.xlu0 0
  %4747 = vperm.xlu0 %4746, %v4739
  %v4748 = vpop.permute.xlu0 %4747
  %v4750 = vadd.f32 %v4736, %v4743
  %v4751 = vadd.f32 %v4737, %v4748
  %v4752 = vmax.f32 %v4750, 0.0
  %v4753 = vmax.f32 %v4751, 0.0
  %v4754 = vpack.c.bf16 %v4753, %v4752
  %v4755 = vld [vmem:[%s24] sm:$0xff]
  %v4756 = vld [vmem:[%s24 + $0x8] sm:$0xff]
  %v4757 = vld [vmem:[%s24 + $0x10] sm:$0xff]
  %v4758 = vld [vmem:[%s24 + $0x18] sm:$0xff]
  %v4759 = vld [vmem:[%s24 + $0x20] sm:$0xff]
  %v4760 = vld [vmem:[%s24 + $0x28] sm:$0xff]
  %v4761 = vld [vmem:[%s24 + $0x30] sm:$0xff]
  %v4762 = vld [vmem:[%s24 + $0x38] sm:$0xff]
  %v4771 = vunpack.c.l.b16 %v4755
  %v4772 = vunpack.c.h.b16 %v4755
  %v4773 = vunpack.c.l.b16 %v4756
  %v4774 = vunpack.c.h.b16 %v4756
  %v4775 = vunpack.c.l.b16 %v4757
  %v4776 = vunpack.c.h.b16 %v4757
  %v4777 = vunpack.c.l.b16 %v4758
  %v4778 = vunpack.c.h.b16 %v4758
  %v4779 = vunpack.c.l.b16 %v4759
  %v4780 = vunpack.c.h.b16 %v4759
  %v4781 = vunpack.c.l.b16 %v4760
  %v4782 = vunpack.c.h.b16 %v4760
  %v4783 = vunpack.c.l.b16 %v4761
  %v4784 = vunpack.c.h.b16 %v4761
  %v4785 = vunpack.c.l.b16 %v4762
  %v4786 = vunpack.c.h.b16 %v4762
  %v4787 = vpack.c.b16 %v4773, %v4771
  %v4788 = vpack.c.b16 %v4774, %v4772
  %v4789 = vpack.c.b16 %v4777, %v4775
  %v4790 = vpack.c.b16 %v4778, %v4776
  %v4791 = vpack.c.b16 %v4781, %v4779
  %v4792 = vpack.c.b16 %v4782, %v4780
  %v4793 = vpack.c.b16 %v4785, %v4783
  %v4794 = vpack.c.b16 %v4786, %v4784
  %v4804 = vsel %vm1049, %v4754, 0
  %4806 = vmatprep.subr.bf16.mxu0 %v4788
  %4807 = vmatpush1.bf16.msra.mxu0 %v4787
  %4808 = vmatprep.subr.bf16.mxu0 %v4790
  %4809 = vmatpush1.bf16.msra.mxu0 %v4789
  %4810 = vmatprep.subr.bf16.mxu0 %v4792
  %4811 = vmatpush1.bf16.msra.mxu0 %v4791
  %4812 = vmatprep.subr.bf16.mxu0 %v4794
  %4813 = vmatpush1.bf16.msra.mxu0 %v4793
  %4814 = vmatprep.subr.bf16.mxu0 0
  %4815 = vmatpush1.bf16.msra.mxu0 0
  %4816 = vmatprep.subr.bf16.mxu0 0
  %4817 = vmatpush1.bf16.msra.mxu0 0
  %4818 = vmatprep.subr.bf16.mxu0 0
  %4819 = vmatpush1.bf16.msra.mxu0 0
  %4820 = vmatprep.subr.bf16.mxu0 0
  %4821 = vmatpush1.bf16.msra.mxu0 0
  %4822 = vmatprep.subr.bf16.mxu0 0
  %4823 = vmatpush1.bf16.msra.mxu0 0
  %4824 = vmatprep.subr.bf16.mxu0 0
  %4825 = vmatpush1.bf16.msra.mxu0 0
  %4826 = vmatprep.subr.bf16.mxu0 0
  %4827 = vmatpush1.bf16.msra.mxu0 0
  %4828 = vmatprep.subr.bf16.mxu0 0
  %4829 = vmatpush1.bf16.msra.mxu0 0
  %4830 = vmatprep.subr.bf16.mxu0 0
  %4831 = vmatpush1.bf16.msra.mxu0 0
  %4832 = vmatprep.subr.bf16.mxu0 0
  %4833 = vmatpush1.bf16.msra.mxu0 0
  %4834 = vmatprep.subr.bf16.mxu0 0
  %4835 = vmatpush1.bf16.msra.mxu0 0
  %4836 = vmatprep.subr.bf16.mxu0 0
  %4837 = vmatpush1.bf16.msra.mxu0 0
  %4838 = vmatprep.mubr.bf16.mxu0 0
  %4839 = vmatmul.mubr.bf16.gmra.mrb[0].mxu0 %v4804
  %v4840 = vpop.f32.mrb[0].mxu0
  %v4841 = vadd.f32 0.0, %v4840
  %v4842 = vpop.f32.mrb[0].mxu0
  %v4843 = vadd.f32 0.0, %v4842
  %v4844 = vpop.f32.mrb[0].mxu0
  %v4845 = vadd.f32 0.0, %v4844
  %v4846 = vpop.f32.mrb[0].mxu0
  %v4847 = vadd.f32 0.0, %v4846
  %4848 = vdwg.mxu0
  %v4849 = vld [vmem:[%s13] sm:$0xf]
  %v4850 = vld [vmem:[%s13 + $0x4] sm:$0xf]
  %v4851 = vld [vmem:[%s13 + $0x8] sm:$0xf]
  %v4852 = vld [vmem:[%s13 + $0xc] sm:$0xf]
  %v4853 = vld [vmem:[%s13 + $0x10] sm:$0xf]
  %v4854 = vld [vmem:[%s13 + $0x14] sm:$0xf]
  %v4855 = vld [vmem:[%s13 + $0x18] sm:$0xf]
  %v4856 = vld [vmem:[%s13 + $0x1c] sm:$0xf]
  %v4857 = vld [vmem:[%s13 + $0x20] sm:$0xf]
  %v4858 = vpack.c.bf16 %v4845, %v4841
  %v4859 = vpack.c.bf16 %v4847, %v4843
  %v4860 = vld [vmem:[%s14] sm:$0xf]
  %v4861 = vld [vmem:[%s14 + $0x4] sm:$0xf]
  %v4862 = vld [vmem:[%s14 + $0x8] sm:$0xf]
  %v4863 = vld [vmem:[%s14 + $0xc] sm:$0xf]
  %v4864 = vld [vmem:[%s14 + $0x10] sm:$0xf]
  %v4865 = vld [vmem:[%s14 + $0x14] sm:$0xf]
  %v4866 = vld [vmem:[%s14 + $0x18] sm:$0xf]
  %v4867 = vld [vmem:[%s14 + $0x1c] sm:$0xf]
  %v4868 = vld [vmem:[%s14 + $0x20] sm:$0xf]
  %v4878 = vunpack.c.l.b16 %v4860
  %v4879 = vunpack.c.l.b16 %v4861
  %v4880 = vunpack.c.l.b16 %v4862
  %v4881 = vunpack.c.l.b16 %v4863
  %v4882 = vunpack.c.l.b16 %v4864
  %v4883 = vunpack.c.l.b16 %v4865
  %v4884 = vunpack.c.l.b16 %v4866
  %v4885 = vunpack.c.l.b16 %v4867
  %v4886 = vunpack.c.l.b16 %v4868
  %v4887 = vpack.c.b16 %v4879, %v4878
  %v4888 = vpack.c.b16 %v4881, %v4880
  %v4889 = vpack.c.b16 %v4883, %v4882
  %v4890 = vpack.c.b16 %v4885, %v4884
  %v4891 = vpack.c.b16 %v4886, %v4886
  %v4893 = vsel %vm148, %v4887, 0
  %v4896 = vsel %vm148, %v4888, 0
  %v4899 = vsel %vm148, %v4889, 0
  %v4902 = vsel %vm148, %v4890, 0
  %v4905 = vsel %vm148, %v4891, 0
  %4907 = vmatprep.subr.bf16.mxu0 %v181
  %4908 = vmatpush1.bf16.msra.mxu0 %v178
  %4909 = vmatprep.subr.bf16.mxu0 0
  %4910 = vmatpush1.bf16.msra.mxu0 0
  %4911 = vmatprep.subr.bf16.mxu0 0
  %4912 = vmatpush1.bf16.msra.mxu0 0
  %4913 = vmatprep.subr.bf16.mxu0 0
  %4914 = vmatpush1.bf16.msra.mxu0 0
  %4915 = vmatprep.subr.bf16.mxu0 0
  %4916 = vmatpush1.bf16.msra.mxu0 0
  %4917 = vmatprep.subr.bf16.mxu0 0
  %4918 = vmatpush1.bf16.msra.mxu0 0
  %4919 = vmatprep.subr.bf16.mxu0 0
  %4920 = vmatpush1.bf16.msra.mxu0 0
  %4921 = vmatprep.subr.bf16.mxu0 0
  %4922 = vmatpush1.bf16.msra.mxu0 0
  %4923 = vmatprep.subr.bf16.mxu0 0
  %4924 = vmatpush1.bf16.msra.mxu0 0
  %4925 = vmatprep.subr.bf16.mxu0 0
  %4926 = vmatpush1.bf16.msra.mxu0 0
  %4927 = vmatprep.subr.bf16.mxu0 0
  %4928 = vmatpush1.bf16.msra.mxu0 0
  %4929 = vmatprep.subr.bf16.mxu0 0
  %4930 = vmatpush1.bf16.msra.mxu0 0
  %4931 = vmatprep.subr.bf16.mxu0 0
  %4932 = vmatpush1.bf16.msra.mxu0 0
  %4933 = vmatprep.subr.bf16.mxu0 0
  %4934 = vmatpush1.bf16.msra.mxu0 0
  %4935 = vmatprep.subr.bf16.mxu0 0
  %4936 = vmatpush1.bf16.msra.mxu0 0
  %4937 = vmatprep.subr.bf16.mxu0 0
  %4938 = vmatpush1.bf16.msra.mxu0 0
  %4939 = vmatprep.mubr.bf16.mxu0 0
  %4940 = vmatmul.mubr.bf16.gmra.mrb[0].mxu0 %v4893
  %v4941 = vpop.f32.mrb[0].mxu0
  %v4942 = vadd.f32 0.0, %v4941
  %v4943 = vpop.f32.mrb[0].mxu0
  %v4944 = vadd.f32 0.0, %v4943
  %v4945 = vpop.f32.mrb[0].mxu0
  %v4946 = vadd.f32 0.0, %v4945
  %v4947 = vpop.f32.mrb[0].mxu0
  %v4948 = vadd.f32 0.0, %v4947
  %4949 = vmatprep.mubr.bf16.mxu0 0
  %4950 = vmatmul.mubr.bf16.gmra.mrb[0].mxu0 %v4896
  %v4951 = vpop.f32.mrb[0].mxu0
  %v4952 = vadd.f32 0.0, %v4951
  %v4953 = vpop.f32.mrb[0].mxu0
  %v4954 = vadd.f32 0.0, %v4953
  %v4955 = vpop.f32.mrb[0].mxu0
  %v4956 = vadd.f32 0.0, %v4955
  %v4957 = vpop.f32.mrb[0].mxu0
  %v4958 = vadd.f32 0.0, %v4957
  %4959 = vmatprep.mubr.bf16.mxu0 0
  %4960 = vmatmul.mubr.bf16.gmra.mrb[0].mxu0 %v4899
  %v4961 = vpop.f32.mrb[0].mxu0
  %v4962 = vadd.f32 0.0, %v4961
  %v4963 = vpop.f32.mrb[0].mxu0
  %v4964 = vadd.f32 0.0, %v4963
  %v4965 = vpop.f32.mrb[0].mxu0
  %v4966 = vadd.f32 0.0, %v4965
  %v4967 = vpop.f32.mrb[0].mxu0
  %v4968 = vadd.f32 0.0, %v4967
  %4969 = vmatprep.mubr.bf16.mxu0 0
  %4970 = vmatmul.mubr.bf16.gmra.mrb[0].mxu0 %v4902
  %v4971 = vpop.f32.mrb[0].mxu0
  %v4972 = vadd.f32 0.0, %v4971
  %v4973 = vpop.f32.mrb[0].mxu0
  %v4974 = vadd.f32 0.0, %v4973
  %v4975 = vpop.f32.mrb[0].mxu0
  %v4976 = vadd.f32 0.0, %v4975
  %v4977 = vpop.f32.mrb[0].mxu0
  %v4978 = vadd.f32 0.0, %v4977
  %4979 = vmatprep.mubr.bf16.mxu0 0
  %4980 = vmatmul.mubr.bf16.gmra.mrb[0].mxu0 %v4905
  %v4981 = vpop.f32.mrb[0].mxu0
  %v4982 = vadd.f32 0.0, %v4981
  %v4983 = vpop.f32.mrb[0].mxu0
  %v4984 = vadd.f32 0.0, %v4983
  %v4985 = vpop.f32.mrb[0].mxu0
  %v4986 = vpop.f32.mrb[0].mxu0
  %4987 = vdwg.mxu0
  %v4997 = vunpack.c.l.b16 %v4849
  %v4998 = vunpack.c.l.b16 %v4850
  %v4999 = vunpack.c.l.b16 %v4851
  %v5000 = vunpack.c.l.b16 %v4852
  %v5001 = vunpack.c.l.b16 %v4853
  %v5002 = vunpack.c.l.b16 %v4854
  %v5003 = vunpack.c.l.b16 %v4855
  %v5004 = vunpack.c.l.b16 %v4856
  %v5005 = vunpack.c.l.b16 %v4857
  %v5006 = vpack.c.b16 %v4998, %v4997
  %v5007 = vpack.c.b16 %v5000, %v4999
  %v5008 = vpack.c.b16 %v5002, %v5001
  %v5009 = vpack.c.b16 %v5004, %v5003
  %v5010 = vpack.c.b16 %v5005, %v5005
  %v5012 = vsel %vm866, %v5006, 0
  %v5015 = vsel %vm866, %v5007, 0
  %v5018 = vsel %vm866, %v5008, 0
  %v5021 = vsel %vm866, %v5009, 0
  %v5024 = vsel %vm866, %v5010, 0
  %5026 = vmatprep.subr.bf16.mxu0 %v4859
  %5027 = vmatpush1.bf16.msra.mxu0 %v4858
  %5028 = vmatprep.subr.bf16.mxu0 0
  %5029 = vmatpush1.bf16.msra.mxu0 0
  %5030 = vmatprep.subr.bf16.mxu0 0
  %5031 = vmatpush1.bf16.msra.mxu0 0
  %5032 = vmatprep.subr.bf16.mxu0 0
  %5033 = vmatpush1.bf16.msra.mxu0 0
  %5034 = vmatprep.subr.bf16.mxu0 0
  %5035 = vmatpush1.bf16.msra.mxu0 0
  %5036 = vmatprep.subr.bf16.mxu0 0
  %5037 = vmatpush1.bf16.msra.mxu0 0
  %5038 = vmatprep.subr.bf16.mxu0 0
  %5039 = vmatpush1.bf16.msra.mxu0 0
  %5040 = vmatprep.subr.bf16.mxu0 0
  %5041 = vmatpush1.bf16.msra.mxu0 0
  %5042 = vmatprep.subr.bf16.mxu0 0
  %5043 = vmatpush1.bf16.msra.mxu0 0
  %5044 = vmatprep.subr.bf16.mxu0 0
  %5045 = vmatpush1.bf16.msra.mxu0 0
  %5046 = vmatprep.subr.bf16.mxu0 0
  %5047 = vmatpush1.bf16.msra.mxu0 0
  %5048 = vmatprep.subr.bf16.mxu0 0
  %5049 = vmatpush1.bf16.msra.mxu0 0
  %5050 = vmatprep.subr.bf16.mxu0 0
  %5051 = vmatpush1.bf16.msra.mxu0 0
  %5052 = vmatprep.subr.bf16.mxu0 0
  %5053 = vmatpush1.bf16.msra.mxu0 0
  %5054 = vmatprep.subr.bf16.mxu0 0
  %5055 = vmatpush1.bf16.msra.mxu0 0
  %5056 = vmatprep.subr.bf16.mxu0 0
  %5057 = vmatpush1.bf16.msra.mxu0 0
  %5058 = vmatprep.mubr.bf16.mxu0 0
  %5059 = vmatmul.mubr.bf16.gmra.mrb[0].mxu0 %v5012
  %v5060 = vpop.f32.mrb[0].mxu0
  %v5061 = vadd.f32 %v4942, %v5060
  %v5062 = vpop.f32.mrb[0].mxu0
  %v5063 = vadd.f32 %v4944, %v5062
  %v5064 = vpop.f32.mrb[0].mxu0
  %v5065 = vadd.f32 %v4946, %v5064
  %v5066 = vpop.f32.mrb[0].mxu0
  %v5067 = vadd.f32 %v4948, %v5066
  %5068 = vmatprep.mubr.bf16.mxu0 0
  %5069 = vmatmul.mubr.bf16.gmra.mrb[0].mxu0 %v5015
  %v5070 = vpop.f32.mrb[0].mxu0
  %v5071 = vadd.f32 %v4952, %v5070
  %v5072 = vpop.f32.mrb[0].mxu0
  %v5073 = vadd.f32 %v4954, %v5072
  %v5074 = vpop.f32.mrb[0].mxu0
  %v5075 = vadd.f32 %v4956, %v5074
  %v5076 = vpop.f32.mrb[0].mxu0
  %v5077 = vadd.f32 %v4958, %v5076
  %5078 = vmatprep.mubr.bf16.mxu0 0
  %5079 = vmatmul.mubr.bf16.gmra.mrb[0].mxu0 %v5018
  %v5080 = vpop.f32.mrb[0].mxu0
  %v5081 = vadd.f32 %v4962, %v5080
  %v5082 = vpop.f32.mrb[0].mxu0
  %v5083 = vadd.f32 %v4964, %v5082
  %v5084 = vpop.f32.mrb[0].mxu0
  %v5085 = vadd.f32 %v4966, %v5084
  %v5086 = vpop.f32.mrb[0].mxu0
  %v5087 = vadd.f32 %v4968, %v5086
  %5088 = vmatprep.mubr.bf16.mxu0 0
  %5089 = vmatmul.mubr.bf16.gmra.mrb[0].mxu0 %v5021
  %v5090 = vpop.f32.mrb[0].mxu0
  %v5091 = vadd.f32 %v4972, %v5090
  %v5092 = vpop.f32.mrb[0].mxu0
  %v5093 = vadd.f32 %v4974, %v5092
  %v5094 = vpop.f32.mrb[0].mxu0
  %v5095 = vadd.f32 %v4976, %v5094
  %v5096 = vpop.f32.mrb[0].mxu0
  %v5097 = vadd.f32 %v4978, %v5096
  %5098 = vmatprep.mubr.bf16.mxu0 0
  %5099 = vmatmul.mubr.bf16.gmra.mrb[0].mxu0 %v5024
  %v5100 = vpop.f32.mrb[0].mxu0
  %v5101 = vadd.f32 %v4982, %v5100
  %v5102 = vpop.f32.mrb[0].mxu0
  %v5103 = vadd.f32 %v4984, %v5102
  %v5104 = vpop.f32.mrb[0].mxu0
  %v5105 = vpop.f32.mrb[0].mxu0
  %5106 = vdwg.mxu0
  %5107 = vrot.lane.b32.xlu0 %v5061, 17
  %v5108 = vpop.permute.xlu0 %5107
  %5109 = vrot.lane.b32.xlu0 %v5063, 17
  %v5110 = vpop.permute.xlu0 %5109
  %v5111 = vsel %vm316, %v5108, %v5110
  %v5112 = vsel %vm316, %v5110, %v5108
  %v5113 = vmul.f32 %v5112, %v326
  %v5114 = vmul.f32 %v5111, %v330
  %v5115 = vadd.f32 %v5081, %v5113
  %v5116 = vadd.f32 %v5083, %v5114
  %5117 = vrot.lane.b32.xlu0 %v5065, 16
  %v5118 = vpop.permute.xlu0 %5117
  %5119 = vrot.lane.b32.xlu0 %v5067, 16
  %v5120 = vpop.permute.xlu0 %5119
  %v5121 = vsel %vm349, %v5118, %v5120
  %v5122 = vsel %vm349, %v5120, %v5118
  %v5123 = vmul.f32 %v5122, %v360
  %v5124 = vmul.f32 %v5121, %v364
  %v5125 = vadd.f32 %v5115, %v5123
  %v5126 = vadd.f32 %v5116, %v5124
  %5127 = vrot.lane.b32.xlu0 %v5071, 15
  %v5128 = vpop.permute.xlu0 %5127
  %5129 = vrot.lane.b32.xlu0 %v5073, 15
  %v5130 = vpop.permute.xlu0 %5129
  %v5131 = vsel %vm383, %v5128, %v5130
  %v5132 = vsel %vm383, %v5130, %v5128
  %v5133 = vmul.f32 %v5132, %v394
  %v5134 = vmul.f32 %v5131, %v398
  %v5135 = vadd.f32 %v5125, %v5133
  %v5136 = vadd.f32 %v5126, %v5134
  %5137 = vrot.lane.b32.xlu0 %v5075, 1
  %v5138 = vpop.permute.xlu0 %5137
  %5139 = vrot.lane.b32.xlu0 %v5077, 1
  %v5140 = vpop.permute.xlu0 %5139
  %v5141 = vsel %vm417, %v5138, %v5140
  %v5142 = vsel %vm417, %v5140, %v5138
  %v5143 = vmul.f32 %v5142, %v428
  %v5144 = vmul.f32 %v5141, %v432
  %v5145 = vadd.f32 %v5135, %v5143
  %v5146 = vadd.f32 %v5136, %v5144
  %5147 = vrot.lane.b32.xlu0 %v5085, 127
  %v5148 = vpop.permute.xlu0 %5147
  %5149 = vrot.lane.b32.xlu0 %v5087, 127
  %v5150 = vpop.permute.xlu0 %5149
  %v5151 = vsel %vm451, %v5148, %v5150
  %v5152 = vsel %vm451, %v5150, %v5148
  %v5153 = vmul.f32 %v5151, %v462
  %v5154 = vmul.f32 %v5152, %v466
  %v5155 = vadd.f32 %v5145, %v5153
  %v5156 = vadd.f32 %v5146, %v5154
  %5157 = vrot.lane.b32.xlu0 %v5091, 113
  %v5158 = vpop.permute.xlu0 %5157
  %5159 = vrot.lane.b32.xlu0 %v5093, 113
  %v5160 = vpop.permute.xlu0 %5159
  %v5161 = vsel %vm485, %v5158, %v5160
  %v5162 = vsel %vm485, %v5160, %v5158
  %v5163 = vmul.f32 %v5161, %v496
  %v5164 = vmul.f32 %v5162, %v500
  %v5165 = vadd.f32 %v5155, %v5163
  %v5166 = vadd.f32 %v5156, %v5164
  %5167 = vrot.lane.b32.xlu0 %v5095, 112
  %v5168 = vpop.permute.xlu0 %5167
  %5169 = vrot.lane.b32.xlu0 %v5097, 112
  %v5170 = vpop.permute.xlu0 %5169
  %v5171 = vsel %vm519, %v5168, %v5170
  %v5172 = vsel %vm519, %v5170, %v5168
  %v5173 = vmul.f32 %v5171, %v530
  %v5174 = vmul.f32 %v5172, %v534
  %v5175 = vadd.f32 %v5165, %v5173
  %v5176 = vadd.f32 %v5166, %v5174
  %5177 = vrot.lane.b32.xlu0 %v5101, 111
  %v5178 = vpop.permute.xlu0 %5177
  %5179 = vrot.lane.b32.xlu0 %v5103, 111
  %v5180 = vpop.permute.xlu0 %5179
  %v5181 = vsel %vm553, %v5178, %v5180
  %v5182 = vsel %vm553, %v5180, %v5178
  %v5183 = vmul.f32 %v5181, %v564
  %v5184 = vmul.f32 %v5182, %v568
  %v5185 = vadd.f32 %v5175, %v5183
  %v5186 = vadd.f32 %v5176, %v5184
  %v5187 = vld [vmem:[%s15] sm:$0xff]
  %5189 = vset.pattern.permute.xlu0 0
  %5190 = vperm.xlu0 %5189, %v5187
  %v5191 = vpop.permute.xlu0 %5190
  %v5193 = vadd.f32 %v5185, %v5191
  %v5194 = vadd.f32 %v5186, %v5191
  %v5195 = vmax.f32 %v5193, 0.0
  %v5196 = vmax.f32 %v5194, 0.0
  %v5197 = vld [vmem:[%s16] sm:$0xf]
  %v5198 = vld [vmem:[%s16 + $0x4] sm:$0xf]
  %v5199 = vld [vmem:[%s16 + $0x8] sm:$0xf]
  %v5200 = vld [vmem:[%s16 + $0xc] sm:$0xf]
  %v5201 = vld [vmem:[%s16 + $0x10] sm:$0xf]
  %v5202 = vld [vmem:[%s16 + $0x14] sm:$0xf]
  %v5203 = vld [vmem:[%s16 + $0x18] sm:$0xf]
  %v5204 = vld [vmem:[%s16 + $0x1c] sm:$0xf]
  %v5205 = vld [vmem:[%s16 + $0x20] sm:$0xf]
  %v5206 = vpack.c.bf16 %v5195, %v5195
  %v5207 = vpack.c.bf16 %v5196, %v5196
  %v5217 = vunpack.c.l.b16 %v5197
  %v5218 = vunpack.c.l.b16 %v5198
  %v5219 = vunpack.c.l.b16 %v5199
  %v5220 = vunpack.c.l.b16 %v5200
  %v5221 = vunpack.c.l.b16 %v5201
  %v5222 = vunpack.c.l.b16 %v5202
  %v5223 = vunpack.c.l.b16 %v5203
  %v5224 = vunpack.c.l.b16 %v5204
  %v5225 = vunpack.c.l.b16 %v5205
  %v5226 = vpack.c.b16 %v5218, %v5217
  %v5227 = vpack.c.b16 %v5220, %v5219
  %v5228 = vpack.c.b16 %v5222, %v5221
  %v5229 = vpack.c.b16 %v5224, %v5223
  %v5230 = vpack.c.b16 %v5225, %v5225
  %v5232 = vsel %vm148, %v5226, 0
  %v5235 = vsel %vm148, %v5227, 0
  %v5238 = vsel %vm148, %v5228, 0
  %v5241 = vsel %vm148, %v5229, 0
  %v5244 = vsel %vm148, %v5230, 0
  %v5247 = vsel %vm176, %v5206, 0
  %v5250 = vsel %vm176, %v5207, 0
  %5252 = vmatprep.subr.bf16.mxu0 %v5250
  %5253 = vmatpush1.bf16.msra.mxu0 %v5247
  %5254 = vmatprep.subr.bf16.mxu0 0
  %5255 = vmatpush1.bf16.msra.mxu0 0
  %5256 = vmatprep.subr.bf16.mxu0 0
  %5257 = vmatpush1.bf16.msra.mxu0 0
  %5258 = vmatprep.subr.bf16.mxu0 0
  %5259 = vmatpush1.bf16.msra.mxu0 0
  %5260 = vmatprep.subr.bf16.mxu0 0
  %5261 = vmatpush1.bf16.msra.mxu0 0
  %5262 = vmatprep.subr.bf16.mxu0 0
  %5263 = vmatpush1.bf16.msra.mxu0 0
  %5264 = vmatprep.subr.bf16.mxu0 0
  %5265 = vmatpush1.bf16.msra.mxu0 0
  %5266 = vmatprep.subr.bf16.mxu0 0
  %5267 = vmatpush1.bf16.msra.mxu0 0
  %5268 = vmatprep.subr.bf16.mxu0 0
  %5269 = vmatpush1.bf16.msra.mxu0 0
  %5270 = vmatprep.subr.bf16.mxu0 0
  %5271 = vmatpush1.bf16.msra.mxu0 0
  %5272 = vmatprep.subr.bf16.mxu0 0
  %5273 = vmatpush1.bf16.msra.mxu0 0
  %5274 = vmatprep.subr.bf16.mxu0 0
  %5275 = vmatpush1.bf16.msra.mxu0 0
  %5276 = vmatprep.subr.bf16.mxu0 0
  %5277 = vmatpush1.bf16.msra.mxu0 0
  %5278 = vmatprep.subr.bf16.mxu0 0
  %5279 = vmatpush1.bf16.msra.mxu0 0
  %5280 = vmatprep.subr.bf16.mxu0 0
  %5281 = vmatpush1.bf16.msra.mxu0 0
  %5282 = vmatprep.subr.bf16.mxu0 0
  %5283 = vmatpush1.bf16.msra.mxu0 0
  %5284 = vmatprep.mubr.bf16.mxu0 0
  %5285 = vmatmul.mubr.bf16.gmra.mrb[0].mxu0 %v5232
  %v5286 = vpop.f32.mrb[0].mxu0
  %v5287 = vadd.f32 0.0, %v5286
  %v5288 = vpop.f32.mrb[0].mxu0
  %v5289 = vadd.f32 0.0, %v5288
  %v5290 = vpop.f32.mrb[0].mxu0
  %v5291 = vadd.f32 0.0, %v5290
  %v5292 = vpop.f32.mrb[0].mxu0
  %v5293 = vadd.f32 0.0, %v5292
  %5294 = vmatprep.mubr.bf16.mxu0 0
  %5295 = vmatmul.mubr.bf16.gmra.mrb[0].mxu0 %v5235
  %v5296 = vpop.f32.mrb[0].mxu0
  %v5297 = vadd.f32 0.0, %v5296
  %v5298 = vpop.f32.mrb[0].mxu0
  %v5299 = vadd.f32 0.0, %v5298
  %v5300 = vpop.f32.mrb[0].mxu0
  %v5301 = vadd.f32 0.0, %v5300
  %v5302 = vpop.f32.mrb[0].mxu0
  %v5303 = vadd.f32 0.0, %v5302
  %5304 = vmatprep.mubr.bf16.mxu0 0
  %5305 = vmatmul.mubr.bf16.gmra.mrb[0].mxu0 %v5238
  %v5306 = vpop.f32.mrb[0].mxu0
  %v5307 = vadd.f32 0.0, %v5306
  %v5308 = vpop.f32.mrb[0].mxu0
  %v5309 = vadd.f32 0.0, %v5308
  %v5310 = vpop.f32.mrb[0].mxu0
  %v5311 = vadd.f32 0.0, %v5310
  %v5312 = vpop.f32.mrb[0].mxu0
  %v5313 = vadd.f32 0.0, %v5312
  %5314 = vmatprep.mubr.bf16.mxu0 0
  %5315 = vmatmul.mubr.bf16.gmra.mrb[0].mxu0 %v5241
  %v5316 = vpop.f32.mrb[0].mxu0
  %v5317 = vadd.f32 0.0, %v5316
  %v5318 = vpop.f32.mrb[0].mxu0
  %v5319 = vadd.f32 0.0, %v5318
  %v5320 = vpop.f32.mrb[0].mxu0
  %v5321 = vadd.f32 0.0, %v5320
  %v5322 = vpop.f32.mrb[0].mxu0
  %v5323 = vadd.f32 0.0, %v5322
  %5324 = vmatprep.mubr.bf16.mxu0 0
  %5325 = vmatmul.mubr.bf16.gmra.mrb[0].mxu0 %v5244
  %v5326 = vpop.f32.mrb[0].mxu0
  %v5327 = vadd.f32 0.0, %v5326
  %v5328 = vpop.f32.mrb[0].mxu0
  %v5329 = vadd.f32 0.0, %v5328
  %v5330 = vpop.f32.mrb[0].mxu0
  %v5331 = vpop.f32.mrb[0].mxu0
  %5332 = vdwg.mxu0
  %5333 = vrot.lane.b32.xlu0 %v5287, 17
  %v5334 = vpop.permute.xlu0 %5333
  %5335 = vrot.lane.b32.xlu0 %v5289, 17
  %v5336 = vpop.permute.xlu0 %5335
  %v5337 = vsel %vm316, %v5334, %v5336
  %v5338 = vsel %vm316, %v5336, %v5334
  %v5339 = vmul.f32 %v5338, %v326
  %v5340 = vmul.f32 %v5337, %v330
  %v5341 = vadd.f32 %v5307, %v5339
  %v5342 = vadd.f32 %v5309, %v5340
  %5343 = vrot.lane.b32.xlu0 %v5291, 16
  %v5344 = vpop.permute.xlu0 %5343
  %5345 = vrot.lane.b32.xlu0 %v5293, 16
  %v5346 = vpop.permute.xlu0 %5345
  %v5347 = vsel %vm349, %v5344, %v5346
  %v5348 = vsel %vm349, %v5346, %v5344
  %v5349 = vmul.f32 %v5348, %v360
  %v5350 = vmul.f32 %v5347, %v364
  %v5351 = vadd.f32 %v5341, %v5349
  %v5352 = vadd.f32 %v5342, %v5350
  %5353 = vrot.lane.b32.xlu0 %v5297, 15
  %v5354 = vpop.permute.xlu0 %5353
  %5355 = vrot.lane.b32.xlu0 %v5299, 15
  %v5356 = vpop.permute.xlu0 %5355
  %v5357 = vsel %vm383, %v5354, %v5356
  %v5358 = vsel %vm383, %v5356, %v5354
  %v5359 = vmul.f32 %v5358, %v394
  %v5360 = vmul.f32 %v5357, %v398
  %v5361 = vadd.f32 %v5351, %v5359
  %v5362 = vadd.f32 %v5352, %v5360
  %5363 = vrot.lane.b32.xlu0 %v5301, 1
  %v5364 = vpop.permute.xlu0 %5363
  %5365 = vrot.lane.b32.xlu0 %v5303, 1
  %v5366 = vpop.permute.xlu0 %5365
  %v5367 = vsel %vm417, %v5364, %v5366
  %v5368 = vsel %vm417, %v5366, %v5364
  %v5369 = vmul.f32 %v5368, %v428
  %v5370 = vmul.f32 %v5367, %v432
  %v5371 = vadd.f32 %v5361, %v5369
  %v5372 = vadd.f32 %v5362, %v5370
  %5373 = vrot.lane.b32.xlu0 %v5311, 127
  %v5374 = vpop.permute.xlu0 %5373
  %5375 = vrot.lane.b32.xlu0 %v5313, 127
  %v5376 = vpop.permute.xlu0 %5375
  %v5377 = vsel %vm451, %v5374, %v5376
  %v5378 = vsel %vm451, %v5376, %v5374
  %v5379 = vmul.f32 %v5377, %v462
  %v5380 = vmul.f32 %v5378, %v466
  %v5381 = vadd.f32 %v5371, %v5379
  %v5382 = vadd.f32 %v5372, %v5380
  %5383 = vrot.lane.b32.xlu0 %v5317, 113
  %v5384 = vpop.permute.xlu0 %5383
  %5385 = vrot.lane.b32.xlu0 %v5319, 113
  %v5386 = vpop.permute.xlu0 %5385
  %v5387 = vsel %vm485, %v5384, %v5386
  %v5388 = vsel %vm485, %v5386, %v5384
  %v5389 = vmul.f32 %v5387, %v496
  %v5390 = vmul.f32 %v5388, %v500
  %v5391 = vadd.f32 %v5381, %v5389
  %v5392 = vadd.f32 %v5382, %v5390
  %5393 = vrot.lane.b32.xlu0 %v5321, 112
  %v5394 = vpop.permute.xlu0 %5393
  %5395 = vrot.lane.b32.xlu0 %v5323, 112
  %v5396 = vpop.permute.xlu0 %5395
  %v5397 = vsel %vm519, %v5394, %v5396
  %v5398 = vsel %vm519, %v5396, %v5394
  %v5399 = vmul.f32 %v5397, %v530
  %v5400 = vmul.f32 %v5398, %v534
  %v5401 = vadd.f32 %v5391, %v5399
  %v5402 = vadd.f32 %v5392, %v5400
  %5403 = vrot.lane.b32.xlu0 %v5327, 111
  %v5404 = vpop.permute.xlu0 %5403
  %5405 = vrot.lane.b32.xlu0 %v5329, 111
  %v5406 = vpop.permute.xlu0 %5405
  %v5407 = vsel %vm553, %v5404, %v5406
  %v5408 = vsel %vm553, %v5406, %v5404
  %v5409 = vmul.f32 %v5407, %v564
  %v5410 = vmul.f32 %v5408, %v568
  %v5411 = vadd.f32 %v5401, %v5409
  %v5412 = vadd.f32 %v5402, %v5410
  %v5413 = vld [vmem:[%s17] sm:$0xff]
  %5415 = vset.pattern.permute.xlu0 0
  %5416 = vperm.xlu0 %5415, %v5413
  %v5417 = vpop.permute.xlu0 %5416
  %v5419 = vadd.f32 %v5411, %v5417
  %v5420 = vadd.f32 %v5412, %v5417
  %v5421 = vmax.f32 %v5419, 0.0
  %v5422 = vmax.f32 %v5420, 0.0
  %v5423 = vxor.u32 %v5421, 2147483648
  %v5424 = vxor.u32 %v5422, 2147483648
  %v5425 = vmul.f32 %v5423, 1.442695
  %v5426 = vpow.pop %v5425
  %v5427 = vmul.f32 %v5424, 1.442695
  %v5428 = vpow.pop %v5427
  %v5429 = vadd.f32 %v5426, 1.0
  %v5430 = vadd.f32 %v5428, 1.0
  %v5431 = vrcp.pop %v5429
  %v5432 = vmul.f32 1.0, %v5431
  %v5433 = vrcp.pop %v5430
  %v5434 = vmul.f32 1.0, %v5433
  %5435 = vst [vmem:[%s25] sm:$0x3f] %v5432
  %5436 = vst [vmem:[%s25 + $0x8] sm:$0x3f] %v5434
  // Predicated region
  $region102: #{hyper_model_forward.1} parent=0 // pred_check
    _
  $region103: #{hyper_model_forward.1} parent=0 // pred_check_branch
    %5438 = sbr.rel (0) target = $region105
  $region104: #{hyper_model_forward.1} parent=0 // pred_region
    _
  $region105: #{hyper_model_forward.1} parent=0 // pred_fallthru
    _
  // Predicated region
  $region106: #{hyper_model_forward.1} parent=0 // pred_check
    _
  $region107: #{hyper_model_forward.1} parent=0 // pred_check_branch
    %5440 = sbr.rel (0) target = $region109
  $region108: #{hyper_model_forward.1} parent=0 // pred_region
    _
  $region109: #{hyper_model_forward.1} parent=0 // pred_fallthru
    _

</llo_original>
